<compile_context>
chip_gen: v6e
topology: v6e:2x2x1
jax: 0.10.0
libtpu: 0.0.40
codegen_flags: <defaults>
</compile_context>

<pallas_src>
import jax
import jax.numpy as jnp
from jax.experimental import pallas as pl
from jax.experimental.pallas import tpu as pltpu

HIDDEN = 32
EPS = 1e-5          # nn.BatchNorm2d default eps
NEG_SLOPE = 0.01    # nn.LeakyReLU default negative_slope


# ---------------------------------------------------------------------------
# Kernels (one batch sample per grid step)
# ---------------------------------------------------------------------------
def _conv_lrelu_stats_kernel(x_ref, w_ref, b_ref, h_ref, s_ref):
    """Conv3x3(valid) + bias -> LeakyReLU -> (bf16 activation, BN partial stats).

    x_ref: (H, W, Cin)      bf16   input activation / image (one sample)
    w_ref: (3, 3*Cin, Cout) bf16   weights, (dy) x (dx, cin) row order
    b_ref: (1, Cout)        f32    bias (preceding BN already folded in)
    h_ref: (Ho, Wo, Cout)   bf16   post-LeakyReLU (pre-BN) activation
    s_ref: (2, Cout)        f32    per-sample [sum, sum-of-squares] over Ho*Wo
    """
    H, W, Cin = x_ref.shape
    Ho, Wo = H - 2, W - 2
    Cout = h_ref.shape[-1]
    M = Ho * Wo

    # One f32 copy of the input; the shifted slices below stay f32 (bf16
    # sublane packing would turn every odd W-offset slice into a packed
    # relayout), and are cast per-slice to bf16 for the MXU.
    x = x_ref[...].astype(jnp.float32)

    # 3 per-dy im2col matmuls (K = 3*Cin) with f32 accumulation: only one dy
    # patch slab is live at a time (1/3 of the 9*Cin slab peak VMEM).
    acc = None
    for dy in range(3):
        patches = jnp.concatenate(
            [x[dy:dy + Ho, dx:dx + Wo, :].astype(jnp.bfloat16) for dx in range(3)],
            axis=-1).reshape(M, 3 * Cin)
        part = jnp.dot(patches, w_ref[dy], preferred_element_type=jnp.float32)
        acc = part if acc is None else acc + part

    y = acc + b_ref[...]                              # (M, Cout) f32
    h = jnp.where(y > 0, y, NEG_SLOPE * y)            # LeakyReLU, f32 VPU math

    # BatchNorm partial statistics (single pass; finalized in the wrapper and
    # folded into the next conv's weights).
    s_ref[...] = jnp.concatenate(
        [jnp.sum(h, axis=0, keepdims=True),
         jnp.sum(h * h, axis=0, keepdims=True)], axis=0)

    h_ref[...] = h.reshape(Ho, Wo, Cout).astype(jnp.bfloat16)


def _conv1_mean_kernel(h_ref, w_ref, b_ref, o_ref):
    """Fused Conv3x3(32->1, valid) + mean over the output map (one sample).

    mean(conv(h)) = (1/P) * sum_{dy,dx,c} w[dy,dx,c] * S[dy,dx,c] + b, with
    S[dy,dx,c] = sum over the (H4, W4) window of h[y+dy, x+dx, c].  S is built
    with separable window sums (row windows first, then column windows).

    h_ref: (H3, W3, C) bf16   w_ref: (1, 9*C) f32 ((dy,dx,c))   b_ref: (1,1) f32
    o_ref: (1, 128)    f32    lane-dense per-sample score
    """
    H3, W3, C = h_ref.shape
    H4, W4 = H3 - 2, W3 - 2
    h = h_ref[...].astype(jnp.float32)

    # Row-window sums R[dy] = sum_{y=dy}^{dy+H4-1} h[y]  (3 windows from 1 full sum).
    A = jnp.sum(h, axis=0)                                     # (W3, C)
    rows = (A - h[H3 - 2] - h[H3 - 1],                         # dy = 0
            A - h[0] - h[H3 - 1],                              # dy = 1
            A - h[0] - h[1])                                   # dy = 2

    taps = []
    for R in rows:
        B = jnp.sum(R, axis=0, keepdims=True)                  # (1, C)
        taps.append(B - R[W3 - 2:W3 - 1] - R[W3 - 1:W3])       # dx = 0
        taps.append(B - R[0:1] - R[W3 - 1:W3])                 # dx = 1
        taps.append(B - R[0:1] - R[1:2])                       # dx = 2
    s_all = jnp.concatenate(taps, axis=-1)                     # (1, 9*C)

    val = jnp.sum(s_all * w_ref[...], axis=-1, keepdims=True)  # (1, 1)
    val = val * (1.0 / (H4 * W4)) + b_ref[...]
    o_ref[...] = jnp.broadcast_to(val, o_ref.shape)


# ---------------------------------------------------------------------------
# pallas_call wrappers
# ---------------------------------------------------------------------------
def _vmem_limit(per_step_bytes):
    """Footprint-derived scoped-VMEM cap with headroom, kept under v7x's 64 MiB."""
    return int(min(max(per_step_bytes + (8 << 20), 16 << 20), 40 << 20))


def _conv_block(x, w3d, b_row):
    """Conv3x3 + LeakyReLU for all samples -> (bf16 activation, per-sample BN stats)."""
    N, H, W, Cin = x.shape
    Cout = w3d.shape[-1]
    Ho, Wo = H - 2, W - 2

    blk_io = 2 * (H * W * Cin * 2 + Ho * Wo * Cout * 2)          # double-buffered blocks
    inter = H * W * Cin * 4 + Ho * Wo * (3 * Cin * 6 + Cout * 12)  # in-kernel temporaries
    wgt = 9 * Cin * Cout * 2 + Cout * 4

    return pl.pallas_call(
        _conv_lrelu_stats_kernel,
        out_shape=(jax.ShapeDtypeStruct((N, Ho, Wo, Cout), jnp.bfloat16),
                   jax.ShapeDtypeStruct((N, 2, Cout), jnp.float32)),
        grid=(N,),
        in_specs=[pl.BlockSpec((None, H, W, Cin), lambda n: (n, 0, 0, 0)),
                  pl.BlockSpec((3, 3 * Cin, Cout), lambda n: (0, 0, 0)),
                  pl.BlockSpec((1, Cout), lambda n: (0, 0))],
        out_specs=(pl.BlockSpec((None, Ho, Wo, Cout), lambda n: (n, 0, 0, 0)),
                   pl.BlockSpec((None, 2, Cout), lambda n: (n, 0, 0))),
        compiler_params=pltpu.CompilerParams(
            dimension_semantics=("parallel",),
            vmem_limit_bytes=_vmem_limit(blk_io + inter + wgt)),
    )(x, w3d, b_row)


def _head(h3, w4_row, b4_11):
    """Fused final conv (32->1) + per-sample mean; returns (N,) f32."""
    N, H3, W3, C = h3.shape
    blk_io = 2 * (H3 * W3 * C * 2 + 128 * 4)
    inter = 3 * H3 * W3 * C * 4

    out = pl.pallas_call(
        _conv1_mean_kernel,
        out_shape=jax.ShapeDtypeStruct((N, 1, 128), jnp.float32),
        grid=(N,),
        in_specs=[pl.BlockSpec((None, H3, W3, C), lambda n: (n, 0, 0, 0)),
                  pl.BlockSpec((1, 9 * C), lambda n: (0, 0)),
                  pl.BlockSpec((1, 1), lambda n: (0, 0))],
        out_specs=pl.BlockSpec((None, 1, 128), lambda n: (n, 0, 0)),
        compiler_params=pltpu.CompilerParams(
            dimension_semantics=("parallel",),
            vmem_limit_bytes=_vmem_limit(blk_io + inter)),
    )(h3, w4_row, b4_11)
    return out[:, 0, 0]


# ---------------------------------------------------------------------------
# BatchNorm finalize / fold-into-next-conv glue (tiny XLA ops between kernels)
# ---------------------------------------------------------------------------
def _bn_affine(stats, gamma, beta, count):
    """Per-channel BN scale/shift from per-sample [sum, sumsq] partial stats."""
    s = jnp.sum(stats, axis=0)                       # (2, C)
    mean = s[0] / count
    var = s[1] / count - mean * mean                 # biased variance (training-mode BN)
    scale = gamma.astype(jnp.float32) * jax.lax.rsqrt(var + EPS)
    shift = beta.astype(jnp.float32) - mean * scale
    return scale, shift


def _fold_bn(w, b, scale, shift):
    """conv(h*scale + shift) == conv'(h) with w' = w*scale[cin],
    b' = b + sum_{dy,dx,cin} w[dy,dx,cin,:]*shift[cin]."""
    w = w.astype(jnp.float32)
    wf = w * scale.reshape(1, 1, -1, 1)
    bf = b.astype(jnp.float32) + jnp.sum(w * shift.reshape(1, 1, -1, 1), axis=(0, 1, 2))
    return wf, bf


def _prep_w(w):
    """(3,3,Cin,Cout) f32 -> (3, 3*Cin, Cout) bf16, (dy) x (dx, cin) row order."""
    kh, kw, cin, cout = w.shape
    return w.reshape(kh, kw * cin, cout).astype(jnp.bfloat16)


def _row(b):
    return b.reshape(1, -1).astype(jnp.float32)


@jax.jit
def basic_critic_forward(x_nchw, params):
    """x_nchw: (N, 3, H, W). params: 4 tuples of conv/bn parameters. Returns (N,)."""
    (w1, b1, g1, be1), (w2, b2, g2, be2), (w3, b3, g3, be3), (w4, b4) = params

    # NCHW -> NHWC, fused with the f32 -> bf16 cast (halves the first HBM DMA).
    x = jnp.transpose(x_nchw, (0, 2, 3, 1)).astype(jnp.bfloat16)
    N = x.shape[0]

    # Block 1: conv1 + LeakyReLU (+ BN1 stats). BN1 is folded into conv2.
    h1, s1 = _conv_block(x, _prep_w(w1.astype(jnp.float32)), _row(b1))
    sc1, sh1 = _bn_affine(s1, g1, be1, N * h1.shape[1] * h1.shape[2])
    w2f, b2f = _fold_bn(w2, b2, sc1, sh1)

    h2, s2 = _conv_block(h1, _prep_w(w2f), _row(b2f))
    sc2, sh2 = _bn_affine(s2, g2, be2, N * h2.shape[1] * h2.shape[2])
    w3f, b3f = _fold_bn(w3, b3, sc2, sh2)

    h3, s3 = _conv_block(h2, _prep_w(w3f), _row(b3f))
    sc3, sh3 = _bn_affine(s3, g3, be3, N * h3.shape[1] * h3.shape[2])
    w4f, b4f = _fold_bn(w4, b4, sc3, sh3)

    return _head(h3, w4f.reshape(1, 9 * HIDDEN).astype(jnp.float32),
                 b4f.reshape(1, 1).astype(jnp.float32))


# ---------------------------------------------------------------------------
# Pure-JAX f32 reference (for correctness check only)
# ---------------------------------------------------------------------------
def ref_forward(x_nchw, params):
    x = jnp.transpose(x_nchw, (0, 2, 3, 1)).astype(jnp.float32)

    def conv(x, w, b):
        y = jax.lax.conv_general_dilated(
            x, w, window_strides=(1, 1), padding="VALID",
            dimension_numbers=("NHWC", "HWIO", "NHWC"))
        return y + b.reshape(1, 1, 1, -1)

    def bn(x, g, be):
        mean = jnp.mean(x, axis=(0, 1, 2), keepdims=True)
        var = jnp.mean((x - mean) ** 2, axis=(0, 1, 2), keepdims=True)
        return (x - mean) * jax.lax.rsqrt(var + EPS) * g.reshape(1, 1, 1, -1) \
               + be.reshape(1, 1, 1, -1)

    lrelu = lambda v: jnp.where(v > 0, v, NEG_SLOPE * v)

    (w1, b1, g1, be1), (w2, b2, g2, be2), (w3, b3, g3, be3), (w4, b4) = params
    h = bn(lrelu(conv(x, w1, b1)), g1, be1)
    h = bn(lrelu(conv(h, w2, b2)), g2, be2)
    h = bn(lrelu(conv(h, w3, b3)), g3, be3)
    y = conv(h, w4, b4)
    return jnp.mean(y.reshape(y.shape[0], -1), axis=1)


# ---------------------------------------------------------------------------
def make_params(key):
    """Deterministic synthetic parameters matching BasicCritic shapes (HWIO)."""
    ks = jax.random.split(key, 16)
    def conv_p(kw, kb, cin, cout):
        w = 0.1 * jax.random.normal(kw, (3, 3, cin, cout), jnp.float32)
        b = 0.1 * jax.random.normal(kb, (cout,), jnp.float32)
        return w, b
    def bn_p(kg, kb, c):
        g = 1.0 + 0.1 * jax.random.normal(kg, (c,), jnp.float32)
        be = 0.1 * jax.random.normal(kb, (c,), jnp.float32)
        return g, be

    w1, b1 = conv_p(ks[0], ks[1], 3, HIDDEN); g1, be1 = bn_p(ks[2], ks[3], HIDDEN)
    w2, b2 = conv_p(ks[4], ks[5], HIDDEN, HIDDEN); g2, be2 = bn_p(ks[6], ks[7], HIDDEN)
    w3, b3 = conv_p(ks[8], ks[9], HIDDEN, HIDDEN); g3, be3 = bn_p(ks[10], ks[11], HIDDEN)
    w4, b4 = conv_p(ks[12], ks[13], HIDDEN, 1)
    return ((w1, b1, g1, be1), (w2, b2, g2, be2), (w3, b3, g3, be3), (w4, b4))


if __name__ == "__main__":
    key = jax.random.PRNGKey(0)
    k_x, k_p = jax.random.split(key)

    N, C, H, W = 2, 3, 16, 16
    x = jax.random.normal(k_x, (N, C, H, W), jnp.float32)
    params = make_params(k_p)

    out = jax.block_until_ready(basic_critic_forward(x, params))
    ref = jax.block_until_ready(ref_forward(x, params))

    assert out.shape == (N,), out.shape
    assert bool(jnp.all(jnp.isfinite(out)))
    # bf16 MXU operands + bf16 inter-layer activation storage (f32 accumulation
    # and f32 element-wise/BN math) -> compare against the pure-f32 reference
    # with a bf16-level tolerance.  This looseness is intentional.
    assert bool(jnp.allclose(out, ref, rtol=2e-2, atol=2e-2)), (out, ref)

    print("KERNEL_OK")
</pallas_src>

<mosaic_0001>
module attributes {stable_mosaic.version = 11 : i64} {
  func.func @_conv_lrelu_stats_kernel(%arg0: i32, %arg1: memref<1x14x14x32xbf16, #tpu.memory_space<vmem>>, %arg2: memref<3x96x32xbf16, #tpu.memory_space<vmem>>, %arg3: memref<1x32xf32, #tpu.memory_space<vmem>>, %arg4: memref<1x12x12x32xbf16, #tpu.memory_space<vmem>>, %arg5: memref<1x2x32xf32, #tpu.memory_space<vmem>>) attributes {dimension_semantics = [#tpu.dimension_semantics<parallel>], iteration_bounds = array<i64: 2>, scalar_prefetch = 0 : i64, scratch_operands = 0 : i64, tpu.core_type = #tpu.core_type<tc>, window_params = [{transform_indices = @transform_0, window_bounds = array<i64: 1, 14, 14, 32>}, {pipeline_mode = #tpu.pipeline_mode<synchronous>, transform_indices = @transform_1, window_bounds = array<i64: 3, 96, 32>}, {pipeline_mode = #tpu.pipeline_mode<synchronous>, transform_indices = @transform_2, window_bounds = array<i64: 1, 32>}, {transform_indices = @transform_3, window_bounds = array<i64: 1, 12, 12, 32>}, {transform_indices = @transform_4, window_bounds = array<i64: 1, 2, 32>}]} {
    %c0 = arith.constant 0 : index
    %c0_0 = arith.constant 0 : index
    %c0_1 = arith.constant 0 : index
    %c0_2 = arith.constant 0 : index
    %0 = vector.load %arg1[%c0, %c0_0, %c0_1, %c0_2] : memref<1x14x14x32xbf16, #tpu.memory_space<vmem>>, vector<1x14x14x32xbf16>
    %1 = vector.shape_cast %0 : vector<1x14x14x32xbf16> to vector<14x14x32xbf16>
    %2 = arith.extf %1 : vector<14x14x32xbf16> to vector<14x14x32xf32>
    %3 = vector.extract_strided_slice %2 {offsets = [0, 0, 0], sizes = [12, 12, 32], strides = [1, 1, 1]} : vector<14x14x32xf32> to vector<12x12x32xf32>
    %4 = arith.truncf %3 : vector<12x12x32xf32> to vector<12x12x32xbf16>
    %5 = vector.extract_strided_slice %2 {offsets = [0, 1, 0], sizes = [12, 12, 32], strides = [1, 1, 1]} : vector<14x14x32xf32> to vector<12x12x32xf32>
    %6 = arith.truncf %5 : vector<12x12x32xf32> to vector<12x12x32xbf16>
    %7 = vector.extract_strided_slice %2 {offsets = [0, 2, 0], sizes = [12, 12, 32], strides = [1, 1, 1]} : vector<14x14x32xf32> to vector<12x12x32xf32>
    %8 = arith.truncf %7 : vector<12x12x32xf32> to vector<12x12x32xbf16>
    %9 = tpu.concatenate %4, %6, %8 in 2 : vector<12x12x32xbf16>, vector<12x12x32xbf16>, vector<12x12x32xbf16> -> vector<12x12x96xbf16>
    %10 = vector.shape_cast %9 : vector<12x12x96xbf16> to vector<144x96xbf16>
    %c0_3 = arith.constant 0 : index
    %c0_4 = arith.constant 0 : index
    %c0_5 = arith.constant 0 : index
    %11 = vector.load %arg2[%c0_3, %c0_4, %c0_5] : memref<3x96x32xbf16, #tpu.memory_space<vmem>>, vector<1x96x32xbf16>
    %12 = vector.shape_cast %11 : vector<1x96x32xbf16> to vector<96x32xbf16>
    %cst = arith.constant dense<0.000000e+00> : vector<144x32xf32>
    %13 = tpu.matmul %10, %12, %cst {dimension_numbers = #tpu.dot_dimension_numbers<[1], [0], [0], [1], [0, 0, 1, 1], [], []>} : vector<144x96xbf16>, vector<96x32xbf16>, vector<144x32xf32> -> vector<144x32xf32>
    %14 = vector.extract_strided_slice %2 {offsets = [1, 0, 0], sizes = [12, 12, 32], strides = [1, 1, 1]} : vector<14x14x32xf32> to vector<12x12x32xf32>
    %15 = arith.truncf %14 : vector<12x12x32xf32> to vector<12x12x32xbf16>
    %16 = vector.extract_strided_slice %2 {offsets = [1, 1, 0], sizes = [12, 12, 32], strides = [1, 1, 1]} : vector<14x14x32xf32> to vector<12x12x32xf32>
    %17 = arith.truncf %16 : vector<12x12x32xf32> to vector<12x12x32xbf16>
    %18 = vector.extract_strided_slice %2 {offsets = [1, 2, 0], sizes = [12, 12, 32], strides = [1, 1, 1]} : vector<14x14x32xf32> to vector<12x12x32xf32>
    %19 = arith.truncf %18 : vector<12x12x32xf32> to vector<12x12x32xbf16>
    %20 = tpu.concatenate %15, %17, %19 in 2 : vector<12x12x32xbf16>, vector<12x12x32xbf16>, vector<12x12x32xbf16> -> vector<12x12x96xbf16>
    %21 = vector.shape_cast %20 : vector<12x12x96xbf16> to vector<144x96xbf16>
    %c1 = arith.constant 1 : index
    %c0_6 = arith.constant 0 : index
    %c0_7 = arith.constant 0 : index
    %22 = vector.load %arg2[%c1, %c0_6, %c0_7] : memref<3x96x32xbf16, #tpu.memory_space<vmem>>, vector<1x96x32xbf16>
    %23 = vector.shape_cast %22 : vector<1x96x32xbf16> to vector<96x32xbf16>
    %cst_8 = arith.constant dense<0.000000e+00> : vector<144x32xf32>
    %24 = tpu.matmul %21, %23, %cst_8 {dimension_numbers = #tpu.dot_dimension_numbers<[1], [0], [0], [1], [0, 0, 1, 1], [], []>} : vector<144x96xbf16>, vector<96x32xbf16>, vector<144x32xf32> -> vector<144x32xf32>
    %25 = arith.addf %13, %24 : vector<144x32xf32>
    %26 = vector.extract_strided_slice %2 {offsets = [2, 0, 0], sizes = [12, 12, 32], strides = [1, 1, 1]} : vector<14x14x32xf32> to vector<12x12x32xf32>
    %27 = arith.truncf %26 : vector<12x12x32xf32> to vector<12x12x32xbf16>
    %28 = vector.extract_strided_slice %2 {offsets = [2, 1, 0], sizes = [12, 12, 32], strides = [1, 1, 1]} : vector<14x14x32xf32> to vector<12x12x32xf32>
    %29 = arith.truncf %28 : vector<12x12x32xf32> to vector<12x12x32xbf16>
    %30 = vector.extract_strided_slice %2 {offsets = [2, 2, 0], sizes = [12, 12, 32], strides = [1, 1, 1]} : vector<14x14x32xf32> to vector<12x12x32xf32>
    %31 = arith.truncf %30 : vector<12x12x32xf32> to vector<12x12x32xbf16>
    %32 = tpu.concatenate %27, %29, %31 in 2 : vector<12x12x32xbf16>, vector<12x12x32xbf16>, vector<12x12x32xbf16> -> vector<12x12x96xbf16>
    %33 = vector.shape_cast %32 : vector<12x12x96xbf16> to vector<144x96xbf16>
    %c2 = arith.constant 2 : index
    %c0_9 = arith.constant 0 : index
    %c0_10 = arith.constant 0 : index
    %34 = vector.load %arg2[%c2, %c0_9, %c0_10] : memref<3x96x32xbf16, #tpu.memory_space<vmem>>, vector<1x96x32xbf16>
    %35 = vector.shape_cast %34 : vector<1x96x32xbf16> to vector<96x32xbf16>
    %cst_11 = arith.constant dense<0.000000e+00> : vector<144x32xf32>
    %36 = tpu.matmul %33, %35, %cst_11 {dimension_numbers = #tpu.dot_dimension_numbers<[1], [0], [0], [1], [0, 0, 1, 1], [], []>} : vector<144x96xbf16>, vector<96x32xbf16>, vector<144x32xf32> -> vector<144x32xf32>
    %37 = arith.addf %25, %36 : vector<144x32xf32>
    %c0_12 = arith.constant 0 : index
    %c0_13 = arith.constant 0 : index
    %38 = vector.load %arg3[%c0_12, %c0_13] : memref<1x32xf32, #tpu.memory_space<vmem>>, vector<1x32xf32>
    %39 = vector.broadcast %38 : vector<1x32xf32> to vector<144x32xf32>
    %40 = arith.addf %37, %39 : vector<144x32xf32>
    %cst_14 = arith.constant 0.000000e+00 : f32
    %41 = vector.broadcast %cst_14 : f32 to vector<144x32xf32>
    %42 = arith.cmpf ogt, %40, %41 : vector<144x32xf32>
    %cst_15 = arith.constant 0.00999999977 : f32
    %43 = vector.broadcast %cst_15 : f32 to vector<144x32xf32>
    %44 = arith.mulf %43, %40 : vector<144x32xf32>
    %45 = arith.select %42, %40, %44 : vector<144x32xi1>, vector<144x32xf32>
    %cst_16 = arith.constant dense<0.000000e+00> : vector<32xf32>
    %46 = vector.multi_reduction <add>, %45, %cst_16 [0] : vector<144x32xf32> to vector<32xf32>
    %47 = vector.shape_cast %46 : vector<32xf32> to vector<1x32xf32>
    %48 = arith.mulf %45, %45 : vector<144x32xf32>
    %cst_17 = arith.constant dense<0.000000e+00> : vector<32xf32>
    %49 = vector.multi_reduction <add>, %48, %cst_17 [0] : vector<144x32xf32> to vector<32xf32>
    %50 = vector.shape_cast %49 : vector<32xf32> to vector<1x32xf32>
    %51 = tpu.concatenate %47, %50 in 0 : vector<1x32xf32>, vector<1x32xf32> -> vector<2x32xf32>
    %c0_18 = arith.constant 0 : index
    %c0_19 = arith.constant 0 : index
    %c0_20 = arith.constant 0 : index
    %52 = vector.load %arg5[%c0_18, %c0_19, %c0_20] : memref<1x2x32xf32, #tpu.memory_space<vmem>>, vector<1x2x32xf32>
    %53 = vector.shape_cast %52 : vector<1x2x32xf32> to vector<2x32xf32>
    %54 = vector.shape_cast %51 : vector<2x32xf32> to vector<1x2x32xf32>
    tpu.vector_store %arg5[%c0_18, %c0_19, %c0_20], %54 {strides = array<i32>} : memref<1x2x32xf32, #tpu.memory_space<vmem>>, vector<1x2x32xf32>,
    %55 = vector.shape_cast %45 : vector<144x32xf32> to vector<12x12x32xf32>
    %56 = arith.truncf %55 : vector<12x12x32xf32> to vector<12x12x32xbf16>
    %c0_21 = arith.constant 0 : index
    %c0_22 = arith.constant 0 : index
    %c0_23 = arith.constant 0 : index
    %c0_24 = arith.constant 0 : index
    %57 = vector.load %arg4[%c0_21, %c0_22, %c0_23, %c0_24] : memref<1x12x12x32xbf16, #tpu.memory_space<vmem>>, vector<1x12x12x32xbf16>
    %58 = vector.shape_cast %57 : vector<1x12x12x32xbf16> to vector<12x12x32xbf16>
    %59 = vector.shape_cast %56 : vector<12x12x32xbf16> to vector<1x12x12x32xbf16>
    tpu.vector_store %arg4[%c0_21, %c0_22, %c0_23, %c0_24], %59 {strides = array<i32>} : memref<1x12x12x32xbf16, #tpu.memory_space<vmem>>, vector<1x12x12x32xbf16>,
    return
  }
  func.func @transform_0(%arg0: i32) -> (i32, i32, i32, i32) {
    %c0_i32 = arith.constant 0 : i32
    %c0_i32_0 = arith.constant 0 : i32
    %c0_i32_1 = arith.constant 0 : i32
    %c0_i32_2 = arith.constant 0 : i32
    return %arg0, %c0_i32, %c0_i32_0, %c0_i32_1 : i32, i32, i32, i32
  }
  func.func @transform_1(%arg0: i32) -> (i32, i32, i32) {
    %c0_i32 = arith.constant 0 : i32
    %c0_i32_0 = arith.constant 0 : i32
    %c0_i32_1 = arith.constant 0 : i32
    %c0_i32_2 = arith.constant 0 : i32
    return %c0_i32, %c0_i32_0, %c0_i32_1 : i32, i32, i32
  }
  func.func @transform_2(%arg0: i32) -> (i32, i32) {
    %c0_i32 = arith.constant 0 : i32
    %c0_i32_0 = arith.constant 0 : i32
    %c0_i32_1 = arith.constant 0 : i32
    return %c0_i32, %c0_i32_0 : i32, i32
  }
  func.func @transform_3(%arg0: i32) -> (i32, i32, i32, i32) {
    %c0_i32 = arith.constant 0 : i32
    %c0_i32_0 = arith.constant 0 : i32
    %c0_i32_1 = arith.constant 0 : i32
    %c0_i32_2 = arith.constant 0 : i32
    return %arg0, %c0_i32, %c0_i32_0, %c0_i32_1 : i32, i32, i32, i32
  }
  func.func @transform_4(%arg0: i32) -> (i32, i32, i32) {
    %c0_i32 = arith.constant 0 : i32
    %c0_i32_0 = arith.constant 0 : i32
    %c0_i32_1 = arith.constant 0 : i32
    return %arg0, %c0_i32, %c0_i32_0 : i32, i32, i32
  }
}

module attributes {stable_mosaic.version = 11 : i64} {
  func.func @_conv_lrelu_stats_kernel(%arg0: i32, %arg1: memref<1x16x16x3xbf16, #tpu.memory_space<vmem>>, %arg2: memref<3x9x32xbf16, #tpu.memory_space<vmem>>, %arg3: memref<1x32xf32, #tpu.memory_space<vmem>>, %arg4: memref<1x14x14x32xbf16, #tpu.memory_space<vmem>>, %arg5: memref<1x2x32xf32, #tpu.memory_space<vmem>>) attributes {dimension_semantics = [#tpu.dimension_semantics<parallel>], iteration_bounds = array<i64: 2>, scalar_prefetch = 0 : i64, scratch_operands = 0 : i64, tpu.core_type = #tpu.core_type<tc>, window_params = [{transform_indices = @transform_0, window_bounds = array<i64: 1, 16, 16, 3>}, {pipeline_mode = #tpu.pipeline_mode<synchronous>, transform_indices = @transform_1, window_bounds = array<i64: 3, 9, 32>}, {pipeline_mode = #tpu.pipeline_mode<synchronous>, transform_indices = @transform_2, window_bounds = array<i64: 1, 32>}, {transform_indices = @transform_3, window_bounds = array<i64: 1, 14, 14, 32>}, {transform_indices = @transform_4, window_bounds = array<i64: 1, 2, 32>}]} {
    %c0 = arith.constant 0 : index
    %c0_0 = arith.constant 0 : index
    %c0_1 = arith.constant 0 : index
    %c0_2 = arith.constant 0 : index
    %0 = vector.load %arg1[%c0, %c0_0, %c0_1, %c0_2] : memref<1x16x16x3xbf16, #tpu.memory_space<vmem>>, vector<1x16x16x3xbf16>
    %1 = vector.shape_cast %0 : vector<1x16x16x3xbf16> to vector<16x16x3xbf16>
    %2 = arith.extf %1 : vector<16x16x3xbf16> to vector<16x16x3xf32>
    %3 = vector.extract_strided_slice %2 {offsets = [0, 0, 0], sizes = [14, 14, 3], strides = [1, 1, 1]} : vector<16x16x3xf32> to vector<14x14x3xf32>
    %4 = arith.truncf %3 : vector<14x14x3xf32> to vector<14x14x3xbf16>
    %5 = vector.extract_strided_slice %2 {offsets = [0, 1, 0], sizes = [14, 14, 3], strides = [1, 1, 1]} : vector<16x16x3xf32> to vector<14x14x3xf32>
    %6 = arith.truncf %5 : vector<14x14x3xf32> to vector<14x14x3xbf16>
    %7 = vector.extract_strided_slice %2 {offsets = [0, 2, 0], sizes = [14, 14, 3], strides = [1, 1, 1]} : vector<16x16x3xf32> to vector<14x14x3xf32>
    %8 = arith.truncf %7 : vector<14x14x3xf32> to vector<14x14x3xbf16>
    %9 = tpu.concatenate %4, %6, %8 in 2 : vector<14x14x3xbf16>, vector<14x14x3xbf16>, vector<14x14x3xbf16> -> vector<14x14x9xbf16>
    %10 = vector.shape_cast %9 : vector<14x14x9xbf16> to vector<196x9xbf16>
    %c0_3 = arith.constant 0 : index
    %c0_4 = arith.constant 0 : index
    %c0_5 = arith.constant 0 : index
    %11 = vector.load %arg2[%c0_3, %c0_4, %c0_5] : memref<3x9x32xbf16, #tpu.memory_space<vmem>>, vector<1x9x32xbf16>
    %12 = vector.shape_cast %11 : vector<1x9x32xbf16> to vector<9x32xbf16>
    %cst = arith.constant dense<0.000000e+00> : vector<196x32xf32>
    %13 = tpu.matmul %10, %12, %cst {dimension_numbers = #tpu.dot_dimension_numbers<[1], [0], [0], [1], [0, 0, 1, 1], [], []>} : vector<196x9xbf16>, vector<9x32xbf16>, vector<196x32xf32> -> vector<196x32xf32>
    %14 = vector.extract_strided_slice %2 {offsets = [1, 0, 0], sizes = [14, 14, 3], strides = [1, 1, 1]} : vector<16x16x3xf32> to vector<14x14x3xf32>
    %15 = arith.truncf %14 : vector<14x14x3xf32> to vector<14x14x3xbf16>
    %16 = vector.extract_strided_slice %2 {offsets = [1, 1, 0], sizes = [14, 14, 3], strides = [1, 1, 1]} : vector<16x16x3xf32> to vector<14x14x3xf32>
    %17 = arith.truncf %16 : vector<14x14x3xf32> to vector<14x14x3xbf16>
    %18 = vector.extract_strided_slice %2 {offsets = [1, 2, 0], sizes = [14, 14, 3], strides = [1, 1, 1]} : vector<16x16x3xf32> to vector<14x14x3xf32>
    %19 = arith.truncf %18 : vector<14x14x3xf32> to vector<14x14x3xbf16>
    %20 = tpu.concatenate %15, %17, %19 in 2 : vector<14x14x3xbf16>, vector<14x14x3xbf16>, vector<14x14x3xbf16> -> vector<14x14x9xbf16>
    %21 = vector.shape_cast %20 : vector<14x14x9xbf16> to vector<196x9xbf16>
    %c1 = arith.constant 1 : index
    %c0_6 = arith.constant 0 : index
    %c0_7 = arith.constant 0 : index
    %22 = vector.load %arg2[%c1, %c0_6, %c0_7] : memref<3x9x32xbf16, #tpu.memory_space<vmem>>, vector<1x9x32xbf16>
    %23 = vector.shape_cast %22 : vector<1x9x32xbf16> to vector<9x32xbf16>
    %cst_8 = arith.constant dense<0.000000e+00> : vector<196x32xf32>
    %24 = tpu.matmul %21, %23, %cst_8 {dimension_numbers = #tpu.dot_dimension_numbers<[1], [0], [0], [1], [0, 0, 1, 1], [], []>} : vector<196x9xbf16>, vector<9x32xbf16>, vector<196x32xf32> -> vector<196x32xf32>
    %25 = arith.addf %13, %24 : vector<196x32xf32>
    %26 = vector.extract_strided_slice %2 {offsets = [2, 0, 0], sizes = [14, 14, 3], strides = [1, 1, 1]} : vector<16x16x3xf32> to vector<14x14x3xf32>
    %27 = arith.truncf %26 : vector<14x14x3xf32> to vector<14x14x3xbf16>
    %28 = vector.extract_strided_slice %2 {offsets = [2, 1, 0], sizes = [14, 14, 3], strides = [1, 1, 1]} : vector<16x16x3xf32> to vector<14x14x3xf32>
    %29 = arith.truncf %28 : vector<14x14x3xf32> to vector<14x14x3xbf16>
    %30 = vector.extract_strided_slice %2 {offsets = [2, 2, 0], sizes = [14, 14, 3], strides = [1, 1, 1]} : vector<16x16x3xf32> to vector<14x14x3xf32>
    %31 = arith.truncf %30 : vector<14x14x3xf32> to vector<14x14x3xbf16>
    %32 = tpu.concatenate %27, %29, %31 in 2 : vector<14x14x3xbf16>, vector<14x14x3xbf16>, vector<14x14x3xbf16> -> vector<14x14x9xbf16>
    %33 = vector.shape_cast %32 : vector<14x14x9xbf16> to vector<196x9xbf16>
    %c2 = arith.constant 2 : index
    %c0_9 = arith.constant 0 : index
    %c0_10 = arith.constant 0 : index
    %34 = vector.load %arg2[%c2, %c0_9, %c0_10] : memref<3x9x32xbf16, #tpu.memory_space<vmem>>, vector<1x9x32xbf16>
    %35 = vector.shape_cast %34 : vector<1x9x32xbf16> to vector<9x32xbf16>
    %cst_11 = arith.constant dense<0.000000e+00> : vector<196x32xf32>
    %36 = tpu.matmul %33, %35, %cst_11 {dimension_numbers = #tpu.dot_dimension_numbers<[1], [0], [0], [1], [0, 0, 1, 1], [], []>} : vector<196x9xbf16>, vector<9x32xbf16>, vector<196x32xf32> -> vector<196x32xf32>
    %37 = arith.addf %25, %36 : vector<196x32xf32>
    %c0_12 = arith.constant 0 : index
    %c0_13 = arith.constant 0 : index
    %38 = vector.load %arg3[%c0_12, %c0_13] : memref<1x32xf32, #tpu.memory_space<vmem>>, vector<1x32xf32>
    %39 = vector.broadcast %38 : vector<1x32xf32> to vector<196x32xf32>
    %40 = arith.addf %37, %39 : vector<196x32xf32>
    %cst_14 = arith.constant 0.000000e+00 : f32
    %41 = vector.broadcast %cst_14 : f32 to vector<196x32xf32>
    %42 = arith.cmpf ogt, %40, %41 : vector<196x32xf32>
    %cst_15 = arith.constant 0.00999999977 : f32
    %43 = vector.broadcast %cst_15 : f32 to vector<196x32xf32>
    %44 = arith.mulf %43, %40 : vector<196x32xf32>
    %45 = arith.select %42, %40, %44 : vector<196x32xi1>, vector<196x32xf32>
    %cst_16 = arith.constant dense<0.000000e+00> : vector<32xf32>
    %46 = vector.multi_reduction <add>, %45, %cst_16 [0] : vector<196x32xf32> to vector<32xf32>
    %47 = vector.shape_cast %46 : vector<32xf32> to vector<1x32xf32>
    %48 = arith.mulf %45, %45 : vector<196x32xf32>
    %cst_17 = arith.constant dense<0.000000e+00> : vector<32xf32>
    %49 = vector.multi_reduction <add>, %48, %cst_17 [0] : vector<196x32xf32> to vector<32xf32>
    %50 = vector.shape_cast %49 : vector<32xf32> to vector<1x32xf32>
    %51 = tpu.concatenate %47, %50 in 0 : vector<1x32xf32>, vector<1x32xf32> -> vector<2x32xf32>
    %c0_18 = arith.constant 0 : index
    %c0_19 = arith.constant 0 : index
    %c0_20 = arith.constant 0 : index
    %52 = vector.load %arg5[%c0_18, %c0_19, %c0_20] : memref<1x2x32xf32, #tpu.memory_space<vmem>>, vector<1x2x32xf32>
    %53 = vector.shape_cast %52 : vector<1x2x32xf32> to vector<2x32xf32>
    %54 = vector.shape_cast %51 : vector<2x32xf32> to vector<1x2x32xf32>
    tpu.vector_store %arg5[%c0_18, %c0_19, %c0_20], %54 {strides = array<i32>} : memref<1x2x32xf32, #tpu.memory_space<vmem>>, vector<1x2x32xf32>,
    %55 = vector.shape_cast %45 : vector<196x32xf32> to vector<14x14x32xf32>
    %56 = arith.truncf %55 : vector<14x14x32xf32> to vector<14x14x32xbf16>
    %c0_21 = arith.constant 0 : index
    %c0_22 = arith.constant 0 : index
    %c0_23 = arith.constant 0 : index
    %c0_24 = arith.constant 0 : index
    %57 = vector.load %arg4[%c0_21, %c0_22, %c0_23, %c0_24] : memref<1x14x14x32xbf16, #tpu.memory_space<vmem>>, vector<1x14x14x32xbf16>
    %58 = vector.shape_cast %57 : vector<1x14x14x32xbf16> to vector<14x14x32xbf16>
    %59 = vector.shape_cast %56 : vector<14x14x32xbf16> to vector<1x14x14x32xbf16>
    tpu.vector_store %arg4[%c0_21, %c0_22, %c0_23, %c0_24], %59 {strides = array<i32>} : memref<1x14x14x32xbf16, #tpu.memory_space<vmem>>, vector<1x14x14x32xbf16>,
    return
  }
  func.func @transform_0(%arg0: i32) -> (i32, i32, i32, i32) {
    %c0_i32 = arith.constant 0 : i32
    %c0_i32_0 = arith.constant 0 : i32
    %c0_i32_1 = arith.constant 0 : i32
    %c0_i32_2 = arith.constant 0 : i32
    return %arg0, %c0_i32, %c0_i32_0, %c0_i32_1 : i32, i32, i32, i32
  }
  func.func @transform_1(%arg0: i32) -> (i32, i32, i32) {
    %c0_i32 = arith.constant 0 : i32
    %c0_i32_0 = arith.constant 0 : i32
    %c0_i32_1 = arith.constant 0 : i32
    %c0_i32_2 = arith.constant 0 : i32
    return %c0_i32, %c0_i32_0, %c0_i32_1 : i32, i32, i32
  }
  func.func @transform_2(%arg0: i32) -> (i32, i32) {
    %c0_i32 = arith.constant 0 : i32
    %c0_i32_0 = arith.constant 0 : i32
    %c0_i32_1 = arith.constant 0 : i32
    return %c0_i32, %c0_i32_0 : i32, i32
  }
  func.func @transform_3(%arg0: i32) -> (i32, i32, i32, i32) {
    %c0_i32 = arith.constant 0 : i32
    %c0_i32_0 = arith.constant 0 : i32
    %c0_i32_1 = arith.constant 0 : i32
    %c0_i32_2 = arith.constant 0 : i32
    return %arg0, %c0_i32, %c0_i32_0, %c0_i32_1 : i32, i32, i32, i32
  }
  func.func @transform_4(%arg0: i32) -> (i32, i32, i32) {
    %c0_i32 = arith.constant 0 : i32
    %c0_i32_0 = arith.constant 0 : i32
    %c0_i32_1 = arith.constant 0 : i32
    return %arg0, %c0_i32, %c0_i32_0 : i32, i32, i32
  }
}

module attributes {stable_mosaic.version = 11 : i64} {
  func.func @_conv_lrelu_stats_kernel(%arg0: i32, %arg1: memref<1x12x12x32xbf16, #tpu.memory_space<vmem>>, %arg2: memref<3x96x32xbf16, #tpu.memory_space<vmem>>, %arg3: memref<1x32xf32, #tpu.memory_space<vmem>>, %arg4: memref<1x10x10x32xbf16, #tpu.memory_space<vmem>>, %arg5: memref<1x2x32xf32, #tpu.memory_space<vmem>>) attributes {dimension_semantics = [#tpu.dimension_semantics<parallel>], iteration_bounds = array<i64: 2>, scalar_prefetch = 0 : i64, scratch_operands = 0 : i64, tpu.core_type = #tpu.core_type<tc>, window_params = [{transform_indices = @transform_0, window_bounds = array<i64: 1, 12, 12, 32>}, {pipeline_mode = #tpu.pipeline_mode<synchronous>, transform_indices = @transform_1, window_bounds = array<i64: 3, 96, 32>}, {pipeline_mode = #tpu.pipeline_mode<synchronous>, transform_indices = @transform_2, window_bounds = array<i64: 1, 32>}, {transform_indices = @transform_3, window_bounds = array<i64: 1, 10, 10, 32>}, {transform_indices = @transform_4, window_bounds = array<i64: 1, 2, 32>}]} {
    %c0 = arith.constant 0 : index
    %c0_0 = arith.constant 0 : index
    %c0_1 = arith.constant 0 : index
    %c0_2 = arith.constant 0 : index
    %0 = vector.load %arg1[%c0, %c0_0, %c0_1, %c0_2] : memref<1x12x12x32xbf16, #tpu.memory_space<vmem>>, vector<1x12x12x32xbf16>
    %1 = vector.shape_cast %0 : vector<1x12x12x32xbf16> to vector<12x12x32xbf16>
    %2 = arith.extf %1 : vector<12x12x32xbf16> to vector<12x12x32xf32>
    %3 = vector.extract_strided_slice %2 {offsets = [0, 0, 0], sizes = [10, 10, 32], strides = [1, 1, 1]} : vector<12x12x32xf32> to vector<10x10x32xf32>
    %4 = arith.truncf %3 : vector<10x10x32xf32> to vector<10x10x32xbf16>
    %5 = vector.extract_strided_slice %2 {offsets = [0, 1, 0], sizes = [10, 10, 32], strides = [1, 1, 1]} : vector<12x12x32xf32> to vector<10x10x32xf32>
    %6 = arith.truncf %5 : vector<10x10x32xf32> to vector<10x10x32xbf16>
    %7 = vector.extract_strided_slice %2 {offsets = [0, 2, 0], sizes = [10, 10, 32], strides = [1, 1, 1]} : vector<12x12x32xf32> to vector<10x10x32xf32>
    %8 = arith.truncf %7 : vector<10x10x32xf32> to vector<10x10x32xbf16>
    %9 = tpu.concatenate %4, %6, %8 in 2 : vector<10x10x32xbf16>, vector<10x10x32xbf16>, vector<10x10x32xbf16> -> vector<10x10x96xbf16>
    %10 = vector.shape_cast %9 : vector<10x10x96xbf16> to vector<100x96xbf16>
    %c0_3 = arith.constant 0 : index
    %c0_4 = arith.constant 0 : index
    %c0_5 = arith.constant 0 : index
    %11 = vector.load %arg2[%c0_3, %c0_4, %c0_5] : memref<3x96x32xbf16, #tpu.memory_space<vmem>>, vector<1x96x32xbf16>
    %12 = vector.shape_cast %11 : vector<1x96x32xbf16> to vector<96x32xbf16>
    %cst = arith.constant dense<0.000000e+00> : vector<100x32xf32>
    %13 = tpu.matmul %10, %12, %cst {dimension_numbers = #tpu.dot_dimension_numbers<[1], [0], [0], [1], [0, 0, 1, 1], [], []>} : vector<100x96xbf16>, vector<96x32xbf16>, vector<100x32xf32> -> vector<100x32xf32>
    %14 = vector.extract_strided_slice %2 {offsets = [1, 0, 0], sizes = [10, 10, 32], strides = [1, 1, 1]} : vector<12x12x32xf32> to vector<10x10x32xf32>
    %15 = arith.truncf %14 : vector<10x10x32xf32> to vector<10x10x32xbf16>
    %16 = vector.extract_strided_slice %2 {offsets = [1, 1, 0], sizes = [10, 10, 32], strides = [1, 1, 1]} : vector<12x12x32xf32> to vector<10x10x32xf32>
    %17 = arith.truncf %16 : vector<10x10x32xf32> to vector<10x10x32xbf16>
    %18 = vector.extract_strided_slice %2 {offsets = [1, 2, 0], sizes = [10, 10, 32], strides = [1, 1, 1]} : vector<12x12x32xf32> to vector<10x10x32xf32>
    %19 = arith.truncf %18 : vector<10x10x32xf32> to vector<10x10x32xbf16>
    %20 = tpu.concatenate %15, %17, %19 in 2 : vector<10x10x32xbf16>, vector<10x10x32xbf16>, vector<10x10x32xbf16> -> vector<10x10x96xbf16>
    %21 = vector.shape_cast %20 : vector<10x10x96xbf16> to vector<100x96xbf16>
    %c1 = arith.constant 1 : index
    %c0_6 = arith.constant 0 : index
    %c0_7 = arith.constant 0 : index
    %22 = vector.load %arg2[%c1, %c0_6, %c0_7] : memref<3x96x32xbf16, #tpu.memory_space<vmem>>, vector<1x96x32xbf16>
    %23 = vector.shape_cast %22 : vector<1x96x32xbf16> to vector<96x32xbf16>
    %cst_8 = arith.constant dense<0.000000e+00> : vector<100x32xf32>
    %24 = tpu.matmul %21, %23, %cst_8 {dimension_numbers = #tpu.dot_dimension_numbers<[1], [0], [0], [1], [0, 0, 1, 1], [], []>} : vector<100x96xbf16>, vector<96x32xbf16>, vector<100x32xf32> -> vector<100x32xf32>
    %25 = arith.addf %13, %24 : vector<100x32xf32>
    %26 = vector.extract_strided_slice %2 {offsets = [2, 0, 0], sizes = [10, 10, 32], strides = [1, 1, 1]} : vector<12x12x32xf32> to vector<10x10x32xf32>
    %27 = arith.truncf %26 : vector<10x10x32xf32> to vector<10x10x32xbf16>
    %28 = vector.extract_strided_slice %2 {offsets = [2, 1, 0], sizes = [10, 10, 32], strides = [1, 1, 1]} : vector<12x12x32xf32> to vector<10x10x32xf32>
    %29 = arith.truncf %28 : vector<10x10x32xf32> to vector<10x10x32xbf16>
    %30 = vector.extract_strided_slice %2 {offsets = [2, 2, 0], sizes = [10, 10, 32], strides = [1, 1, 1]} : vector<12x12x32xf32> to vector<10x10x32xf32>
    %31 = arith.truncf %30 : vector<10x10x32xf32> to vector<10x10x32xbf16>
    %32 = tpu.concatenate %27, %29, %31 in 2 : vector<10x10x32xbf16>, vector<10x10x32xbf16>, vector<10x10x32xbf16> -> vector<10x10x96xbf16>
    %33 = vector.shape_cast %32 : vector<10x10x96xbf16> to vector<100x96xbf16>
    %c2 = arith.constant 2 : index
    %c0_9 = arith.constant 0 : index
    %c0_10 = arith.constant 0 : index
    %34 = vector.load %arg2[%c2, %c0_9, %c0_10] : memref<3x96x32xbf16, #tpu.memory_space<vmem>>, vector<1x96x32xbf16>
    %35 = vector.shape_cast %34 : vector<1x96x32xbf16> to vector<96x32xbf16>
    %cst_11 = arith.constant dense<0.000000e+00> : vector<100x32xf32>
    %36 = tpu.matmul %33, %35, %cst_11 {dimension_numbers = #tpu.dot_dimension_numbers<[1], [0], [0], [1], [0, 0, 1, 1], [], []>} : vector<100x96xbf16>, vector<96x32xbf16>, vector<100x32xf32> -> vector<100x32xf32>
    %37 = arith.addf %25, %36 : vector<100x32xf32>
    %c0_12 = arith.constant 0 : index
    %c0_13 = arith.constant 0 : index
    %38 = vector.load %arg3[%c0_12, %c0_13] : memref<1x32xf32, #tpu.memory_space<vmem>>, vector<1x32xf32>
    %39 = vector.broadcast %38 : vector<1x32xf32> to vector<100x32xf32>
    %40 = arith.addf %37, %39 : vector<100x32xf32>
    %cst_14 = arith.constant 0.000000e+00 : f32
    %41 = vector.broadcast %cst_14 : f32 to vector<100x32xf32>
    %42 = arith.cmpf ogt, %40, %41 : vector<100x32xf32>
    %cst_15 = arith.constant 0.00999999977 : f32
    %43 = vector.broadcast %cst_15 : f32 to vector<100x32xf32>
    %44 = arith.mulf %43, %40 : vector<100x32xf32>
    %45 = arith.select %42, %40, %44 : vector<100x32xi1>, vector<100x32xf32>
    %cst_16 = arith.constant dense<0.000000e+00> : vector<32xf32>
    %46 = vector.multi_reduction <add>, %45, %cst_16 [0] : vector<100x32xf32> to vector<32xf32>
    %47 = vector.shape_cast %46 : vector<32xf32> to vector<1x32xf32>
    %48 = arith.mulf %45, %45 : vector<100x32xf32>
    %cst_17 = arith.constant dense<0.000000e+00> : vector<32xf32>
    %49 = vector.multi_reduction <add>, %48, %cst_17 [0] : vector<100x32xf32> to vector<32xf32>
    %50 = vector.shape_cast %49 : vector<32xf32> to vector<1x32xf32>
    %51 = tpu.concatenate %47, %50 in 0 : vector<1x32xf32>, vector<1x32xf32> -> vector<2x32xf32>
    %c0_18 = arith.constant 0 : index
    %c0_19 = arith.constant 0 : index
    %c0_20 = arith.constant 0 : index
    %52 = vector.load %arg5[%c0_18, %c0_19, %c0_20] : memref<1x2x32xf32, #tpu.memory_space<vmem>>, vector<1x2x32xf32>
    %53 = vector.shape_cast %52 : vector<1x2x32xf32> to vector<2x32xf32>
    %54 = vector.shape_cast %51 : vector<2x32xf32> to vector<1x2x32xf32>
    tpu.vector_store %arg5[%c0_18, %c0_19, %c0_20], %54 {strides = array<i32>} : memref<1x2x32xf32, #tpu.memory_space<vmem>>, vector<1x2x32xf32>,
    %55 = vector.shape_cast %45 : vector<100x32xf32> to vector<10x10x32xf32>
    %56 = arith.truncf %55 : vector<10x10x32xf32> to vector<10x10x32xbf16>
    %c0_21 = arith.constant 0 : index
    %c0_22 = arith.constant 0 : index
    %c0_23 = arith.constant 0 : index
    %c0_24 = arith.constant 0 : index
    %57 = vector.load %arg4[%c0_21, %c0_22, %c0_23, %c0_24] : memref<1x10x10x32xbf16, #tpu.memory_space<vmem>>, vector<1x10x10x32xbf16>
    %58 = vector.shape_cast %57 : vector<1x10x10x32xbf16> to vector<10x10x32xbf16>
    %59 = vector.shape_cast %56 : vector<10x10x32xbf16> to vector<1x10x10x32xbf16>
    tpu.vector_store %arg4[%c0_21, %c0_22, %c0_23, %c0_24], %59 {strides = array<i32>} : memref<1x10x10x32xbf16, #tpu.memory_space<vmem>>, vector<1x10x10x32xbf16>,
    return
  }
  func.func @transform_0(%arg0: i32) -> (i32, i32, i32, i32) {
    %c0_i32 = arith.constant 0 : i32
    %c0_i32_0 = arith.constant 0 : i32
    %c0_i32_1 = arith.constant 0 : i32
    %c0_i32_2 = arith.constant 0 : i32
    return %arg0, %c0_i32, %c0_i32_0, %c0_i32_1 : i32, i32, i32, i32
  }
  func.func @transform_1(%arg0: i32) -> (i32, i32, i32) {
    %c0_i32 = arith.constant 0 : i32
    %c0_i32_0 = arith.constant 0 : i32
    %c0_i32_1 = arith.constant 0 : i32
    %c0_i32_2 = arith.constant 0 : i32
    return %c0_i32, %c0_i32_0, %c0_i32_1 : i32, i32, i32
  }
  func.func @transform_2(%arg0: i32) -> (i32, i32) {
    %c0_i32 = arith.constant 0 : i32
    %c0_i32_0 = arith.constant 0 : i32
    %c0_i32_1 = arith.constant 0 : i32
    return %c0_i32, %c0_i32_0 : i32, i32
  }
  func.func @transform_3(%arg0: i32) -> (i32, i32, i32, i32) {
    %c0_i32 = arith.constant 0 : i32
    %c0_i32_0 = arith.constant 0 : i32
    %c0_i32_1 = arith.constant 0 : i32
    %c0_i32_2 = arith.constant 0 : i32
    return %arg0, %c0_i32, %c0_i32_0, %c0_i32_1 : i32, i32, i32, i32
  }
  func.func @transform_4(%arg0: i32) -> (i32, i32, i32) {
    %c0_i32 = arith.constant 0 : i32
    %c0_i32_0 = arith.constant 0 : i32
    %c0_i32_1 = arith.constant 0 : i32
    return %arg0, %c0_i32, %c0_i32_0 : i32, i32, i32
  }
}

module attributes {stable_mosaic.version = 11 : i64} {
  func.func @_conv1_mean_kernel(%arg0: i32, %arg1: memref<1x10x10x32xbf16, #tpu.memory_space<vmem>>, %arg2: memref<1x288xf32, #tpu.memory_space<vmem>>, %arg3: memref<1x1xf32, #tpu.memory_space<vmem>>, %arg4: memref<1x1x128xf32, #tpu.memory_space<vmem>>) attributes {dimension_semantics = [#tpu.dimension_semantics<parallel>], iteration_bounds = array<i64: 2>, scalar_prefetch = 0 : i64, scratch_operands = 0 : i64, tpu.core_type = #tpu.core_type<tc>, window_params = [{transform_indices = @transform_0, window_bounds = array<i64: 1, 10, 10, 32>}, {pipeline_mode = #tpu.pipeline_mode<synchronous>, transform_indices = @transform_1, window_bounds = array<i64: 1, 288>}, {pipeline_mode = #tpu.pipeline_mode<synchronous>, transform_indices = @transform_2, window_bounds = array<i64: 1, 1>}, {transform_indices = @transform_3, window_bounds = array<i64: 1, 1, 128>}]} {
    %c0 = arith.constant 0 : index
    %c0_0 = arith.constant 0 : index
    %c0_1 = arith.constant 0 : index
    %c0_2 = arith.constant 0 : index
    %0 = vector.load %arg1[%c0, %c0_0, %c0_1, %c0_2] : memref<1x10x10x32xbf16, #tpu.memory_space<vmem>>, vector<1x10x10x32xbf16>
    %1 = vector.shape_cast %0 : vector<1x10x10x32xbf16> to vector<10x10x32xbf16>
    %2 = arith.extf %1 : vector<10x10x32xbf16> to vector<10x10x32xf32>
    %cst = arith.constant dense<0.000000e+00> : vector<10x32xf32>
    %3 = vector.multi_reduction <add>, %2, %cst [0] : vector<10x10x32xf32> to vector<10x32xf32>
    %4 = vector.extract_strided_slice %2 {offsets = [8, 0, 0], sizes = [1, 10, 32], strides = [1, 1, 1]} : vector<10x10x32xf32> to vector<1x10x32xf32>
    %5 = vector.shape_cast %4 : vector<1x10x32xf32> to vector<10x32xf32>
    %6 = arith.subf %3, %5 : vector<10x32xf32>
    %7 = vector.extract_strided_slice %2 {offsets = [9, 0, 0], sizes = [1, 10, 32], strides = [1, 1, 1]} : vector<10x10x32xf32> to vector<1x10x32xf32>
    %8 = vector.shape_cast %7 : vector<1x10x32xf32> to vector<10x32xf32>
    %9 = arith.subf %6, %8 : vector<10x32xf32>
    %10 = vector.extract_strided_slice %2 {offsets = [0, 0, 0], sizes = [1, 10, 32], strides = [1, 1, 1]} : vector<10x10x32xf32> to vector<1x10x32xf32>
    %11 = vector.shape_cast %10 : vector<1x10x32xf32> to vector<10x32xf32>
    %12 = arith.subf %3, %11 : vector<10x32xf32>
    %13 = vector.extract_strided_slice %2 {offsets = [9, 0, 0], sizes = [1, 10, 32], strides = [1, 1, 1]} : vector<10x10x32xf32> to vector<1x10x32xf32>
    %14 = vector.shape_cast %13 : vector<1x10x32xf32> to vector<10x32xf32>
    %15 = arith.subf %12, %14 : vector<10x32xf32>
    %16 = vector.extract_strided_slice %2 {offsets = [0, 0, 0], sizes = [1, 10, 32], strides = [1, 1, 1]} : vector<10x10x32xf32> to vector<1x10x32xf32>
    %17 = vector.shape_cast %16 : vector<1x10x32xf32> to vector<10x32xf32>
    %18 = arith.subf %3, %17 : vector<10x32xf32>
    %19 = vector.extract_strided_slice %2 {offsets = [1, 0, 0], sizes = [1, 10, 32], strides = [1, 1, 1]} : vector<10x10x32xf32> to vector<1x10x32xf32>
    %20 = vector.shape_cast %19 : vector<1x10x32xf32> to vector<10x32xf32>
    %21 = arith.subf %18, %20 : vector<10x32xf32>
    %cst_3 = arith.constant dense<0.000000e+00> : vector<32xf32>
    %22 = vector.multi_reduction <add>, %9, %cst_3 [0] : vector<10x32xf32> to vector<32xf32>
    %23 = vector.shape_cast %22 : vector<32xf32> to vector<1x32xf32>
    %24 = vector.extract_strided_slice %9 {offsets = [8, 0], sizes = [1, 32], strides = [1, 1]} : vector<10x32xf32> to vector<1x32xf32>
    %25 = arith.subf %23, %24 : vector<1x32xf32>
    %26 = vector.extract_strided_slice %9 {offsets = [9, 0], sizes = [1, 32], strides = [1, 1]} : vector<10x32xf32> to vector<1x32xf32>
    %27 = arith.subf %25, %26 : vector<1x32xf32>
    %28 = vector.extract_strided_slice %9 {offsets = [0, 0], sizes = [1, 32], strides = [1, 1]} : vector<10x32xf32> to vector<1x32xf32>
    %29 = arith.subf %23, %28 : vector<1x32xf32>
    %30 = vector.extract_strided_slice %9 {offsets = [9, 0], sizes = [1, 32], strides = [1, 1]} : vector<10x32xf32> to vector<1x32xf32>
    %31 = arith.subf %29, %30 : vector<1x32xf32>
    %32 = vector.extract_strided_slice %9 {offsets = [0, 0], sizes = [1, 32], strides = [1, 1]} : vector<10x32xf32> to vector<1x32xf32>
    %33 = arith.subf %23, %32 : vector<1x32xf32>
    %34 = vector.extract_strided_slice %9 {offsets = [1, 0], sizes = [1, 32], strides = [1, 1]} : vector<10x32xf32> to vector<1x32xf32>
    %35 = arith.subf %33, %34 : vector<1x32xf32>
    %cst_4 = arith.constant dense<0.000000e+00> : vector<32xf32>
    %36 = vector.multi_reduction <add>, %15, %cst_4 [0] : vector<10x32xf32> to vector<32xf32>
    %37 = vector.shape_cast %36 : vector<32xf32> to vector<1x32xf32>
    %38 = vector.extract_strided_slice %15 {offsets = [8, 0], sizes = [1, 32], strides = [1, 1]} : vector<10x32xf32> to vector<1x32xf32>
    %39 = arith.subf %37, %38 : vector<1x32xf32>
    %40 = vector.extract_strided_slice %15 {offsets = [9, 0], sizes = [1, 32], strides = [1, 1]} : vector<10x32xf32> to vector<1x32xf32>
    %41 = arith.subf %39, %40 : vector<1x32xf32>
    %42 = vector.extract_strided_slice %15 {offsets = [0, 0], sizes = [1, 32], strides = [1, 1]} : vector<10x32xf32> to vector<1x32xf32>
    %43 = arith.subf %37, %42 : vector<1x32xf32>
    %44 = vector.extract_strided_slice %15 {offsets = [9, 0], sizes = [1, 32], strides = [1, 1]} : vector<10x32xf32> to vector<1x32xf32>
    %45 = arith.subf %43, %44 : vector<1x32xf32>
    %46 = vector.extract_strided_slice %15 {offsets = [0, 0], sizes = [1, 32], strides = [1, 1]} : vector<10x32xf32> to vector<1x32xf32>
    %47 = arith.subf %37, %46 : vector<1x32xf32>
    %48 = vector.extract_strided_slice %15 {offsets = [1, 0], sizes = [1, 32], strides = [1, 1]} : vector<10x32xf32> to vector<1x32xf32>
    %49 = arith.subf %47, %48 : vector<1x32xf32>
    %cst_5 = arith.constant dense<0.000000e+00> : vector<32xf32>
    %50 = vector.multi_reduction <add>, %21, %cst_5 [0] : vector<10x32xf32> to vector<32xf32>
    %51 = vector.shape_cast %50 : vector<32xf32> to vector<1x32xf32>
    %52 = vector.extract_strided_slice %21 {offsets = [8, 0], sizes = [1, 32], strides = [1, 1]} : vector<10x32xf32> to vector<1x32xf32>
    %53 = arith.subf %51, %52 : vector<1x32xf32>
    %54 = vector.extract_strided_slice %21 {offsets = [9, 0], sizes = [1, 32], strides = [1, 1]} : vector<10x32xf32> to vector<1x32xf32>
    %55 = arith.subf %53, %54 : vector<1x32xf32>
    %56 = vector.extract_strided_slice %21 {offsets = [0, 0], sizes = [1, 32], strides = [1, 1]} : vector<10x32xf32> to vector<1x32xf32>
    %57 = arith.subf %51, %56 : vector<1x32xf32>
    %58 = vector.extract_strided_slice %21 {offsets = [9, 0], sizes = [1, 32], strides = [1, 1]} : vector<10x32xf32> to vector<1x32xf32>
    %59 = arith.subf %57, %58 : vector<1x32xf32>
    %60 = vector.extract_strided_slice %21 {offsets = [0, 0], sizes = [1, 32], strides = [1, 1]} : vector<10x32xf32> to vector<1x32xf32>
    %61 = arith.subf %51, %60 : vector<1x32xf32>
    %62 = vector.extract_strided_slice %21 {offsets = [1, 0], sizes = [1, 32], strides = [1, 1]} : vector<10x32xf32> to vector<1x32xf32>
    %63 = arith.subf %61, %62 : vector<1x32xf32>
    %64 = tpu.concatenate %27, %31, %35, %41, %45, %49, %55, %59, %63 in 1 : vector<1x32xf32>, vector<1x32xf32>, vector<1x32xf32>, vector<1x32xf32>, vector<1x32xf32>, vector<1x32xf32>, vector<1x32xf32>, vector<1x32xf32>, vector<1x32xf32> -> vector<1x288xf32>
    %c0_6 = arith.constant 0 : index
    %c0_7 = arith.constant 0 : index
    %65 = vector.load %arg2[%c0_6, %c0_7] : memref<1x288xf32, #tpu.memory_space<vmem>>, vector<1x288xf32>
    %66 = arith.mulf %64, %65 : vector<1x288xf32>
    %cst_8 = arith.constant dense<0.000000e+00> : vector<1xf32>
    %67 = vector.multi_reduction <add>, %66, %cst_8 [1] : vector<1x288xf32> to vector<1xf32>
    %68 = vector.shape_cast %67 : vector<1xf32> to vector<1x1xf32>
    %cst_9 = arith.constant 1.562500e-02 : f32
    %69 = vector.broadcast %cst_9 : f32 to vector<1x1xf32>
    %70 = arith.mulf %68, %69 : vector<1x1xf32>
    %c0_10 = arith.constant 0 : index
    %c0_11 = arith.constant 0 : index
    %71 = vector.load %arg3[%c0_10, %c0_11] : memref<1x1xf32, #tpu.memory_space<vmem>>, vector<1x1xf32>
    %72 = arith.addf %70, %71 : vector<1x1xf32>
    %73 = vector.shape_cast %72 : vector<1x1xf32> to vector<1x1xf32>
    %74 = vector.broadcast %73 : vector<1x1xf32> to vector<1x128xf32>
    %c0_12 = arith.constant 0 : index
    %c0_13 = arith.constant 0 : index
    %c0_14 = arith.constant 0 : index
    %75 = vector.load %arg4[%c0_12, %c0_13, %c0_14] : memref<1x1x128xf32, #tpu.memory_space<vmem>>, vector<1x1x128xf32>
    %76 = vector.shape_cast %75 : vector<1x1x128xf32> to vector<1x128xf32>
    %77 = vector.shape_cast %74 : vector<1x128xf32> to vector<1x1x128xf32>
    tpu.vector_store %arg4[%c0_12, %c0_13, %c0_14], %77 {strides = array<i32>} : memref<1x1x128xf32, #tpu.memory_space<vmem>>, vector<1x1x128xf32>,
    return
  }
  func.func @transform_0(%arg0: i32) -> (i32, i32, i32, i32) {
    %c0_i32 = arith.constant 0 : i32
    %c0_i32_0 = arith.constant 0 : i32
    %c0_i32_1 = arith.constant 0 : i32
    %c0_i32_2 = arith.constant 0 : i32
    return %arg0, %c0_i32, %c0_i32_0, %c0_i32_1 : i32, i32, i32, i32
  }
  func.func @transform_1(%arg0: i32) -> (i32, i32) {
    %c0_i32 = arith.constant 0 : i32
    %c0_i32_0 = arith.constant 0 : i32
    %c0_i32_1 = arith.constant 0 : i32
    return %c0_i32, %c0_i32_0 : i32, i32
  }
  func.func @transform_2(%arg0: i32) -> (i32, i32) {
    %c0_i32 = arith.constant 0 : i32
    %c0_i32_0 = arith.constant 0 : i32
    %c0_i32_1 = arith.constant 0 : i32
    return %c0_i32, %c0_i32_0 : i32, i32
  }
  func.func @transform_3(%arg0: i32) -> (i32, i32, i32) {
    %c0_i32 = arith.constant 0 : i32
    %c0_i32_0 = arith.constant 0 : i32
    %c0_i32_1 = arith.constant 0 : i32
    return %arg0, %c0_i32, %c0_i32_0 : i32, i32, i32
  }
}

</mosaic_0001>

<llo_original>
// kernel: basic_critic_forward.5
$region0: #{basic_critic_forward.5}
  #allocation0 [shape = 'u32[]', space=smem, size = 0x4, offset = 0x4, fixed_abs, tag = 'smem constant byte address 0x4 - core index']
  #allocation1 [shape = 'u32[144,128]{1,0:T(1,128)}', space=vmem, size = 0x12000, scoped, tag = 'internal scratch']
  %s0 = inlined_call_operand.vmem [shape: bf16[2,14,14,32], index: 0, kind: input, shape index: {}]
  %s1 = inlined_call_operand.vmem [shape: bf16[3,96,32], index: 1, kind: input, shape index: {}]
  %s2 = inlined_call_operand.vmem [shape: f32[1,32], index: 2, kind: input, shape index: {}]
  %s3 = inlined_call_operand.vmem [shape: bf16[2,12,12,32], index: 3, kind: output, shape index: {0}]
  %s4 = inlined_call_operand.vmem [shape: f32[2,2,32], index: 4, kind: output, shape index: {1}]
  %5 = xla_tuple %s3, %s4
  %s6 = sld [smem:[#allocation0]]
  $region53: #{basic_critic_forward.5} parent=0
    _
  %s8 = ssub.s32 1, %s6
  %s9 = scalar_select 0, %s8, %s6
  loop: start=0, step=1, limit=4
  $region2: #{basic_critic_forward.5} parent=0 // loop_pre_header
    _
  $region3: #{basic_critic_forward.5} parent=0 // loop_header
    %s11 = sphi 0, %s15
    %p12 = scmp.ge.s32.totalorder %s11, 4
    %s21 = sphi 0, %s23
    %s24 = sphi 0, %s21
    %s25 = sphi 0, %s24
    %s41 = sphi 0, %s25
    %s45 = sphi 0, %s45
    %s47 = sphi 0, %s45
    %s48 = sphi 0, %s47
    %s62 = sphi 0, %s48
    %s66 = sphi 0, %s66
    %s68 = sphi 0, %s66
    %s69 = sphi 0, %s68
    %s83 = sphi 0, %s69
    %s89 = sphi 0, %s91
    %s92 = sphi 0, %s89
    %s93 = sphi 0, %s92
    %s109 = sphi 0, %s93
    %s115 = sphi 0, %s117
    %s118 = sphi 0, %s115
    %s119 = sphi 0, %s118
    %s135 = sphi 0, %s119
  $region4: #{basic_critic_forward.5} parent=0 // loop_header_branch
    %14 = sbr.rel (%p12) target = $region8
  $region5: #{basic_critic_forward.5} parent=0 // loop_body
    %s16 = ssub.s32 %s11, 1
    %s17 = ssub.s32 %s11, 2
    %s18 = sadd.s32 %s11, 1
    %s19 = ssub.s32 %s11, %s18
    %p20 = scmp.eq.s32.totalorder %s19, 0
    %s22 = sadd.s32 %s21, 1
    %s23 = scalar_select %p20, %s21, %s22
    %p26 = pneg %p20
    %p27 = scmp.eq.s32.totalorder %s11, 1
    %p28 = por %p26, %p27
    %p29 = scmp.ne.s32.totalorder %s21, %s24
    %p30 = scmp.eq.s32.totalorder %s11, 0
    %p31 = por %p29, %p30
    %p32 = scmp.ne.s32.totalorder %s21, %s24
    %p33 = scmp.eq.s32.totalorder %s16, 1
    %p34 = por %p32, %p33
    %p35 = scmp.ne.s32.totalorder %s24, %s25
    %p36 = scmp.eq.s32.totalorder %s16, 0
    %p37 = por %p35, %p36
    %p38 = scmp.ne.s32.totalorder %s24, %s25
    %p39 = scmp.eq.s32.totalorder %s17, 1
    %p40 = por %p38, %p39
    %p42 = scmp.ne.s32.totalorder %s25, %s41
    %p43 = scmp.eq.s32.totalorder %s17, 0
    %p44 = por %p42, %p43
    %s46 = sadd.s32 %s45, 1
    %p49 = scmp.eq.s32.totalorder %s11, 1
    %p50 = scmp.ne.s32.totalorder %s45, %s47
    %p51 = scmp.eq.s32.totalorder %s11, 0
    %p52 = por %p50, %p51
    %p53 = scmp.ne.s32.totalorder %s45, %s47
    %p54 = scmp.eq.s32.totalorder %s16, 1
    %p55 = por %p53, %p54
    %p56 = scmp.ne.s32.totalorder %s47, %s48
    %p57 = scmp.eq.s32.totalorder %s16, 0
    %p58 = por %p56, %p57
    %p59 = scmp.ne.s32.totalorder %s47, %s48
    %p60 = scmp.eq.s32.totalorder %s17, 1
    %p61 = por %p59, %p60
    %p63 = scmp.ne.s32.totalorder %s48, %s62
    %p64 = scmp.eq.s32.totalorder %s17, 0
    %p65 = por %p63, %p64
    %s67 = sadd.s32 %s66, 1
    %p70 = scmp.eq.s32.totalorder %s11, 1
    %p71 = scmp.ne.s32.totalorder %s66, %s68
    %p72 = scmp.eq.s32.totalorder %s11, 0
    %p73 = por %p71, %p72
    %p74 = scmp.ne.s32.totalorder %s66, %s68
    %p75 = scmp.eq.s32.totalorder %s16, 1
    %p76 = por %p74, %p75
    %p77 = scmp.ne.s32.totalorder %s68, %s69
    %p78 = scmp.eq.s32.totalorder %s16, 0
    %p79 = por %p77, %p78
    %p80 = scmp.ne.s32.totalorder %s68, %s69
    %p81 = scmp.eq.s32.totalorder %s17, 1
    %p82 = por %p80, %p81
    %p84 = scmp.ne.s32.totalorder %s69, %s83
    %p85 = scmp.eq.s32.totalorder %s17, 0
    %p86 = por %p84, %p85
    %s87 = ssub.s32 %s11, %s18
    %p88 = scmp.eq.s32.totalorder %s87, 0
    %s90 = sadd.s32 %s89, 1
    %s91 = scalar_select %p88, %s89, %s90
    %p94 = pneg %p88
    %p95 = scmp.eq.s32.totalorder %s11, 1
    %p96 = por %p94, %p95
    %p97 = scmp.ne.s32.totalorder %s89, %s92
    %p98 = scmp.eq.s32.totalorder %s11, 0
    %p99 = por %p97, %p98
    %p100 = scmp.ne.s32.totalorder %s89, %s92
    %p101 = scmp.eq.s32.totalorder %s16, 1
    %p102 = por %p100, %p101
    %p103 = scmp.ne.s32.totalorder %s92, %s93
    %p104 = scmp.eq.s32.totalorder %s16, 0
    %p105 = por %p103, %p104
    %p106 = scmp.ne.s32.totalorder %s92, %s93
    %p107 = scmp.eq.s32.totalorder %s17, 1
    %p108 = por %p106, %p107
    %p110 = scmp.ne.s32.totalorder %s93, %s109
    %p111 = scmp.eq.s32.totalorder %s17, 0
    %p112 = por %p110, %p111
    %s113 = ssub.s32 %s11, %s18
    %p114 = scmp.eq.s32.totalorder %s113, 0
    %s116 = sadd.s32 %s115, 1
    %s117 = scalar_select %p114, %s115, %s116
    %p120 = pneg %p114
    %p121 = scmp.eq.s32.totalorder %s11, 1
    %p122 = por %p120, %p121
    %p123 = scmp.ne.s32.totalorder %s115, %s118
    %p124 = scmp.eq.s32.totalorder %s11, 0
    %p125 = por %p123, %p124
    %p126 = scmp.ne.s32.totalorder %s115, %s118
    %p127 = scmp.eq.s32.totalorder %s16, 1
    %p128 = por %p126, %p127
    %p129 = scmp.ne.s32.totalorder %s118, %s119
    %p130 = scmp.eq.s32.totalorder %s16, 0
    %p131 = por %p129, %p130
    %p132 = scmp.ne.s32.totalorder %s118, %s119
    %p133 = scmp.eq.s32.totalorder %s17, 1
    %p134 = por %p132, %p133
    %p136 = scmp.ne.s32.totalorder %s119, %s135
    %p137 = scmp.eq.s32.totalorder %s17, 0
    %p138 = por %p136, %p137
    %p139 = scmp.le.s32.totalorder 1, %s11
    %p140 = scmp.lt.s32.totalorder %s11, 3
    %p141 = pnand %p139, %p140
    %p142 = pneg %p141
    // Predicated region
    $region9: #{basic_critic_forward.5} parent=5 // pred_check
      _
    $region10: #{basic_critic_forward.5} parent=5 // pred_check_branch
      %144 = sbr.rel (%p141) target = $region12
    $region11: #{basic_critic_forward.5} parent=5 // pred_region
      %s145 = ssub.s32 %s11, 1
      // Predicated region
      $region13: #{basic_critic_forward.5} parent=11 // pred_check
        %p146 = pneg %p58
      $region14: #{basic_critic_forward.5} parent=11 // pred_check_branch
        %148 = sbr.rel (%p146) target = $region16
      $region15: #{basic_critic_forward.5} parent=11 // pred_region
        _
      $region16: #{basic_critic_forward.5} parent=11 // pred_fallthru
        _
      // Predicated region
      $region17: #{basic_critic_forward.5} parent=11 // pred_check
        %p149 = pneg %p79
      $region18: #{basic_critic_forward.5} parent=11 // pred_check_branch
        %151 = sbr.rel (%p149) target = $region20
      $region19: #{basic_critic_forward.5} parent=11 // pred_region
        _
      $region20: #{basic_critic_forward.5} parent=11 // pred_fallthru
        _
    $region12: #{basic_critic_forward.5} parent=5 // pred_fallthru
      _
    %p152 = scmp.lt.s32.totalorder %s11, 2
    // Predicated region
    $region21: #{basic_critic_forward.5} parent=5 // pred_check
      %p153 = pneg %p152
    $region22: #{basic_critic_forward.5} parent=5 // pred_check_branch
      %155 = sbr.rel (%p153) target = $region24
    $region23: #{basic_critic_forward.5} parent=5 // pred_region
      // Predicated region
      $region25: #{basic_critic_forward.5} parent=23 // pred_check
        %p156 = pneg %p31
      $region26: #{basic_critic_forward.5} parent=23 // pred_check_branch
        %158 = sbr.rel (%p156) target = $region28
      $region27: #{basic_critic_forward.5} parent=23 // pred_region
        %p159 = scmp.lt.s32.totalorder %s11, 1
        %s160 = scalar_select %p159, %s11, 1
        %s161 = smul.addr %s160, 28
        %s162 = smul.addr %s161, 4
        %s163 = scalar_lea.vmem %s0, %s162
      $region28: #{basic_critic_forward.5} parent=23 // pred_fallthru
        _
    $region24: #{basic_critic_forward.5} parent=5 // pred_fallthru
      _
    %p164 = scmp.le.s32.totalorder 1, %s11
    %p165 = scmp.lt.s32.totalorder %s11, 3
    %p166 = pnand %p164, %p165
    %p167 = pneg %p166
    // Predicated region
    $region29: #{basic_critic_forward.5} parent=5 // pred_check
      _
    $region30: #{basic_critic_forward.5} parent=5 // pred_check_branch
      %169 = sbr.rel (%p166) target = $region32
    $region31: #{basic_critic_forward.5} parent=5 // pred_region
      %s170 = ssub.s32 %s11, 1
      %p171 = scmp.lt.s32.totalorder %s16, 1
      %s172 = scalar_select %p171, %s16, 1
      %s173 = smul.addr %s172, 28
      %s174 = smul.addr %s173, 4
      %s175 = scalar_lea.vmem %s0, %s174
      %p176 = pneg %p37
      %p177 = pneg %p34
      %p178 = pneg %p58
      %p179 = pneg %p55
      %p180 = pneg %p79
      %p181 = pneg %p76
      %p182 = pneg %p105
      %p183 = pneg %p102
      %p184 = scmp.lt.s32.totalorder %s16, 1
      %s185 = scalar_select %p184, %s16, 1
      %s186 = smul.addr %s185, 24
      %s187 = smul.addr %s186, 4
      %s188 = scalar_lea.vmem %s3, %s187
      %p189 = pneg %p131
      %p190 = pneg %p128
      %p191 = scmp.lt.s32.totalorder %s16, 1
      %s192 = scalar_select %p191, %s16, 1
      %s193 = smul.addr %s192, 2
      %s194 = scalar_lea.vmem %s4, %s193
      %p195 = scmp.lt.s32.totalorder %s16, 1
      %s196 = scalar_select %p195, %s16, 1
      %s197 = smul.addr %s196, 28
      %s198 = smul.addr %s197, 4
      %s199 = scalar_lea.vmem %s0, %s198
      %p200 = scmp.lt.s32.totalorder %s16, 1
      %s201 = scalar_select %p200, %s16, 1
      %s202 = smul.addr %s201, 24
      %s203 = smul.addr %s202, 4
      %s204 = scalar_lea.vmem %s3, %s203
      %p205 = scmp.lt.s32.totalorder %s16, 1
      %s206 = scalar_select %p205, %s16, 1
      %s207 = smul.addr %s206, 2
      %s208 = scalar_lea.vmem %s4, %s207
      %v210 = vld [vmem:[%s199] sm:$0xf]
      %v211 = vld [vmem:[%s199 + $0x4] sm:$0x7]
      %v212 = vld [vmem:[%s199 + $0x8] sm:$0xf]
      %v213 = vld [vmem:[%s199 + $0xc] sm:$0x7]
      %v214 = vld [vmem:[%s199 + $0x10] sm:$0xf]
      %v215 = vld [vmem:[%s199 + $0x14] sm:$0x7]
      %v216 = vld [vmem:[%s199 + $0x18] sm:$0xf]
      %v217 = vld [vmem:[%s199 + $0x1c] sm:$0x7]
      %v218 = vld [vmem:[%s199 + $0x20] sm:$0xf]
      %v219 = vld [vmem:[%s199 + $0x24] sm:$0x7]
      %v220 = vld [vmem:[%s199 + $0x28] sm:$0xf]
      %v221 = vld [vmem:[%s199 + $0x2c] sm:$0x7]
      %v222 = vld [vmem:[%s199 + $0x30] sm:$0xf]
      %v223 = vld [vmem:[%s199 + $0x34] sm:$0x7]
      %v224 = vld [vmem:[%s199 + $0x38] sm:$0xf]
      %v225 = vld [vmem:[%s199 + $0x3c] sm:$0x7]
      %v226 = vld [vmem:[%s199 + $0x40] sm:$0xf]
      %v227 = vld [vmem:[%s199 + $0x44] sm:$0x7]
      %v228 = vld [vmem:[%s199 + $0x48] sm:$0xf]
      %v229 = vld [vmem:[%s199 + $0x4c] sm:$0x7]
      %v230 = vld [vmem:[%s199 + $0x50] sm:$0xf]
      %v231 = vld [vmem:[%s199 + $0x54] sm:$0x7]
      %v232 = vld [vmem:[%s199 + $0x58] sm:$0xf]
      %v233 = vld [vmem:[%s199 + $0x5c] sm:$0x7]
      %v234 = vld [vmem:[%s199 + $0x60] sm:$0xf]
      %v235 = vld [vmem:[%s199 + $0x64] sm:$0x7]
      %v236 = vld [vmem:[%s199 + $0x68] sm:$0xf]
      %v237 = vld [vmem:[%s199 + $0x6c] sm:$0x7]
      %v238 = vunpack.c.l.bf16 %v210
      %v239 = vunpack.c.l.bf16 %v211
      %v240 = vunpack.c.l.bf16 %v212
      %v241 = vunpack.c.l.bf16 %v213
      %v242 = vunpack.c.l.bf16 %v214
      %v243 = vunpack.c.l.bf16 %v215
      %v244 = vunpack.c.l.bf16 %v216
      %v245 = vunpack.c.l.bf16 %v217
      %v246 = vunpack.c.l.bf16 %v218
      %v247 = vunpack.c.l.bf16 %v219
      %v248 = vunpack.c.l.bf16 %v220
      %v249 = vunpack.c.l.bf16 %v221
      %v250 = vunpack.c.l.bf16 %v222
      %v251 = vunpack.c.l.bf16 %v223
      %v252 = vunpack.c.l.bf16 %v224
      %v253 = vunpack.c.l.bf16 %v225
      %v254 = vunpack.c.l.bf16 %v226
      %v255 = vunpack.c.l.bf16 %v227
      %v256 = vunpack.c.l.bf16 %v228
      %v257 = vunpack.c.l.bf16 %v229
      %v258 = vunpack.c.l.bf16 %v230
      %v259 = vunpack.c.l.bf16 %v231
      %v260 = vunpack.c.l.bf16 %v232
      %v261 = vunpack.c.l.bf16 %v233
      %v262 = vunpack.c.l.bf16 %v234
      %v263 = vunpack.c.l.bf16 %v235
      %v264 = vunpack.c.l.bf16 %v236
      %v265 = vunpack.c.l.bf16 %v237
      %v266 = vpack.c.bf16 %v239, %v238
      %v267 = vpack.c.bf16 %v241, %v240
      %v268 = vpack.c.bf16 %v243, %v242
      %v269 = vpack.c.bf16 %v245, %v244
      %v270 = vpack.c.bf16 %v247, %v246
      %v271 = vpack.c.bf16 %v249, %v248
      %v272 = vpack.c.bf16 %v251, %v250
      %v273 = vpack.c.bf16 %v253, %v252
      %v274 = vpack.c.bf16 %v255, %v254
      %v275 = vpack.c.bf16 %v257, %v256
      %v276 = vpack.c.bf16 %v259, %v258
      %v277 = vpack.c.bf16 %v261, %v260
      %v279 = vshrl.u32 %v266, 16
      %v281 = vshll.u32 %v266, 16
      %v283 = vrot.slane %v281, 1
      %v284 = vor.u32 %v279, %v283
      %v286 = vshrl.u32 %v267, 16
      %v288 = vshll.u32 %v267, 16
      %v290 = vrot.slane %v288, 1
      %v291 = vor.u32 %v286, %v290
      %v293 = vshrl.u32 %v268, 16
      %v295 = vshll.u32 %v268, 16
      %v297 = vrot.slane %v295, 1
      %v298 = vor.u32 %v293, %v297
      %v300 = vshrl.u32 %v269, 16
      %v302 = vshll.u32 %v269, 16
      %v304 = vrot.slane %v302, 1
      %v305 = vor.u32 %v300, %v304
      %v307 = vshrl.u32 %v270, 16
      %v309 = vshll.u32 %v270, 16
      %v311 = vrot.slane %v309, 1
      %v312 = vor.u32 %v307, %v311
      %v314 = vshrl.u32 %v271, 16
      %v316 = vshll.u32 %v271, 16
      %v318 = vrot.slane %v316, 1
      %v319 = vor.u32 %v314, %v318
      %v321 = vshrl.u32 %v272, 16
      %v323 = vshll.u32 %v272, 16
      %v325 = vrot.slane %v323, 1
      %v326 = vor.u32 %v321, %v325
      %v328 = vshrl.u32 %v273, 16
      %v330 = vshll.u32 %v273, 16
      %v332 = vrot.slane %v330, 1
      %v333 = vor.u32 %v328, %v332
      %v335 = vshrl.u32 %v274, 16
      %v337 = vshll.u32 %v274, 16
      %v339 = vrot.slane %v337, 1
      %v340 = vor.u32 %v335, %v339
      %v342 = vshrl.u32 %v275, 16
      %v344 = vshll.u32 %v275, 16
      %v346 = vrot.slane %v344, 1
      %v347 = vor.u32 %v342, %v346
      %v349 = vshrl.u32 %v276, 16
      %v351 = vshll.u32 %v276, 16
      %v353 = vrot.slane %v351, 1
      %v354 = vor.u32 %v349, %v353
      %v356 = vshrl.u32 %v277, 16
      %v358 = vshll.u32 %v277, 16
      %v360 = vrot.slane %v358, 1
      %v361 = vor.u32 %v356, %v360
      %362 = vrot.lane.b32.xlu0 %v284, 32
      %v363 = vpop.permute.xlu0 %362
      %364 = vrot.lane.b32.xlu0 %v291, 32
      %v365 = vpop.permute.xlu0 %364
      %366 = vrot.lane.b32.xlu0 %v298, 32
      %v367 = vpop.permute.xlu0 %366
      %368 = vrot.lane.b32.xlu0 %v305, 32
      %v369 = vpop.permute.xlu0 %368
      %370 = vrot.lane.b32.xlu0 %v312, 32
      %v371 = vpop.permute.xlu0 %370
      %372 = vrot.lane.b32.xlu0 %v319, 32
      %v373 = vpop.permute.xlu0 %372
      %374 = vrot.lane.b32.xlu0 %v326, 32
      %v375 = vpop.permute.xlu0 %374
      %376 = vrot.lane.b32.xlu0 %v333, 32
      %v377 = vpop.permute.xlu0 %376
      %378 = vrot.lane.b32.xlu0 %v340, 32
      %v379 = vpop.permute.xlu0 %378
      %380 = vrot.lane.b32.xlu0 %v347, 32
      %v381 = vpop.permute.xlu0 %380
      %382 = vrot.lane.b32.xlu0 %v354, 32
      %v383 = vpop.permute.xlu0 %382
      %384 = vrot.lane.b32.xlu0 %v361, 32
      %v385 = vpop.permute.xlu0 %384
      %v398 = vrot.slane %v266, 1
      %v399 = vrot.slane %v267, 1
      %v400 = vrot.slane %v268, 1
      %v401 = vrot.slane %v269, 1
      %v402 = vrot.slane %v270, 1
      %v403 = vrot.slane %v271, 1
      %v404 = vrot.slane %v272, 1
      %v405 = vrot.slane %v273, 1
      %v406 = vrot.slane %v274, 1
      %v407 = vrot.slane %v275, 1
      %v408 = vrot.slane %v276, 1
      %v409 = vrot.slane %v277, 1
      %410 = vrot.lane.b32.xlu0 %v398, 64
      %v411 = vpop.permute.xlu0 %410
      %412 = vrot.lane.b32.xlu0 %v399, 64
      %v413 = vpop.permute.xlu0 %412
      %414 = vrot.lane.b32.xlu0 %v400, 64
      %v415 = vpop.permute.xlu0 %414
      %416 = vrot.lane.b32.xlu0 %v401, 64
      %v417 = vpop.permute.xlu0 %416
      %418 = vrot.lane.b32.xlu0 %v402, 64
      %v419 = vpop.permute.xlu0 %418
      %420 = vrot.lane.b32.xlu0 %v403, 64
      %v421 = vpop.permute.xlu0 %420
      %422 = vrot.lane.b32.xlu0 %v404, 64
      %v423 = vpop.permute.xlu0 %422
      %424 = vrot.lane.b32.xlu0 %v405, 64
      %v425 = vpop.permute.xlu0 %424
      %426 = vrot.lane.b32.xlu0 %v406, 64
      %v427 = vpop.permute.xlu0 %426
      %428 = vrot.lane.b32.xlu0 %v407, 64
      %v429 = vpop.permute.xlu0 %428
      %430 = vrot.lane.b32.xlu0 %v408, 64
      %v431 = vpop.permute.xlu0 %430
      %432 = vrot.lane.b32.xlu0 %v409, 64
      %v433 = vpop.permute.xlu0 %432
      %vm434 = vcmask 261120
      %v436 = vsel %vm434, %v266, %v363
      %v438 = vsel %vm434, %v267, %v365
      %v440 = vsel %vm434, %v268, %v367
      %v442 = vsel %vm434, %v269, %v369
      %v444 = vsel %vm434, %v270, %v371
      %v446 = vsel %vm434, %v271, %v373
      %v448 = vsel %vm434, %v272, %v375
      %v450 = vsel %vm434, %v273, %v377
      %v452 = vsel %vm434, %v274, %v379
      %v454 = vsel %vm434, %v275, %v381
      %v456 = vsel %vm434, %v276, %v383
      %v458 = vsel %vm434, %v277, %v385
      %vm459 = vcmask 523264
      %v461 = vsel %vm459, %v436, %v411
      %v463 = vsel %vm459, %v438, %v413
      %v465 = vsel %vm459, %v440, %v415
      %v467 = vsel %vm459, %v442, %v417
      %v469 = vsel %vm459, %v444, %v419
      %v471 = vsel %vm459, %v446, %v421
      %v473 = vsel %vm459, %v448, %v423
      %v475 = vsel %vm459, %v450, %v425
      %v477 = vsel %vm459, %v452, %v427
      %v479 = vsel %vm459, %v454, %v429
      %v481 = vsel %vm459, %v456, %v431
      %v483 = vsel %vm459, %v458, %v433
      %v496 = vcombine.high %v461, %v461
      %v498 = vunpack.c.l.s4 1983009808
      %v499 = vunpack.c.0.s8 %v498
      %v500 = vlaneseq
      %v501 = vshrl.u32 %v500, 7
      %v502 = vsub.s32 %v499, %v501
      %v503 = vrot.slane %v461, %v502
      %v505 = vunpack.c.l.s4 1983009808
      %v506 = vunpack.c.0.s8 %v505
      %v507 = vlaneseq
      %v508 = vshrl.u32 %v507, 7
      %v509 = vsub.s32 %v506, %v508
      %v510 = vrot.slane %v496, %v509
      %v511 = vcombine.high %v503, %v503
      %v512 = vcombine.high %v463, %v463
      %v514 = vunpack.c.l.s4 1983009808
      %v515 = vunpack.c.0.s8 %v514
      %v516 = vlaneseq
      %v517 = vshrl.u32 %v516, 7
      %v518 = vsub.s32 %v515, %v517
      %v519 = vrot.slane %v463, %v518
      %v521 = vunpack.c.l.s4 1983009808
      %v522 = vunpack.c.0.s8 %v521
      %v523 = vlaneseq
      %v524 = vshrl.u32 %v523, 7
      %v525 = vsub.s32 %v522, %v524
      %v526 = vrot.slane %v512, %v525
      %v527 = vcombine.high %v519, %v519
      %v528 = vcombine.high %v465, %v465
      %v530 = vunpack.c.l.s4 1983009808
      %v531 = vunpack.c.0.s8 %v530
      %v532 = vlaneseq
      %v533 = vshrl.u32 %v532, 7
      %v534 = vsub.s32 %v531, %v533
      %v535 = vrot.slane %v465, %v534
      %v537 = vunpack.c.l.s4 1983009808
      %v538 = vunpack.c.0.s8 %v537
      %v539 = vlaneseq
      %v540 = vshrl.u32 %v539, 7
      %v541 = vsub.s32 %v538, %v540
      %v542 = vrot.slane %v528, %v541
      %v543 = vcombine.high %v535, %v535
      %v544 = vcombine.high %v467, %v467
      %v546 = vunpack.c.l.s4 1983009808
      %v547 = vunpack.c.0.s8 %v546
      %v548 = vlaneseq
      %v549 = vshrl.u32 %v548, 7
      %v550 = vsub.s32 %v547, %v549
      %v551 = vrot.slane %v467, %v550
      %v553 = vunpack.c.l.s4 1983009808
      %v554 = vunpack.c.0.s8 %v553
      %v555 = vlaneseq
      %v556 = vshrl.u32 %v555, 7
      %v557 = vsub.s32 %v554, %v556
      %v558 = vrot.slane %v544, %v557
      %v559 = vcombine.high %v551, %v551
      %v560 = vcombine.high %v469, %v469
      %v562 = vunpack.c.l.s4 1983009808
      %v563 = vunpack.c.0.s8 %v562
      %v564 = vlaneseq
      %v565 = vshrl.u32 %v564, 7
      %v566 = vsub.s32 %v563, %v565
      %v567 = vrot.slane %v469, %v566
      %v569 = vunpack.c.l.s4 1983009808
      %v570 = vunpack.c.0.s8 %v569
      %v571 = vlaneseq
      %v572 = vshrl.u32 %v571, 7
      %v573 = vsub.s32 %v570, %v572
      %v574 = vrot.slane %v560, %v573
      %v575 = vcombine.high %v567, %v567
      %v576 = vcombine.high %v471, %v471
      %v578 = vunpack.c.l.s4 1983009808
      %v579 = vunpack.c.0.s8 %v578
      %v580 = vlaneseq
      %v581 = vshrl.u32 %v580, 7
      %v582 = vsub.s32 %v579, %v581
      %v583 = vrot.slane %v471, %v582
      %v585 = vunpack.c.l.s4 1983009808
      %v586 = vunpack.c.0.s8 %v585
      %v587 = vlaneseq
      %v588 = vshrl.u32 %v587, 7
      %v589 = vsub.s32 %v586, %v588
      %v590 = vrot.slane %v576, %v589
      %v591 = vcombine.high %v583, %v583
      %v592 = vcombine.high %v473, %v473
      %v594 = vunpack.c.l.s4 1983009808
      %v595 = vunpack.c.0.s8 %v594
      %v596 = vlaneseq
      %v597 = vshrl.u32 %v596, 7
      %v598 = vsub.s32 %v595, %v597
      %v599 = vrot.slane %v473, %v598
      %v601 = vunpack.c.l.s4 1983009808
      %v602 = vunpack.c.0.s8 %v601
      %v603 = vlaneseq
      %v604 = vshrl.u32 %v603, 7
      %v605 = vsub.s32 %v602, %v604
      %v606 = vrot.slane %v592, %v605
      %v607 = vcombine.high %v599, %v599
      %v608 = vcombine.high %v475, %v475
      %v610 = vunpack.c.l.s4 1983009808
      %v611 = vunpack.c.0.s8 %v610
      %v612 = vlaneseq
      %v613 = vshrl.u32 %v612, 7
      %v614 = vsub.s32 %v611, %v613
      %v615 = vrot.slane %v475, %v614
      %v617 = vunpack.c.l.s4 1983009808
      %v618 = vunpack.c.0.s8 %v617
      %v619 = vlaneseq
      %v620 = vshrl.u32 %v619, 7
      %v621 = vsub.s32 %v618, %v620
      %v622 = vrot.slane %v608, %v621
      %v623 = vcombine.high %v615, %v615
      %v624 = vcombine.high %v477, %v477
      %v626 = vunpack.c.l.s4 1983009808
      %v627 = vunpack.c.0.s8 %v626
      %v628 = vlaneseq
      %v629 = vshrl.u32 %v628, 7
      %v630 = vsub.s32 %v627, %v629
      %v631 = vrot.slane %v477, %v630
      %v633 = vunpack.c.l.s4 1983009808
      %v634 = vunpack.c.0.s8 %v633
      %v635 = vlaneseq
      %v636 = vshrl.u32 %v635, 7
      %v637 = vsub.s32 %v634, %v636
      %v638 = vrot.slane %v624, %v637
      %v639 = vcombine.high %v631, %v631
      %v640 = vcombine.high %v479, %v479
      %v642 = vunpack.c.l.s4 1983009808
      %v643 = vunpack.c.0.s8 %v642
      %v644 = vlaneseq
      %v645 = vshrl.u32 %v644, 7
      %v646 = vsub.s32 %v643, %v645
      %v647 = vrot.slane %v479, %v646
      %v649 = vunpack.c.l.s4 1983009808
      %v650 = vunpack.c.0.s8 %v649
      %v651 = vlaneseq
      %v652 = vshrl.u32 %v651, 7
      %v653 = vsub.s32 %v650, %v652
      %v654 = vrot.slane %v640, %v653
      %v655 = vcombine.high %v647, %v647
      %v656 = vcombine.high %v481, %v481
      %v658 = vunpack.c.l.s4 1983009808
      %v659 = vunpack.c.0.s8 %v658
      %v660 = vlaneseq
      %v661 = vshrl.u32 %v660, 7
      %v662 = vsub.s32 %v659, %v661
      %v663 = vrot.slane %v481, %v662
      %v665 = vunpack.c.l.s4 1983009808
      %v666 = vunpack.c.0.s8 %v665
      %v667 = vlaneseq
      %v668 = vshrl.u32 %v667, 7
      %v669 = vsub.s32 %v666, %v668
      %v670 = vrot.slane %v656, %v669
      %v671 = vcombine.high %v663, %v663
      %v672 = vcombine.high %v483, %v483
      %v674 = vunpack.c.l.s4 1983009808
      %v675 = vunpack.c.0.s8 %v674
      %v676 = vlaneseq
      %v677 = vshrl.u32 %v676, 7
      %v678 = vsub.s32 %v675, %v677
      %v679 = vrot.slane %v483, %v678
      %v681 = vunpack.c.l.s4 1983009808
      %v682 = vunpack.c.0.s8 %v681
      %v683 = vlaneseq
      %v684 = vshrl.u32 %v683, 7
      %v685 = vsub.s32 %v682, %v684
      %v686 = vrot.slane %v672, %v685
      %v687 = vcombine.high %v679, %v679
      %v688 = vld [vmem:[%s1] sm:$0xf]
      %v689 = vld [vmem:[%s1 + $0x4] sm:$0xf]
      %v690 = vld [vmem:[%s1 + $0x8] sm:$0xf]
      %v691 = vld [vmem:[%s1 + $0xc] sm:$0xf]
      %v692 = vld [vmem:[%s1 + $0x10] sm:$0xf]
      %v693 = vld [vmem:[%s1 + $0x14] sm:$0xf]
      %v694 = vld [vmem:[%s1 + $0x18] sm:$0xf]
      %v695 = vld [vmem:[%s1 + $0x1c] sm:$0xf]
      %v696 = vld [vmem:[%s1 + $0x20] sm:$0xf]
      %v697 = vld [vmem:[%s1 + $0x24] sm:$0xf]
      %v698 = vld [vmem:[%s1 + $0x28] sm:$0xf]
      %v699 = vld [vmem:[%s1 + $0x2c] sm:$0xf]
      %v700 = vpack.c.bf16 %v263, %v262
      %v702 = vshrl.u32 %v700, 16
      %v704 = vshll.u32 %v700, 16
      %v706 = vrot.slane %v704, 1
      %v707 = vor.u32 %v702, %v706
      %708 = vrot.lane.b32.xlu0 %v707, 32
      %v709 = vpop.permute.xlu0 %708
      %v711 = vrot.slane %v700, 1
      %712 = vrot.lane.b32.xlu0 %v711, 64
      %v713 = vpop.permute.xlu0 %712
      %v715 = vsel %vm434, %v700, %v709
      %v717 = vsel %vm459, %v715, %v713
      %v719 = vcombine.high %v717, %v717
      %v721 = vunpack.c.l.s4 1983009808
      %v722 = vunpack.c.0.s8 %v721
      %v723 = vlaneseq
      %v724 = vshrl.u32 %v723, 7
      %v725 = vsub.s32 %v722, %v724
      %v726 = vrot.slane %v717, %v725
      %v728 = vunpack.c.l.s4 1983009808
      %v729 = vunpack.c.0.s8 %v728
      %v730 = vlaneseq
      %v731 = vshrl.u32 %v730, 7
      %v732 = vsub.s32 %v729, %v731
      %v733 = vrot.slane %v719, %v732
      %v734 = vcombine.high %v726, %v726
      %s735 = scalar_lea.vmem %s1, 48
      %v736 = vld [vmem:[%s735] sm:$0xf]
      %v737 = vld [vmem:[%s735 + $0x4] sm:$0xf]
      %v738 = vld [vmem:[%s735 + $0x8] sm:$0xf]
      %v739 = vld [vmem:[%s735 + $0xc] sm:$0xf]
      %v740 = vld [vmem:[%s735 + $0x10] sm:$0xf]
      %v741 = vld [vmem:[%s735 + $0x14] sm:$0xf]
      %v742 = vld [vmem:[%s735 + $0x18] sm:$0xf]
      %v743 = vld [vmem:[%s735 + $0x1c] sm:$0xf]
      %v744 = vld [vmem:[%s735 + $0x20] sm:$0xf]
      %v745 = vld [vmem:[%s735 + $0x24] sm:$0xf]
      %v746 = vld [vmem:[%s735 + $0x28] sm:$0xf]
      %v747 = vld [vmem:[%s735 + $0x2c] sm:$0xf]
      %v748 = vcombine.low %v519, %v527
      %v749 = vcombine.low %v526, %v535
      %v751 = vunpack.c.l.s4 1983009808
      %v752 = vunpack.c.0.s8 %v751
      %v753 = vlaneseq
      %v754 = vshrl.u32 %v753, 7
      %v755 = vsub.s32 %v752, %v754
      %v756 = vrot.slane %v748, %v755
      %v758 = vunpack.c.l.s4 1983009808
      %v759 = vunpack.c.0.s8 %v758
      %v760 = vlaneseq
      %v761 = vshrl.u32 %v760, 7
      %v762 = vsub.s32 %v759, %v761
      %v763 = vrot.slane %v749, %v762
      %v764 = vcombine.low %v756, %v763
      %v765 = vcombine.low %v543, %v542
      %v766 = vcombine.low %v551, %v559
      %v768 = vunpack.c.l.s4 1983009808
      %v769 = vunpack.c.0.s8 %v768
      %v770 = vlaneseq
      %v771 = vshrl.u32 %v770, 7
      %v772 = vsub.s32 %v769, %v771
      %v773 = vrot.slane %v765, %v772
      %v775 = vunpack.c.l.s4 1983009808
      %v776 = vunpack.c.0.s8 %v775
      %v777 = vlaneseq
      %v778 = vshrl.u32 %v777, 7
      %v779 = vsub.s32 %v776, %v778
      %v780 = vrot.slane %v766, %v779
      %v781 = vcombine.low %v773, %v780
      %v782 = vcombine.low %v558, %v567
      %v783 = vcombine.low %v575, %v574
      %v785 = vunpack.c.l.s4 1983009808
      %v786 = vunpack.c.0.s8 %v785
      %v787 = vlaneseq
      %v788 = vshrl.u32 %v787, 7
      %v789 = vsub.s32 %v786, %v788
      %v790 = vrot.slane %v782, %v789
      %v792 = vunpack.c.l.s4 1983009808
      %v793 = vunpack.c.0.s8 %v792
      %v794 = vlaneseq
      %v795 = vshrl.u32 %v794, 7
      %v796 = vsub.s32 %v793, %v795
      %v797 = vrot.slane %v783, %v796
      %v798 = vcombine.low %v790, %v797
      %v799 = vcombine.low %v583, %v591
      %v800 = vcombine.low %v590, %v599
      %v802 = vunpack.c.l.s4 1983009808
      %v803 = vunpack.c.0.s8 %v802
      %v804 = vlaneseq
      %v805 = vshrl.u32 %v804, 7
      %v806 = vsub.s32 %v803, %v805
      %v807 = vrot.slane %v799, %v806
      %v809 = vunpack.c.l.s4 1983009808
      %v810 = vunpack.c.0.s8 %v809
      %v811 = vlaneseq
      %v812 = vshrl.u32 %v811, 7
      %v813 = vsub.s32 %v810, %v812
      %v814 = vrot.slane %v800, %v813
      %v815 = vcombine.low %v807, %v814
      %v816 = vcombine.low %v607, %v606
      %v817 = vcombine.low %v615, %v623
      %v819 = vunpack.c.l.s4 1983009808
      %v820 = vunpack.c.0.s8 %v819
      %v821 = vlaneseq
      %v822 = vshrl.u32 %v821, 7
      %v823 = vsub.s32 %v820, %v822
      %v824 = vrot.slane %v816, %v823
      %v826 = vunpack.c.l.s4 1983009808
      %v827 = vunpack.c.0.s8 %v826
      %v828 = vlaneseq
      %v829 = vshrl.u32 %v828, 7
      %v830 = vsub.s32 %v827, %v829
      %v831 = vrot.slane %v817, %v830
      %v832 = vcombine.low %v824, %v831
      %v833 = vcombine.low %v622, %v631
      %v834 = vcombine.low %v639, %v638
      %v836 = vunpack.c.l.s4 1983009808
      %v837 = vunpack.c.0.s8 %v836
      %v838 = vlaneseq
      %v839 = vshrl.u32 %v838, 7
      %v840 = vsub.s32 %v837, %v839
      %v841 = vrot.slane %v833, %v840
      %v843 = vunpack.c.l.s4 1983009808
      %v844 = vunpack.c.0.s8 %v843
      %v845 = vlaneseq
      %v846 = vshrl.u32 %v845, 7
      %v847 = vsub.s32 %v844, %v846
      %v848 = vrot.slane %v834, %v847
      %v849 = vcombine.low %v841, %v848
      %v850 = vcombine.low %v647, %v655
      %v851 = vcombine.low %v654, %v663
      %v853 = vunpack.c.l.s4 1983009808
      %v854 = vunpack.c.0.s8 %v853
      %v855 = vlaneseq
      %v856 = vshrl.u32 %v855, 7
      %v857 = vsub.s32 %v854, %v856
      %v858 = vrot.slane %v850, %v857
      %v860 = vunpack.c.l.s4 1983009808
      %v861 = vunpack.c.0.s8 %v860
      %v862 = vlaneseq
      %v863 = vshrl.u32 %v862, 7
      %v864 = vsub.s32 %v861, %v863
      %v865 = vrot.slane %v851, %v864
      %v866 = vcombine.low %v858, %v865
      %v867 = vcombine.low %v671, %v670
      %v868 = vcombine.low %v679, %v687
      %v870 = vunpack.c.l.s4 1983009808
      %v871 = vunpack.c.0.s8 %v870
      %v872 = vlaneseq
      %v873 = vshrl.u32 %v872, 7
      %v874 = vsub.s32 %v871, %v873
      %v875 = vrot.slane %v867, %v874
      %v877 = vunpack.c.l.s4 1983009808
      %v878 = vunpack.c.0.s8 %v877
      %v879 = vlaneseq
      %v880 = vshrl.u32 %v879, 7
      %v881 = vsub.s32 %v878, %v880
      %v882 = vrot.slane %v868, %v881
      %v883 = vcombine.low %v875, %v882
      %v884 = vcombine.low %v686, %v726
      %v885 = vcombine.low %v734, %v733
      %v887 = vunpack.c.l.s4 1983009808
      %v888 = vunpack.c.0.s8 %v887
      %v889 = vlaneseq
      %v890 = vshrl.u32 %v889, 7
      %v891 = vsub.s32 %v888, %v890
      %v892 = vrot.slane %v884, %v891
      %v894 = vunpack.c.l.s4 1983009808
      %v895 = vunpack.c.0.s8 %v894
      %v896 = vlaneseq
      %v897 = vshrl.u32 %v896, 7
      %v898 = vsub.s32 %v895, %v897
      %v899 = vrot.slane %v885, %v898
      %v900 = vcombine.low %v892, %v899
      %v913 = vunpack.c.l.b16 %v736
      %v914 = vunpack.c.l.b16 %v737
      %v915 = vunpack.c.l.b16 %v738
      %v916 = vunpack.c.l.b16 %v739
      %v917 = vunpack.c.l.b16 %v740
      %v918 = vunpack.c.l.b16 %v741
      %v919 = vunpack.c.l.b16 %v742
      %v920 = vunpack.c.l.b16 %v743
      %v921 = vunpack.c.l.b16 %v744
      %v922 = vunpack.c.l.b16 %v745
      %v923 = vunpack.c.l.b16 %v746
      %v924 = vunpack.c.l.b16 %v747
      %v925 = vpack.c.b16 %v914, %v913
      %v926 = vpack.c.b16 %v916, %v915
      %v927 = vpack.c.b16 %v918, %v917
      %v928 = vpack.c.b16 %v920, %v919
      %v929 = vpack.c.b16 %v922, %v921
      %v930 = vpack.c.b16 %v924, %v923
      %vm937 = vcmask 785408
      %v939 = vsel %vm937, %v764, 0
      %v942 = vsel %vm937, %v781, 0
      %v945 = vsel %vm937, %v798, 0
      %v948 = vsel %vm937, %v815, 0
      %v951 = vsel %vm937, %v832, 0
      %v954 = vsel %vm937, %v849, 0
      %v957 = vsel %vm937, %v866, 0
      %v960 = vsel %vm937, %v883, 0
      %v963 = vsel %vm937, %v900, 0
      %965 = vmatprep.subr.bf16.mxu0 0
      %966 = vmatpush1.bf16.msra.mxu0 0
      %967 = vmatprep.subr.bf16.mxu0 0
      %968 = vmatpush1.bf16.msra.mxu0 0
      %969 = vmatprep.subr.bf16.mxu0 0
      %970 = vmatpush1.bf16.msra.mxu0 %v930
      %971 = vmatprep.subr.bf16.mxu0 0
      %972 = vmatpush1.bf16.msra.mxu0 %v929
      %973 = vmatprep.subr.bf16.mxu0 0
      %974 = vmatpush1.bf16.msra.mxu0 %v928
      %975 = vmatprep.subr.bf16.mxu0 0
      %976 = vmatpush1.bf16.msra.mxu0 %v927
      %977 = vmatprep.subr.bf16.mxu0 0
      %978 = vmatpush1.bf16.msra.mxu0 %v926
      %979 = vmatprep.subr.bf16.mxu0 0
      %980 = vmatpush1.bf16.msra.mxu0 %v925
      %981 = vmatprep.subr.bf16.mxu0 0
      %982 = vmatpush2.bf16.msra.mxu0 0
      %983 = vmatprep.subr.bf16.mxu0 0
      %984 = vmatpush2.bf16.msra.mxu0 0
      %985 = vmatprep.subr.bf16.mxu0 0
      %986 = vmatpush2.bf16.msra.mxu0 0
      %987 = vmatprep.subr.bf16.mxu0 0
      %988 = vmatpush2.bf16.msra.mxu0 0
      %989 = vmatprep.subr.bf16.mxu0 0
      %990 = vmatpush2.bf16.msra.mxu0 0
      %991 = vmatprep.subr.bf16.mxu0 0
      %992 = vmatpush2.bf16.msra.mxu0 0
      %993 = vmatprep.subr.bf16.mxu0 0
      %994 = vmatpush2.bf16.msra.mxu0 0
      %995 = vmatprep.subr.bf16.mxu0 0
      %996 = vmatpush2.bf16.msra.mxu0 0
      %997 = vmatprep.mubr.bf16.mxu0 0
      %998 = vmatmul.mubr.bf16.gmra.mxu0 %v939
      %v999 = vpop.f32.mrf.mxu0
      %v1000 = vadd.f32 0.0, %v999
      %v1001 = vpop.f32.mrf.mxu0
      %v1002 = vpop.f32.mrf.mxu0
      %v1003 = vadd.f32 0.0, %v1002
      %v1004 = vpop.f32.mrf.mxu0
      %1005 = vmatprep.mubr.bf16.mxu0 0
      %1006 = vmatmul.mubr.bf16.gmra.mxu0 %v942
      %v1007 = vpop.f32.mrf.mxu0
      %v1008 = vadd.f32 0.0, %v1007
      %v1009 = vpop.f32.mrf.mxu0
      %v1010 = vpop.f32.mrf.mxu0
      %v1011 = vadd.f32 0.0, %v1010
      %v1012 = vpop.f32.mrf.mxu0
      %1013 = vmatprep.mubr.bf16.mxu0 0
      %1014 = vmatmul.mubr.bf16.gmra.mxu0 %v945
      %v1015 = vpop.f32.mrf.mxu0
      %v1016 = vadd.f32 0.0, %v1015
      %v1017 = vpop.f32.mrf.mxu0
      %v1018 = vpop.f32.mrf.mxu0
      %v1019 = vadd.f32 0.0, %v1018
      %v1020 = vpop.f32.mrf.mxu0
      %1021 = vmatprep.mubr.bf16.mxu0 0
      %1022 = vmatmul.mubr.bf16.gmra.mxu0 %v948
      %v1023 = vpop.f32.mrf.mxu0
      %v1024 = vadd.f32 0.0, %v1023
      %v1025 = vpop.f32.mrf.mxu0
      %v1026 = vpop.f32.mrf.mxu0
      %v1027 = vadd.f32 0.0, %v1026
      %v1028 = vpop.f32.mrf.mxu0
      %1029 = vmatprep.mubr.bf16.mxu0 0
      %1030 = vmatmul.mubr.bf16.gmra.mxu0 %v951
      %v1031 = vpop.f32.mrf.mxu0
      %v1032 = vadd.f32 0.0, %v1031
      %v1033 = vpop.f32.mrf.mxu0
      %v1034 = vpop.f32.mrf.mxu0
      %v1035 = vadd.f32 0.0, %v1034
      %v1036 = vpop.f32.mrf.mxu0
      %1037 = vmatprep.mubr.bf16.mxu0 0
      %1038 = vmatmul.mubr.bf16.gmra.mxu0 %v954
      %v1039 = vpop.f32.mrf.mxu0
      %v1040 = vadd.f32 0.0, %v1039
      %v1041 = vpop.f32.mrf.mxu0
      %v1042 = vpop.f32.mrf.mxu0
      %v1043 = vadd.f32 0.0, %v1042
      %v1044 = vpop.f32.mrf.mxu0
      %1045 = vmatprep.mubr.bf16.mxu0 0
      %1046 = vmatmul.mubr.bf16.gmra.mxu0 %v957
      %v1047 = vpop.f32.mrf.mxu0
      %v1048 = vadd.f32 0.0, %v1047
      %v1049 = vpop.f32.mrf.mxu0
      %v1050 = vpop.f32.mrf.mxu0
      %v1051 = vadd.f32 0.0, %v1050
      %v1052 = vpop.f32.mrf.mxu0
      %1053 = vmatprep.mubr.bf16.mxu0 0
      %1054 = vmatmul.mubr.bf16.gmra.mxu0 %v960
      %v1055 = vpop.f32.mrf.mxu0
      %v1056 = vadd.f32 0.0, %v1055
      %v1057 = vpop.f32.mrf.mxu0
      %v1058 = vpop.f32.mrf.mxu0
      %v1059 = vadd.f32 0.0, %v1058
      %v1060 = vpop.f32.mrf.mxu0
      %1061 = vmatprep.mubr.bf16.mxu0 0
      %1062 = vmatmul.mubr.bf16.gmra.mxu0 %v963
      %v1063 = vpop.f32.mrf.mxu0
      %v1064 = vadd.f32 0.0, %v1063
      %v1065 = vpop.f32.mrf.mxu0
      %v1066 = vpop.f32.mrf.mxu0
      %v1067 = vadd.f32 0.0, %v1066
      %v1068 = vpop.f32.mrf.mxu0
      %1069 = vdwg.mxu0
      %v1070 = vcombine.low %v503, %v511
      %v1071 = vcombine.low %v510, %v519
      %v1073 = vunpack.c.l.s4 1983009808
      %v1074 = vunpack.c.0.s8 %v1073
      %v1075 = vlaneseq
      %v1076 = vshrl.u32 %v1075, 7
      %v1077 = vsub.s32 %v1074, %v1076
      %v1078 = vrot.slane %v1070, %v1077
      %v1080 = vunpack.c.l.s4 1983009808
      %v1081 = vunpack.c.0.s8 %v1080
      %v1082 = vlaneseq
      %v1083 = vshrl.u32 %v1082, 7
      %v1084 = vsub.s32 %v1081, %v1083
      %v1085 = vrot.slane %v1071, %v1084
      %v1086 = vcombine.low %v1078, %v1085
      %v1087 = vcombine.low %v527, %v526
      %v1088 = vcombine.low %v535, %v543
      %v1090 = vunpack.c.l.s4 1983009808
      %v1091 = vunpack.c.0.s8 %v1090
      %v1092 = vlaneseq
      %v1093 = vshrl.u32 %v1092, 7
      %v1094 = vsub.s32 %v1091, %v1093
      %v1095 = vrot.slane %v1087, %v1094
      %v1097 = vunpack.c.l.s4 1983009808
      %v1098 = vunpack.c.0.s8 %v1097
      %v1099 = vlaneseq
      %v1100 = vshrl.u32 %v1099, 7
      %v1101 = vsub.s32 %v1098, %v1100
      %v1102 = vrot.slane %v1088, %v1101
      %v1103 = vcombine.low %v1095, %v1102
      %v1104 = vcombine.low %v542, %v551
      %v1105 = vcombine.low %v559, %v558
      %v1107 = vunpack.c.l.s4 1983009808
      %v1108 = vunpack.c.0.s8 %v1107
      %v1109 = vlaneseq
      %v1110 = vshrl.u32 %v1109, 7
      %v1111 = vsub.s32 %v1108, %v1110
      %v1112 = vrot.slane %v1104, %v1111
      %v1114 = vunpack.c.l.s4 1983009808
      %v1115 = vunpack.c.0.s8 %v1114
      %v1116 = vlaneseq
      %v1117 = vshrl.u32 %v1116, 7
      %v1118 = vsub.s32 %v1115, %v1117
      %v1119 = vrot.slane %v1105, %v1118
      %v1120 = vcombine.low %v1112, %v1119
      %v1121 = vcombine.low %v567, %v575
      %v1122 = vcombine.low %v574, %v583
      %v1124 = vunpack.c.l.s4 1983009808
      %v1125 = vunpack.c.0.s8 %v1124
      %v1126 = vlaneseq
      %v1127 = vshrl.u32 %v1126, 7
      %v1128 = vsub.s32 %v1125, %v1127
      %v1129 = vrot.slane %v1121, %v1128
      %v1131 = vunpack.c.l.s4 1983009808
      %v1132 = vunpack.c.0.s8 %v1131
      %v1133 = vlaneseq
      %v1134 = vshrl.u32 %v1133, 7
      %v1135 = vsub.s32 %v1132, %v1134
      %v1136 = vrot.slane %v1122, %v1135
      %v1137 = vcombine.low %v1129, %v1136
      %v1138 = vcombine.low %v591, %v590
      %v1139 = vcombine.low %v599, %v607
      %v1141 = vunpack.c.l.s4 1983009808
      %v1142 = vunpack.c.0.s8 %v1141
      %v1143 = vlaneseq
      %v1144 = vshrl.u32 %v1143, 7
      %v1145 = vsub.s32 %v1142, %v1144
      %v1146 = vrot.slane %v1138, %v1145
      %v1148 = vunpack.c.l.s4 1983009808
      %v1149 = vunpack.c.0.s8 %v1148
      %v1150 = vlaneseq
      %v1151 = vshrl.u32 %v1150, 7
      %v1152 = vsub.s32 %v1149, %v1151
      %v1153 = vrot.slane %v1139, %v1152
      %v1154 = vcombine.low %v1146, %v1153
      %v1155 = vcombine.low %v606, %v615
      %v1156 = vcombine.low %v623, %v622
      %v1158 = vunpack.c.l.s4 1983009808
      %v1159 = vunpack.c.0.s8 %v1158
      %v1160 = vlaneseq
      %v1161 = vshrl.u32 %v1160, 7
      %v1162 = vsub.s32 %v1159, %v1161
      %v1163 = vrot.slane %v1155, %v1162
      %v1165 = vunpack.c.l.s4 1983009808
      %v1166 = vunpack.c.0.s8 %v1165
      %v1167 = vlaneseq
      %v1168 = vshrl.u32 %v1167, 7
      %v1169 = vsub.s32 %v1166, %v1168
      %v1170 = vrot.slane %v1156, %v1169
      %v1171 = vcombine.low %v1163, %v1170
      %v1172 = vcombine.low %v631, %v639
      %v1173 = vcombine.low %v638, %v647
      %v1175 = vunpack.c.l.s4 1983009808
      %v1176 = vunpack.c.0.s8 %v1175
      %v1177 = vlaneseq
      %v1178 = vshrl.u32 %v1177, 7
      %v1179 = vsub.s32 %v1176, %v1178
      %v1180 = vrot.slane %v1172, %v1179
      %v1182 = vunpack.c.l.s4 1983009808
      %v1183 = vunpack.c.0.s8 %v1182
      %v1184 = vlaneseq
      %v1185 = vshrl.u32 %v1184, 7
      %v1186 = vsub.s32 %v1183, %v1185
      %v1187 = vrot.slane %v1173, %v1186
      %v1188 = vcombine.low %v1180, %v1187
      %v1189 = vcombine.low %v655, %v654
      %v1190 = vcombine.low %v663, %v671
      %v1192 = vunpack.c.l.s4 1983009808
      %v1193 = vunpack.c.0.s8 %v1192
      %v1194 = vlaneseq
      %v1195 = vshrl.u32 %v1194, 7
      %v1196 = vsub.s32 %v1193, %v1195
      %v1197 = vrot.slane %v1189, %v1196
      %v1199 = vunpack.c.l.s4 1983009808
      %v1200 = vunpack.c.0.s8 %v1199
      %v1201 = vlaneseq
      %v1202 = vshrl.u32 %v1201, 7
      %v1203 = vsub.s32 %v1200, %v1202
      %v1204 = vrot.slane %v1190, %v1203
      %v1205 = vcombine.low %v1197, %v1204
      %v1206 = vcombine.low %v670, %v679
      %v1207 = vcombine.low %v687, %v686
      %v1209 = vunpack.c.l.s4 1983009808
      %v1210 = vunpack.c.0.s8 %v1209
      %v1211 = vlaneseq
      %v1212 = vshrl.u32 %v1211, 7
      %v1213 = vsub.s32 %v1210, %v1212
      %v1214 = vrot.slane %v1206, %v1213
      %v1216 = vunpack.c.l.s4 1983009808
      %v1217 = vunpack.c.0.s8 %v1216
      %v1218 = vlaneseq
      %v1219 = vshrl.u32 %v1218, 7
      %v1220 = vsub.s32 %v1217, %v1219
      %v1221 = vrot.slane %v1207, %v1220
      %v1222 = vcombine.low %v1214, %v1221
      %v1235 = vunpack.c.l.b16 %v688
      %v1236 = vunpack.c.l.b16 %v689
      %v1237 = vunpack.c.l.b16 %v690
      %v1238 = vunpack.c.l.b16 %v691
      %v1239 = vunpack.c.l.b16 %v692
      %v1240 = vunpack.c.l.b16 %v693
      %v1241 = vunpack.c.l.b16 %v694
      %v1242 = vunpack.c.l.b16 %v695
      %v1243 = vunpack.c.l.b16 %v696
      %v1244 = vunpack.c.l.b16 %v697
      %v1245 = vunpack.c.l.b16 %v698
      %v1246 = vunpack.c.l.b16 %v699
      %v1247 = vpack.c.b16 %v1236, %v1235
      %v1248 = vpack.c.b16 %v1238, %v1237
      %v1249 = vpack.c.b16 %v1240, %v1239
      %v1250 = vpack.c.b16 %v1242, %v1241
      %v1251 = vpack.c.b16 %v1244, %v1243
      %v1252 = vpack.c.b16 %v1246, %v1245
      %v1260 = vsel %vm937, %v1086, 0
      %v1263 = vsel %vm937, %v1103, 0
      %v1266 = vsel %vm937, %v1120, 0
      %v1269 = vsel %vm937, %v1137, 0
      %v1272 = vsel %vm937, %v1154, 0
      %v1275 = vsel %vm937, %v1171, 0
      %v1278 = vsel %vm937, %v1188, 0
      %v1281 = vsel %vm937, %v1205, 0
      %v1284 = vsel %vm937, %v1222, 0
      %1286 = vmatprep.subr.bf16.mxu0 0
      %1287 = vmatpush1.bf16.msra.mxu0 0
      %1288 = vmatprep.subr.bf16.mxu0 0
      %1289 = vmatpush1.bf16.msra.mxu0 0
      %1290 = vmatprep.subr.bf16.mxu0 0
      %1291 = vmatpush1.bf16.msra.mxu0 %v1252
      %1292 = vmatprep.subr.bf16.mxu0 0
      %1293 = vmatpush1.bf16.msra.mxu0 %v1251
      %1294 = vmatprep.subr.bf16.mxu0 0
      %1295 = vmatpush1.bf16.msra.mxu0 %v1250
      %1296 = vmatprep.subr.bf16.mxu0 0
      %1297 = vmatpush1.bf16.msra.mxu0 %v1249
      %1298 = vmatprep.subr.bf16.mxu0 0
      %1299 = vmatpush1.bf16.msra.mxu0 %v1248
      %1300 = vmatprep.subr.bf16.mxu0 0
      %1301 = vmatpush1.bf16.msra.mxu0 %v1247
      %1302 = vmatprep.subr.bf16.mxu0 0
      %1303 = vmatpush2.bf16.msra.mxu0 0
      %1304 = vmatprep.subr.bf16.mxu0 0
      %1305 = vmatpush2.bf16.msra.mxu0 0
      %1306 = vmatprep.subr.bf16.mxu0 0
      %1307 = vmatpush2.bf16.msra.mxu0 0
      %1308 = vmatprep.subr.bf16.mxu0 0
      %1309 = vmatpush2.bf16.msra.mxu0 0
      %1310 = vmatprep.subr.bf16.mxu0 0
      %1311 = vmatpush2.bf16.msra.mxu0 0
      %1312 = vmatprep.subr.bf16.mxu0 0
      %1313 = vmatpush2.bf16.msra.mxu0 0
      %1314 = vmatprep.subr.bf16.mxu0 0
      %1315 = vmatpush2.bf16.msra.mxu0 0
      %1316 = vmatprep.subr.bf16.mxu0 0
      %1317 = vmatpush2.bf16.msra.mxu0 0
      %1318 = vmatprep.mubr.bf16.mxu0 0
      %1319 = vmatmul.mubr.bf16.gmra.mxu0 %v1260
      %v1320 = vpop.f32.mrf.mxu0
      %v1321 = vadd.f32 %v1000, %v1320
      %v1322 = vpop.f32.mrf.mxu0
      %v1323 = vpop.f32.mrf.mxu0
      %v1324 = vadd.f32 %v1003, %v1323
      %v1325 = vpop.f32.mrf.mxu0
      %1326 = vmatprep.mubr.bf16.mxu0 0
      %1327 = vmatmul.mubr.bf16.gmra.mxu0 %v1263
      %v1328 = vpop.f32.mrf.mxu0
      %v1329 = vadd.f32 %v1008, %v1328
      %v1330 = vpop.f32.mrf.mxu0
      %v1331 = vpop.f32.mrf.mxu0
      %v1332 = vadd.f32 %v1011, %v1331
      %v1333 = vpop.f32.mrf.mxu0
      %1334 = vmatprep.mubr.bf16.mxu0 0
      %1335 = vmatmul.mubr.bf16.gmra.mxu0 %v1266
      %v1336 = vpop.f32.mrf.mxu0
      %v1337 = vadd.f32 %v1016, %v1336
      %v1338 = vpop.f32.mrf.mxu0
      %v1339 = vpop.f32.mrf.mxu0
      %v1340 = vadd.f32 %v1019, %v1339
      %v1341 = vpop.f32.mrf.mxu0
      %1342 = vmatprep.mubr.bf16.mxu0 0
      %1343 = vmatmul.mubr.bf16.gmra.mxu0 %v1269
      %v1344 = vpop.f32.mrf.mxu0
      %v1345 = vadd.f32 %v1024, %v1344
      %v1346 = vpop.f32.mrf.mxu0
      %v1347 = vpop.f32.mrf.mxu0
      %v1348 = vadd.f32 %v1027, %v1347
      %v1349 = vpop.f32.mrf.mxu0
      %1350 = vmatprep.mubr.bf16.mxu0 0
      %1351 = vmatmul.mubr.bf16.gmra.mxu0 %v1272
      %v1352 = vpop.f32.mrf.mxu0
      %v1353 = vadd.f32 %v1032, %v1352
      %v1354 = vpop.f32.mrf.mxu0
      %v1355 = vpop.f32.mrf.mxu0
      %v1356 = vadd.f32 %v1035, %v1355
      %v1357 = vpop.f32.mrf.mxu0
      %1358 = vmatprep.mubr.bf16.mxu0 0
      %1359 = vmatmul.mubr.bf16.gmra.mxu0 %v1275
      %v1360 = vpop.f32.mrf.mxu0
      %v1361 = vadd.f32 %v1040, %v1360
      %v1362 = vpop.f32.mrf.mxu0
      %v1363 = vpop.f32.mrf.mxu0
      %v1364 = vadd.f32 %v1043, %v1363
      %v1365 = vpop.f32.mrf.mxu0
      %1366 = vmatprep.mubr.bf16.mxu0 0
      %1367 = vmatmul.mubr.bf16.gmra.mxu0 %v1278
      %v1368 = vpop.f32.mrf.mxu0
      %v1369 = vadd.f32 %v1048, %v1368
      %v1370 = vpop.f32.mrf.mxu0
      %v1371 = vpop.f32.mrf.mxu0
      %v1372 = vadd.f32 %v1051, %v1371
      %v1373 = vpop.f32.mrf.mxu0
      %1374 = vmatprep.mubr.bf16.mxu0 0
      %1375 = vmatmul.mubr.bf16.gmra.mxu0 %v1281
      %v1376 = vpop.f32.mrf.mxu0
      %v1377 = vadd.f32 %v1056, %v1376
      %v1378 = vpop.f32.mrf.mxu0
      %v1379 = vpop.f32.mrf.mxu0
      %v1380 = vadd.f32 %v1059, %v1379
      %v1381 = vpop.f32.mrf.mxu0
      %1382 = vmatprep.mubr.bf16.mxu0 0
      %1383 = vmatmul.mubr.bf16.gmra.mxu0 %v1284
      %v1384 = vpop.f32.mrf.mxu0
      %v1385 = vadd.f32 %v1064, %v1384
      %v1386 = vpop.f32.mrf.mxu0
      %v1387 = vpop.f32.mrf.mxu0
      %v1388 = vadd.f32 %v1067, %v1387
      %v1389 = vpop.f32.mrf.mxu0
      %1390 = vdwg.mxu0
      %v1391 = vpack.c.bf16 %v265, %v264
      %v1393 = vshrl.u32 %v1391, 16
      %v1395 = vshll.u32 %v1391, 16
      %v1397 = vrot.slane %v1395, 1
      %v1398 = vor.u32 %v1393, %v1397
      %1399 = vrot.lane.b32.xlu0 %v1398, 32
      %v1400 = vpop.permute.xlu0 %1399
      %v1402 = vrot.slane %v1391, 1
      %1403 = vrot.lane.b32.xlu0 %v1402, 64
      %v1404 = vpop.permute.xlu0 %1403
      %v1406 = vsel %vm434, %v1391, %v1400
      %v1408 = vsel %vm459, %v1406, %v1404
      %v1410 = vcombine.high %v1408, %v1408
      %v1412 = vunpack.c.l.s4 1983009808
      %v1413 = vunpack.c.0.s8 %v1412
      %v1414 = vlaneseq
      %v1415 = vshrl.u32 %v1414, 7
      %v1416 = vsub.s32 %v1413, %v1415
      %v1417 = vrot.slane %v1408, %v1416
      %v1419 = vunpack.c.l.s4 1983009808
      %v1420 = vunpack.c.0.s8 %v1419
      %v1421 = vlaneseq
      %v1422 = vshrl.u32 %v1421, 7
      %v1423 = vsub.s32 %v1420, %v1422
      %v1424 = vrot.slane %v1410, %v1423
      %v1425 = vcombine.high %v1417, %v1417
      %s1426 = scalar_lea.vmem %s1, 96
      %v1427 = vld [vmem:[%s1426] sm:$0xf]
      %v1428 = vld [vmem:[%s1426 + $0x4] sm:$0xf]
      %v1429 = vld [vmem:[%s1426 + $0x8] sm:$0xf]
      %v1430 = vld [vmem:[%s1426 + $0xc] sm:$0xf]
      %v1431 = vld [vmem:[%s1426 + $0x10] sm:$0xf]
      %v1432 = vld [vmem:[%s1426 + $0x14] sm:$0xf]
      %v1433 = vld [vmem:[%s1426 + $0x18] sm:$0xf]
      %v1434 = vld [vmem:[%s1426 + $0x1c] sm:$0xf]
      %v1435 = vld [vmem:[%s1426 + $0x20] sm:$0xf]
      %v1436 = vld [vmem:[%s1426 + $0x24] sm:$0xf]
      %v1437 = vld [vmem:[%s1426 + $0x28] sm:$0xf]
      %v1438 = vld [vmem:[%s1426 + $0x2c] sm:$0xf]
      %v1439 = vcombine.low %v1102, %v1112
      %v1440 = vcombine.low %v1119, %v1129
      %v1441 = vcombine.low %v1136, %v1146
      %v1442 = vcombine.low %v1153, %v1163
      %v1443 = vcombine.low %v1170, %v1180
      %v1444 = vcombine.low %v1187, %v1197
      %v1445 = vcombine.low %v1204, %v1214
      %v1446 = vcombine.low %v726, %v734
      %v1448 = vunpack.c.l.s4 1983009808
      %v1449 = vunpack.c.0.s8 %v1448
      %v1450 = vlaneseq
      %v1451 = vshrl.u32 %v1450, 7
      %v1452 = vsub.s32 %v1449, %v1451
      %v1453 = vrot.slane %v1446, %v1452
      %v1454 = vcombine.low %v1221, %v1453
      %v1455 = vcombine.low %v733, %v1417
      %v1456 = vcombine.low %v1425, %v1424
      %v1458 = vunpack.c.l.s4 1983009808
      %v1459 = vunpack.c.0.s8 %v1458
      %v1460 = vlaneseq
      %v1461 = vshrl.u32 %v1460, 7
      %v1462 = vsub.s32 %v1459, %v1461
      %v1463 = vrot.slane %v1455, %v1462
      %v1465 = vunpack.c.l.s4 1983009808
      %v1466 = vunpack.c.0.s8 %v1465
      %v1467 = vlaneseq
      %v1468 = vshrl.u32 %v1467, 7
      %v1469 = vsub.s32 %v1466, %v1468
      %v1470 = vrot.slane %v1456, %v1469
      %v1471 = vcombine.low %v1463, %v1470
      %v1484 = vunpack.c.l.b16 %v1427
      %v1485 = vunpack.c.l.b16 %v1428
      %v1486 = vunpack.c.l.b16 %v1429
      %v1487 = vunpack.c.l.b16 %v1430
      %v1488 = vunpack.c.l.b16 %v1431
      %v1489 = vunpack.c.l.b16 %v1432
      %v1490 = vunpack.c.l.b16 %v1433
      %v1491 = vunpack.c.l.b16 %v1434
      %v1492 = vunpack.c.l.b16 %v1435
      %v1493 = vunpack.c.l.b16 %v1436
      %v1494 = vunpack.c.l.b16 %v1437
      %v1495 = vunpack.c.l.b16 %v1438
      %v1496 = vpack.c.b16 %v1485, %v1484
      %v1497 = vpack.c.b16 %v1487, %v1486
      %v1498 = vpack.c.b16 %v1489, %v1488
      %v1499 = vpack.c.b16 %v1491, %v1490
      %v1500 = vpack.c.b16 %v1493, %v1492
      %v1501 = vpack.c.b16 %v1495, %v1494
      %v1509 = vsel %vm937, %v1439, 0
      %v1512 = vsel %vm937, %v1440, 0
      %v1515 = vsel %vm937, %v1441, 0
      %v1518 = vsel %vm937, %v1442, 0
      %v1521 = vsel %vm937, %v1443, 0
      %v1524 = vsel %vm937, %v1444, 0
      %v1527 = vsel %vm937, %v1445, 0
      %v1530 = vsel %vm937, %v1454, 0
      %v1533 = vsel %vm937, %v1471, 0
      %1535 = vmatprep.subr.bf16.mxu0 0
      %1536 = vmatpush1.bf16.msra.mxu0 0
      %1537 = vmatprep.subr.bf16.mxu0 0
      %1538 = vmatpush1.bf16.msra.mxu0 0
      %1539 = vmatprep.subr.bf16.mxu0 0
      %1540 = vmatpush1.bf16.msra.mxu0 %v1501
      %1541 = vmatprep.subr.bf16.mxu0 0
      %1542 = vmatpush1.bf16.msra.mxu0 %v1500
      %1543 = vmatprep.subr.bf16.mxu0 0
      %1544 = vmatpush1.bf16.msra.mxu0 %v1499
      %1545 = vmatprep.subr.bf16.mxu0 0
      %1546 = vmatpush1.bf16.msra.mxu0 %v1498
      %1547 = vmatprep.subr.bf16.mxu0 0
      %1548 = vmatpush1.bf16.msra.mxu0 %v1497
      %1549 = vmatprep.subr.bf16.mxu0 0
      %1550 = vmatpush1.bf16.msra.mxu0 %v1496
      %1551 = vmatprep.subr.bf16.mxu0 0
      %1552 = vmatpush2.bf16.msra.mxu0 0
      %1553 = vmatprep.subr.bf16.mxu0 0
      %1554 = vmatpush2.bf16.msra.mxu0 0
      %1555 = vmatprep.subr.bf16.mxu0 0
      %1556 = vmatpush2.bf16.msra.mxu0 0
      %1557 = vmatprep.subr.bf16.mxu0 0
      %1558 = vmatpush2.bf16.msra.mxu0 0
      %1559 = vmatprep.subr.bf16.mxu0 0
      %1560 = vmatpush2.bf16.msra.mxu0 0
      %1561 = vmatprep.subr.bf16.mxu0 0
      %1562 = vmatpush2.bf16.msra.mxu0 0
      %1563 = vmatprep.subr.bf16.mxu0 0
      %1564 = vmatpush2.bf16.msra.mxu0 0
      %1565 = vmatprep.subr.bf16.mxu0 0
      %1566 = vmatpush2.bf16.msra.mxu0 0
      %1567 = vmatprep.mubr.bf16.mxu0 0
      %1568 = vmatmul.mubr.bf16.gmra.mxu0 %v1509
      %v1569 = vpop.f32.mrf.mxu0
      %v1570 = vadd.f32 0.0, %v1569
      %v1571 = vpop.f32.mrf.mxu0
      %v1572 = vpop.f32.mrf.mxu0
      %v1573 = vadd.f32 0.0, %v1572
      %v1574 = vpop.f32.mrf.mxu0
      %1575 = vmatprep.mubr.bf16.mxu0 0
      %1576 = vmatmul.mubr.bf16.gmra.mxu0 %v1512
      %v1577 = vpop.f32.mrf.mxu0
      %v1578 = vadd.f32 0.0, %v1577
      %v1579 = vpop.f32.mrf.mxu0
      %v1580 = vpop.f32.mrf.mxu0
      %v1581 = vadd.f32 0.0, %v1580
      %v1582 = vpop.f32.mrf.mxu0
      %1583 = vmatprep.mubr.bf16.mxu0 0
      %1584 = vmatmul.mubr.bf16.gmra.mxu0 %v1515
      %v1585 = vpop.f32.mrf.mxu0
      %v1586 = vadd.f32 0.0, %v1585
      %v1587 = vpop.f32.mrf.mxu0
      %v1588 = vpop.f32.mrf.mxu0
      %v1589 = vadd.f32 0.0, %v1588
      %v1590 = vpop.f32.mrf.mxu0
      %1591 = vmatprep.mubr.bf16.mxu0 0
      %1592 = vmatmul.mubr.bf16.gmra.mxu0 %v1518
      %v1593 = vpop.f32.mrf.mxu0
      %v1594 = vadd.f32 0.0, %v1593
      %v1595 = vpop.f32.mrf.mxu0
      %v1596 = vpop.f32.mrf.mxu0
      %v1597 = vadd.f32 0.0, %v1596
      %v1598 = vpop.f32.mrf.mxu0
      %1599 = vmatprep.mubr.bf16.mxu0 0
      %1600 = vmatmul.mubr.bf16.gmra.mxu0 %v1521
      %v1601 = vpop.f32.mrf.mxu0
      %v1602 = vadd.f32 0.0, %v1601
      %v1603 = vpop.f32.mrf.mxu0
      %v1604 = vpop.f32.mrf.mxu0
      %v1605 = vadd.f32 0.0, %v1604
      %v1606 = vpop.f32.mrf.mxu0
      %1607 = vmatprep.mubr.bf16.mxu0 0
      %1608 = vmatmul.mubr.bf16.gmra.mxu0 %v1524
      %v1609 = vpop.f32.mrf.mxu0
      %v1610 = vadd.f32 0.0, %v1609
      %v1611 = vpop.f32.mrf.mxu0
      %v1612 = vpop.f32.mrf.mxu0
      %v1613 = vadd.f32 0.0, %v1612
      %v1614 = vpop.f32.mrf.mxu0
      %1615 = vmatprep.mubr.bf16.mxu0 0
      %1616 = vmatmul.mubr.bf16.gmra.mxu0 %v1527
      %v1617 = vpop.f32.mrf.mxu0
      %v1618 = vadd.f32 0.0, %v1617
      %v1619 = vpop.f32.mrf.mxu0
      %v1620 = vpop.f32.mrf.mxu0
      %v1621 = vadd.f32 0.0, %v1620
      %v1622 = vpop.f32.mrf.mxu0
      %1623 = vmatprep.mubr.bf16.mxu0 0
      %1624 = vmatmul.mubr.bf16.gmra.mxu0 %v1530
      %v1625 = vpop.f32.mrf.mxu0
      %v1626 = vadd.f32 0.0, %v1625
      %v1627 = vpop.f32.mrf.mxu0
      %v1628 = vpop.f32.mrf.mxu0
      %v1629 = vadd.f32 0.0, %v1628
      %v1630 = vpop.f32.mrf.mxu0
      %1631 = vmatprep.mubr.bf16.mxu0 0
      %1632 = vmatmul.mubr.bf16.gmra.mxu0 %v1533
      %v1633 = vpop.f32.mrf.mxu0
      %v1634 = vadd.f32 0.0, %v1633
      %v1635 = vpop.f32.mrf.mxu0
      %v1636 = vpop.f32.mrf.mxu0
      %v1637 = vadd.f32 0.0, %v1636
      %v1638 = vpop.f32.mrf.mxu0
      %1639 = vdwg.mxu0
      %v1640 = vadd.f32 %v1321, %v1570
      %v1641 = vadd.f32 %v1324, %v1573
      %v1642 = vadd.f32 %v1329, %v1578
      %v1643 = vadd.f32 %v1332, %v1581
      %v1644 = vadd.f32 %v1337, %v1586
      %v1645 = vadd.f32 %v1340, %v1589
      %v1646 = vadd.f32 %v1345, %v1594
      %v1647 = vadd.f32 %v1348, %v1597
      %v1648 = vadd.f32 %v1353, %v1602
      %v1649 = vadd.f32 %v1356, %v1605
      %v1650 = vadd.f32 %v1361, %v1610
      %v1651 = vadd.f32 %v1364, %v1613
      %v1652 = vadd.f32 %v1369, %v1618
      %v1653 = vadd.f32 %v1372, %v1621
      %v1654 = vadd.f32 %v1377, %v1626
      %v1655 = vadd.f32 %v1380, %v1629
      %v1656 = vadd.f32 %v1385, %v1634
      %v1657 = vadd.f32 %v1388, %v1637
      %v1658 = vld [vmem:[%s2] sm:$0x1]
      %v1660 = vlaneseq
      %v1661 = vshrl.u32 %v1660, 7
      %v1662 = vsub.s32 0, %v1661
      %v1663 = vrot.slane %v1658, %v1662
      %v1665 = vadd.f32 %v1640, %v1663
      %v1666 = vadd.f32 %v1641, %v1663
      %v1667 = vadd.f32 %v1642, %v1663
      %v1668 = vadd.f32 %v1643, %v1663
      %v1669 = vadd.f32 %v1644, %v1663
      %v1670 = vadd.f32 %v1645, %v1663
      %v1671 = vadd.f32 %v1646, %v1663
      %v1672 = vadd.f32 %v1647, %v1663
      %v1673 = vadd.f32 %v1648, %v1663
      %v1674 = vadd.f32 %v1649, %v1663
      %v1675 = vadd.f32 %v1650, %v1663
      %v1676 = vadd.f32 %v1651, %v1663
      %v1677 = vadd.f32 %v1652, %v1663
      %v1678 = vadd.f32 %v1653, %v1663
      %v1679 = vadd.f32 %v1654, %v1663
      %v1680 = vadd.f32 %v1655, %v1663
      %v1681 = vadd.f32 %v1656, %v1663
      %v1682 = vadd.f32 %v1657, %v1663
      %vm1683 = vcmp.gt.f32.partialorder %v1665, 0.0
      %vm1684 = vcmp.gt.f32.partialorder %v1666, 0.0
      %vm1685 = vcmp.gt.f32.partialorder %v1667, 0.0
      %vm1686 = vcmp.gt.f32.partialorder %v1668, 0.0
      %vm1687 = vcmp.gt.f32.partialorder %v1669, 0.0
      %vm1688 = vcmp.gt.f32.partialorder %v1670, 0.0
      %vm1689 = vcmp.gt.f32.partialorder %v1671, 0.0
      %vm1690 = vcmp.gt.f32.partialorder %v1672, 0.0
      %vm1691 = vcmp.gt.f32.partialorder %v1673, 0.0
      %vm1692 = vcmp.gt.f32.partialorder %v1674, 0.0
      %vm1693 = vcmp.gt.f32.partialorder %v1675, 0.0
      %vm1694 = vcmp.gt.f32.partialorder %v1676, 0.0
      %vm1695 = vcmp.gt.f32.partialorder %v1677, 0.0
      %vm1696 = vcmp.gt.f32.partialorder %v1678, 0.0
      %vm1697 = vcmp.gt.f32.partialorder %v1679, 0.0
      %vm1698 = vcmp.gt.f32.partialorder %v1680, 0.0
      %vm1699 = vcmp.gt.f32.partialorder %v1681, 0.0
      %vm1700 = vcmp.gt.f32.partialorder %v1682, 0.0
      %v1701 = vmul.f32 %v1665, 0.01
      %v1702 = vmul.f32 %v1666, 0.01
      %v1703 = vmul.f32 %v1667, 0.01
      %v1704 = vmul.f32 %v1668, 0.01
      %v1705 = vmul.f32 %v1669, 0.01
      %v1706 = vmul.f32 %v1670, 0.01
      %v1707 = vmul.f32 %v1671, 0.01
      %v1708 = vmul.f32 %v1672, 0.01
      %v1709 = vmul.f32 %v1673, 0.01
      %v1710 = vmul.f32 %v1674, 0.01
      %v1711 = vmul.f32 %v1675, 0.01
      %v1712 = vmul.f32 %v1676, 0.01
      %v1713 = vmul.f32 %v1677, 0.01
      %v1714 = vmul.f32 %v1678, 0.01
      %v1715 = vmul.f32 %v1679, 0.01
      %v1716 = vmul.f32 %v1680, 0.01
      %v1717 = vmul.f32 %v1681, 0.01
      %v1718 = vmul.f32 %v1682, 0.01
      %v1719 = vsel %vm1683, %v1665, %v1701
      %v1720 = vsel %vm1684, %v1666, %v1702
      %v1721 = vsel %vm1685, %v1667, %v1703
      %v1722 = vsel %vm1686, %v1668, %v1704
      %v1723 = vsel %vm1687, %v1669, %v1705
      %v1724 = vsel %vm1688, %v1670, %v1706
      %v1725 = vsel %vm1689, %v1671, %v1707
      %v1726 = vsel %vm1690, %v1672, %v1708
      %v1727 = vsel %vm1691, %v1673, %v1709
      %v1728 = vsel %vm1692, %v1674, %v1710
      %v1729 = vsel %vm1693, %v1675, %v1711
      %v1730 = vsel %vm1694, %v1676, %v1712
      %v1731 = vsel %vm1695, %v1677, %v1713
      %v1732 = vsel %vm1696, %v1678, %v1714
      %v1733 = vsel %vm1697, %v1679, %v1715
      %v1734 = vsel %vm1698, %v1680, %v1716
      %v1735 = vsel %vm1699, %v1681, %v1717
      %v1736 = vsel %vm1700, %v1682, %v1718
      %v1737 = vsel %vm434, %v1719, 0.0
      %v1738 = vsel %vm434, %v1720, 0.0
      %v1739 = vadd.f32 %v1737, %v1738
      %v1740 = vsel %vm434, %v1721, 0.0
      %v1741 = vadd.f32 %v1739, %v1740
      %v1742 = vsel %vm434, %v1722, 0.0
      %v1743 = vadd.f32 %v1741, %v1742
      %v1744 = vsel %vm434, %v1723, 0.0
      %v1745 = vadd.f32 %v1743, %v1744
      %v1746 = vsel %vm434, %v1724, 0.0
      %v1747 = vadd.f32 %v1745, %v1746
      %v1748 = vsel %vm434, %v1725, 0.0
      %v1749 = vadd.f32 %v1747, %v1748
      %v1750 = vsel %vm434, %v1726, 0.0
      %v1751 = vadd.f32 %v1749, %v1750
      %v1752 = vsel %vm434, %v1727, 0.0
      %v1753 = vadd.f32 %v1751, %v1752
      %v1754 = vsel %vm434, %v1728, 0.0
      %v1755 = vadd.f32 %v1753, %v1754
      %v1756 = vsel %vm434, %v1729, 0.0
      %v1757 = vadd.f32 %v1755, %v1756
      %v1758 = vsel %vm434, %v1730, 0.0
      %v1759 = vadd.f32 %v1757, %v1758
      %v1760 = vsel %vm434, %v1731, 0.0
      %v1761 = vadd.f32 %v1759, %v1760
      %v1762 = vsel %vm434, %v1732, 0.0
      %v1763 = vadd.f32 %v1761, %v1762
      %v1764 = vsel %vm434, %v1733, 0.0
      %v1765 = vadd.f32 %v1763, %v1764
      %v1766 = vsel %vm434, %v1734, 0.0
      %v1767 = vadd.f32 %v1765, %v1766
      %v1768 = vsel %vm434, %v1735, 0.0
      %v1769 = vadd.f32 %v1767, %v1768
      %v1770 = vsel %vm434, %v1736, 0.0
      %v1771 = vadd.f32 %v1769, %v1770
      %v1772 = vrot.slane %v1771, 4
      %v1773 = vadd.f32 %v1771, %v1772
      %v1774 = vrot.slane %v1773, 2
      %v1775 = vadd.f32 %v1773, %v1774
      %v1776 = vrot.slane %v1775, 1
      %v1777 = vadd.f32 %v1775, %v1776
      %v1778 = vmul.f32 %v1719, %v1719
      %v1779 = vmul.f32 %v1720, %v1720
      %v1780 = vmul.f32 %v1721, %v1721
      %v1781 = vmul.f32 %v1722, %v1722
      %v1782 = vmul.f32 %v1723, %v1723
      %v1783 = vmul.f32 %v1724, %v1724
      %v1784 = vmul.f32 %v1725, %v1725
      %v1785 = vmul.f32 %v1726, %v1726
      %v1786 = vmul.f32 %v1727, %v1727
      %v1787 = vmul.f32 %v1728, %v1728
      %v1788 = vmul.f32 %v1729, %v1729
      %v1789 = vmul.f32 %v1730, %v1730
      %v1790 = vmul.f32 %v1731, %v1731
      %v1791 = vmul.f32 %v1732, %v1732
      %v1792 = vmul.f32 %v1733, %v1733
      %v1793 = vmul.f32 %v1734, %v1734
      %v1794 = vmul.f32 %v1735, %v1735
      %v1795 = vmul.f32 %v1736, %v1736
      %v1796 = vsel %vm434, %v1778, 0.0
      %v1797 = vsel %vm434, %v1779, 0.0
      %v1798 = vadd.f32 %v1796, %v1797
      %v1799 = vsel %vm434, %v1780, 0.0
      %v1800 = vadd.f32 %v1798, %v1799
      %v1801 = vsel %vm434, %v1781, 0.0
      %v1802 = vadd.f32 %v1800, %v1801
      %v1803 = vsel %vm434, %v1782, 0.0
      %v1804 = vadd.f32 %v1802, %v1803
      %v1805 = vsel %vm434, %v1783, 0.0
      %v1806 = vadd.f32 %v1804, %v1805
      %v1807 = vsel %vm434, %v1784, 0.0
      %v1808 = vadd.f32 %v1806, %v1807
      %v1809 = vsel %vm434, %v1785, 0.0
      %v1810 = vadd.f32 %v1808, %v1809
      %v1811 = vsel %vm434, %v1786, 0.0
      %v1812 = vadd.f32 %v1810, %v1811
      %v1813 = vsel %vm434, %v1787, 0.0
      %v1814 = vadd.f32 %v1812, %v1813
      %v1815 = vsel %vm434, %v1788, 0.0
      %v1816 = vadd.f32 %v1814, %v1815
      %v1817 = vsel %vm434, %v1789, 0.0
      %v1818 = vadd.f32 %v1816, %v1817
      %v1819 = vsel %vm434, %v1790, 0.0
      %v1820 = vadd.f32 %v1818, %v1819
      %v1821 = vsel %vm434, %v1791, 0.0
      %v1822 = vadd.f32 %v1820, %v1821
      %v1823 = vsel %vm434, %v1792, 0.0
      %v1824 = vadd.f32 %v1822, %v1823
      %v1825 = vsel %vm434, %v1793, 0.0
      %v1826 = vadd.f32 %v1824, %v1825
      %v1827 = vsel %vm434, %v1794, 0.0
      %v1828 = vadd.f32 %v1826, %v1827
      %v1829 = vsel %vm434, %v1795, 0.0
      %v1830 = vadd.f32 %v1828, %v1829
      %v1831 = vrot.slane %v1830, 4
      %v1832 = vadd.f32 %v1830, %v1831
      %v1833 = vrot.slane %v1832, 2
      %v1834 = vadd.f32 %v1832, %v1833
      %v1835 = vrot.slane %v1834, 1
      %v1836 = vadd.f32 %v1834, %v1835
      %vm1837 = vcmask 1040384
      %v1838 = vsel %vm1837, %v1777, %v1836
      %vm1839 = vcmask 254976
      %1840 = vst.msk [vmem:[%s208] sm:$0x3] %vm1839, %v1838
      %v1859 = vcombine.high %v1719, %v1719
      %v1860 = vcombine.high %v1720, %v1720
      %v1861 = vcombine.high %v1721, %v1721
      %v1862 = vcombine.high %v1722, %v1722
      %v1863 = vcombine.high %v1723, %v1723
      %v1864 = vcombine.high %v1724, %v1724
      %v1865 = vcombine.high %v1725, %v1725
      %v1866 = vcombine.high %v1726, %v1726
      %v1867 = vcombine.high %v1727, %v1727
      %v1868 = vcombine.high %v1728, %v1728
      %v1869 = vcombine.high %v1729, %v1729
      %v1870 = vcombine.high %v1730, %v1730
      %v1871 = vcombine.high %v1731, %v1731
      %v1872 = vcombine.high %v1732, %v1732
      %v1873 = vcombine.high %v1733, %v1733
      %v1874 = vcombine.high %v1734, %v1734
      %v1875 = vcombine.high %v1735, %v1735
      %v1876 = vcombine.high %v1736, %v1736
      %v1883 = vcombine.low %v1719, %v1859
      %v1884 = vcombine.low %v1860, %v1721
      %v1885 = vcombine.low %v1722, %v1862
      %v1886 = vcombine.low %v1863, %v1724
      %v1887 = vcombine.low %v1725, %v1865
      %v1888 = vcombine.low %v1866, %v1727
      %v1889 = vcombine.low %v1728, %v1868
      %v1890 = vcombine.low %v1869, %v1730
      %v1891 = vcombine.low %v1731, %v1871
      %v1892 = vcombine.low %v1872, %v1733
      %v1893 = vcombine.low %v1734, %v1874
      %v1894 = vcombine.low %v1875, %v1736
      %v1907 = vpack.c.bf16 %v1720, %v1883
      %v1908 = vpack.c.bf16 %v1861, %v1884
      %v1909 = vpack.c.bf16 %v1723, %v1885
      %v1910 = vpack.c.bf16 %v1864, %v1886
      %v1911 = vpack.c.bf16 %v1726, %v1887
      %v1912 = vpack.c.bf16 %v1867, %v1888
      %v1913 = vpack.c.bf16 %v1729, %v1889
      %v1914 = vpack.c.bf16 %v1870, %v1890
      %v1915 = vpack.c.bf16 %v1732, %v1891
      %v1916 = vpack.c.bf16 %v1873, %v1892
      %v1917 = vpack.c.bf16 %v1735, %v1893
      %v1918 = vpack.c.bf16 %v1876, %v1894
      %v1931 = vunpack.c.l.b16 %v1907
      %v1932 = vunpack.c.h.b16 %v1907
      %v1933 = vunpack.c.l.b16 %v1908
      %v1934 = vunpack.c.h.b16 %v1908
      %v1935 = vunpack.c.l.b16 %v1909
      %v1936 = vunpack.c.h.b16 %v1909
      %v1937 = vunpack.c.l.b16 %v1910
      %v1938 = vunpack.c.h.b16 %v1910
      %v1939 = vunpack.c.l.b16 %v1911
      %v1940 = vunpack.c.h.b16 %v1911
      %v1941 = vunpack.c.l.b16 %v1912
      %v1942 = vunpack.c.h.b16 %v1912
      %v1943 = vunpack.c.l.b16 %v1913
      %v1944 = vunpack.c.h.b16 %v1913
      %v1945 = vunpack.c.l.b16 %v1914
      %v1946 = vunpack.c.h.b16 %v1914
      %v1947 = vunpack.c.l.b16 %v1915
      %v1948 = vunpack.c.h.b16 %v1915
      %v1949 = vunpack.c.l.b16 %v1916
      %v1950 = vunpack.c.h.b16 %v1916
      %v1951 = vunpack.c.l.b16 %v1917
      %v1952 = vunpack.c.h.b16 %v1917
      %v1953 = vunpack.c.l.b16 %v1918
      %v1954 = vunpack.c.h.b16 %v1918
      %v1955 = vpack.c.b16 %v1931, %v1931
      %v1956 = vpack.c.b16 %v1932, %v1932
      %v1957 = vpack.c.b16 %v1933, %v1933
      %v1958 = vpack.c.b16 %v1934, %v1934
      %v1959 = vpack.c.b16 %v1935, %v1935
      %v1960 = vpack.c.b16 %v1936, %v1936
      %v1961 = vpack.c.b16 %v1937, %v1937
      %v1962 = vpack.c.b16 %v1938, %v1938
      %v1963 = vpack.c.b16 %v1939, %v1939
      %v1964 = vpack.c.b16 %v1940, %v1940
      %v1965 = vpack.c.b16 %v1941, %v1941
      %v1966 = vpack.c.b16 %v1942, %v1942
      %v1967 = vpack.c.b16 %v1943, %v1943
      %v1968 = vpack.c.b16 %v1944, %v1944
      %v1969 = vpack.c.b16 %v1945, %v1945
      %v1970 = vpack.c.b16 %v1946, %v1946
      %v1971 = vpack.c.b16 %v1947, %v1947
      %v1972 = vpack.c.b16 %v1948, %v1948
      %v1973 = vpack.c.b16 %v1949, %v1949
      %v1974 = vpack.c.b16 %v1950, %v1950
      %v1975 = vpack.c.b16 %v1951, %v1951
      %v1976 = vpack.c.b16 %v1952, %v1952
      %v1977 = vpack.c.b16 %v1953, %v1953
      %v1978 = vpack.c.b16 %v1954, %v1954
      %vm2003 = vcmask 257024
      %2004 = vst.msk [vmem:[%s204] sm:$0xf] %vm2003, %v1955
      %2005 = vst.msk [vmem:[%s204 + $0x4] sm:$0x3] %vm1839, %v1956
      %2006 = vst.msk [vmem:[%s204 + $0x8] sm:$0xf] %vm2003, %v1957
      %2007 = vst.msk [vmem:[%s204 + $0xc] sm:$0x3] %vm1839, %v1958
      %2008 = vst.msk [vmem:[%s204 + $0x10] sm:$0xf] %vm2003, %v1959
      %2009 = vst.msk [vmem:[%s204 + $0x14] sm:$0x3] %vm1839, %v1960
      %2010 = vst.msk [vmem:[%s204 + $0x18] sm:$0xf] %vm2003, %v1961
      %2011 = vst.msk [vmem:[%s204 + $0x1c] sm:$0x3] %vm1839, %v1962
      %2012 = vst.msk [vmem:[%s204 + $0x20] sm:$0xf] %vm2003, %v1963
      %2013 = vst.msk [vmem:[%s204 + $0x24] sm:$0x3] %vm1839, %v1964
      %2014 = vst.msk [vmem:[%s204 + $0x28] sm:$0xf] %vm2003, %v1965
      %2015 = vst.msk [vmem:[%s204 + $0x2c] sm:$0x3] %vm1839, %v1966
      %2016 = vst.msk [vmem:[%s204 + $0x30] sm:$0xf] %vm2003, %v1967
      %2017 = vst.msk [vmem:[%s204 + $0x34] sm:$0x3] %vm1839, %v1968
      %2018 = vst.msk [vmem:[%s204 + $0x38] sm:$0xf] %vm2003, %v1969
      %2019 = vst.msk [vmem:[%s204 + $0x3c] sm:$0x3] %vm1839, %v1970
      %2020 = vst.msk [vmem:[%s204 + $0x40] sm:$0xf] %vm2003, %v1971
      %2021 = vst.msk [vmem:[%s204 + $0x44] sm:$0x3] %vm1839, %v1972
      %2022 = vst.msk [vmem:[%s204 + $0x48] sm:$0xf] %vm2003, %v1973
      %2023 = vst.msk [vmem:[%s204 + $0x4c] sm:$0x3] %vm1839, %v1974
      %2024 = vst.msk [vmem:[%s204 + $0x50] sm:$0xf] %vm2003, %v1975
      %2025 = vst.msk [vmem:[%s204 + $0x54] sm:$0x3] %vm1839, %v1976
      %2026 = vst.msk [vmem:[%s204 + $0x58] sm:$0xf] %vm2003, %v1977
      %2027 = vst.msk [vmem:[%s204 + $0x5c] sm:$0x3] %vm1839, %v1978
      %p2028 = scmp.lt.s32.totalorder %s16, 1
      %s2029 = scalar_select %p2028, %s16, 1
      %s2030 = smul.addr %s2029, 24
      %s2031 = smul.addr %s2030, 4
      %s2032 = scalar_lea.vmem %s3, %s2031
      %p2033 = scmp.lt.s32.totalorder %s16, 1
      %s2034 = scalar_select %p2033, %s16, 1
      %s2035 = smul.addr %s2034, 2
      %s2036 = scalar_lea.vmem %s4, %s2035
      // Predicated region
      $region33: #{basic_critic_forward.5} parent=31 // pred_check
        %p2037 = pneg %p102
      $region34: #{basic_critic_forward.5} parent=31 // pred_check_branch
        %2039 = sbr.rel (%p2037) target = $region36
      $region35: #{basic_critic_forward.5} parent=31 // pred_region
        _
      $region36: #{basic_critic_forward.5} parent=31 // pred_fallthru
        _
      // Predicated region
      $region37: #{basic_critic_forward.5} parent=31 // pred_check
        %p2040 = pneg %p128
      $region38: #{basic_critic_forward.5} parent=31 // pred_check_branch
        %2042 = sbr.rel (%p2040) target = $region40
      $region39: #{basic_critic_forward.5} parent=31 // pred_region
        _
      $region40: #{basic_critic_forward.5} parent=31 // pred_fallthru
        _
    $region32: #{basic_critic_forward.5} parent=5 // pred_fallthru
      _
    %p2043 = scmp.le.s32.totalorder 2, %s11
    // Predicated region
    $region41: #{basic_critic_forward.5} parent=5 // pred_check
      %p2044 = pneg %p2043
    $region42: #{basic_critic_forward.5} parent=5 // pred_check_branch
      %2046 = sbr.rel (%p2044) target = $region44
    $region43: #{basic_critic_forward.5} parent=5 // pred_region
      %s2047 = ssub.s32 %s11, 2
      // Predicated region
      $region45: #{basic_critic_forward.5} parent=43 // pred_check
        %p2048 = pneg %p108
      $region46: #{basic_critic_forward.5} parent=43 // pred_check_branch
        %2050 = sbr.rel (%p2048) target = $region48
      $region47: #{basic_critic_forward.5} parent=43 // pred_region
        %p2051 = scmp.lt.s32.totalorder %s17, 1
        %s2052 = scalar_select %p2051, %s17, 1
        %s2053 = smul.addr %s2052, 24
        %s2054 = smul.addr %s2053, 4
        %s2055 = scalar_lea.vmem %s3, %s2054
      $region48: #{basic_critic_forward.5} parent=43 // pred_fallthru
        _
      // Predicated region
      $region49: #{basic_critic_forward.5} parent=43 // pred_check
        %p2056 = pneg %p134
      $region50: #{basic_critic_forward.5} parent=43 // pred_check_branch
        %2058 = sbr.rel (%p2056) target = $region52
      $region51: #{basic_critic_forward.5} parent=43 // pred_region
        %p2059 = scmp.lt.s32.totalorder %s17, 1
        %s2060 = scalar_select %p2059, %s17, 1
        %s2061 = smul.addr %s2060, 2
        %s2062 = scalar_lea.vmem %s4, %s2061
      $region52: #{basic_critic_forward.5} parent=43 // pred_fallthru
        _
    $region44: #{basic_critic_forward.5} parent=5 // pred_fallthru
      _
  $region6: #{basic_critic_forward.5} parent=0 // loop_footer
    %s15 = sadd.s32 1, %s11
  $region7: #{basic_critic_forward.5} parent=0 // loop_footer_branch
    %10 = sbr.rel target = $region3
  $region8: #{basic_critic_forward.5} parent=0 // loop_exit
    _

// kernel: basic_critic_forward.7
$region0: #{basic_critic_forward.7}
  #allocation0 [shape = 'u32[]', space=smem, size = 0x4, offset = 0x4, fixed_abs, tag = 'smem constant byte address 0x4 - core index']
  #allocation1 [shape = 'u32[144,128]{1,0:T(1,128)}', space=vmem, size = 0x12000, scoped, tag = 'internal scratch']
  #allocation2 [shape = 'f32[1,1]{1,0:T(1,128)S(1)}', space=vmem, size = 0x200, scoped, tag = 'scoped memory for basic_critic_forward.7']
  %s0 = inlined_call_operand.vmem [shape: bf16[2,10,10,32], index: 0, kind: input, shape index: {}]
  %s1 = inlined_call_operand.vmem [shape: f32[1,288], index: 1, kind: input, shape index: {}]
  %s2 = inlined_call_operand.<no memory space> [shape: f32[1,1], index: 2, kind: input, shape index: {}]
  %s3 = inlined_call_operand.vmem [shape: f32[2,1,128], index: 3, kind: output, shape index: {}]
  %s4 = sld [smem:[#allocation0]]
  $region45: #{basic_critic_forward.7} parent=0
    _
  %s6 = ssub.s32 1, %s4
  %s7 = scalar_select 0, %s6, %s4
  %v8 = vstv %s2
  %9 = vst [vmem:[#allocation2] sm:$0x1] %v8
  loop: start=0, step=1, limit=4
  $region2: #{basic_critic_forward.7} parent=0 // loop_pre_header
    _
  $region3: #{basic_critic_forward.7} parent=0 // loop_header
    %s11 = sphi 0, %s15
    %p12 = scmp.ge.s32.totalorder %s11, 4
    %s21 = sphi 0, %s23
    %s24 = sphi 0, %s21
    %s25 = sphi 0, %s24
    %s41 = sphi 0, %s25
    %s45 = sphi 0, %s45
    %s47 = sphi 0, %s45
    %s48 = sphi 0, %s47
    %s62 = sphi 0, %s48
    %s66 = sphi 0, %s66
    %s68 = sphi 0, %s66
    %s69 = sphi 0, %s68
    %s83 = sphi 0, %s69
    %s89 = sphi 0, %s91
    %s92 = sphi 0, %s89
    %s93 = sphi 0, %s92
    %s109 = sphi 0, %s93
  $region4: #{basic_critic_forward.7} parent=0 // loop_header_branch
    %14 = sbr.rel (%p12) target = $region8
  $region5: #{basic_critic_forward.7} parent=0 // loop_body
    %s16 = ssub.s32 %s11, 1
    %s17 = ssub.s32 %s11, 2
    %s18 = sadd.s32 %s11, 1
    %s19 = ssub.s32 %s11, %s18
    %p20 = scmp.eq.s32.totalorder %s19, 0
    %s22 = sadd.s32 %s21, 1
    %s23 = scalar_select %p20, %s21, %s22
    %p26 = pneg %p20
    %p27 = scmp.eq.s32.totalorder %s11, 1
    %p28 = por %p26, %p27
    %p29 = scmp.ne.s32.totalorder %s21, %s24
    %p30 = scmp.eq.s32.totalorder %s11, 0
    %p31 = por %p29, %p30
    %p32 = scmp.ne.s32.totalorder %s21, %s24
    %p33 = scmp.eq.s32.totalorder %s16, 1
    %p34 = por %p32, %p33
    %p35 = scmp.ne.s32.totalorder %s24, %s25
    %p36 = scmp.eq.s32.totalorder %s16, 0
    %p37 = por %p35, %p36
    %p38 = scmp.ne.s32.totalorder %s24, %s25
    %p39 = scmp.eq.s32.totalorder %s17, 1
    %p40 = por %p38, %p39
    %p42 = scmp.ne.s32.totalorder %s25, %s41
    %p43 = scmp.eq.s32.totalorder %s17, 0
    %p44 = por %p42, %p43
    %s46 = sadd.s32 %s45, 1
    %p49 = scmp.eq.s32.totalorder %s11, 1
    %p50 = scmp.ne.s32.totalorder %s45, %s47
    %p51 = scmp.eq.s32.totalorder %s11, 0
    %p52 = por %p50, %p51
    %p53 = scmp.ne.s32.totalorder %s45, %s47
    %p54 = scmp.eq.s32.totalorder %s16, 1
    %p55 = por %p53, %p54
    %p56 = scmp.ne.s32.totalorder %s47, %s48
    %p57 = scmp.eq.s32.totalorder %s16, 0
    %p58 = por %p56, %p57
    %p59 = scmp.ne.s32.totalorder %s47, %s48
    %p60 = scmp.eq.s32.totalorder %s17, 1
    %p61 = por %p59, %p60
    %p63 = scmp.ne.s32.totalorder %s48, %s62
    %p64 = scmp.eq.s32.totalorder %s17, 0
    %p65 = por %p63, %p64
    %s67 = sadd.s32 %s66, 1
    %p70 = scmp.eq.s32.totalorder %s11, 1
    %p71 = scmp.ne.s32.totalorder %s66, %s68
    %p72 = scmp.eq.s32.totalorder %s11, 0
    %p73 = por %p71, %p72
    %p74 = scmp.ne.s32.totalorder %s66, %s68
    %p75 = scmp.eq.s32.totalorder %s16, 1
    %p76 = por %p74, %p75
    %p77 = scmp.ne.s32.totalorder %s68, %s69
    %p78 = scmp.eq.s32.totalorder %s16, 0
    %p79 = por %p77, %p78
    %p80 = scmp.ne.s32.totalorder %s68, %s69
    %p81 = scmp.eq.s32.totalorder %s17, 1
    %p82 = por %p80, %p81
    %p84 = scmp.ne.s32.totalorder %s69, %s83
    %p85 = scmp.eq.s32.totalorder %s17, 0
    %p86 = por %p84, %p85
    %s87 = ssub.s32 %s11, %s18
    %p88 = scmp.eq.s32.totalorder %s87, 0
    %s90 = sadd.s32 %s89, 1
    %s91 = scalar_select %p88, %s89, %s90
    %p94 = pneg %p88
    %p95 = scmp.eq.s32.totalorder %s11, 1
    %p96 = por %p94, %p95
    %p97 = scmp.ne.s32.totalorder %s89, %s92
    %p98 = scmp.eq.s32.totalorder %s11, 0
    %p99 = por %p97, %p98
    %p100 = scmp.ne.s32.totalorder %s89, %s92
    %p101 = scmp.eq.s32.totalorder %s16, 1
    %p102 = por %p100, %p101
    %p103 = scmp.ne.s32.totalorder %s92, %s93
    %p104 = scmp.eq.s32.totalorder %s16, 0
    %p105 = por %p103, %p104
    %p106 = scmp.ne.s32.totalorder %s92, %s93
    %p107 = scmp.eq.s32.totalorder %s17, 1
    %p108 = por %p106, %p107
    %p110 = scmp.ne.s32.totalorder %s93, %s109
    %p111 = scmp.eq.s32.totalorder %s17, 0
    %p112 = por %p110, %p111
    %p113 = scmp.le.s32.totalorder 1, %s11
    %p114 = scmp.lt.s32.totalorder %s11, 3
    %p115 = pnand %p113, %p114
    %p116 = pneg %p115
    // Predicated region
    $region9: #{basic_critic_forward.7} parent=5 // pred_check
      _
    $region10: #{basic_critic_forward.7} parent=5 // pred_check_branch
      %118 = sbr.rel (%p115) target = $region12
    $region11: #{basic_critic_forward.7} parent=5 // pred_region
      %s119 = ssub.s32 %s11, 1
      // Predicated region
      $region13: #{basic_critic_forward.7} parent=11 // pred_check
        %p120 = pneg %p58
      $region14: #{basic_critic_forward.7} parent=11 // pred_check_branch
        %122 = sbr.rel (%p120) target = $region16
      $region15: #{basic_critic_forward.7} parent=11 // pred_region
        _
      $region16: #{basic_critic_forward.7} parent=11 // pred_fallthru
        _
      // Predicated region
      $region17: #{basic_critic_forward.7} parent=11 // pred_check
        %p123 = pneg %p79
      $region18: #{basic_critic_forward.7} parent=11 // pred_check_branch
        %125 = sbr.rel (%p123) target = $region20
      $region19: #{basic_critic_forward.7} parent=11 // pred_region
        _
      $region20: #{basic_critic_forward.7} parent=11 // pred_fallthru
        _
    $region12: #{basic_critic_forward.7} parent=5 // pred_fallthru
      _
    %p126 = scmp.lt.s32.totalorder %s11, 2
    // Predicated region
    $region21: #{basic_critic_forward.7} parent=5 // pred_check
      %p127 = pneg %p126
    $region22: #{basic_critic_forward.7} parent=5 // pred_check_branch
      %129 = sbr.rel (%p127) target = $region24
    $region23: #{basic_critic_forward.7} parent=5 // pred_region
      // Predicated region
      $region25: #{basic_critic_forward.7} parent=23 // pred_check
        %p130 = pneg %p31
      $region26: #{basic_critic_forward.7} parent=23 // pred_check_branch
        %132 = sbr.rel (%p130) target = $region28
      $region27: #{basic_critic_forward.7} parent=23 // pred_region
        %p133 = scmp.lt.s32.totalorder %s11, 1
        %s134 = scalar_select %p133, %s11, 1
        %s135 = smul.addr %s134, 20
        %s136 = smul.addr %s135, 4
        %s137 = scalar_lea.vmem %s0, %s136
      $region28: #{basic_critic_forward.7} parent=23 // pred_fallthru
        _
    $region24: #{basic_critic_forward.7} parent=5 // pred_fallthru
      _
    %p138 = scmp.le.s32.totalorder 1, %s11
    %p139 = scmp.lt.s32.totalorder %s11, 3
    %p140 = pnand %p138, %p139
    %p141 = pneg %p140
    // Predicated region
    $region29: #{basic_critic_forward.7} parent=5 // pred_check
      _
    $region30: #{basic_critic_forward.7} parent=5 // pred_check_branch
      %143 = sbr.rel (%p140) target = $region32
    $region31: #{basic_critic_forward.7} parent=5 // pred_region
      %s144 = ssub.s32 %s11, 1
      %p145 = scmp.lt.s32.totalorder %s16, 1
      %s146 = scalar_select %p145, %s16, 1
      %s147 = smul.addr %s146, 20
      %s148 = smul.addr %s147, 4
      %s149 = scalar_lea.vmem %s0, %s148
      %p150 = pneg %p37
      %p151 = pneg %p34
      %p152 = pneg %p58
      %p153 = pneg %p55
      %p154 = pneg %p79
      %p155 = pneg %p76
      %p156 = pneg %p105
      %p157 = pneg %p102
      %p158 = scmp.lt.s32.totalorder %s16, 1
      %s159 = scalar_select %p158, %s16, 1
      %s160 = scalar_lea.vmem %s3, %s159
      %p161 = scmp.lt.s32.totalorder %s16, 1
      %s162 = scalar_select %p161, %s16, 1
      %s163 = smul.addr %s162, 20
      %s164 = smul.addr %s163, 4
      %s165 = scalar_lea.vmem %s0, %s164
      %p166 = scmp.lt.s32.totalorder %s16, 1
      %s167 = scalar_select %p166, %s16, 1
      %s168 = scalar_lea.vmem %s3, %s167
      %v169 = vld [vmem:[%s165] sm:$0xf]
      %v170 = vld [vmem:[%s165 + $0x4] sm:$0x1]
      %v171 = vld [vmem:[%s165 + $0x8] sm:$0xf]
      %v172 = vld [vmem:[%s165 + $0xc] sm:$0x1]
      %v173 = vld [vmem:[%s165 + $0x10] sm:$0xf]
      %v174 = vld [vmem:[%s165 + $0x14] sm:$0x1]
      %v175 = vld [vmem:[%s165 + $0x18] sm:$0xf]
      %v176 = vld [vmem:[%s165 + $0x1c] sm:$0x1]
      %v177 = vld [vmem:[%s165 + $0x20] sm:$0xf]
      %v178 = vld [vmem:[%s165 + $0x24] sm:$0x1]
      %v179 = vld [vmem:[%s165 + $0x28] sm:$0xf]
      %v180 = vld [vmem:[%s165 + $0x2c] sm:$0x1]
      %v181 = vld [vmem:[%s165 + $0x30] sm:$0xf]
      %v182 = vld [vmem:[%s165 + $0x34] sm:$0x1]
      %v183 = vld [vmem:[%s165 + $0x38] sm:$0xf]
      %v184 = vld [vmem:[%s165 + $0x3c] sm:$0x1]
      %v185 = vld [vmem:[%s165 + $0x40] sm:$0xf]
      %v186 = vld [vmem:[%s165 + $0x44] sm:$0x1]
      %v187 = vld [vmem:[%s165 + $0x48] sm:$0xf]
      %v188 = vld [vmem:[%s165 + $0x4c] sm:$0x1]
      %v189 = vunpack.c.l.bf16 %v169
      %v190 = vunpack.c.l.bf16 %v170
      %v191 = vunpack.c.l.bf16 %v171
      %v192 = vunpack.c.l.bf16 %v172
      %v193 = vunpack.c.l.bf16 %v173
      %v194 = vunpack.c.l.bf16 %v174
      %v195 = vunpack.c.l.bf16 %v175
      %v196 = vunpack.c.l.bf16 %v176
      %v197 = vunpack.c.l.bf16 %v177
      %v198 = vunpack.c.l.bf16 %v178
      %v199 = vunpack.c.l.bf16 %v179
      %v200 = vunpack.c.l.bf16 %v180
      %v201 = vunpack.c.l.bf16 %v181
      %v202 = vunpack.c.l.bf16 %v182
      %v203 = vunpack.c.l.bf16 %v183
      %v204 = vunpack.c.l.bf16 %v184
      %v205 = vunpack.c.l.bf16 %v185
      %v206 = vunpack.c.l.bf16 %v186
      %v207 = vunpack.c.l.bf16 %v187
      %v208 = vunpack.c.l.bf16 %v188
      %vm209 = vcmask 261120
      %v210 = vsel %vm209, %v189, 0.0
      %v211 = vsel %vm209, %v191, 0.0
      %v212 = vadd.f32 %v210, %v211
      %v213 = vsel %vm209, %v193, 0.0
      %v214 = vadd.f32 %v212, %v213
      %v215 = vsel %vm209, %v195, 0.0
      %v216 = vadd.f32 %v214, %v215
      %v217 = vsel %vm209, %v197, 0.0
      %v218 = vadd.f32 %v216, %v217
      %v219 = vsel %vm209, %v199, 0.0
      %v220 = vadd.f32 %v218, %v219
      %v221 = vsel %vm209, %v201, 0.0
      %v222 = vadd.f32 %v220, %v221
      %v223 = vsel %vm209, %v203, 0.0
      %v224 = vadd.f32 %v222, %v223
      %v225 = vsel %vm209, %v205, 0.0
      %v226 = vadd.f32 %v224, %v225
      %v227 = vsel %vm209, %v207, 0.0
      %v228 = vadd.f32 %v226, %v227
      %vm229 = vcmask 254976
      %v230 = vsel %vm229, %v190, 0.0
      %v231 = vsel %vm229, %v192, 0.0
      %v232 = vadd.f32 %v230, %v231
      %v233 = vsel %vm229, %v194, 0.0
      %v234 = vadd.f32 %v232, %v233
      %v235 = vsel %vm229, %v196, 0.0
      %v236 = vadd.f32 %v234, %v235
      %v237 = vsel %vm229, %v198, 0.0
      %v238 = vadd.f32 %v236, %v237
      %v239 = vsel %vm229, %v200, 0.0
      %v240 = vadd.f32 %v238, %v239
      %v241 = vsel %vm229, %v202, 0.0
      %v242 = vadd.f32 %v240, %v241
      %v243 = vsel %vm229, %v204, 0.0
      %v244 = vadd.f32 %v242, %v243
      %v245 = vsel %vm229, %v206, 0.0
      %v246 = vadd.f32 %v244, %v245
      %v247 = vsel %vm229, %v208, 0.0
      %v248 = vadd.f32 %v246, %v247
      %v249 = vsub.f32 %v228, %v205
      %v250 = vsub.f32 %v248, %v206
      %v251 = vsub.f32 %v249, %v207
      %v252 = vsub.f32 %v250, %v208
      %v253 = vsub.f32 %v228, %v189
      %v254 = vsub.f32 %v248, %v190
      %v255 = vsub.f32 %v253, %v207
      %v256 = vsub.f32 %v254, %v208
      %v257 = vsub.f32 %v253, %v191
      %v258 = vsub.f32 %v254, %v192
      %v259 = vsel %vm209, %v251, 0.0
      %v260 = vsel %vm229, %v252, 0.0
      %v261 = vadd.f32 %v259, %v260
      %v262 = vrot.slane %v261, 4
      %v263 = vadd.f32 %v261, %v262
      %v264 = vrot.slane %v263, 2
      %v265 = vadd.f32 %v263, %v264
      %v266 = vrot.slane %v265, 1
      %v267 = vadd.f32 %v265, %v266
      %v268 = vsub.f32 %v267, %v252
      %v270 = vrot.slane %v252, 1
      %v272 = vsub.f32 %v268, %v270
      %v273 = vsub.f32 %v267, %v251
      %v274 = vsub.f32 %v273, %v270
      %v276 = vrot.slane %v251, 1
      %v278 = vsub.f32 %v273, %v276
      %v279 = vsel %vm209, %v255, 0.0
      %v280 = vsel %vm229, %v256, 0.0
      %v281 = vadd.f32 %v279, %v280
      %v282 = vrot.slane %v281, 4
      %v283 = vadd.f32 %v281, %v282
      %v284 = vrot.slane %v283, 2
      %v285 = vadd.f32 %v283, %v284
      %v286 = vrot.slane %v285, 1
      %v287 = vadd.f32 %v285, %v286
      %v288 = vsub.f32 %v287, %v256
      %v290 = vrot.slane %v256, 1
      %v292 = vsub.f32 %v288, %v290
      %v293 = vsub.f32 %v287, %v255
      %v294 = vsub.f32 %v293, %v290
      %v296 = vrot.slane %v255, 1
      %v298 = vsub.f32 %v293, %v296
      %v299 = vsel %vm209, %v257, 0.0
      %v300 = vsel %vm229, %v258, 0.0
      %v301 = vadd.f32 %v299, %v300
      %v302 = vrot.slane %v301, 4
      %v303 = vadd.f32 %v301, %v302
      %v304 = vrot.slane %v303, 2
      %v305 = vadd.f32 %v303, %v304
      %v306 = vrot.slane %v305, 1
      %v307 = vadd.f32 %v305, %v306
      %v308 = vsub.f32 %v307, %v258
      %v310 = vrot.slane %v258, 1
      %v312 = vsub.f32 %v308, %v310
      %v313 = vsub.f32 %v307, %v257
      %v314 = vsub.f32 %v313, %v310
      %v316 = vrot.slane %v257, 1
      %v318 = vsub.f32 %v313, %v316
      %320 = vrot.lane.b32.xlu0 %v274, 32
      %v321 = vpop.permute.xlu0 %320
      %324 = vrot.lane.b32.xlu0 %v278, 64
      %v325 = vpop.permute.xlu0 %324
      %328 = vrot.lane.b32.xlu0 %v292, 96
      %v329 = vpop.permute.xlu0 %328
      %332 = vrot.lane.b32.xlu0 %v298, 32
      %v333 = vpop.permute.xlu0 %332
      %336 = vrot.lane.b32.xlu0 %v312, 64
      %v337 = vpop.permute.xlu0 %336
      %340 = vrot.lane.b32.xlu0 %v314, 96
      %v341 = vpop.permute.xlu0 %340
      %v343 = vsel %vm209, %v272, %v321
      %vm344 = vcmask 523264
      %v345 = vsel %vm344, %v343, %v325
      %vm346 = vcmask 785408
      %v347 = vsel %vm346, %v345, %v329
      %v348 = vsel %vm209, %v294, %v333
      %v349 = vsel %vm344, %v348, %v337
      %v350 = vsel %vm346, %v349, %v341
      %v351 = vld [vmem:[%s1] sm:$0x7]
      %v353 = vlaneseq
      %v354 = vshrl.u32 %v353, 7
      %v355 = vsub.s32 0, %v354
      %v356 = vrot.slane %v351, %v355
      %v357 = vlaneseq
      %v358 = vshrl.u32 %v357, 7
      %v359 = vsub.s32 1, %v358
      %v360 = vrot.slane %v351, %v359
      %v361 = vlaneseq
      %v362 = vshrl.u32 %v361, 7
      %v363 = vsub.s32 2, %v362
      %v364 = vrot.slane %v351, %v363
      %v368 = vmul.f32 %v347, %v356
      %v369 = vmul.f32 %v350, %v360
      %v370 = vmul.f32 %v318, %v364
      %vm371 = vcmask 1040384
      %v372 = vsel %vm371, %v368, 0.0
      %v373 = vsel %vm371, %v369, 0.0
      %v374 = vadd.f32 %v372, %v373
      %vm375 = vcmask 253952
      %v376 = vsel %vm375, %v370, 0.0
      %v377 = vadd.f32 %v374, %v376
      %378 = vadd.xlane.f32.xlu0 %v377
      %v379 = vpop.xlane.xlu0 %378
      %v380 = vmul.f32 %v379, 0.015625
      %v381 = vld [vmem:[#allocation2] sm:$0x1]
      %v382 = vadd.f32 %v380, %v381
      %384 = vset.pattern.permute.xlu0 0
      %385 = vperm.xlu0 %384, %v382
      %v386 = vpop.permute.xlu0 %385
      %388 = vst [vmem:[%s168] sm:$0x1] %v386
      %p389 = scmp.lt.s32.totalorder %s16, 1
      %s390 = scalar_select %p389, %s16, 1
      %s391 = scalar_lea.vmem %s3, %s390
      // Predicated region
      $region33: #{basic_critic_forward.7} parent=31 // pred_check
        %p392 = pneg %p102
      $region34: #{basic_critic_forward.7} parent=31 // pred_check_branch
        %394 = sbr.rel (%p392) target = $region36
      $region35: #{basic_critic_forward.7} parent=31 // pred_region
        _
      $region36: #{basic_critic_forward.7} parent=31 // pred_fallthru
        _
    $region32: #{basic_critic_forward.7} parent=5 // pred_fallthru
      _
    %p395 = scmp.le.s32.totalorder 2, %s11
    // Predicated region
    $region37: #{basic_critic_forward.7} parent=5 // pred_check
      %p396 = pneg %p395
    $region38: #{basic_critic_forward.7} parent=5 // pred_check_branch
      %398 = sbr.rel (%p396) target = $region40
    $region39: #{basic_critic_forward.7} parent=5 // pred_region
      %s399 = ssub.s32 %s11, 2
      // Predicated region
      $region41: #{basic_critic_forward.7} parent=39 // pred_check
        %p400 = pneg %p108
      $region42: #{basic_critic_forward.7} parent=39 // pred_check_branch
        %402 = sbr.rel (%p400) target = $region44
      $region43: #{basic_critic_forward.7} parent=39 // pred_region
        %p403 = scmp.lt.s32.totalorder %s17, 1
        %s404 = scalar_select %p403, %s17, 1
        %s405 = scalar_lea.vmem %s3, %s404
      $region44: #{basic_critic_forward.7} parent=39 // pred_fallthru
        _
    $region40: #{basic_critic_forward.7} parent=5 // pred_fallthru
      _
  $region6: #{basic_critic_forward.7} parent=0 // loop_footer
    %s15 = sadd.s32 1, %s11
  $region7: #{basic_critic_forward.7} parent=0 // loop_footer_branch
    %10 = sbr.rel target = $region3
  $region8: #{basic_critic_forward.7} parent=0 // loop_exit
    _

// kernel: basic_critic_forward.6
$region0: #{basic_critic_forward.6}
  #allocation0 [shape = 'u32[]', space=smem, size = 0x4, offset = 0x4, fixed_abs, tag = 'smem constant byte address 0x4 - core index']
  #allocation1 [shape = 'u32[144,128]{1,0:T(1,128)}', space=vmem, size = 0x12000, scoped, tag = 'internal scratch']
  %s0 = inlined_call_operand.vmem [shape: bf16[2,12,12,32], index: 0, kind: input, shape index: {}]
  %s1 = inlined_call_operand.vmem [shape: bf16[3,96,32], index: 1, kind: input, shape index: {}]
  %s2 = inlined_call_operand.vmem [shape: f32[1,32], index: 2, kind: input, shape index: {}]
  %s3 = inlined_call_operand.vmem [shape: bf16[2,10,10,32], index: 3, kind: output, shape index: {0}]
  %s4 = inlined_call_operand.vmem [shape: f32[2,2,32], index: 4, kind: output, shape index: {1}]
  %5 = xla_tuple %s3, %s4
  %s6 = sld [smem:[#allocation0]]
  $region53: #{basic_critic_forward.6} parent=0
    _
  %s8 = ssub.s32 1, %s6
  %s9 = scalar_select 0, %s8, %s6
  loop: start=0, step=1, limit=4
  $region2: #{basic_critic_forward.6} parent=0 // loop_pre_header
    _
  $region3: #{basic_critic_forward.6} parent=0 // loop_header
    %s11 = sphi 0, %s15
    %p12 = scmp.ge.s32.totalorder %s11, 4
    %s21 = sphi 0, %s23
    %s24 = sphi 0, %s21
    %s25 = sphi 0, %s24
    %s41 = sphi 0, %s25
    %s45 = sphi 0, %s45
    %s47 = sphi 0, %s45
    %s48 = sphi 0, %s47
    %s62 = sphi 0, %s48
    %s66 = sphi 0, %s66
    %s68 = sphi 0, %s66
    %s69 = sphi 0, %s68
    %s83 = sphi 0, %s69
    %s89 = sphi 0, %s91
    %s92 = sphi 0, %s89
    %s93 = sphi 0, %s92
    %s109 = sphi 0, %s93
    %s115 = sphi 0, %s117
    %s118 = sphi 0, %s115
    %s119 = sphi 0, %s118
    %s135 = sphi 0, %s119
  $region4: #{basic_critic_forward.6} parent=0 // loop_header_branch
    %14 = sbr.rel (%p12) target = $region8
  $region5: #{basic_critic_forward.6} parent=0 // loop_body
    %s16 = ssub.s32 %s11, 1
    %s17 = ssub.s32 %s11, 2
    %s18 = sadd.s32 %s11, 1
    %s19 = ssub.s32 %s11, %s18
    %p20 = scmp.eq.s32.totalorder %s19, 0
    %s22 = sadd.s32 %s21, 1
    %s23 = scalar_select %p20, %s21, %s22
    %p26 = pneg %p20
    %p27 = scmp.eq.s32.totalorder %s11, 1
    %p28 = por %p26, %p27
    %p29 = scmp.ne.s32.totalorder %s21, %s24
    %p30 = scmp.eq.s32.totalorder %s11, 0
    %p31 = por %p29, %p30
    %p32 = scmp.ne.s32.totalorder %s21, %s24
    %p33 = scmp.eq.s32.totalorder %s16, 1
    %p34 = por %p32, %p33
    %p35 = scmp.ne.s32.totalorder %s24, %s25
    %p36 = scmp.eq.s32.totalorder %s16, 0
    %p37 = por %p35, %p36
    %p38 = scmp.ne.s32.totalorder %s24, %s25
    %p39 = scmp.eq.s32.totalorder %s17, 1
    %p40 = por %p38, %p39
    %p42 = scmp.ne.s32.totalorder %s25, %s41
    %p43 = scmp.eq.s32.totalorder %s17, 0
    %p44 = por %p42, %p43
    %s46 = sadd.s32 %s45, 1
    %p49 = scmp.eq.s32.totalorder %s11, 1
    %p50 = scmp.ne.s32.totalorder %s45, %s47
    %p51 = scmp.eq.s32.totalorder %s11, 0
    %p52 = por %p50, %p51
    %p53 = scmp.ne.s32.totalorder %s45, %s47
    %p54 = scmp.eq.s32.totalorder %s16, 1
    %p55 = por %p53, %p54
    %p56 = scmp.ne.s32.totalorder %s47, %s48
    %p57 = scmp.eq.s32.totalorder %s16, 0
    %p58 = por %p56, %p57
    %p59 = scmp.ne.s32.totalorder %s47, %s48
    %p60 = scmp.eq.s32.totalorder %s17, 1
    %p61 = por %p59, %p60
    %p63 = scmp.ne.s32.totalorder %s48, %s62
    %p64 = scmp.eq.s32.totalorder %s17, 0
    %p65 = por %p63, %p64
    %s67 = sadd.s32 %s66, 1
    %p70 = scmp.eq.s32.totalorder %s11, 1
    %p71 = scmp.ne.s32.totalorder %s66, %s68
    %p72 = scmp.eq.s32.totalorder %s11, 0
    %p73 = por %p71, %p72
    %p74 = scmp.ne.s32.totalorder %s66, %s68
    %p75 = scmp.eq.s32.totalorder %s16, 1
    %p76 = por %p74, %p75
    %p77 = scmp.ne.s32.totalorder %s68, %s69
    %p78 = scmp.eq.s32.totalorder %s16, 0
    %p79 = por %p77, %p78
    %p80 = scmp.ne.s32.totalorder %s68, %s69
    %p81 = scmp.eq.s32.totalorder %s17, 1
    %p82 = por %p80, %p81
    %p84 = scmp.ne.s32.totalorder %s69, %s83
    %p85 = scmp.eq.s32.totalorder %s17, 0
    %p86 = por %p84, %p85
    %s87 = ssub.s32 %s11, %s18
    %p88 = scmp.eq.s32.totalorder %s87, 0
    %s90 = sadd.s32 %s89, 1
    %s91 = scalar_select %p88, %s89, %s90
    %p94 = pneg %p88
    %p95 = scmp.eq.s32.totalorder %s11, 1
    %p96 = por %p94, %p95
    %p97 = scmp.ne.s32.totalorder %s89, %s92
    %p98 = scmp.eq.s32.totalorder %s11, 0
    %p99 = por %p97, %p98
    %p100 = scmp.ne.s32.totalorder %s89, %s92
    %p101 = scmp.eq.s32.totalorder %s16, 1
    %p102 = por %p100, %p101
    %p103 = scmp.ne.s32.totalorder %s92, %s93
    %p104 = scmp.eq.s32.totalorder %s16, 0
    %p105 = por %p103, %p104
    %p106 = scmp.ne.s32.totalorder %s92, %s93
    %p107 = scmp.eq.s32.totalorder %s17, 1
    %p108 = por %p106, %p107
    %p110 = scmp.ne.s32.totalorder %s93, %s109
    %p111 = scmp.eq.s32.totalorder %s17, 0
    %p112 = por %p110, %p111
    %s113 = ssub.s32 %s11, %s18
    %p114 = scmp.eq.s32.totalorder %s113, 0
    %s116 = sadd.s32 %s115, 1
    %s117 = scalar_select %p114, %s115, %s116
    %p120 = pneg %p114
    %p121 = scmp.eq.s32.totalorder %s11, 1
    %p122 = por %p120, %p121
    %p123 = scmp.ne.s32.totalorder %s115, %s118
    %p124 = scmp.eq.s32.totalorder %s11, 0
    %p125 = por %p123, %p124
    %p126 = scmp.ne.s32.totalorder %s115, %s118
    %p127 = scmp.eq.s32.totalorder %s16, 1
    %p128 = por %p126, %p127
    %p129 = scmp.ne.s32.totalorder %s118, %s119
    %p130 = scmp.eq.s32.totalorder %s16, 0
    %p131 = por %p129, %p130
    %p132 = scmp.ne.s32.totalorder %s118, %s119
    %p133 = scmp.eq.s32.totalorder %s17, 1
    %p134 = por %p132, %p133
    %p136 = scmp.ne.s32.totalorder %s119, %s135
    %p137 = scmp.eq.s32.totalorder %s17, 0
    %p138 = por %p136, %p137
    %p139 = scmp.le.s32.totalorder 1, %s11
    %p140 = scmp.lt.s32.totalorder %s11, 3
    %p141 = pnand %p139, %p140
    %p142 = pneg %p141
    // Predicated region
    $region9: #{basic_critic_forward.6} parent=5 // pred_check
      _
    $region10: #{basic_critic_forward.6} parent=5 // pred_check_branch
      %144 = sbr.rel (%p141) target = $region12
    $region11: #{basic_critic_forward.6} parent=5 // pred_region
      %s145 = ssub.s32 %s11, 1
      // Predicated region
      $region13: #{basic_critic_forward.6} parent=11 // pred_check
        %p146 = pneg %p58
      $region14: #{basic_critic_forward.6} parent=11 // pred_check_branch
        %148 = sbr.rel (%p146) target = $region16
      $region15: #{basic_critic_forward.6} parent=11 // pred_region
        _
      $region16: #{basic_critic_forward.6} parent=11 // pred_fallthru
        _
      // Predicated region
      $region17: #{basic_critic_forward.6} parent=11 // pred_check
        %p149 = pneg %p79
      $region18: #{basic_critic_forward.6} parent=11 // pred_check_branch
        %151 = sbr.rel (%p149) target = $region20
      $region19: #{basic_critic_forward.6} parent=11 // pred_region
        _
      $region20: #{basic_critic_forward.6} parent=11 // pred_fallthru
        _
    $region12: #{basic_critic_forward.6} parent=5 // pred_fallthru
      _
    %p152 = scmp.lt.s32.totalorder %s11, 2
    // Predicated region
    $region21: #{basic_critic_forward.6} parent=5 // pred_check
      %p153 = pneg %p152
    $region22: #{basic_critic_forward.6} parent=5 // pred_check_branch
      %155 = sbr.rel (%p153) target = $region24
    $region23: #{basic_critic_forward.6} parent=5 // pred_region
      // Predicated region
      $region25: #{basic_critic_forward.6} parent=23 // pred_check
        %p156 = pneg %p31
      $region26: #{basic_critic_forward.6} parent=23 // pred_check_branch
        %158 = sbr.rel (%p156) target = $region28
      $region27: #{basic_critic_forward.6} parent=23 // pred_region
        %p159 = scmp.lt.s32.totalorder %s11, 1
        %s160 = scalar_select %p159, %s11, 1
        %s161 = smul.addr %s160, 24
        %s162 = smul.addr %s161, 4
        %s163 = scalar_lea.vmem %s0, %s162
      $region28: #{basic_critic_forward.6} parent=23 // pred_fallthru
        _
    $region24: #{basic_critic_forward.6} parent=5 // pred_fallthru
      _
    %p164 = scmp.le.s32.totalorder 1, %s11
    %p165 = scmp.lt.s32.totalorder %s11, 3
    %p166 = pnand %p164, %p165
    %p167 = pneg %p166
    // Predicated region
    $region29: #{basic_critic_forward.6} parent=5 // pred_check
      _
    $region30: #{basic_critic_forward.6} parent=5 // pred_check_branch
      %169 = sbr.rel (%p166) target = $region32
    $region31: #{basic_critic_forward.6} parent=5 // pred_region
      %s170 = ssub.s32 %s11, 1
      %p171 = scmp.lt.s32.totalorder %s16, 1
      %s172 = scalar_select %p171, %s16, 1
      %s173 = smul.addr %s172, 24
      %s174 = smul.addr %s173, 4
      %s175 = scalar_lea.vmem %s0, %s174
      %p176 = pneg %p37
      %p177 = pneg %p34
      %p178 = pneg %p58
      %p179 = pneg %p55
      %p180 = pneg %p79
      %p181 = pneg %p76
      %p182 = pneg %p105
      %p183 = pneg %p102
      %p184 = scmp.lt.s32.totalorder %s16, 1
      %s185 = scalar_select %p184, %s16, 1
      %s186 = smul.addr %s185, 20
      %s187 = smul.addr %s186, 4
      %s188 = scalar_lea.vmem %s3, %s187
      %p189 = pneg %p131
      %p190 = pneg %p128
      %p191 = scmp.lt.s32.totalorder %s16, 1
      %s192 = scalar_select %p191, %s16, 1
      %s193 = smul.addr %s192, 2
      %s194 = scalar_lea.vmem %s4, %s193
      %p195 = scmp.lt.s32.totalorder %s16, 1
      %s196 = scalar_select %p195, %s16, 1
      %s197 = smul.addr %s196, 24
      %s198 = smul.addr %s197, 4
      %s199 = scalar_lea.vmem %s0, %s198
      %p200 = scmp.lt.s32.totalorder %s16, 1
      %s201 = scalar_select %p200, %s16, 1
      %s202 = smul.addr %s201, 20
      %s203 = smul.addr %s202, 4
      %s204 = scalar_lea.vmem %s3, %s203
      %p205 = scmp.lt.s32.totalorder %s16, 1
      %s206 = scalar_select %p205, %s16, 1
      %s207 = smul.addr %s206, 2
      %s208 = scalar_lea.vmem %s4, %s207
      %v210 = vld [vmem:[%s199] sm:$0xf]
      %v211 = vld [vmem:[%s199 + $0x4] sm:$0x3]
      %v212 = vld [vmem:[%s199 + $0x8] sm:$0xf]
      %v213 = vld [vmem:[%s199 + $0xc] sm:$0x3]
      %v214 = vld [vmem:[%s199 + $0x10] sm:$0xf]
      %v215 = vld [vmem:[%s199 + $0x14] sm:$0x3]
      %v216 = vld [vmem:[%s199 + $0x18] sm:$0xf]
      %v217 = vld [vmem:[%s199 + $0x1c] sm:$0x3]
      %v218 = vld [vmem:[%s199 + $0x20] sm:$0xf]
      %v219 = vld [vmem:[%s199 + $0x24] sm:$0x3]
      %v220 = vld [vmem:[%s199 + $0x28] sm:$0xf]
      %v221 = vld [vmem:[%s199 + $0x2c] sm:$0x3]
      %v222 = vld [vmem:[%s199 + $0x30] sm:$0xf]
      %v223 = vld [vmem:[%s199 + $0x34] sm:$0x3]
      %v224 = vld [vmem:[%s199 + $0x38] sm:$0xf]
      %v225 = vld [vmem:[%s199 + $0x3c] sm:$0x3]
      %v226 = vld [vmem:[%s199 + $0x40] sm:$0xf]
      %v227 = vld [vmem:[%s199 + $0x44] sm:$0x3]
      %v228 = vld [vmem:[%s199 + $0x48] sm:$0xf]
      %v229 = vld [vmem:[%s199 + $0x4c] sm:$0x3]
      %v230 = vld [vmem:[%s199 + $0x50] sm:$0xf]
      %v231 = vld [vmem:[%s199 + $0x54] sm:$0x3]
      %v232 = vld [vmem:[%s199 + $0x58] sm:$0xf]
      %v233 = vld [vmem:[%s199 + $0x5c] sm:$0x3]
      %v234 = vunpack.c.l.bf16 %v210
      %v235 = vunpack.c.l.bf16 %v211
      %v236 = vunpack.c.l.bf16 %v212
      %v237 = vunpack.c.l.bf16 %v213
      %v238 = vunpack.c.l.bf16 %v214
      %v239 = vunpack.c.l.bf16 %v215
      %v240 = vunpack.c.l.bf16 %v216
      %v241 = vunpack.c.l.bf16 %v217
      %v242 = vunpack.c.l.bf16 %v218
      %v243 = vunpack.c.l.bf16 %v219
      %v244 = vunpack.c.l.bf16 %v220
      %v245 = vunpack.c.l.bf16 %v221
      %v246 = vunpack.c.l.bf16 %v222
      %v247 = vunpack.c.l.bf16 %v223
      %v248 = vunpack.c.l.bf16 %v224
      %v249 = vunpack.c.l.bf16 %v225
      %v250 = vunpack.c.l.bf16 %v226
      %v251 = vunpack.c.l.bf16 %v227
      %v252 = vunpack.c.l.bf16 %v228
      %v253 = vunpack.c.l.bf16 %v229
      %v254 = vunpack.c.l.bf16 %v230
      %v255 = vunpack.c.l.bf16 %v231
      %v256 = vunpack.c.l.bf16 %v232
      %v257 = vunpack.c.l.bf16 %v233
      %v258 = vpack.c.bf16 %v235, %v234
      %v259 = vpack.c.bf16 %v237, %v236
      %v260 = vpack.c.bf16 %v239, %v238
      %v261 = vpack.c.bf16 %v241, %v240
      %v262 = vpack.c.bf16 %v243, %v242
      %v263 = vpack.c.bf16 %v245, %v244
      %v264 = vpack.c.bf16 %v247, %v246
      %v265 = vpack.c.bf16 %v249, %v248
      %v266 = vpack.c.bf16 %v251, %v250
      %v267 = vpack.c.bf16 %v253, %v252
      %v269 = vshrl.u32 %v258, 16
      %v271 = vshll.u32 %v258, 16
      %v273 = vrot.slane %v271, 1
      %v274 = vor.u32 %v269, %v273
      %v276 = vshrl.u32 %v259, 16
      %v278 = vshll.u32 %v259, 16
      %v280 = vrot.slane %v278, 1
      %v281 = vor.u32 %v276, %v280
      %v283 = vshrl.u32 %v260, 16
      %v285 = vshll.u32 %v260, 16
      %v287 = vrot.slane %v285, 1
      %v288 = vor.u32 %v283, %v287
      %v290 = vshrl.u32 %v261, 16
      %v292 = vshll.u32 %v261, 16
      %v294 = vrot.slane %v292, 1
      %v295 = vor.u32 %v290, %v294
      %v297 = vshrl.u32 %v262, 16
      %v299 = vshll.u32 %v262, 16
      %v301 = vrot.slane %v299, 1
      %v302 = vor.u32 %v297, %v301
      %v304 = vshrl.u32 %v263, 16
      %v306 = vshll.u32 %v263, 16
      %v308 = vrot.slane %v306, 1
      %v309 = vor.u32 %v304, %v308
      %v311 = vshrl.u32 %v264, 16
      %v313 = vshll.u32 %v264, 16
      %v315 = vrot.slane %v313, 1
      %v316 = vor.u32 %v311, %v315
      %v318 = vshrl.u32 %v265, 16
      %v320 = vshll.u32 %v265, 16
      %v322 = vrot.slane %v320, 1
      %v323 = vor.u32 %v318, %v322
      %v325 = vshrl.u32 %v266, 16
      %v327 = vshll.u32 %v266, 16
      %v329 = vrot.slane %v327, 1
      %v330 = vor.u32 %v325, %v329
      %v332 = vshrl.u32 %v267, 16
      %v334 = vshll.u32 %v267, 16
      %v336 = vrot.slane %v334, 1
      %v337 = vor.u32 %v332, %v336
      %338 = vrot.lane.b32.xlu0 %v274, 32
      %v339 = vpop.permute.xlu0 %338
      %340 = vrot.lane.b32.xlu0 %v281, 32
      %v341 = vpop.permute.xlu0 %340
      %342 = vrot.lane.b32.xlu0 %v288, 32
      %v343 = vpop.permute.xlu0 %342
      %344 = vrot.lane.b32.xlu0 %v295, 32
      %v345 = vpop.permute.xlu0 %344
      %346 = vrot.lane.b32.xlu0 %v302, 32
      %v347 = vpop.permute.xlu0 %346
      %348 = vrot.lane.b32.xlu0 %v309, 32
      %v349 = vpop.permute.xlu0 %348
      %350 = vrot.lane.b32.xlu0 %v316, 32
      %v351 = vpop.permute.xlu0 %350
      %352 = vrot.lane.b32.xlu0 %v323, 32
      %v353 = vpop.permute.xlu0 %352
      %354 = vrot.lane.b32.xlu0 %v330, 32
      %v355 = vpop.permute.xlu0 %354
      %356 = vrot.lane.b32.xlu0 %v337, 32
      %v357 = vpop.permute.xlu0 %356
      %v368 = vrot.slane %v258, 1
      %v369 = vrot.slane %v259, 1
      %v370 = vrot.slane %v260, 1
      %v371 = vrot.slane %v261, 1
      %v372 = vrot.slane %v262, 1
      %v373 = vrot.slane %v263, 1
      %v374 = vrot.slane %v264, 1
      %v375 = vrot.slane %v265, 1
      %v376 = vrot.slane %v266, 1
      %v377 = vrot.slane %v267, 1
      %378 = vrot.lane.b32.xlu0 %v368, 64
      %v379 = vpop.permute.xlu0 %378
      %380 = vrot.lane.b32.xlu0 %v369, 64
      %v381 = vpop.permute.xlu0 %380
      %382 = vrot.lane.b32.xlu0 %v370, 64
      %v383 = vpop.permute.xlu0 %382
      %384 = vrot.lane.b32.xlu0 %v371, 64
      %v385 = vpop.permute.xlu0 %384
      %386 = vrot.lane.b32.xlu0 %v372, 64
      %v387 = vpop.permute.xlu0 %386
      %388 = vrot.lane.b32.xlu0 %v373, 64
      %v389 = vpop.permute.xlu0 %388
      %390 = vrot.lane.b32.xlu0 %v374, 64
      %v391 = vpop.permute.xlu0 %390
      %392 = vrot.lane.b32.xlu0 %v375, 64
      %v393 = vpop.permute.xlu0 %392
      %394 = vrot.lane.b32.xlu0 %v376, 64
      %v395 = vpop.permute.xlu0 %394
      %396 = vrot.lane.b32.xlu0 %v377, 64
      %v397 = vpop.permute.xlu0 %396
      %vm398 = vcmask 261120
      %v400 = vsel %vm398, %v258, %v339
      %v402 = vsel %vm398, %v259, %v341
      %v404 = vsel %vm398, %v260, %v343
      %v406 = vsel %vm398, %v261, %v345
      %v408 = vsel %vm398, %v262, %v347
      %v410 = vsel %vm398, %v263, %v349
      %v412 = vsel %vm398, %v264, %v351
      %v414 = vsel %vm398, %v265, %v353
      %v416 = vsel %vm398, %v266, %v355
      %v418 = vsel %vm398, %v267, %v357
      %vm419 = vcmask 523264
      %v421 = vsel %vm419, %v400, %v379
      %v423 = vsel %vm419, %v402, %v381
      %v425 = vsel %vm419, %v404, %v383
      %v427 = vsel %vm419, %v406, %v385
      %v429 = vsel %vm419, %v408, %v387
      %v431 = vsel %vm419, %v410, %v389
      %v433 = vsel %vm419, %v412, %v391
      %v435 = vsel %vm419, %v414, %v393
      %v437 = vsel %vm419, %v416, %v395
      %v439 = vsel %vm419, %v418, %v397
      %v450 = vcombine.high %v421, %v421
      %v452 = vunpack.c.l.s4 1966171168
      %v453 = vunpack.c.0.s8 %v452
      %v454 = vlaneseq
      %v455 = vshrl.u32 %v454, 7
      %v456 = vsub.s32 %v453, %v455
      %v457 = vrot.slane %v421, %v456
      %v459 = vunpack.c.l.s4 1966171168
      %v460 = vunpack.c.0.s8 %v459
      %v461 = vlaneseq
      %v462 = vshrl.u32 %v461, 7
      %v463 = vsub.s32 %v460, %v462
      %v464 = vrot.slane %v450, %v463
      %v465 = vcombine.high %v457, %v457
      %v467 = vunpack.c.l.s4 1966171168
      %v468 = vunpack.c.0.s8 %v467
      %v469 = vlaneseq
      %v470 = vshrl.u32 %v469, 7
      %v471 = vsub.s32 %v468, %v470
      %v472 = vrot.slane %v457, %v471
      %v474 = vunpack.c.l.s4 1966171168
      %v475 = vunpack.c.0.s8 %v474
      %v476 = vlaneseq
      %v477 = vshrl.u32 %v476, 7
      %v478 = vsub.s32 %v475, %v477
      %v479 = vrot.slane %v464, %v478
      %v481 = vunpack.c.l.s4 1966171168
      %v482 = vunpack.c.0.s8 %v481
      %v483 = vlaneseq
      %v484 = vshrl.u32 %v483, 7
      %v485 = vsub.s32 %v482, %v484
      %v486 = vrot.slane %v465, %v485
      %v487 = vcombine.high %v472, %v472
      %v488 = vcombine.high %v486, %v486
      %v489 = vcombine.high %v423, %v423
      %v491 = vunpack.c.l.s4 1966171168
      %v492 = vunpack.c.0.s8 %v491
      %v493 = vlaneseq
      %v494 = vshrl.u32 %v493, 7
      %v495 = vsub.s32 %v492, %v494
      %v496 = vrot.slane %v423, %v495
      %v498 = vunpack.c.l.s4 1966171168
      %v499 = vunpack.c.0.s8 %v498
      %v500 = vlaneseq
      %v501 = vshrl.u32 %v500, 7
      %v502 = vsub.s32 %v499, %v501
      %v503 = vrot.slane %v489, %v502
      %v504 = vcombine.high %v496, %v496
      %v506 = vunpack.c.l.s4 1966171168
      %v507 = vunpack.c.0.s8 %v506
      %v508 = vlaneseq
      %v509 = vshrl.u32 %v508, 7
      %v510 = vsub.s32 %v507, %v509
      %v511 = vrot.slane %v496, %v510
      %v513 = vunpack.c.l.s4 1966171168
      %v514 = vunpack.c.0.s8 %v513
      %v515 = vlaneseq
      %v516 = vshrl.u32 %v515, 7
      %v517 = vsub.s32 %v514, %v516
      %v518 = vrot.slane %v503, %v517
      %v520 = vunpack.c.l.s4 1966171168
      %v521 = vunpack.c.0.s8 %v520
      %v522 = vlaneseq
      %v523 = vshrl.u32 %v522, 7
      %v524 = vsub.s32 %v521, %v523
      %v525 = vrot.slane %v504, %v524
      %v526 = vcombine.high %v511, %v511
      %v527 = vcombine.high %v525, %v525
      %v528 = vcombine.high %v425, %v425
      %v530 = vunpack.c.l.s4 1966171168
      %v531 = vunpack.c.0.s8 %v530
      %v532 = vlaneseq
      %v533 = vshrl.u32 %v532, 7
      %v534 = vsub.s32 %v531, %v533
      %v535 = vrot.slane %v425, %v534
      %v537 = vunpack.c.l.s4 1966171168
      %v538 = vunpack.c.0.s8 %v537
      %v539 = vlaneseq
      %v540 = vshrl.u32 %v539, 7
      %v541 = vsub.s32 %v538, %v540
      %v542 = vrot.slane %v528, %v541
      %v543 = vcombine.high %v535, %v535
      %v545 = vunpack.c.l.s4 1966171168
      %v546 = vunpack.c.0.s8 %v545
      %v547 = vlaneseq
      %v548 = vshrl.u32 %v547, 7
      %v549 = vsub.s32 %v546, %v548
      %v550 = vrot.slane %v535, %v549
      %v552 = vunpack.c.l.s4 1966171168
      %v553 = vunpack.c.0.s8 %v552
      %v554 = vlaneseq
      %v555 = vshrl.u32 %v554, 7
      %v556 = vsub.s32 %v553, %v555
      %v557 = vrot.slane %v542, %v556
      %v559 = vunpack.c.l.s4 1966171168
      %v560 = vunpack.c.0.s8 %v559
      %v561 = vlaneseq
      %v562 = vshrl.u32 %v561, 7
      %v563 = vsub.s32 %v560, %v562
      %v564 = vrot.slane %v543, %v563
      %v565 = vcombine.high %v550, %v550
      %v566 = vcombine.high %v564, %v564
      %v567 = vcombine.high %v427, %v427
      %v569 = vunpack.c.l.s4 1966171168
      %v570 = vunpack.c.0.s8 %v569
      %v571 = vlaneseq
      %v572 = vshrl.u32 %v571, 7
      %v573 = vsub.s32 %v570, %v572
      %v574 = vrot.slane %v427, %v573
      %v576 = vunpack.c.l.s4 1966171168
      %v577 = vunpack.c.0.s8 %v576
      %v578 = vlaneseq
      %v579 = vshrl.u32 %v578, 7
      %v580 = vsub.s32 %v577, %v579
      %v581 = vrot.slane %v567, %v580
      %v582 = vcombine.high %v574, %v574
      %v584 = vunpack.c.l.s4 1966171168
      %v585 = vunpack.c.0.s8 %v584
      %v586 = vlaneseq
      %v587 = vshrl.u32 %v586, 7
      %v588 = vsub.s32 %v585, %v587
      %v589 = vrot.slane %v574, %v588
      %v591 = vunpack.c.l.s4 1966171168
      %v592 = vunpack.c.0.s8 %v591
      %v593 = vlaneseq
      %v594 = vshrl.u32 %v593, 7
      %v595 = vsub.s32 %v592, %v594
      %v596 = vrot.slane %v581, %v595
      %v598 = vunpack.c.l.s4 1966171168
      %v599 = vunpack.c.0.s8 %v598
      %v600 = vlaneseq
      %v601 = vshrl.u32 %v600, 7
      %v602 = vsub.s32 %v599, %v601
      %v603 = vrot.slane %v582, %v602
      %v604 = vcombine.high %v589, %v589
      %v605 = vcombine.high %v603, %v603
      %v606 = vcombine.high %v429, %v429
      %v608 = vunpack.c.l.s4 1966171168
      %v609 = vunpack.c.0.s8 %v608
      %v610 = vlaneseq
      %v611 = vshrl.u32 %v610, 7
      %v612 = vsub.s32 %v609, %v611
      %v613 = vrot.slane %v429, %v612
      %v615 = vunpack.c.l.s4 1966171168
      %v616 = vunpack.c.0.s8 %v615
      %v617 = vlaneseq
      %v618 = vshrl.u32 %v617, 7
      %v619 = vsub.s32 %v616, %v618
      %v620 = vrot.slane %v606, %v619
      %v621 = vcombine.high %v613, %v613
      %v623 = vunpack.c.l.s4 1966171168
      %v624 = vunpack.c.0.s8 %v623
      %v625 = vlaneseq
      %v626 = vshrl.u32 %v625, 7
      %v627 = vsub.s32 %v624, %v626
      %v628 = vrot.slane %v613, %v627
      %v630 = vunpack.c.l.s4 1966171168
      %v631 = vunpack.c.0.s8 %v630
      %v632 = vlaneseq
      %v633 = vshrl.u32 %v632, 7
      %v634 = vsub.s32 %v631, %v633
      %v635 = vrot.slane %v620, %v634
      %v637 = vunpack.c.l.s4 1966171168
      %v638 = vunpack.c.0.s8 %v637
      %v639 = vlaneseq
      %v640 = vshrl.u32 %v639, 7
      %v641 = vsub.s32 %v638, %v640
      %v642 = vrot.slane %v621, %v641
      %v643 = vcombine.high %v628, %v628
      %v644 = vcombine.high %v642, %v642
      %v645 = vcombine.high %v431, %v431
      %v647 = vunpack.c.l.s4 1966171168
      %v648 = vunpack.c.0.s8 %v647
      %v649 = vlaneseq
      %v650 = vshrl.u32 %v649, 7
      %v651 = vsub.s32 %v648, %v650
      %v652 = vrot.slane %v431, %v651
      %v654 = vunpack.c.l.s4 1966171168
      %v655 = vunpack.c.0.s8 %v654
      %v656 = vlaneseq
      %v657 = vshrl.u32 %v656, 7
      %v658 = vsub.s32 %v655, %v657
      %v659 = vrot.slane %v645, %v658
      %v660 = vcombine.high %v652, %v652
      %v662 = vunpack.c.l.s4 1966171168
      %v663 = vunpack.c.0.s8 %v662
      %v664 = vlaneseq
      %v665 = vshrl.u32 %v664, 7
      %v666 = vsub.s32 %v663, %v665
      %v667 = vrot.slane %v652, %v666
      %v669 = vunpack.c.l.s4 1966171168
      %v670 = vunpack.c.0.s8 %v669
      %v671 = vlaneseq
      %v672 = vshrl.u32 %v671, 7
      %v673 = vsub.s32 %v670, %v672
      %v674 = vrot.slane %v659, %v673
      %v676 = vunpack.c.l.s4 1966171168
      %v677 = vunpack.c.0.s8 %v676
      %v678 = vlaneseq
      %v679 = vshrl.u32 %v678, 7
      %v680 = vsub.s32 %v677, %v679
      %v681 = vrot.slane %v660, %v680
      %v682 = vcombine.high %v667, %v667
      %v683 = vcombine.high %v681, %v681
      %v684 = vcombine.high %v433, %v433
      %v686 = vunpack.c.l.s4 1966171168
      %v687 = vunpack.c.0.s8 %v686
      %v688 = vlaneseq
      %v689 = vshrl.u32 %v688, 7
      %v690 = vsub.s32 %v687, %v689
      %v691 = vrot.slane %v433, %v690
      %v693 = vunpack.c.l.s4 1966171168
      %v694 = vunpack.c.0.s8 %v693
      %v695 = vlaneseq
      %v696 = vshrl.u32 %v695, 7
      %v697 = vsub.s32 %v694, %v696
      %v698 = vrot.slane %v684, %v697
      %v699 = vcombine.high %v691, %v691
      %v701 = vunpack.c.l.s4 1966171168
      %v702 = vunpack.c.0.s8 %v701
      %v703 = vlaneseq
      %v704 = vshrl.u32 %v703, 7
      %v705 = vsub.s32 %v702, %v704
      %v706 = vrot.slane %v691, %v705
      %v708 = vunpack.c.l.s4 1966171168
      %v709 = vunpack.c.0.s8 %v708
      %v710 = vlaneseq
      %v711 = vshrl.u32 %v710, 7
      %v712 = vsub.s32 %v709, %v711
      %v713 = vrot.slane %v698, %v712
      %v715 = vunpack.c.l.s4 1966171168
      %v716 = vunpack.c.0.s8 %v715
      %v717 = vlaneseq
      %v718 = vshrl.u32 %v717, 7
      %v719 = vsub.s32 %v716, %v718
      %v720 = vrot.slane %v699, %v719
      %v721 = vcombine.high %v706, %v706
      %v722 = vcombine.high %v720, %v720
      %v723 = vcombine.high %v435, %v435
      %v725 = vunpack.c.l.s4 1966171168
      %v726 = vunpack.c.0.s8 %v725
      %v727 = vlaneseq
      %v728 = vshrl.u32 %v727, 7
      %v729 = vsub.s32 %v726, %v728
      %v730 = vrot.slane %v435, %v729
      %v732 = vunpack.c.l.s4 1966171168
      %v733 = vunpack.c.0.s8 %v732
      %v734 = vlaneseq
      %v735 = vshrl.u32 %v734, 7
      %v736 = vsub.s32 %v733, %v735
      %v737 = vrot.slane %v723, %v736
      %v738 = vcombine.high %v730, %v730
      %v740 = vunpack.c.l.s4 1966171168
      %v741 = vunpack.c.0.s8 %v740
      %v742 = vlaneseq
      %v743 = vshrl.u32 %v742, 7
      %v744 = vsub.s32 %v741, %v743
      %v745 = vrot.slane %v730, %v744
      %v747 = vunpack.c.l.s4 1966171168
      %v748 = vunpack.c.0.s8 %v747
      %v749 = vlaneseq
      %v750 = vshrl.u32 %v749, 7
      %v751 = vsub.s32 %v748, %v750
      %v752 = vrot.slane %v737, %v751
      %v754 = vunpack.c.l.s4 1966171168
      %v755 = vunpack.c.0.s8 %v754
      %v756 = vlaneseq
      %v757 = vshrl.u32 %v756, 7
      %v758 = vsub.s32 %v755, %v757
      %v759 = vrot.slane %v738, %v758
      %v760 = vcombine.high %v745, %v745
      %v761 = vcombine.high %v759, %v759
      %v762 = vcombine.high %v437, %v437
      %v764 = vunpack.c.l.s4 1966171168
      %v765 = vunpack.c.0.s8 %v764
      %v766 = vlaneseq
      %v767 = vshrl.u32 %v766, 7
      %v768 = vsub.s32 %v765, %v767
      %v769 = vrot.slane %v437, %v768
      %v771 = vunpack.c.l.s4 1966171168
      %v772 = vunpack.c.0.s8 %v771
      %v773 = vlaneseq
      %v774 = vshrl.u32 %v773, 7
      %v775 = vsub.s32 %v772, %v774
      %v776 = vrot.slane %v762, %v775
      %v777 = vcombine.high %v769, %v769
      %v779 = vunpack.c.l.s4 1966171168
      %v780 = vunpack.c.0.s8 %v779
      %v781 = vlaneseq
      %v782 = vshrl.u32 %v781, 7
      %v783 = vsub.s32 %v780, %v782
      %v784 = vrot.slane %v769, %v783
      %v786 = vunpack.c.l.s4 1966171168
      %v787 = vunpack.c.0.s8 %v786
      %v788 = vlaneseq
      %v789 = vshrl.u32 %v788, 7
      %v790 = vsub.s32 %v787, %v789
      %v791 = vrot.slane %v776, %v790
      %v793 = vunpack.c.l.s4 1966171168
      %v794 = vunpack.c.0.s8 %v793
      %v795 = vlaneseq
      %v796 = vshrl.u32 %v795, 7
      %v797 = vsub.s32 %v794, %v796
      %v798 = vrot.slane %v777, %v797
      %v799 = vcombine.high %v784, %v784
      %v800 = vcombine.high %v798, %v798
      %v801 = vcombine.high %v439, %v439
      %v803 = vunpack.c.l.s4 1966171168
      %v804 = vunpack.c.0.s8 %v803
      %v805 = vlaneseq
      %v806 = vshrl.u32 %v805, 7
      %v807 = vsub.s32 %v804, %v806
      %v808 = vrot.slane %v439, %v807
      %v810 = vunpack.c.l.s4 1966171168
      %v811 = vunpack.c.0.s8 %v810
      %v812 = vlaneseq
      %v813 = vshrl.u32 %v812, 7
      %v814 = vsub.s32 %v811, %v813
      %v815 = vrot.slane %v801, %v814
      %v816 = vcombine.high %v808, %v808
      %v818 = vunpack.c.l.s4 1966171168
      %v819 = vunpack.c.0.s8 %v818
      %v820 = vlaneseq
      %v821 = vshrl.u32 %v820, 7
      %v822 = vsub.s32 %v819, %v821
      %v823 = vrot.slane %v808, %v822
      %v825 = vunpack.c.l.s4 1966171168
      %v826 = vunpack.c.0.s8 %v825
      %v827 = vlaneseq
      %v828 = vshrl.u32 %v827, 7
      %v829 = vsub.s32 %v826, %v828
      %v830 = vrot.slane %v815, %v829
      %v832 = vunpack.c.l.s4 1966171168
      %v833 = vunpack.c.0.s8 %v832
      %v834 = vlaneseq
      %v835 = vshrl.u32 %v834, 7
      %v836 = vsub.s32 %v833, %v835
      %v837 = vrot.slane %v816, %v836
      %v838 = vcombine.high %v823, %v823
      %v839 = vcombine.high %v837, %v837
      %v840 = vld [vmem:[%s1] sm:$0xf]
      %v841 = vld [vmem:[%s1 + $0x4] sm:$0xf]
      %v842 = vld [vmem:[%s1 + $0x8] sm:$0xf]
      %v843 = vld [vmem:[%s1 + $0xc] sm:$0xf]
      %v844 = vld [vmem:[%s1 + $0x10] sm:$0xf]
      %v845 = vld [vmem:[%s1 + $0x14] sm:$0xf]
      %v846 = vld [vmem:[%s1 + $0x18] sm:$0xf]
      %v847 = vld [vmem:[%s1 + $0x1c] sm:$0xf]
      %v848 = vld [vmem:[%s1 + $0x20] sm:$0xf]
      %v849 = vld [vmem:[%s1 + $0x24] sm:$0xf]
      %v850 = vld [vmem:[%s1 + $0x28] sm:$0xf]
      %v851 = vld [vmem:[%s1 + $0x2c] sm:$0xf]
      %v852 = vpack.c.bf16 %v255, %v254
      %v854 = vshrl.u32 %v852, 16
      %v856 = vshll.u32 %v852, 16
      %v858 = vrot.slane %v856, 1
      %v859 = vor.u32 %v854, %v858
      %860 = vrot.lane.b32.xlu0 %v859, 32
      %v861 = vpop.permute.xlu0 %860
      %v863 = vrot.slane %v852, 1
      %864 = vrot.lane.b32.xlu0 %v863, 64
      %v865 = vpop.permute.xlu0 %864
      %v867 = vsel %vm398, %v852, %v861
      %v869 = vsel %vm419, %v867, %v865
      %v871 = vcombine.high %v869, %v869
      %v873 = vunpack.c.l.s4 1966171168
      %v874 = vunpack.c.0.s8 %v873
      %v875 = vlaneseq
      %v876 = vshrl.u32 %v875, 7
      %v877 = vsub.s32 %v874, %v876
      %v878 = vrot.slane %v869, %v877
      %v880 = vunpack.c.l.s4 1966171168
      %v881 = vunpack.c.0.s8 %v880
      %v882 = vlaneseq
      %v883 = vshrl.u32 %v882, 7
      %v884 = vsub.s32 %v881, %v883
      %v885 = vrot.slane %v871, %v884
      %v886 = vcombine.high %v878, %v878
      %v888 = vunpack.c.l.s4 1966171168
      %v889 = vunpack.c.0.s8 %v888
      %v890 = vlaneseq
      %v891 = vshrl.u32 %v890, 7
      %v892 = vsub.s32 %v889, %v891
      %v893 = vrot.slane %v878, %v892
      %v895 = vunpack.c.l.s4 1966171168
      %v896 = vunpack.c.0.s8 %v895
      %v897 = vlaneseq
      %v898 = vshrl.u32 %v897, 7
      %v899 = vsub.s32 %v896, %v898
      %v900 = vrot.slane %v885, %v899
      %v902 = vunpack.c.l.s4 1966171168
      %v903 = vunpack.c.0.s8 %v902
      %v904 = vlaneseq
      %v905 = vshrl.u32 %v904, 7
      %v906 = vsub.s32 %v903, %v905
      %v907 = vrot.slane %v886, %v906
      %v908 = vcombine.high %v893, %v893
      %v909 = vcombine.high %v907, %v907
      %s910 = scalar_lea.vmem %s1, 48
      %v911 = vld [vmem:[%s910] sm:$0xf]
      %v912 = vld [vmem:[%s910 + $0x4] sm:$0xf]
      %v913 = vld [vmem:[%s910 + $0x8] sm:$0xf]
      %v914 = vld [vmem:[%s910 + $0xc] sm:$0xf]
      %v915 = vld [vmem:[%s910 + $0x10] sm:$0xf]
      %v916 = vld [vmem:[%s910 + $0x14] sm:$0xf]
      %v917 = vld [vmem:[%s910 + $0x18] sm:$0xf]
      %v918 = vld [vmem:[%s910 + $0x1c] sm:$0xf]
      %v919 = vld [vmem:[%s910 + $0x20] sm:$0xf]
      %v920 = vld [vmem:[%s910 + $0x24] sm:$0xf]
      %v921 = vld [vmem:[%s910 + $0x28] sm:$0xf]
      %v922 = vld [vmem:[%s910 + $0x2c] sm:$0xf]
      %v923 = vcombine.low %v511, %v525
      %v924 = vcombine.low %v526, %v527
      %v925 = vcombine.low %v518, %v550
      %v926 = vcombine.low %v564, %v565
      %v928 = vunpack.c.l.s4 1966171168
      %v929 = vunpack.c.0.s8 %v928
      %v930 = vlaneseq
      %v931 = vshrl.u32 %v930, 7
      %v932 = vsub.s32 %v929, %v931
      %v933 = vrot.slane %v923, %v932
      %v935 = vunpack.c.l.s4 1966171168
      %v936 = vunpack.c.0.s8 %v935
      %v937 = vlaneseq
      %v938 = vshrl.u32 %v937, 7
      %v939 = vsub.s32 %v936, %v938
      %v940 = vrot.slane %v924, %v939
      %v942 = vunpack.c.l.s4 1966171168
      %v943 = vunpack.c.0.s8 %v942
      %v944 = vlaneseq
      %v945 = vshrl.u32 %v944, 7
      %v946 = vsub.s32 %v943, %v945
      %v947 = vrot.slane %v925, %v946
      %v949 = vunpack.c.l.s4 1966171168
      %v950 = vunpack.c.0.s8 %v949
      %v951 = vlaneseq
      %v952 = vshrl.u32 %v951, 7
      %v953 = vsub.s32 %v950, %v952
      %v954 = vrot.slane %v926, %v953
      %v955 = vcombine.low %v933, %v940
      %v956 = vcombine.low %v947, %v954
      %v958 = vunpack.c.l.s4 1966171168
      %v959 = vunpack.c.0.s8 %v958
      %v960 = vlaneseq
      %v961 = vshrl.u32 %v960, 7
      %v962 = vsub.s32 %v959, %v961
      %v963 = vrot.slane %v955, %v962
      %v965 = vunpack.c.l.s4 1966171168
      %v966 = vunpack.c.0.s8 %v965
      %v967 = vlaneseq
      %v968 = vshrl.u32 %v967, 7
      %v969 = vsub.s32 %v966, %v968
      %v970 = vrot.slane %v956, %v969
      %v971 = vcombine.low %v963, %v970
      %v972 = vcombine.low %v566, %v557
      %v973 = vcombine.low %v589, %v603
      %v974 = vcombine.low %v604, %v605
      %v975 = vcombine.low %v596, %v628
      %v977 = vunpack.c.l.s4 1966171168
      %v978 = vunpack.c.0.s8 %v977
      %v979 = vlaneseq
      %v980 = vshrl.u32 %v979, 7
      %v981 = vsub.s32 %v978, %v980
      %v982 = vrot.slane %v972, %v981
      %v984 = vunpack.c.l.s4 1966171168
      %v985 = vunpack.c.0.s8 %v984
      %v986 = vlaneseq
      %v987 = vshrl.u32 %v986, 7
      %v988 = vsub.s32 %v985, %v987
      %v989 = vrot.slane %v973, %v988
      %v991 = vunpack.c.l.s4 1966171168
      %v992 = vunpack.c.0.s8 %v991
      %v993 = vlaneseq
      %v994 = vshrl.u32 %v993, 7
      %v995 = vsub.s32 %v992, %v994
      %v996 = vrot.slane %v974, %v995
      %v998 = vunpack.c.l.s4 1966171168
      %v999 = vunpack.c.0.s8 %v998
      %v1000 = vlaneseq
      %v1001 = vshrl.u32 %v1000, 7
      %v1002 = vsub.s32 %v999, %v1001
      %v1003 = vrot.slane %v975, %v1002
      %v1004 = vcombine.low %v982, %v989
      %v1005 = vcombine.low %v996, %v1003
      %v1007 = vunpack.c.l.s4 1966171168
      %v1008 = vunpack.c.0.s8 %v1007
      %v1009 = vlaneseq
      %v1010 = vshrl.u32 %v1009, 7
      %v1011 = vsub.s32 %v1008, %v1010
      %v1012 = vrot.slane %v1004, %v1011
      %v1014 = vunpack.c.l.s4 1966171168
      %v1015 = vunpack.c.0.s8 %v1014
      %v1016 = vlaneseq
      %v1017 = vshrl.u32 %v1016, 7
      %v1018 = vsub.s32 %v1015, %v1017
      %v1019 = vrot.slane %v1005, %v1018
      %v1020 = vcombine.low %v1012, %v1019
      %v1021 = vcombine.low %v642, %v643
      %v1022 = vcombine.low %v644, %v635
      %v1023 = vcombine.low %v667, %v681
      %v1024 = vcombine.low %v682, %v683
      %v1026 = vunpack.c.l.s4 1966171168
      %v1027 = vunpack.c.0.s8 %v1026
      %v1028 = vlaneseq
      %v1029 = vshrl.u32 %v1028, 7
      %v1030 = vsub.s32 %v1027, %v1029
      %v1031 = vrot.slane %v1021, %v1030
      %v1033 = vunpack.c.l.s4 1966171168
      %v1034 = vunpack.c.0.s8 %v1033
      %v1035 = vlaneseq
      %v1036 = vshrl.u32 %v1035, 7
      %v1037 = vsub.s32 %v1034, %v1036
      %v1038 = vrot.slane %v1022, %v1037
      %v1040 = vunpack.c.l.s4 1966171168
      %v1041 = vunpack.c.0.s8 %v1040
      %v1042 = vlaneseq
      %v1043 = vshrl.u32 %v1042, 7
      %v1044 = vsub.s32 %v1041, %v1043
      %v1045 = vrot.slane %v1023, %v1044
      %v1047 = vunpack.c.l.s4 1966171168
      %v1048 = vunpack.c.0.s8 %v1047
      %v1049 = vlaneseq
      %v1050 = vshrl.u32 %v1049, 7
      %v1051 = vsub.s32 %v1048, %v1050
      %v1052 = vrot.slane %v1024, %v1051
      %v1053 = vcombine.low %v1031, %v1038
      %v1054 = vcombine.low %v1045, %v1052
      %v1056 = vunpack.c.l.s4 1966171168
      %v1057 = vunpack.c.0.s8 %v1056
      %v1058 = vlaneseq
      %v1059 = vshrl.u32 %v1058, 7
      %v1060 = vsub.s32 %v1057, %v1059
      %v1061 = vrot.slane %v1053, %v1060
      %v1063 = vunpack.c.l.s4 1966171168
      %v1064 = vunpack.c.0.s8 %v1063
      %v1065 = vlaneseq
      %v1066 = vshrl.u32 %v1065, 7
      %v1067 = vsub.s32 %v1064, %v1066
      %v1068 = vrot.slane %v1054, %v1067
      %v1069 = vcombine.low %v1061, %v1068
      %v1070 = vcombine.low %v674, %v706
      %v1071 = vcombine.low %v720, %v721
      %v1072 = vcombine.low %v722, %v713
      %v1073 = vcombine.low %v745, %v759
      %v1075 = vunpack.c.l.s4 1966171168
      %v1076 = vunpack.c.0.s8 %v1075
      %v1077 = vlaneseq
      %v1078 = vshrl.u32 %v1077, 7
      %v1079 = vsub.s32 %v1076, %v1078
      %v1080 = vrot.slane %v1070, %v1079
      %v1082 = vunpack.c.l.s4 1966171168
      %v1083 = vunpack.c.0.s8 %v1082
      %v1084 = vlaneseq
      %v1085 = vshrl.u32 %v1084, 7
      %v1086 = vsub.s32 %v1083, %v1085
      %v1087 = vrot.slane %v1071, %v1086
      %v1089 = vunpack.c.l.s4 1966171168
      %v1090 = vunpack.c.0.s8 %v1089
      %v1091 = vlaneseq
      %v1092 = vshrl.u32 %v1091, 7
      %v1093 = vsub.s32 %v1090, %v1092
      %v1094 = vrot.slane %v1072, %v1093
      %v1096 = vunpack.c.l.s4 1966171168
      %v1097 = vunpack.c.0.s8 %v1096
      %v1098 = vlaneseq
      %v1099 = vshrl.u32 %v1098, 7
      %v1100 = vsub.s32 %v1097, %v1099
      %v1101 = vrot.slane %v1073, %v1100
      %v1102 = vcombine.low %v1080, %v1087
      %v1103 = vcombine.low %v1094, %v1101
      %v1105 = vunpack.c.l.s4 1966171168
      %v1106 = vunpack.c.0.s8 %v1105
      %v1107 = vlaneseq
      %v1108 = vshrl.u32 %v1107, 7
      %v1109 = vsub.s32 %v1106, %v1108
      %v1110 = vrot.slane %v1102, %v1109
      %v1112 = vunpack.c.l.s4 1966171168
      %v1113 = vunpack.c.0.s8 %v1112
      %v1114 = vlaneseq
      %v1115 = vshrl.u32 %v1114, 7
      %v1116 = vsub.s32 %v1113, %v1115
      %v1117 = vrot.slane %v1103, %v1116
      %v1118 = vcombine.low %v1110, %v1117
      %v1119 = vcombine.low %v760, %v761
      %v1120 = vcombine.low %v752, %v784
      %v1121 = vcombine.low %v798, %v799
      %v1122 = vcombine.low %v800, %v791
      %v1124 = vunpack.c.l.s4 1966171168
      %v1125 = vunpack.c.0.s8 %v1124
      %v1126 = vlaneseq
      %v1127 = vshrl.u32 %v1126, 7
      %v1128 = vsub.s32 %v1125, %v1127
      %v1129 = vrot.slane %v1119, %v1128
      %v1131 = vunpack.c.l.s4 1966171168
      %v1132 = vunpack.c.0.s8 %v1131
      %v1133 = vlaneseq
      %v1134 = vshrl.u32 %v1133, 7
      %v1135 = vsub.s32 %v1132, %v1134
      %v1136 = vrot.slane %v1120, %v1135
      %v1138 = vunpack.c.l.s4 1966171168
      %v1139 = vunpack.c.0.s8 %v1138
      %v1140 = vlaneseq
      %v1141 = vshrl.u32 %v1140, 7
      %v1142 = vsub.s32 %v1139, %v1141
      %v1143 = vrot.slane %v1121, %v1142
      %v1145 = vunpack.c.l.s4 1966171168
      %v1146 = vunpack.c.0.s8 %v1145
      %v1147 = vlaneseq
      %v1148 = vshrl.u32 %v1147, 7
      %v1149 = vsub.s32 %v1146, %v1148
      %v1150 = vrot.slane %v1122, %v1149
      %v1151 = vcombine.low %v1129, %v1136
      %v1152 = vcombine.low %v1143, %v1150
      %v1154 = vunpack.c.l.s4 1966171168
      %v1155 = vunpack.c.0.s8 %v1154
      %v1156 = vlaneseq
      %v1157 = vshrl.u32 %v1156, 7
      %v1158 = vsub.s32 %v1155, %v1157
      %v1159 = vrot.slane %v1151, %v1158
      %v1161 = vunpack.c.l.s4 1966171168
      %v1162 = vunpack.c.0.s8 %v1161
      %v1163 = vlaneseq
      %v1164 = vshrl.u32 %v1163, 7
      %v1165 = vsub.s32 %v1162, %v1164
      %v1166 = vrot.slane %v1152, %v1165
      %v1167 = vcombine.low %v1159, %v1166
      %v1168 = vcombine.low %v823, %v837
      %v1169 = vcombine.low %v838, %v839
      %v1170 = vcombine.low %v830, %v893
      %v1171 = vcombine.low %v907, %v908
      %v1173 = vunpack.c.l.s4 1966171168
      %v1174 = vunpack.c.0.s8 %v1173
      %v1175 = vlaneseq
      %v1176 = vshrl.u32 %v1175, 7
      %v1177 = vsub.s32 %v1174, %v1176
      %v1178 = vrot.slane %v1168, %v1177
      %v1180 = vunpack.c.l.s4 1966171168
      %v1181 = vunpack.c.0.s8 %v1180
      %v1182 = vlaneseq
      %v1183 = vshrl.u32 %v1182, 7
      %v1184 = vsub.s32 %v1181, %v1183
      %v1185 = vrot.slane %v1169, %v1184
      %v1187 = vunpack.c.l.s4 1966171168
      %v1188 = vunpack.c.0.s8 %v1187
      %v1189 = vlaneseq
      %v1190 = vshrl.u32 %v1189, 7
      %v1191 = vsub.s32 %v1188, %v1190
      %v1192 = vrot.slane %v1170, %v1191
      %v1194 = vunpack.c.l.s4 1966171168
      %v1195 = vunpack.c.0.s8 %v1194
      %v1196 = vlaneseq
      %v1197 = vshrl.u32 %v1196, 7
      %v1198 = vsub.s32 %v1195, %v1197
      %v1199 = vrot.slane %v1171, %v1198
      %v1200 = vcombine.low %v1178, %v1185
      %v1201 = vcombine.low %v1192, %v1199
      %v1203 = vunpack.c.l.s4 1966171168
      %v1204 = vunpack.c.0.s8 %v1203
      %v1205 = vlaneseq
      %v1206 = vshrl.u32 %v1205, 7
      %v1207 = vsub.s32 %v1204, %v1206
      %v1208 = vrot.slane %v1200, %v1207
      %v1210 = vunpack.c.l.s4 1966171168
      %v1211 = vunpack.c.0.s8 %v1210
      %v1212 = vlaneseq
      %v1213 = vshrl.u32 %v1212, 7
      %v1214 = vsub.s32 %v1211, %v1213
      %v1215 = vrot.slane %v1201, %v1214
      %v1216 = vcombine.low %v1208, %v1215
      %v1217 = vcombine.low %v909, %v900
      %v1219 = vunpack.c.l.s4 1966171168
      %v1220 = vunpack.c.0.s8 %v1219
      %v1221 = vlaneseq
      %v1222 = vshrl.u32 %v1221, 7
      %v1223 = vsub.s32 %v1220, %v1222
      %v1224 = vrot.slane %v1217, %v1223
      %v1226 = vunpack.c.l.s4 1966171168
      %v1227 = vunpack.c.0.s8 %v1226
      %v1228 = vlaneseq
      %v1229 = vshrl.u32 %v1228, 7
      %v1230 = vsub.s32 %v1227, %v1229
      %v1231 = vrot.slane %v1224, %v1230
      %v1244 = vunpack.c.l.b16 %v911
      %v1245 = vunpack.c.l.b16 %v912
      %v1246 = vunpack.c.l.b16 %v913
      %v1247 = vunpack.c.l.b16 %v914
      %v1248 = vunpack.c.l.b16 %v915
      %v1249 = vunpack.c.l.b16 %v916
      %v1250 = vunpack.c.l.b16 %v917
      %v1251 = vunpack.c.l.b16 %v918
      %v1252 = vunpack.c.l.b16 %v919
      %v1253 = vunpack.c.l.b16 %v920
      %v1254 = vunpack.c.l.b16 %v921
      %v1255 = vunpack.c.l.b16 %v922
      %v1256 = vpack.c.b16 %v1245, %v1244
      %v1257 = vpack.c.b16 %v1247, %v1246
      %v1258 = vpack.c.b16 %v1249, %v1248
      %v1259 = vpack.c.b16 %v1251, %v1250
      %v1260 = vpack.c.b16 %v1253, %v1252
      %v1261 = vpack.c.b16 %v1255, %v1254
      %vm1268 = vcmask 785408
      %v1270 = vsel %vm1268, %v971, 0
      %v1273 = vsel %vm1268, %v1020, 0
      %v1276 = vsel %vm1268, %v1069, 0
      %v1279 = vsel %vm1268, %v1118, 0
      %v1282 = vsel %vm1268, %v1167, 0
      %v1285 = vsel %vm1268, %v1216, 0
      %v1288 = vsel %vm1268, %v1231, 0
      %1290 = vmatprep.subr.bf16.mxu0 0
      %1291 = vmatpush1.bf16.msra.mxu0 0
      %1292 = vmatprep.subr.bf16.mxu0 0
      %1293 = vmatpush1.bf16.msra.mxu0 0
      %1294 = vmatprep.subr.bf16.mxu0 0
      %1295 = vmatpush1.bf16.msra.mxu0 %v1261
      %1296 = vmatprep.subr.bf16.mxu0 0
      %1297 = vmatpush1.bf16.msra.mxu0 %v1260
      %1298 = vmatprep.subr.bf16.mxu0 0
      %1299 = vmatpush1.bf16.msra.mxu0 %v1259
      %1300 = vmatprep.subr.bf16.mxu0 0
      %1301 = vmatpush1.bf16.msra.mxu0 %v1258
      %1302 = vmatprep.subr.bf16.mxu0 0
      %1303 = vmatpush1.bf16.msra.mxu0 %v1257
      %1304 = vmatprep.subr.bf16.mxu0 0
      %1305 = vmatpush1.bf16.msra.mxu0 %v1256
      %1306 = vmatprep.subr.bf16.mxu0 0
      %1307 = vmatpush2.bf16.msra.mxu0 0
      %1308 = vmatprep.subr.bf16.mxu0 0
      %1309 = vmatpush2.bf16.msra.mxu0 0
      %1310 = vmatprep.subr.bf16.mxu0 0
      %1311 = vmatpush2.bf16.msra.mxu0 0
      %1312 = vmatprep.subr.bf16.mxu0 0
      %1313 = vmatpush2.bf16.msra.mxu0 0
      %1314 = vmatprep.subr.bf16.mxu0 0
      %1315 = vmatpush2.bf16.msra.mxu0 0
      %1316 = vmatprep.subr.bf16.mxu0 0
      %1317 = vmatpush2.bf16.msra.mxu0 0
      %1318 = vmatprep.subr.bf16.mxu0 0
      %1319 = vmatpush2.bf16.msra.mxu0 0
      %1320 = vmatprep.subr.bf16.mxu0 0
      %1321 = vmatpush2.bf16.msra.mxu0 0
      %1322 = vmatprep.mubr.bf16.mxu0 0
      %1323 = vmatmul.mubr.bf16.gmra.mxu0 %v1270
      %v1324 = vpop.f32.mrf.mxu0
      %v1325 = vadd.f32 0.0, %v1324
      %v1326 = vpop.f32.mrf.mxu0
      %v1327 = vpop.f32.mrf.mxu0
      %v1328 = vadd.f32 0.0, %v1327
      %v1329 = vpop.f32.mrf.mxu0
      %1330 = vmatprep.mubr.bf16.mxu0 0
      %1331 = vmatmul.mubr.bf16.gmra.mxu0 %v1273
      %v1332 = vpop.f32.mrf.mxu0
      %v1333 = vadd.f32 0.0, %v1332
      %v1334 = vpop.f32.mrf.mxu0
      %v1335 = vpop.f32.mrf.mxu0
      %v1336 = vadd.f32 0.0, %v1335
      %v1337 = vpop.f32.mrf.mxu0
      %1338 = vmatprep.mubr.bf16.mxu0 0
      %1339 = vmatmul.mubr.bf16.gmra.mxu0 %v1276
      %v1340 = vpop.f32.mrf.mxu0
      %v1341 = vadd.f32 0.0, %v1340
      %v1342 = vpop.f32.mrf.mxu0
      %v1343 = vpop.f32.mrf.mxu0
      %v1344 = vadd.f32 0.0, %v1343
      %v1345 = vpop.f32.mrf.mxu0
      %1346 = vmatprep.mubr.bf16.mxu0 0
      %1347 = vmatmul.mubr.bf16.gmra.mxu0 %v1279
      %v1348 = vpop.f32.mrf.mxu0
      %v1349 = vadd.f32 0.0, %v1348
      %v1350 = vpop.f32.mrf.mxu0
      %v1351 = vpop.f32.mrf.mxu0
      %v1352 = vadd.f32 0.0, %v1351
      %v1353 = vpop.f32.mrf.mxu0
      %1354 = vmatprep.mubr.bf16.mxu0 0
      %1355 = vmatmul.mubr.bf16.gmra.mxu0 %v1282
      %v1356 = vpop.f32.mrf.mxu0
      %v1357 = vadd.f32 0.0, %v1356
      %v1358 = vpop.f32.mrf.mxu0
      %v1359 = vpop.f32.mrf.mxu0
      %v1360 = vadd.f32 0.0, %v1359
      %v1361 = vpop.f32.mrf.mxu0
      %1362 = vmatprep.mubr.bf16.mxu0 0
      %1363 = vmatmul.mubr.bf16.gmra.mxu0 %v1285
      %v1364 = vpop.f32.mrf.mxu0
      %v1365 = vadd.f32 0.0, %v1364
      %v1366 = vpop.f32.mrf.mxu0
      %v1367 = vpop.f32.mrf.mxu0
      %v1368 = vadd.f32 0.0, %v1367
      %v1369 = vpop.f32.mrf.mxu0
      %1370 = vmatprep.mubr.bf16.mxu0 0
      %1371 = vmatmul.mubr.bf16.gmra.mxu0 %v1288
      %v1372 = vpop.f32.mrf.mxu0
      %v1373 = vadd.f32 0.0, %v1372
      %v1374 = vpop.f32.mrf.mxu0
      %v1375 = vpop.f32.mrf.mxu0
      %v1376 = vpop.f32.mrf.mxu0
      %1377 = vdwg.mxu0
      %v1378 = vcombine.low %v472, %v486
      %v1379 = vcombine.low %v487, %v488
      %v1380 = vcombine.low %v479, %v511
      %v1381 = vcombine.low %v525, %v526
      %v1383 = vunpack.c.l.s4 1966171168
      %v1384 = vunpack.c.0.s8 %v1383
      %v1385 = vlaneseq
      %v1386 = vshrl.u32 %v1385, 7
      %v1387 = vsub.s32 %v1384, %v1386
      %v1388 = vrot.slane %v1378, %v1387
      %v1390 = vunpack.c.l.s4 1966171168
      %v1391 = vunpack.c.0.s8 %v1390
      %v1392 = vlaneseq
      %v1393 = vshrl.u32 %v1392, 7
      %v1394 = vsub.s32 %v1391, %v1393
      %v1395 = vrot.slane %v1379, %v1394
      %v1397 = vunpack.c.l.s4 1966171168
      %v1398 = vunpack.c.0.s8 %v1397
      %v1399 = vlaneseq
      %v1400 = vshrl.u32 %v1399, 7
      %v1401 = vsub.s32 %v1398, %v1400
      %v1402 = vrot.slane %v1380, %v1401
      %v1404 = vunpack.c.l.s4 1966171168
      %v1405 = vunpack.c.0.s8 %v1404
      %v1406 = vlaneseq
      %v1407 = vshrl.u32 %v1406, 7
      %v1408 = vsub.s32 %v1405, %v1407
      %v1409 = vrot.slane %v1381, %v1408
      %v1410 = vcombine.low %v1388, %v1395
      %v1411 = vcombine.low %v1402, %v1409
      %v1413 = vunpack.c.l.s4 1966171168
      %v1414 = vunpack.c.0.s8 %v1413
      %v1415 = vlaneseq
      %v1416 = vshrl.u32 %v1415, 7
      %v1417 = vsub.s32 %v1414, %v1416
      %v1418 = vrot.slane %v1410, %v1417
      %v1420 = vunpack.c.l.s4 1966171168
      %v1421 = vunpack.c.0.s8 %v1420
      %v1422 = vlaneseq
      %v1423 = vshrl.u32 %v1422, 7
      %v1424 = vsub.s32 %v1421, %v1423
      %v1425 = vrot.slane %v1411, %v1424
      %v1426 = vcombine.low %v1418, %v1425
      %v1427 = vcombine.low %v527, %v518
      %v1428 = vcombine.low %v550, %v564
      %v1429 = vcombine.low %v565, %v566
      %v1430 = vcombine.low %v557, %v589
      %v1432 = vunpack.c.l.s4 1966171168
      %v1433 = vunpack.c.0.s8 %v1432
      %v1434 = vlaneseq
      %v1435 = vshrl.u32 %v1434, 7
      %v1436 = vsub.s32 %v1433, %v1435
      %v1437 = vrot.slane %v1427, %v1436
      %v1439 = vunpack.c.l.s4 1966171168
      %v1440 = vunpack.c.0.s8 %v1439
      %v1441 = vlaneseq
      %v1442 = vshrl.u32 %v1441, 7
      %v1443 = vsub.s32 %v1440, %v1442
      %v1444 = vrot.slane %v1428, %v1443
      %v1446 = vunpack.c.l.s4 1966171168
      %v1447 = vunpack.c.0.s8 %v1446
      %v1448 = vlaneseq
      %v1449 = vshrl.u32 %v1448, 7
      %v1450 = vsub.s32 %v1447, %v1449
      %v1451 = vrot.slane %v1429, %v1450
      %v1453 = vunpack.c.l.s4 1966171168
      %v1454 = vunpack.c.0.s8 %v1453
      %v1455 = vlaneseq
      %v1456 = vshrl.u32 %v1455, 7
      %v1457 = vsub.s32 %v1454, %v1456
      %v1458 = vrot.slane %v1430, %v1457
      %v1459 = vcombine.low %v1437, %v1444
      %v1460 = vcombine.low %v1451, %v1458
      %v1462 = vunpack.c.l.s4 1966171168
      %v1463 = vunpack.c.0.s8 %v1462
      %v1464 = vlaneseq
      %v1465 = vshrl.u32 %v1464, 7
      %v1466 = vsub.s32 %v1463, %v1465
      %v1467 = vrot.slane %v1459, %v1466
      %v1469 = vunpack.c.l.s4 1966171168
      %v1470 = vunpack.c.0.s8 %v1469
      %v1471 = vlaneseq
      %v1472 = vshrl.u32 %v1471, 7
      %v1473 = vsub.s32 %v1470, %v1472
      %v1474 = vrot.slane %v1460, %v1473
      %v1475 = vcombine.low %v1467, %v1474
      %v1476 = vcombine.low %v603, %v604
      %v1477 = vcombine.low %v605, %v596
      %v1478 = vcombine.low %v628, %v642
      %v1479 = vcombine.low %v643, %v644
      %v1481 = vunpack.c.l.s4 1966171168
      %v1482 = vunpack.c.0.s8 %v1481
      %v1483 = vlaneseq
      %v1484 = vshrl.u32 %v1483, 7
      %v1485 = vsub.s32 %v1482, %v1484
      %v1486 = vrot.slane %v1476, %v1485
      %v1488 = vunpack.c.l.s4 1966171168
      %v1489 = vunpack.c.0.s8 %v1488
      %v1490 = vlaneseq
      %v1491 = vshrl.u32 %v1490, 7
      %v1492 = vsub.s32 %v1489, %v1491
      %v1493 = vrot.slane %v1477, %v1492
      %v1495 = vunpack.c.l.s4 1966171168
      %v1496 = vunpack.c.0.s8 %v1495
      %v1497 = vlaneseq
      %v1498 = vshrl.u32 %v1497, 7
      %v1499 = vsub.s32 %v1496, %v1498
      %v1500 = vrot.slane %v1478, %v1499
      %v1502 = vunpack.c.l.s4 1966171168
      %v1503 = vunpack.c.0.s8 %v1502
      %v1504 = vlaneseq
      %v1505 = vshrl.u32 %v1504, 7
      %v1506 = vsub.s32 %v1503, %v1505
      %v1507 = vrot.slane %v1479, %v1506
      %v1508 = vcombine.low %v1486, %v1493
      %v1509 = vcombine.low %v1500, %v1507
      %v1511 = vunpack.c.l.s4 1966171168
      %v1512 = vunpack.c.0.s8 %v1511
      %v1513 = vlaneseq
      %v1514 = vshrl.u32 %v1513, 7
      %v1515 = vsub.s32 %v1512, %v1514
      %v1516 = vrot.slane %v1508, %v1515
      %v1518 = vunpack.c.l.s4 1966171168
      %v1519 = vunpack.c.0.s8 %v1518
      %v1520 = vlaneseq
      %v1521 = vshrl.u32 %v1520, 7
      %v1522 = vsub.s32 %v1519, %v1521
      %v1523 = vrot.slane %v1509, %v1522
      %v1524 = vcombine.low %v1516, %v1523
      %v1525 = vcombine.low %v635, %v667
      %v1526 = vcombine.low %v681, %v682
      %v1527 = vcombine.low %v683, %v674
      %v1528 = vcombine.low %v706, %v720
      %v1530 = vunpack.c.l.s4 1966171168
      %v1531 = vunpack.c.0.s8 %v1530
      %v1532 = vlaneseq
      %v1533 = vshrl.u32 %v1532, 7
      %v1534 = vsub.s32 %v1531, %v1533
      %v1535 = vrot.slane %v1525, %v1534
      %v1537 = vunpack.c.l.s4 1966171168
      %v1538 = vunpack.c.0.s8 %v1537
      %v1539 = vlaneseq
      %v1540 = vshrl.u32 %v1539, 7
      %v1541 = vsub.s32 %v1538, %v1540
      %v1542 = vrot.slane %v1526, %v1541
      %v1544 = vunpack.c.l.s4 1966171168
      %v1545 = vunpack.c.0.s8 %v1544
      %v1546 = vlaneseq
      %v1547 = vshrl.u32 %v1546, 7
      %v1548 = vsub.s32 %v1545, %v1547
      %v1549 = vrot.slane %v1527, %v1548
      %v1551 = vunpack.c.l.s4 1966171168
      %v1552 = vunpack.c.0.s8 %v1551
      %v1553 = vlaneseq
      %v1554 = vshrl.u32 %v1553, 7
      %v1555 = vsub.s32 %v1552, %v1554
      %v1556 = vrot.slane %v1528, %v1555
      %v1557 = vcombine.low %v1535, %v1542
      %v1558 = vcombine.low %v1549, %v1556
      %v1560 = vunpack.c.l.s4 1966171168
      %v1561 = vunpack.c.0.s8 %v1560
      %v1562 = vlaneseq
      %v1563 = vshrl.u32 %v1562, 7
      %v1564 = vsub.s32 %v1561, %v1563
      %v1565 = vrot.slane %v1557, %v1564
      %v1567 = vunpack.c.l.s4 1966171168
      %v1568 = vunpack.c.0.s8 %v1567
      %v1569 = vlaneseq
      %v1570 = vshrl.u32 %v1569, 7
      %v1571 = vsub.s32 %v1568, %v1570
      %v1572 = vrot.slane %v1558, %v1571
      %v1573 = vcombine.low %v1565, %v1572
      %v1574 = vcombine.low %v721, %v722
      %v1575 = vcombine.low %v713, %v745
      %v1576 = vcombine.low %v759, %v760
      %v1577 = vcombine.low %v761, %v752
      %v1579 = vunpack.c.l.s4 1966171168
      %v1580 = vunpack.c.0.s8 %v1579
      %v1581 = vlaneseq
      %v1582 = vshrl.u32 %v1581, 7
      %v1583 = vsub.s32 %v1580, %v1582
      %v1584 = vrot.slane %v1574, %v1583
      %v1586 = vunpack.c.l.s4 1966171168
      %v1587 = vunpack.c.0.s8 %v1586
      %v1588 = vlaneseq
      %v1589 = vshrl.u32 %v1588, 7
      %v1590 = vsub.s32 %v1587, %v1589
      %v1591 = vrot.slane %v1575, %v1590
      %v1593 = vunpack.c.l.s4 1966171168
      %v1594 = vunpack.c.0.s8 %v1593
      %v1595 = vlaneseq
      %v1596 = vshrl.u32 %v1595, 7
      %v1597 = vsub.s32 %v1594, %v1596
      %v1598 = vrot.slane %v1576, %v1597
      %v1600 = vunpack.c.l.s4 1966171168
      %v1601 = vunpack.c.0.s8 %v1600
      %v1602 = vlaneseq
      %v1603 = vshrl.u32 %v1602, 7
      %v1604 = vsub.s32 %v1601, %v1603
      %v1605 = vrot.slane %v1577, %v1604
      %v1606 = vcombine.low %v1584, %v1591
      %v1607 = vcombine.low %v1598, %v1605
      %v1609 = vunpack.c.l.s4 1966171168
      %v1610 = vunpack.c.0.s8 %v1609
      %v1611 = vlaneseq
      %v1612 = vshrl.u32 %v1611, 7
      %v1613 = vsub.s32 %v1610, %v1612
      %v1614 = vrot.slane %v1606, %v1613
      %v1616 = vunpack.c.l.s4 1966171168
      %v1617 = vunpack.c.0.s8 %v1616
      %v1618 = vlaneseq
      %v1619 = vshrl.u32 %v1618, 7
      %v1620 = vsub.s32 %v1617, %v1619
      %v1621 = vrot.slane %v1607, %v1620
      %v1622 = vcombine.low %v1614, %v1621
      %v1623 = vcombine.low %v784, %v798
      %v1624 = vcombine.low %v799, %v800
      %v1625 = vcombine.low %v791, %v823
      %v1626 = vcombine.low %v837, %v838
      %v1628 = vunpack.c.l.s4 1966171168
      %v1629 = vunpack.c.0.s8 %v1628
      %v1630 = vlaneseq
      %v1631 = vshrl.u32 %v1630, 7
      %v1632 = vsub.s32 %v1629, %v1631
      %v1633 = vrot.slane %v1623, %v1632
      %v1635 = vunpack.c.l.s4 1966171168
      %v1636 = vunpack.c.0.s8 %v1635
      %v1637 = vlaneseq
      %v1638 = vshrl.u32 %v1637, 7
      %v1639 = vsub.s32 %v1636, %v1638
      %v1640 = vrot.slane %v1624, %v1639
      %v1642 = vunpack.c.l.s4 1966171168
      %v1643 = vunpack.c.0.s8 %v1642
      %v1644 = vlaneseq
      %v1645 = vshrl.u32 %v1644, 7
      %v1646 = vsub.s32 %v1643, %v1645
      %v1647 = vrot.slane %v1625, %v1646
      %v1649 = vunpack.c.l.s4 1966171168
      %v1650 = vunpack.c.0.s8 %v1649
      %v1651 = vlaneseq
      %v1652 = vshrl.u32 %v1651, 7
      %v1653 = vsub.s32 %v1650, %v1652
      %v1654 = vrot.slane %v1626, %v1653
      %v1655 = vcombine.low %v1633, %v1640
      %v1656 = vcombine.low %v1647, %v1654
      %v1658 = vunpack.c.l.s4 1966171168
      %v1659 = vunpack.c.0.s8 %v1658
      %v1660 = vlaneseq
      %v1661 = vshrl.u32 %v1660, 7
      %v1662 = vsub.s32 %v1659, %v1661
      %v1663 = vrot.slane %v1655, %v1662
      %v1665 = vunpack.c.l.s4 1966171168
      %v1666 = vunpack.c.0.s8 %v1665
      %v1667 = vlaneseq
      %v1668 = vshrl.u32 %v1667, 7
      %v1669 = vsub.s32 %v1666, %v1668
      %v1670 = vrot.slane %v1656, %v1669
      %v1671 = vcombine.low %v1663, %v1670
      %v1672 = vcombine.low %v839, %v830
      %v1674 = vunpack.c.l.s4 1966171168
      %v1675 = vunpack.c.0.s8 %v1674
      %v1676 = vlaneseq
      %v1677 = vshrl.u32 %v1676, 7
      %v1678 = vsub.s32 %v1675, %v1677
      %v1679 = vrot.slane %v1672, %v1678
      %v1681 = vunpack.c.l.s4 1966171168
      %v1682 = vunpack.c.0.s8 %v1681
      %v1683 = vlaneseq
      %v1684 = vshrl.u32 %v1683, 7
      %v1685 = vsub.s32 %v1682, %v1684
      %v1686 = vrot.slane %v1679, %v1685
      %v1699 = vunpack.c.l.b16 %v840
      %v1700 = vunpack.c.l.b16 %v841
      %v1701 = vunpack.c.l.b16 %v842
      %v1702 = vunpack.c.l.b16 %v843
      %v1703 = vunpack.c.l.b16 %v844
      %v1704 = vunpack.c.l.b16 %v845
      %v1705 = vunpack.c.l.b16 %v846
      %v1706 = vunpack.c.l.b16 %v847
      %v1707 = vunpack.c.l.b16 %v848
      %v1708 = vunpack.c.l.b16 %v849
      %v1709 = vunpack.c.l.b16 %v850
      %v1710 = vunpack.c.l.b16 %v851
      %v1711 = vpack.c.b16 %v1700, %v1699
      %v1712 = vpack.c.b16 %v1702, %v1701
      %v1713 = vpack.c.b16 %v1704, %v1703
      %v1714 = vpack.c.b16 %v1706, %v1705
      %v1715 = vpack.c.b16 %v1708, %v1707
      %v1716 = vpack.c.b16 %v1710, %v1709
      %v1724 = vsel %vm1268, %v1426, 0
      %v1727 = vsel %vm1268, %v1475, 0
      %v1730 = vsel %vm1268, %v1524, 0
      %v1733 = vsel %vm1268, %v1573, 0
      %v1736 = vsel %vm1268, %v1622, 0
      %v1739 = vsel %vm1268, %v1671, 0
      %v1742 = vsel %vm1268, %v1686, 0
      %1744 = vmatprep.subr.bf16.mxu0 0
      %1745 = vmatpush1.bf16.msra.mxu0 0
      %1746 = vmatprep.subr.bf16.mxu0 0
      %1747 = vmatpush1.bf16.msra.mxu0 0
      %1748 = vmatprep.subr.bf16.mxu0 0
      %1749 = vmatpush1.bf16.msra.mxu0 %v1716
      %1750 = vmatprep.subr.bf16.mxu0 0
      %1751 = vmatpush1.bf16.msra.mxu0 %v1715
      %1752 = vmatprep.subr.bf16.mxu0 0
      %1753 = vmatpush1.bf16.msra.mxu0 %v1714
      %1754 = vmatprep.subr.bf16.mxu0 0
      %1755 = vmatpush1.bf16.msra.mxu0 %v1713
      %1756 = vmatprep.subr.bf16.mxu0 0
      %1757 = vmatpush1.bf16.msra.mxu0 %v1712
      %1758 = vmatprep.subr.bf16.mxu0 0
      %1759 = vmatpush1.bf16.msra.mxu0 %v1711
      %1760 = vmatprep.subr.bf16.mxu0 0
      %1761 = vmatpush2.bf16.msra.mxu0 0
      %1762 = vmatprep.subr.bf16.mxu0 0
      %1763 = vmatpush2.bf16.msra.mxu0 0
      %1764 = vmatprep.subr.bf16.mxu0 0
      %1765 = vmatpush2.bf16.msra.mxu0 0
      %1766 = vmatprep.subr.bf16.mxu0 0
      %1767 = vmatpush2.bf16.msra.mxu0 0
      %1768 = vmatprep.subr.bf16.mxu0 0
      %1769 = vmatpush2.bf16.msra.mxu0 0
      %1770 = vmatprep.subr.bf16.mxu0 0
      %1771 = vmatpush2.bf16.msra.mxu0 0
      %1772 = vmatprep.subr.bf16.mxu0 0
      %1773 = vmatpush2.bf16.msra.mxu0 0
      %1774 = vmatprep.subr.bf16.mxu0 0
      %1775 = vmatpush2.bf16.msra.mxu0 0
      %1776 = vmatprep.mubr.bf16.mxu0 0
      %1777 = vmatmul.mubr.bf16.gmra.mxu0 %v1724
      %v1778 = vpop.f32.mrf.mxu0
      %v1779 = vadd.f32 %v1325, %v1778
      %v1780 = vpop.f32.mrf.mxu0
      %v1781 = vpop.f32.mrf.mxu0
      %v1782 = vadd.f32 %v1328, %v1781
      %v1783 = vpop.f32.mrf.mxu0
      %1784 = vmatprep.mubr.bf16.mxu0 0
      %1785 = vmatmul.mubr.bf16.gmra.mxu0 %v1727
      %v1786 = vpop.f32.mrf.mxu0
      %v1787 = vadd.f32 %v1333, %v1786
      %v1788 = vpop.f32.mrf.mxu0
      %v1789 = vpop.f32.mrf.mxu0
      %v1790 = vadd.f32 %v1336, %v1789
      %v1791 = vpop.f32.mrf.mxu0
      %1792 = vmatprep.mubr.bf16.mxu0 0
      %1793 = vmatmul.mubr.bf16.gmra.mxu0 %v1730
      %v1794 = vpop.f32.mrf.mxu0
      %v1795 = vadd.f32 %v1341, %v1794
      %v1796 = vpop.f32.mrf.mxu0
      %v1797 = vpop.f32.mrf.mxu0
      %v1798 = vadd.f32 %v1344, %v1797
      %v1799 = vpop.f32.mrf.mxu0
      %1800 = vmatprep.mubr.bf16.mxu0 0
      %1801 = vmatmul.mubr.bf16.gmra.mxu0 %v1733
      %v1802 = vpop.f32.mrf.mxu0
      %v1803 = vadd.f32 %v1349, %v1802
      %v1804 = vpop.f32.mrf.mxu0
      %v1805 = vpop.f32.mrf.mxu0
      %v1806 = vadd.f32 %v1352, %v1805
      %v1807 = vpop.f32.mrf.mxu0
      %1808 = vmatprep.mubr.bf16.mxu0 0
      %1809 = vmatmul.mubr.bf16.gmra.mxu0 %v1736
      %v1810 = vpop.f32.mrf.mxu0
      %v1811 = vadd.f32 %v1357, %v1810
      %v1812 = vpop.f32.mrf.mxu0
      %v1813 = vpop.f32.mrf.mxu0
      %v1814 = vadd.f32 %v1360, %v1813
      %v1815 = vpop.f32.mrf.mxu0
      %1816 = vmatprep.mubr.bf16.mxu0 0
      %1817 = vmatmul.mubr.bf16.gmra.mxu0 %v1739
      %v1818 = vpop.f32.mrf.mxu0
      %v1819 = vadd.f32 %v1365, %v1818
      %v1820 = vpop.f32.mrf.mxu0
      %v1821 = vpop.f32.mrf.mxu0
      %v1822 = vadd.f32 %v1368, %v1821
      %v1823 = vpop.f32.mrf.mxu0
      %1824 = vmatprep.mubr.bf16.mxu0 0
      %1825 = vmatmul.mubr.bf16.gmra.mxu0 %v1742
      %v1826 = vpop.f32.mrf.mxu0
      %v1827 = vadd.f32 %v1373, %v1826
      %v1828 = vpop.f32.mrf.mxu0
      %v1829 = vpop.f32.mrf.mxu0
      %v1830 = vpop.f32.mrf.mxu0
      %1831 = vdwg.mxu0
      %v1832 = vpack.c.bf16 %v257, %v256
      %v1834 = vshrl.u32 %v1832, 16
      %v1836 = vshll.u32 %v1832, 16
      %v1838 = vrot.slane %v1836, 1
      %v1839 = vor.u32 %v1834, %v1838
      %1840 = vrot.lane.b32.xlu0 %v1839, 32
      %v1841 = vpop.permute.xlu0 %1840
      %v1843 = vrot.slane %v1832, 1
      %1844 = vrot.lane.b32.xlu0 %v1843, 64
      %v1845 = vpop.permute.xlu0 %1844
      %v1847 = vsel %vm398, %v1832, %v1841
      %v1849 = vsel %vm419, %v1847, %v1845
      %v1851 = vcombine.high %v1849, %v1849
      %v1853 = vunpack.c.l.s4 1966171168
      %v1854 = vunpack.c.0.s8 %v1853
      %v1855 = vlaneseq
      %v1856 = vshrl.u32 %v1855, 7
      %v1857 = vsub.s32 %v1854, %v1856
      %v1858 = vrot.slane %v1849, %v1857
      %v1860 = vunpack.c.l.s4 1966171168
      %v1861 = vunpack.c.0.s8 %v1860
      %v1862 = vlaneseq
      %v1863 = vshrl.u32 %v1862, 7
      %v1864 = vsub.s32 %v1861, %v1863
      %v1865 = vrot.slane %v1851, %v1864
      %v1866 = vcombine.high %v1858, %v1858
      %v1868 = vunpack.c.l.s4 1966171168
      %v1869 = vunpack.c.0.s8 %v1868
      %v1870 = vlaneseq
      %v1871 = vshrl.u32 %v1870, 7
      %v1872 = vsub.s32 %v1869, %v1871
      %v1873 = vrot.slane %v1858, %v1872
      %v1875 = vunpack.c.l.s4 1966171168
      %v1876 = vunpack.c.0.s8 %v1875
      %v1877 = vlaneseq
      %v1878 = vshrl.u32 %v1877, 7
      %v1879 = vsub.s32 %v1876, %v1878
      %v1880 = vrot.slane %v1865, %v1879
      %v1882 = vunpack.c.l.s4 1966171168
      %v1883 = vunpack.c.0.s8 %v1882
      %v1884 = vlaneseq
      %v1885 = vshrl.u32 %v1884, 7
      %v1886 = vsub.s32 %v1883, %v1885
      %v1887 = vrot.slane %v1866, %v1886
      %v1888 = vcombine.high %v1873, %v1873
      %v1889 = vcombine.high %v1887, %v1887
      %s1890 = scalar_lea.vmem %s1, 96
      %v1891 = vld [vmem:[%s1890] sm:$0xf]
      %v1892 = vld [vmem:[%s1890 + $0x4] sm:$0xf]
      %v1893 = vld [vmem:[%s1890 + $0x8] sm:$0xf]
      %v1894 = vld [vmem:[%s1890 + $0xc] sm:$0xf]
      %v1895 = vld [vmem:[%s1890 + $0x10] sm:$0xf]
      %v1896 = vld [vmem:[%s1890 + $0x14] sm:$0xf]
      %v1897 = vld [vmem:[%s1890 + $0x18] sm:$0xf]
      %v1898 = vld [vmem:[%s1890 + $0x1c] sm:$0xf]
      %v1899 = vld [vmem:[%s1890 + $0x20] sm:$0xf]
      %v1900 = vld [vmem:[%s1890 + $0x24] sm:$0xf]
      %v1901 = vld [vmem:[%s1890 + $0x28] sm:$0xf]
      %v1902 = vld [vmem:[%s1890 + $0x2c] sm:$0xf]
      %v1903 = vcombine.low %v1444, %v1451
      %v1904 = vcombine.low %v1458, %v1486
      %v1906 = vunpack.c.l.s4 1966171168
      %v1907 = vunpack.c.0.s8 %v1906
      %v1908 = vlaneseq
      %v1909 = vshrl.u32 %v1908, 7
      %v1910 = vsub.s32 %v1907, %v1909
      %v1911 = vrot.slane %v1903, %v1910
      %v1913 = vunpack.c.l.s4 1966171168
      %v1914 = vunpack.c.0.s8 %v1913
      %v1915 = vlaneseq
      %v1916 = vshrl.u32 %v1915, 7
      %v1917 = vsub.s32 %v1914, %v1916
      %v1918 = vrot.slane %v1904, %v1917
      %v1919 = vcombine.low %v1911, %v1918
      %v1920 = vcombine.low %v1493, %v1500
      %v1921 = vcombine.low %v1507, %v1535
      %v1923 = vunpack.c.l.s4 1966171168
      %v1924 = vunpack.c.0.s8 %v1923
      %v1925 = vlaneseq
      %v1926 = vshrl.u32 %v1925, 7
      %v1927 = vsub.s32 %v1924, %v1926
      %v1928 = vrot.slane %v1920, %v1927
      %v1930 = vunpack.c.l.s4 1966171168
      %v1931 = vunpack.c.0.s8 %v1930
      %v1932 = vlaneseq
      %v1933 = vshrl.u32 %v1932, 7
      %v1934 = vsub.s32 %v1931, %v1933
      %v1935 = vrot.slane %v1921, %v1934
      %v1936 = vcombine.low %v1928, %v1935
      %v1937 = vcombine.low %v1542, %v1549
      %v1938 = vcombine.low %v1556, %v1584
      %v1940 = vunpack.c.l.s4 1966171168
      %v1941 = vunpack.c.0.s8 %v1940
      %v1942 = vlaneseq
      %v1943 = vshrl.u32 %v1942, 7
      %v1944 = vsub.s32 %v1941, %v1943
      %v1945 = vrot.slane %v1937, %v1944
      %v1947 = vunpack.c.l.s4 1966171168
      %v1948 = vunpack.c.0.s8 %v1947
      %v1949 = vlaneseq
      %v1950 = vshrl.u32 %v1949, 7
      %v1951 = vsub.s32 %v1948, %v1950
      %v1952 = vrot.slane %v1938, %v1951
      %v1953 = vcombine.low %v1945, %v1952
      %v1954 = vcombine.low %v1591, %v1598
      %v1955 = vcombine.low %v1605, %v1633
      %v1957 = vunpack.c.l.s4 1966171168
      %v1958 = vunpack.c.0.s8 %v1957
      %v1959 = vlaneseq
      %v1960 = vshrl.u32 %v1959, 7
      %v1961 = vsub.s32 %v1958, %v1960
      %v1962 = vrot.slane %v1954, %v1961
      %v1964 = vunpack.c.l.s4 1966171168
      %v1965 = vunpack.c.0.s8 %v1964
      %v1966 = vlaneseq
      %v1967 = vshrl.u32 %v1966, 7
      %v1968 = vsub.s32 %v1965, %v1967
      %v1969 = vrot.slane %v1955, %v1968
      %v1970 = vcombine.low %v1962, %v1969
      %v1971 = vcombine.low %v1640, %v1647
      %v1972 = vcombine.low %v1654, %v1679
      %v1974 = vunpack.c.l.s4 1966171168
      %v1975 = vunpack.c.0.s8 %v1974
      %v1976 = vlaneseq
      %v1977 = vshrl.u32 %v1976, 7
      %v1978 = vsub.s32 %v1975, %v1977
      %v1979 = vrot.slane %v1971, %v1978
      %v1981 = vunpack.c.l.s4 1966171168
      %v1982 = vunpack.c.0.s8 %v1981
      %v1983 = vlaneseq
      %v1984 = vshrl.u32 %v1983, 7
      %v1985 = vsub.s32 %v1982, %v1984
      %v1986 = vrot.slane %v1972, %v1985
      %v1987 = vcombine.low %v1979, %v1986
      %v1988 = vcombine.low %v893, %v907
      %v1989 = vcombine.low %v908, %v909
      %v1990 = vcombine.low %v900, %v1873
      %v1991 = vcombine.low %v1887, %v1888
      %v1993 = vunpack.c.l.s4 1966171168
      %v1994 = vunpack.c.0.s8 %v1993
      %v1995 = vlaneseq
      %v1996 = vshrl.u32 %v1995, 7
      %v1997 = vsub.s32 %v1994, %v1996
      %v1998 = vrot.slane %v1988, %v1997
      %v2000 = vunpack.c.l.s4 1966171168
      %v2001 = vunpack.c.0.s8 %v2000
      %v2002 = vlaneseq
      %v2003 = vshrl.u32 %v2002, 7
      %v2004 = vsub.s32 %v2001, %v2003
      %v2005 = vrot.slane %v1989, %v2004
      %v2007 = vunpack.c.l.s4 1966171168
      %v2008 = vunpack.c.0.s8 %v2007
      %v2009 = vlaneseq
      %v2010 = vshrl.u32 %v2009, 7
      %v2011 = vsub.s32 %v2008, %v2010
      %v2012 = vrot.slane %v1990, %v2011
      %v2014 = vunpack.c.l.s4 1966171168
      %v2015 = vunpack.c.0.s8 %v2014
      %v2016 = vlaneseq
      %v2017 = vshrl.u32 %v2016, 7
      %v2018 = vsub.s32 %v2015, %v2017
      %v2019 = vrot.slane %v1991, %v2018
      %v2020 = vcombine.low %v1998, %v2005
      %v2021 = vcombine.low %v2012, %v2019
      %v2023 = vunpack.c.l.s4 1966171168
      %v2024 = vunpack.c.0.s8 %v2023
      %v2025 = vlaneseq
      %v2026 = vshrl.u32 %v2025, 7
      %v2027 = vsub.s32 %v2024, %v2026
      %v2028 = vrot.slane %v2020, %v2027
      %v2030 = vunpack.c.l.s4 1966171168
      %v2031 = vunpack.c.0.s8 %v2030
      %v2032 = vlaneseq
      %v2033 = vshrl.u32 %v2032, 7
      %v2034 = vsub.s32 %v2031, %v2033
      %v2035 = vrot.slane %v2021, %v2034
      %v2036 = vcombine.low %v2028, %v2035
      %v2037 = vcombine.low %v1889, %v1880
      %v2039 = vunpack.c.l.s4 1966171168
      %v2040 = vunpack.c.0.s8 %v2039
      %v2041 = vlaneseq
      %v2042 = vshrl.u32 %v2041, 7
      %v2043 = vsub.s32 %v2040, %v2042
      %v2044 = vrot.slane %v2037, %v2043
      %v2046 = vunpack.c.l.s4 1966171168
      %v2047 = vunpack.c.0.s8 %v2046
      %v2048 = vlaneseq
      %v2049 = vshrl.u32 %v2048, 7
      %v2050 = vsub.s32 %v2047, %v2049
      %v2051 = vrot.slane %v2044, %v2050
      %v2064 = vunpack.c.l.b16 %v1891
      %v2065 = vunpack.c.l.b16 %v1892
      %v2066 = vunpack.c.l.b16 %v1893
      %v2067 = vunpack.c.l.b16 %v1894
      %v2068 = vunpack.c.l.b16 %v1895
      %v2069 = vunpack.c.l.b16 %v1896
      %v2070 = vunpack.c.l.b16 %v1897
      %v2071 = vunpack.c.l.b16 %v1898
      %v2072 = vunpack.c.l.b16 %v1899
      %v2073 = vunpack.c.l.b16 %v1900
      %v2074 = vunpack.c.l.b16 %v1901
      %v2075 = vunpack.c.l.b16 %v1902
      %v2076 = vpack.c.b16 %v2065, %v2064
      %v2077 = vpack.c.b16 %v2067, %v2066
      %v2078 = vpack.c.b16 %v2069, %v2068
      %v2079 = vpack.c.b16 %v2071, %v2070
      %v2080 = vpack.c.b16 %v2073, %v2072
      %v2081 = vpack.c.b16 %v2075, %v2074
      %v2089 = vsel %vm1268, %v1919, 0
      %v2092 = vsel %vm1268, %v1936, 0
      %v2095 = vsel %vm1268, %v1953, 0
      %v2098 = vsel %vm1268, %v1970, 0
      %v2101 = vsel %vm1268, %v1987, 0
      %v2104 = vsel %vm1268, %v2036, 0
      %v2107 = vsel %vm1268, %v2051, 0
      %2109 = vmatprep.subr.bf16.mxu0 0
      %2110 = vmatpush1.bf16.msra.mxu0 0
      %2111 = vmatprep.subr.bf16.mxu0 0
      %2112 = vmatpush1.bf16.msra.mxu0 0
      %2113 = vmatprep.subr.bf16.mxu0 0
      %2114 = vmatpush1.bf16.msra.mxu0 %v2081
      %2115 = vmatprep.subr.bf16.mxu0 0
      %2116 = vmatpush1.bf16.msra.mxu0 %v2080
      %2117 = vmatprep.subr.bf16.mxu0 0
      %2118 = vmatpush1.bf16.msra.mxu0 %v2079
      %2119 = vmatprep.subr.bf16.mxu0 0
      %2120 = vmatpush1.bf16.msra.mxu0 %v2078
      %2121 = vmatprep.subr.bf16.mxu0 0
      %2122 = vmatpush1.bf16.msra.mxu0 %v2077
      %2123 = vmatprep.subr.bf16.mxu0 0
      %2124 = vmatpush1.bf16.msra.mxu0 %v2076
      %2125 = vmatprep.subr.bf16.mxu0 0
      %2126 = vmatpush2.bf16.msra.mxu0 0
      %2127 = vmatprep.subr.bf16.mxu0 0
      %2128 = vmatpush2.bf16.msra.mxu0 0
      %2129 = vmatprep.subr.bf16.mxu0 0
      %2130 = vmatpush2.bf16.msra.mxu0 0
      %2131 = vmatprep.subr.bf16.mxu0 0
      %2132 = vmatpush2.bf16.msra.mxu0 0
      %2133 = vmatprep.subr.bf16.mxu0 0
      %2134 = vmatpush2.bf16.msra.mxu0 0
      %2135 = vmatprep.subr.bf16.mxu0 0
      %2136 = vmatpush2.bf16.msra.mxu0 0
      %2137 = vmatprep.subr.bf16.mxu0 0
      %2138 = vmatpush2.bf16.msra.mxu0 0
      %2139 = vmatprep.subr.bf16.mxu0 0
      %2140 = vmatpush2.bf16.msra.mxu0 0
      %2141 = vmatprep.mubr.bf16.mxu0 0
      %2142 = vmatmul.mubr.bf16.gmra.mxu0 %v2089
      %v2143 = vpop.f32.mrf.mxu0
      %v2144 = vadd.f32 0.0, %v2143
      %v2145 = vpop.f32.mrf.mxu0
      %v2146 = vpop.f32.mrf.mxu0
      %v2147 = vadd.f32 0.0, %v2146
      %v2148 = vpop.f32.mrf.mxu0
      %2149 = vmatprep.mubr.bf16.mxu0 0
      %2150 = vmatmul.mubr.bf16.gmra.mxu0 %v2092
      %v2151 = vpop.f32.mrf.mxu0
      %v2152 = vadd.f32 0.0, %v2151
      %v2153 = vpop.f32.mrf.mxu0
      %v2154 = vpop.f32.mrf.mxu0
      %v2155 = vadd.f32 0.0, %v2154
      %v2156 = vpop.f32.mrf.mxu0
      %2157 = vmatprep.mubr.bf16.mxu0 0
      %2158 = vmatmul.mubr.bf16.gmra.mxu0 %v2095
      %v2159 = vpop.f32.mrf.mxu0
      %v2160 = vadd.f32 0.0, %v2159
      %v2161 = vpop.f32.mrf.mxu0
      %v2162 = vpop.f32.mrf.mxu0
      %v2163 = vadd.f32 0.0, %v2162
      %v2164 = vpop.f32.mrf.mxu0
      %2165 = vmatprep.mubr.bf16.mxu0 0
      %2166 = vmatmul.mubr.bf16.gmra.mxu0 %v2098
      %v2167 = vpop.f32.mrf.mxu0
      %v2168 = vadd.f32 0.0, %v2167
      %v2169 = vpop.f32.mrf.mxu0
      %v2170 = vpop.f32.mrf.mxu0
      %v2171 = vadd.f32 0.0, %v2170
      %v2172 = vpop.f32.mrf.mxu0
      %2173 = vmatprep.mubr.bf16.mxu0 0
      %2174 = vmatmul.mubr.bf16.gmra.mxu0 %v2101
      %v2175 = vpop.f32.mrf.mxu0
      %v2176 = vadd.f32 0.0, %v2175
      %v2177 = vpop.f32.mrf.mxu0
      %v2178 = vpop.f32.mrf.mxu0
      %v2179 = vadd.f32 0.0, %v2178
      %v2180 = vpop.f32.mrf.mxu0
      %2181 = vmatprep.mubr.bf16.mxu0 0
      %2182 = vmatmul.mubr.bf16.gmra.mxu0 %v2104
      %v2183 = vpop.f32.mrf.mxu0
      %v2184 = vadd.f32 0.0, %v2183
      %v2185 = vpop.f32.mrf.mxu0
      %v2186 = vpop.f32.mrf.mxu0
      %v2187 = vadd.f32 0.0, %v2186
      %v2188 = vpop.f32.mrf.mxu0
      %2189 = vmatprep.mubr.bf16.mxu0 0
      %2190 = vmatmul.mubr.bf16.gmra.mxu0 %v2107
      %v2191 = vpop.f32.mrf.mxu0
      %v2192 = vadd.f32 0.0, %v2191
      %v2193 = vpop.f32.mrf.mxu0
      %v2194 = vpop.f32.mrf.mxu0
      %v2195 = vpop.f32.mrf.mxu0
      %2196 = vdwg.mxu0
      %v2197 = vadd.f32 %v1779, %v2144
      %v2198 = vadd.f32 %v1782, %v2147
      %v2199 = vadd.f32 %v1787, %v2152
      %v2200 = vadd.f32 %v1790, %v2155
      %v2201 = vadd.f32 %v1795, %v2160
      %v2202 = vadd.f32 %v1798, %v2163
      %v2203 = vadd.f32 %v1803, %v2168
      %v2204 = vadd.f32 %v1806, %v2171
      %v2205 = vadd.f32 %v1811, %v2176
      %v2206 = vadd.f32 %v1814, %v2179
      %v2207 = vadd.f32 %v1819, %v2184
      %v2208 = vadd.f32 %v1822, %v2187
      %v2209 = vadd.f32 %v1827, %v2192
      %v2210 = vld [vmem:[%s2] sm:$0x1]
      %v2212 = vlaneseq
      %v2213 = vshrl.u32 %v2212, 7
      %v2214 = vsub.s32 0, %v2213
      %v2215 = vrot.slane %v2210, %v2214
      %v2217 = vadd.f32 %v2197, %v2215
      %v2218 = vadd.f32 %v2198, %v2215
      %v2219 = vadd.f32 %v2199, %v2215
      %v2220 = vadd.f32 %v2200, %v2215
      %v2221 = vadd.f32 %v2201, %v2215
      %v2222 = vadd.f32 %v2202, %v2215
      %v2223 = vadd.f32 %v2203, %v2215
      %v2224 = vadd.f32 %v2204, %v2215
      %v2225 = vadd.f32 %v2205, %v2215
      %v2226 = vadd.f32 %v2206, %v2215
      %v2227 = vadd.f32 %v2207, %v2215
      %v2228 = vadd.f32 %v2208, %v2215
      %v2229 = vadd.f32 %v2209, %v2215
      %vm2230 = vcmp.gt.f32.partialorder %v2217, 0.0
      %vm2231 = vcmp.gt.f32.partialorder %v2218, 0.0
      %vm2232 = vcmp.gt.f32.partialorder %v2219, 0.0
      %vm2233 = vcmp.gt.f32.partialorder %v2220, 0.0
      %vm2234 = vcmp.gt.f32.partialorder %v2221, 0.0
      %vm2235 = vcmp.gt.f32.partialorder %v2222, 0.0
      %vm2236 = vcmp.gt.f32.partialorder %v2223, 0.0
      %vm2237 = vcmp.gt.f32.partialorder %v2224, 0.0
      %vm2238 = vcmp.gt.f32.partialorder %v2225, 0.0
      %vm2239 = vcmp.gt.f32.partialorder %v2226, 0.0
      %vm2240 = vcmp.gt.f32.partialorder %v2227, 0.0
      %vm2241 = vcmp.gt.f32.partialorder %v2228, 0.0
      %vm2242 = vcmp.gt.f32.partialorder %v2229, 0.0
      %v2243 = vmul.f32 %v2217, 0.01
      %v2244 = vmul.f32 %v2218, 0.01
      %v2245 = vmul.f32 %v2219, 0.01
      %v2246 = vmul.f32 %v2220, 0.01
      %v2247 = vmul.f32 %v2221, 0.01
      %v2248 = vmul.f32 %v2222, 0.01
      %v2249 = vmul.f32 %v2223, 0.01
      %v2250 = vmul.f32 %v2224, 0.01
      %v2251 = vmul.f32 %v2225, 0.01
      %v2252 = vmul.f32 %v2226, 0.01
      %v2253 = vmul.f32 %v2227, 0.01
      %v2254 = vmul.f32 %v2228, 0.01
      %v2255 = vmul.f32 %v2229, 0.01
      %v2256 = vsel %vm2230, %v2217, %v2243
      %v2257 = vsel %vm2231, %v2218, %v2244
      %v2258 = vsel %vm2232, %v2219, %v2245
      %v2259 = vsel %vm2233, %v2220, %v2246
      %v2260 = vsel %vm2234, %v2221, %v2247
      %v2261 = vsel %vm2235, %v2222, %v2248
      %v2262 = vsel %vm2236, %v2223, %v2249
      %v2263 = vsel %vm2237, %v2224, %v2250
      %v2264 = vsel %vm2238, %v2225, %v2251
      %v2265 = vsel %vm2239, %v2226, %v2252
      %v2266 = vsel %vm2240, %v2227, %v2253
      %v2267 = vsel %vm2241, %v2228, %v2254
      %v2268 = vsel %vm2242, %v2229, %v2255
      %v2269 = vsel %vm398, %v2256, 0.0
      %v2270 = vsel %vm398, %v2257, 0.0
      %v2271 = vadd.f32 %v2269, %v2270
      %v2272 = vsel %vm398, %v2258, 0.0
      %v2273 = vadd.f32 %v2271, %v2272
      %v2274 = vsel %vm398, %v2259, 0.0
      %v2275 = vadd.f32 %v2273, %v2274
      %v2276 = vsel %vm398, %v2260, 0.0
      %v2277 = vadd.f32 %v2275, %v2276
      %v2278 = vsel %vm398, %v2261, 0.0
      %v2279 = vadd.f32 %v2277, %v2278
      %v2280 = vsel %vm398, %v2262, 0.0
      %v2281 = vadd.f32 %v2279, %v2280
      %v2282 = vsel %vm398, %v2263, 0.0
      %v2283 = vadd.f32 %v2281, %v2282
      %v2284 = vsel %vm398, %v2264, 0.0
      %v2285 = vadd.f32 %v2283, %v2284
      %v2286 = vsel %vm398, %v2265, 0.0
      %v2287 = vadd.f32 %v2285, %v2286
      %v2288 = vsel %vm398, %v2266, 0.0
      %v2289 = vadd.f32 %v2287, %v2288
      %v2290 = vsel %vm398, %v2267, 0.0
      %v2291 = vadd.f32 %v2289, %v2290
      %vm2292 = vcmask 257024
      %v2293 = vsel %vm2292, %v2268, 0.0
      %v2294 = vadd.f32 %v2291, %v2293
      %v2295 = vrot.slane %v2294, 4
      %v2296 = vadd.f32 %v2294, %v2295
      %v2297 = vrot.slane %v2296, 2
      %v2298 = vadd.f32 %v2296, %v2297
      %v2299 = vrot.slane %v2298, 1
      %v2300 = vadd.f32 %v2298, %v2299
      %v2301 = vmul.f32 %v2256, %v2256
      %v2302 = vmul.f32 %v2257, %v2257
      %v2303 = vmul.f32 %v2258, %v2258
      %v2304 = vmul.f32 %v2259, %v2259
      %v2305 = vmul.f32 %v2260, %v2260
      %v2306 = vmul.f32 %v2261, %v2261
      %v2307 = vmul.f32 %v2262, %v2262
      %v2308 = vmul.f32 %v2263, %v2263
      %v2309 = vmul.f32 %v2264, %v2264
      %v2310 = vmul.f32 %v2265, %v2265
      %v2311 = vmul.f32 %v2266, %v2266
      %v2312 = vmul.f32 %v2267, %v2267
      %v2313 = vmul.f32 %v2268, %v2268
      %v2314 = vsel %vm398, %v2301, 0.0
      %v2315 = vsel %vm398, %v2302, 0.0
      %v2316 = vadd.f32 %v2314, %v2315
      %v2317 = vsel %vm398, %v2303, 0.0
      %v2318 = vadd.f32 %v2316, %v2317
      %v2319 = vsel %vm398, %v2304, 0.0
      %v2320 = vadd.f32 %v2318, %v2319
      %v2321 = vsel %vm398, %v2305, 0.0
      %v2322 = vadd.f32 %v2320, %v2321
      %v2323 = vsel %vm398, %v2306, 0.0
      %v2324 = vadd.f32 %v2322, %v2323
      %v2325 = vsel %vm398, %v2307, 0.0
      %v2326 = vadd.f32 %v2324, %v2325
      %v2327 = vsel %vm398, %v2308, 0.0
      %v2328 = vadd.f32 %v2326, %v2327
      %v2329 = vsel %vm398, %v2309, 0.0
      %v2330 = vadd.f32 %v2328, %v2329
      %v2331 = vsel %vm398, %v2310, 0.0
      %v2332 = vadd.f32 %v2330, %v2331
      %v2333 = vsel %vm398, %v2311, 0.0
      %v2334 = vadd.f32 %v2332, %v2333
      %v2335 = vsel %vm398, %v2312, 0.0
      %v2336 = vadd.f32 %v2334, %v2335
      %v2337 = vsel %vm2292, %v2313, 0.0
      %v2338 = vadd.f32 %v2336, %v2337
      %v2339 = vrot.slane %v2338, 4
      %v2340 = vadd.f32 %v2338, %v2339
      %v2341 = vrot.slane %v2340, 2
      %v2342 = vadd.f32 %v2340, %v2341
      %v2343 = vrot.slane %v2342, 1
      %v2344 = vadd.f32 %v2342, %v2343
      %vm2345 = vcmask 1040384
      %v2346 = vsel %vm2345, %v2300, %v2344
      %vm2347 = vcmask 254976
      %2348 = vst.msk [vmem:[%s208] sm:$0x3] %vm2347, %v2346
      %v2362 = vcombine.high %v2256, %v2256
      %v2364 = vunpack.c.l.s4 1983009808
      %v2365 = vunpack.c.0.s8 %v2364
      %v2366 = vlaneseq
      %v2367 = vshrl.u32 %v2366, 7
      %v2368 = vsub.s32 %v2365, %v2367
      %v2369 = vrot.slane %v2256, %v2368
      %v2371 = vunpack.c.l.s4 1983009808
      %v2372 = vunpack.c.0.s8 %v2371
      %v2373 = vlaneseq
      %v2374 = vshrl.u32 %v2373, 7
      %v2375 = vsub.s32 %v2372, %v2374
      %v2376 = vrot.slane %v2362, %v2375
      %v2377 = vcombine.high %v2369, %v2369
      %v2378 = vcombine.high %v2376, %v2376
      %v2379 = vcombine.high %v2257, %v2257
      %v2381 = vunpack.c.l.s4 1983009808
      %v2382 = vunpack.c.0.s8 %v2381
      %v2383 = vlaneseq
      %v2384 = vshrl.u32 %v2383, 7
      %v2385 = vsub.s32 %v2382, %v2384
      %v2386 = vrot.slane %v2257, %v2385
      %v2388 = vunpack.c.l.s4 1983009808
      %v2389 = vunpack.c.0.s8 %v2388
      %v2390 = vlaneseq
      %v2391 = vshrl.u32 %v2390, 7
      %v2392 = vsub.s32 %v2389, %v2391
      %v2393 = vrot.slane %v2379, %v2392
      %v2394 = vcombine.high %v2386, %v2386
      %v2395 = vcombine.high %v2393, %v2393
      %v2396 = vcombine.high %v2258, %v2258
      %v2398 = vunpack.c.l.s4 1983009808
      %v2399 = vunpack.c.0.s8 %v2398
      %v2400 = vlaneseq
      %v2401 = vshrl.u32 %v2400, 7
      %v2402 = vsub.s32 %v2399, %v2401
      %v2403 = vrot.slane %v2258, %v2402
      %v2405 = vunpack.c.l.s4 1983009808
      %v2406 = vunpack.c.0.s8 %v2405
      %v2407 = vlaneseq
      %v2408 = vshrl.u32 %v2407, 7
      %v2409 = vsub.s32 %v2406, %v2408
      %v2410 = vrot.slane %v2396, %v2409
      %v2411 = vcombine.high %v2403, %v2403
      %v2412 = vcombine.high %v2410, %v2410
      %v2413 = vcombine.high %v2259, %v2259
      %v2415 = vunpack.c.l.s4 1983009808
      %v2416 = vunpack.c.0.s8 %v2415
      %v2417 = vlaneseq
      %v2418 = vshrl.u32 %v2417, 7
      %v2419 = vsub.s32 %v2416, %v2418
      %v2420 = vrot.slane %v2259, %v2419
      %v2422 = vunpack.c.l.s4 1983009808
      %v2423 = vunpack.c.0.s8 %v2422
      %v2424 = vlaneseq
      %v2425 = vshrl.u32 %v2424, 7
      %v2426 = vsub.s32 %v2423, %v2425
      %v2427 = vrot.slane %v2413, %v2426
      %v2428 = vcombine.high %v2420, %v2420
      %v2429 = vcombine.high %v2427, %v2427
      %v2430 = vcombine.high %v2260, %v2260
      %v2432 = vunpack.c.l.s4 1983009808
      %v2433 = vunpack.c.0.s8 %v2432
      %v2434 = vlaneseq
      %v2435 = vshrl.u32 %v2434, 7
      %v2436 = vsub.s32 %v2433, %v2435
      %v2437 = vrot.slane %v2260, %v2436
      %v2439 = vunpack.c.l.s4 1983009808
      %v2440 = vunpack.c.0.s8 %v2439
      %v2441 = vlaneseq
      %v2442 = vshrl.u32 %v2441, 7
      %v2443 = vsub.s32 %v2440, %v2442
      %v2444 = vrot.slane %v2430, %v2443
      %v2445 = vcombine.high %v2437, %v2437
      %v2446 = vcombine.high %v2444, %v2444
      %v2447 = vcombine.high %v2261, %v2261
      %v2449 = vunpack.c.l.s4 1983009808
      %v2450 = vunpack.c.0.s8 %v2449
      %v2451 = vlaneseq
      %v2452 = vshrl.u32 %v2451, 7
      %v2453 = vsub.s32 %v2450, %v2452
      %v2454 = vrot.slane %v2261, %v2453
      %v2456 = vunpack.c.l.s4 1983009808
      %v2457 = vunpack.c.0.s8 %v2456
      %v2458 = vlaneseq
      %v2459 = vshrl.u32 %v2458, 7
      %v2460 = vsub.s32 %v2457, %v2459
      %v2461 = vrot.slane %v2447, %v2460
      %v2462 = vcombine.high %v2454, %v2454
      %v2463 = vcombine.high %v2461, %v2461
      %v2464 = vcombine.high %v2262, %v2262
      %v2466 = vunpack.c.l.s4 1983009808
      %v2467 = vunpack.c.0.s8 %v2466
      %v2468 = vlaneseq
      %v2469 = vshrl.u32 %v2468, 7
      %v2470 = vsub.s32 %v2467, %v2469
      %v2471 = vrot.slane %v2262, %v2470
      %v2473 = vunpack.c.l.s4 1983009808
      %v2474 = vunpack.c.0.s8 %v2473
      %v2475 = vlaneseq
      %v2476 = vshrl.u32 %v2475, 7
      %v2477 = vsub.s32 %v2474, %v2476
      %v2478 = vrot.slane %v2464, %v2477
      %v2479 = vcombine.high %v2471, %v2471
      %v2480 = vcombine.high %v2478, %v2478
      %v2481 = vcombine.high %v2263, %v2263
      %v2483 = vunpack.c.l.s4 1983009808
      %v2484 = vunpack.c.0.s8 %v2483
      %v2485 = vlaneseq
      %v2486 = vshrl.u32 %v2485, 7
      %v2487 = vsub.s32 %v2484, %v2486
      %v2488 = vrot.slane %v2263, %v2487
      %v2490 = vunpack.c.l.s4 1983009808
      %v2491 = vunpack.c.0.s8 %v2490
      %v2492 = vlaneseq
      %v2493 = vshrl.u32 %v2492, 7
      %v2494 = vsub.s32 %v2491, %v2493
      %v2495 = vrot.slane %v2481, %v2494
      %v2496 = vcombine.high %v2488, %v2488
      %v2497 = vcombine.high %v2495, %v2495
      %v2498 = vcombine.high %v2264, %v2264
      %v2500 = vunpack.c.l.s4 1983009808
      %v2501 = vunpack.c.0.s8 %v2500
      %v2502 = vlaneseq
      %v2503 = vshrl.u32 %v2502, 7
      %v2504 = vsub.s32 %v2501, %v2503
      %v2505 = vrot.slane %v2264, %v2504
      %v2507 = vunpack.c.l.s4 1983009808
      %v2508 = vunpack.c.0.s8 %v2507
      %v2509 = vlaneseq
      %v2510 = vshrl.u32 %v2509, 7
      %v2511 = vsub.s32 %v2508, %v2510
      %v2512 = vrot.slane %v2498, %v2511
      %v2513 = vcombine.high %v2505, %v2505
      %v2514 = vcombine.high %v2512, %v2512
      %v2515 = vcombine.high %v2265, %v2265
      %v2517 = vunpack.c.l.s4 1983009808
      %v2518 = vunpack.c.0.s8 %v2517
      %v2519 = vlaneseq
      %v2520 = vshrl.u32 %v2519, 7
      %v2521 = vsub.s32 %v2518, %v2520
      %v2522 = vrot.slane %v2265, %v2521
      %v2524 = vunpack.c.l.s4 1983009808
      %v2525 = vunpack.c.0.s8 %v2524
      %v2526 = vlaneseq
      %v2527 = vshrl.u32 %v2526, 7
      %v2528 = vsub.s32 %v2525, %v2527
      %v2529 = vrot.slane %v2515, %v2528
      %v2530 = vcombine.high %v2522, %v2522
      %v2531 = vcombine.high %v2529, %v2529
      %v2532 = vcombine.high %v2266, %v2266
      %v2534 = vunpack.c.l.s4 1983009808
      %v2535 = vunpack.c.0.s8 %v2534
      %v2536 = vlaneseq
      %v2537 = vshrl.u32 %v2536, 7
      %v2538 = vsub.s32 %v2535, %v2537
      %v2539 = vrot.slane %v2266, %v2538
      %v2541 = vunpack.c.l.s4 1983009808
      %v2542 = vunpack.c.0.s8 %v2541
      %v2543 = vlaneseq
      %v2544 = vshrl.u32 %v2543, 7
      %v2545 = vsub.s32 %v2542, %v2544
      %v2546 = vrot.slane %v2532, %v2545
      %v2547 = vcombine.high %v2539, %v2539
      %v2548 = vcombine.high %v2546, %v2546
      %v2549 = vcombine.high %v2267, %v2267
      %v2551 = vunpack.c.l.s4 1983009808
      %v2552 = vunpack.c.0.s8 %v2551
      %v2553 = vlaneseq
      %v2554 = vshrl.u32 %v2553, 7
      %v2555 = vsub.s32 %v2552, %v2554
      %v2556 = vrot.slane %v2267, %v2555
      %v2558 = vunpack.c.l.s4 1983009808
      %v2559 = vunpack.c.0.s8 %v2558
      %v2560 = vlaneseq
      %v2561 = vshrl.u32 %v2560, 7
      %v2562 = vsub.s32 %v2559, %v2561
      %v2563 = vrot.slane %v2549, %v2562
      %v2564 = vcombine.high %v2556, %v2556
      %v2565 = vcombine.high %v2563, %v2563
      %v2567 = vunpack.c.l.s4 1983009808
      %v2568 = vunpack.c.0.s8 %v2567
      %v2569 = vlaneseq
      %v2570 = vshrl.u32 %v2569, 7
      %v2571 = vsub.s32 %v2568, %v2570
      %v2572 = vrot.slane %v2268, %v2571
      %v2573 = vcombine.high %v2572, %v2572
      %v2574 = vcombine.low %v2369, %v2377
      %v2575 = vcombine.low %v2376, %v2378
      %v2577 = vunpack.c.l.s4 1983009808
      %v2578 = vunpack.c.0.s8 %v2577
      %v2579 = vlaneseq
      %v2580 = vshrl.u32 %v2579, 7
      %v2581 = vsub.s32 %v2578, %v2580
      %v2582 = vrot.slane %v2574, %v2581
      %v2584 = vunpack.c.l.s4 1983009808
      %v2585 = vunpack.c.0.s8 %v2584
      %v2586 = vlaneseq
      %v2587 = vshrl.u32 %v2586, 7
      %v2588 = vsub.s32 %v2585, %v2587
      %v2589 = vrot.slane %v2575, %v2588
      %v2590 = vcombine.low %v2582, %v2589
      %v2592 = vunpack.c.l.s4 1983009808
      %v2593 = vunpack.c.0.s8 %v2592
      %v2594 = vlaneseq
      %v2595 = vshrl.u32 %v2594, 7
      %v2596 = vsub.s32 %v2593, %v2595
      %v2597 = vrot.slane %v2386, %v2596
      %v2598 = vcombine.low %v2394, %v2393
      %v2599 = vcombine.low %v2395, %v2403
      %v2601 = vunpack.c.l.s4 1983009808
      %v2602 = vunpack.c.0.s8 %v2601
      %v2603 = vlaneseq
      %v2604 = vshrl.u32 %v2603, 7
      %v2605 = vsub.s32 %v2602, %v2604
      %v2606 = vrot.slane %v2598, %v2605
      %v2608 = vunpack.c.l.s4 1983009808
      %v2609 = vunpack.c.0.s8 %v2608
      %v2610 = vlaneseq
      %v2611 = vshrl.u32 %v2610, 7
      %v2612 = vsub.s32 %v2609, %v2611
      %v2613 = vrot.slane %v2599, %v2612
      %v2614 = vcombine.low %v2606, %v2613
      %v2616 = vunpack.c.l.s4 1983009808
      %v2617 = vunpack.c.0.s8 %v2616
      %v2618 = vlaneseq
      %v2619 = vshrl.u32 %v2618, 7
      %v2620 = vsub.s32 %v2617, %v2619
      %v2621 = vrot.slane %v2411, %v2620
      %v2622 = vcombine.low %v2410, %v2412
      %v2623 = vcombine.low %v2420, %v2428
      %v2625 = vunpack.c.l.s4 1983009808
      %v2626 = vunpack.c.0.s8 %v2625
      %v2627 = vlaneseq
      %v2628 = vshrl.u32 %v2627, 7
      %v2629 = vsub.s32 %v2626, %v2628
      %v2630 = vrot.slane %v2622, %v2629
      %v2632 = vunpack.c.l.s4 1983009808
      %v2633 = vunpack.c.0.s8 %v2632
      %v2634 = vlaneseq
      %v2635 = vshrl.u32 %v2634, 7
      %v2636 = vsub.s32 %v2633, %v2635
      %v2637 = vrot.slane %v2623, %v2636
      %v2638 = vcombine.low %v2630, %v2637
      %v2640 = vunpack.c.l.s4 1983009808
      %v2641 = vunpack.c.0.s8 %v2640
      %v2642 = vlaneseq
      %v2643 = vshrl.u32 %v2642, 7
      %v2644 = vsub.s32 %v2641, %v2643
      %v2645 = vrot.slane %v2427, %v2644
      %v2646 = vcombine.low %v2429, %v2437
      %v2647 = vcombine.low %v2445, %v2444
      %v2649 = vunpack.c.l.s4 1983009808
      %v2650 = vunpack.c.0.s8 %v2649
      %v2651 = vlaneseq
      %v2652 = vshrl.u32 %v2651, 7
      %v2653 = vsub.s32 %v2650, %v2652
      %v2654 = vrot.slane %v2646, %v2653
      %v2656 = vunpack.c.l.s4 1983009808
      %v2657 = vunpack.c.0.s8 %v2656
      %v2658 = vlaneseq
      %v2659 = vshrl.u32 %v2658, 7
      %v2660 = vsub.s32 %v2657, %v2659
      %v2661 = vrot.slane %v2647, %v2660
      %v2662 = vcombine.low %v2654, %v2661
      %v2664 = vunpack.c.l.s4 1983009808
      %v2665 = vunpack.c.0.s8 %v2664
      %v2666 = vlaneseq
      %v2667 = vshrl.u32 %v2666, 7
      %v2668 = vsub.s32 %v2665, %v2667
      %v2669 = vrot.slane %v2446, %v2668
      %v2670 = vcombine.low %v2454, %v2462
      %v2671 = vcombine.low %v2461, %v2463
      %v2673 = vunpack.c.l.s4 1983009808
      %v2674 = vunpack.c.0.s8 %v2673
      %v2675 = vlaneseq
      %v2676 = vshrl.u32 %v2675, 7
      %v2677 = vsub.s32 %v2674, %v2676
      %v2678 = vrot.slane %v2670, %v2677
      %v2680 = vunpack.c.l.s4 1983009808
      %v2681 = vunpack.c.0.s8 %v2680
      %v2682 = vlaneseq
      %v2683 = vshrl.u32 %v2682, 7
      %v2684 = vsub.s32 %v2681, %v2683
      %v2685 = vrot.slane %v2671, %v2684
      %v2686 = vcombine.low %v2678, %v2685
      %v2688 = vunpack.c.l.s4 1983009808
      %v2689 = vunpack.c.0.s8 %v2688
      %v2690 = vlaneseq
      %v2691 = vshrl.u32 %v2690, 7
      %v2692 = vsub.s32 %v2689, %v2691
      %v2693 = vrot.slane %v2471, %v2692
      %v2694 = vcombine.low %v2479, %v2478
      %v2695 = vcombine.low %v2480, %v2488
      %v2697 = vunpack.c.l.s4 1983009808
      %v2698 = vunpack.c.0.s8 %v2697
      %v2699 = vlaneseq
      %v2700 = vshrl.u32 %v2699, 7
      %v2701 = vsub.s32 %v2698, %v2700
      %v2702 = vrot.slane %v2694, %v2701
      %v2704 = vunpack.c.l.s4 1983009808
      %v2705 = vunpack.c.0.s8 %v2704
      %v2706 = vlaneseq
      %v2707 = vshrl.u32 %v2706, 7
      %v2708 = vsub.s32 %v2705, %v2707
      %v2709 = vrot.slane %v2695, %v2708
      %v2710 = vcombine.low %v2702, %v2709
      %v2712 = vunpack.c.l.s4 1983009808
      %v2713 = vunpack.c.0.s8 %v2712
      %v2714 = vlaneseq
      %v2715 = vshrl.u32 %v2714, 7
      %v2716 = vsub.s32 %v2713, %v2715
      %v2717 = vrot.slane %v2496, %v2716
      %v2718 = vcombine.low %v2495, %v2497
      %v2719 = vcombine.low %v2505, %v2513
      %v2721 = vunpack.c.l.s4 1983009808
      %v2722 = vunpack.c.0.s8 %v2721
      %v2723 = vlaneseq
      %v2724 = vshrl.u32 %v2723, 7
      %v2725 = vsub.s32 %v2722, %v2724
      %v2726 = vrot.slane %v2718, %v2725
      %v2728 = vunpack.c.l.s4 1983009808
      %v2729 = vunpack.c.0.s8 %v2728
      %v2730 = vlaneseq
      %v2731 = vshrl.u32 %v2730, 7
      %v2732 = vsub.s32 %v2729, %v2731
      %v2733 = vrot.slane %v2719, %v2732
      %v2734 = vcombine.low %v2726, %v2733
      %v2736 = vunpack.c.l.s4 1983009808
      %v2737 = vunpack.c.0.s8 %v2736
      %v2738 = vlaneseq
      %v2739 = vshrl.u32 %v2738, 7
      %v2740 = vsub.s32 %v2737, %v2739
      %v2741 = vrot.slane %v2512, %v2740
      %v2742 = vcombine.low %v2514, %v2522
      %v2743 = vcombine.low %v2530, %v2529
      %v2745 = vunpack.c.l.s4 1983009808
      %v2746 = vunpack.c.0.s8 %v2745
      %v2747 = vlaneseq
      %v2748 = vshrl.u32 %v2747, 7
      %v2749 = vsub.s32 %v2746, %v2748
      %v2750 = vrot.slane %v2742, %v2749
      %v2752 = vunpack.c.l.s4 1983009808
      %v2753 = vunpack.c.0.s8 %v2752
      %v2754 = vlaneseq
      %v2755 = vshrl.u32 %v2754, 7
      %v2756 = vsub.s32 %v2753, %v2755
      %v2757 = vrot.slane %v2743, %v2756
      %v2758 = vcombine.low %v2750, %v2757
      %v2760 = vunpack.c.l.s4 1983009808
      %v2761 = vunpack.c.0.s8 %v2760
      %v2762 = vlaneseq
      %v2763 = vshrl.u32 %v2762, 7
      %v2764 = vsub.s32 %v2761, %v2763
      %v2765 = vrot.slane %v2531, %v2764
      %v2766 = vcombine.low %v2539, %v2547
      %v2767 = vcombine.low %v2546, %v2548
      %v2769 = vunpack.c.l.s4 1983009808
      %v2770 = vunpack.c.0.s8 %v2769
      %v2771 = vlaneseq
      %v2772 = vshrl.u32 %v2771, 7
      %v2773 = vsub.s32 %v2770, %v2772
      %v2774 = vrot.slane %v2766, %v2773
      %v2776 = vunpack.c.l.s4 1983009808
      %v2777 = vunpack.c.0.s8 %v2776
      %v2778 = vlaneseq
      %v2779 = vshrl.u32 %v2778, 7
      %v2780 = vsub.s32 %v2777, %v2779
      %v2781 = vrot.slane %v2767, %v2780
      %v2782 = vcombine.low %v2774, %v2781
      %v2784 = vunpack.c.l.s4 1983009808
      %v2785 = vunpack.c.0.s8 %v2784
      %v2786 = vlaneseq
      %v2787 = vshrl.u32 %v2786, 7
      %v2788 = vsub.s32 %v2785, %v2787
      %v2789 = vrot.slane %v2556, %v2788
      %v2790 = vcombine.low %v2564, %v2563
      %v2791 = vcombine.low %v2565, %v2572
      %v2793 = vunpack.c.l.s4 1983009808
      %v2794 = vunpack.c.0.s8 %v2793
      %v2795 = vlaneseq
      %v2796 = vshrl.u32 %v2795, 7
      %v2797 = vsub.s32 %v2794, %v2796
      %v2798 = vrot.slane %v2790, %v2797
      %v2800 = vunpack.c.l.s4 1983009808
      %v2801 = vunpack.c.0.s8 %v2800
      %v2802 = vlaneseq
      %v2803 = vshrl.u32 %v2802, 7
      %v2804 = vsub.s32 %v2801, %v2803
      %v2805 = vrot.slane %v2791, %v2804
      %v2806 = vcombine.low %v2798, %v2805
      %v2808 = vunpack.c.l.s4 1983009808
      %v2809 = vunpack.c.0.s8 %v2808
      %v2810 = vlaneseq
      %v2811 = vshrl.u32 %v2810, 7
      %v2812 = vsub.s32 %v2809, %v2811
      %v2813 = vrot.slane %v2573, %v2812
      %v2834 = vpack.c.bf16 %v2597, %v2590
      %v2835 = vpack.c.bf16 %v2621, %v2614
      %v2836 = vpack.c.bf16 %v2645, %v2638
      %v2837 = vpack.c.bf16 %v2669, %v2662
      %v2838 = vpack.c.bf16 %v2693, %v2686
      %v2839 = vpack.c.bf16 %v2717, %v2710
      %v2840 = vpack.c.bf16 %v2741, %v2734
      %v2841 = vpack.c.bf16 %v2765, %v2758
      %v2842 = vpack.c.bf16 %v2789, %v2782
      %v2843 = vpack.c.bf16 %v2813, %v2806
      %v2854 = vunpack.c.l.b16 %v2834
      %v2855 = vunpack.c.h.b16 %v2834
      %v2856 = vunpack.c.l.b16 %v2835
      %v2857 = vunpack.c.h.b16 %v2835
      %v2858 = vunpack.c.l.b16 %v2836
      %v2859 = vunpack.c.h.b16 %v2836
      %v2860 = vunpack.c.l.b16 %v2837
      %v2861 = vunpack.c.h.b16 %v2837
      %v2862 = vunpack.c.l.b16 %v2838
      %v2863 = vunpack.c.h.b16 %v2838
      %v2864 = vunpack.c.l.b16 %v2839
      %v2865 = vunpack.c.h.b16 %v2839
      %v2866 = vunpack.c.l.b16 %v2840
      %v2867 = vunpack.c.h.b16 %v2840
      %v2868 = vunpack.c.l.b16 %v2841
      %v2869 = vunpack.c.h.b16 %v2841
      %v2870 = vunpack.c.l.b16 %v2842
      %v2871 = vunpack.c.h.b16 %v2842
      %v2872 = vunpack.c.l.b16 %v2843
      %v2873 = vunpack.c.h.b16 %v2843
      %v2874 = vpack.c.b16 %v2854, %v2854
      %v2875 = vpack.c.b16 %v2855, %v2855
      %v2876 = vpack.c.b16 %v2856, %v2856
      %v2877 = vpack.c.b16 %v2857, %v2857
      %v2878 = vpack.c.b16 %v2858, %v2858
      %v2879 = vpack.c.b16 %v2859, %v2859
      %v2880 = vpack.c.b16 %v2860, %v2860
      %v2881 = vpack.c.b16 %v2861, %v2861
      %v2882 = vpack.c.b16 %v2862, %v2862
      %v2883 = vpack.c.b16 %v2863, %v2863
      %v2884 = vpack.c.b16 %v2864, %v2864
      %v2885 = vpack.c.b16 %v2865, %v2865
      %v2886 = vpack.c.b16 %v2866, %v2866
      %v2887 = vpack.c.b16 %v2867, %v2867
      %v2888 = vpack.c.b16 %v2868, %v2868
      %v2889 = vpack.c.b16 %v2869, %v2869
      %v2890 = vpack.c.b16 %v2870, %v2870
      %v2891 = vpack.c.b16 %v2871, %v2871
      %v2892 = vpack.c.b16 %v2872, %v2872
      %v2893 = vpack.c.b16 %v2873, %v2873
      %2914 = vst.msk [vmem:[%s204] sm:$0xf] %vm2292, %v2874
      %vm2915 = vcmask 253952
      %2916 = vst.msk [vmem:[%s204 + $0x4] sm:$0x1] %vm2915, %v2875
      %2917 = vst.msk [vmem:[%s204 + $0x8] sm:$0xf] %vm2292, %v2876
      %2918 = vst.msk [vmem:[%s204 + $0xc] sm:$0x1] %vm2915, %v2877
      %2919 = vst.msk [vmem:[%s204 + $0x10] sm:$0xf] %vm2292, %v2878
      %2920 = vst.msk [vmem:[%s204 + $0x14] sm:$0x1] %vm2915, %v2879
      %2921 = vst.msk [vmem:[%s204 + $0x18] sm:$0xf] %vm2292, %v2880
      %2922 = vst.msk [vmem:[%s204 + $0x1c] sm:$0x1] %vm2915, %v2881
      %2923 = vst.msk [vmem:[%s204 + $0x20] sm:$0xf] %vm2292, %v2882
      %2924 = vst.msk [vmem:[%s204 + $0x24] sm:$0x1] %vm2915, %v2883
      %2925 = vst.msk [vmem:[%s204 + $0x28] sm:$0xf] %vm2292, %v2884
      %2926 = vst.msk [vmem:[%s204 + $0x2c] sm:$0x1] %vm2915, %v2885
      %2927 = vst.msk [vmem:[%s204 + $0x30] sm:$0xf] %vm2292, %v2886
      %2928 = vst.msk [vmem:[%s204 + $0x34] sm:$0x1] %vm2915, %v2887
      %2929 = vst.msk [vmem:[%s204 + $0x38] sm:$0xf] %vm2292, %v2888
      %2930 = vst.msk [vmem:[%s204 + $0x3c] sm:$0x1] %vm2915, %v2889
      %2931 = vst.msk [vmem:[%s204 + $0x40] sm:$0xf] %vm2292, %v2890
      %2932 = vst.msk [vmem:[%s204 + $0x44] sm:$0x1] %vm2915, %v2891
      %2933 = vst.msk [vmem:[%s204 + $0x48] sm:$0xf] %vm2292, %v2892
      %2934 = vst.msk [vmem:[%s204 + $0x4c] sm:$0x1] %vm2915, %v2893
      %p2935 = scmp.lt.s32.totalorder %s16, 1
      %s2936 = scalar_select %p2935, %s16, 1
      %s2937 = smul.addr %s2936, 20
      %s2938 = smul.addr %s2937, 4
      %s2939 = scalar_lea.vmem %s3, %s2938
      %p2940 = scmp.lt.s32.totalorder %s16, 1
      %s2941 = scalar_select %p2940, %s16, 1
      %s2942 = smul.addr %s2941, 2
      %s2943 = scalar_lea.vmem %s4, %s2942
      // Predicated region
      $region33: #{basic_critic_forward.6} parent=31 // pred_check
        %p2944 = pneg %p102
      $region34: #{basic_critic_forward.6} parent=31 // pred_check_branch
        %2946 = sbr.rel (%p2944) target = $region36
      $region35: #{basic_critic_forward.6} parent=31 // pred_region
        _
      $region36: #{basic_critic_forward.6} parent=31 // pred_fallthru
        _
      // Predicated region
      $region37: #{basic_critic_forward.6} parent=31 // pred_check
        %p2947 = pneg %p128
      $region38: #{basic_critic_forward.6} parent=31 // pred_check_branch
        %2949 = sbr.rel (%p2947) target = $region40
      $region39: #{basic_critic_forward.6} parent=31 // pred_region
        _
      $region40: #{basic_critic_forward.6} parent=31 // pred_fallthru
        _
    $region32: #{basic_critic_forward.6} parent=5 // pred_fallthru
      _
    %p2950 = scmp.le.s32.totalorder 2, %s11
    // Predicated region
    $region41: #{basic_critic_forward.6} parent=5 // pred_check
      %p2951 = pneg %p2950
    $region42: #{basic_critic_forward.6} parent=5 // pred_check_branch
      %2953 = sbr.rel (%p2951) target = $region44
    $region43: #{basic_critic_forward.6} parent=5 // pred_region
      %s2954 = ssub.s32 %s11, 2
      // Predicated region
      $region45: #{basic_critic_forward.6} parent=43 // pred_check
        %p2955 = pneg %p108
      $region46: #{basic_critic_forward.6} parent=43 // pred_check_branch
        %2957 = sbr.rel (%p2955) target = $region48
      $region47: #{basic_critic_forward.6} parent=43 // pred_region
        %p2958 = scmp.lt.s32.totalorder %s17, 1
        %s2959 = scalar_select %p2958, %s17, 1
        %s2960 = smul.addr %s2959, 20
        %s2961 = smul.addr %s2960, 4
        %s2962 = scalar_lea.vmem %s3, %s2961
      $region48: #{basic_critic_forward.6} parent=43 // pred_fallthru
        _
      // Predicated region
      $region49: #{basic_critic_forward.6} parent=43 // pred_check
        %p2963 = pneg %p134
      $region50: #{basic_critic_forward.6} parent=43 // pred_check_branch
        %2965 = sbr.rel (%p2963) target = $region52
      $region51: #{basic_critic_forward.6} parent=43 // pred_region
        %p2966 = scmp.lt.s32.totalorder %s17, 1
        %s2967 = scalar_select %p2966, %s17, 1
        %s2968 = smul.addr %s2967, 2
        %s2969 = scalar_lea.vmem %s4, %s2968
      $region52: #{basic_critic_forward.6} parent=43 // pred_fallthru
        _
    $region44: #{basic_critic_forward.6} parent=5 // pred_fallthru
      _
  $region6: #{basic_critic_forward.6} parent=0 // loop_footer
    %s15 = sadd.s32 1, %s11
  $region7: #{basic_critic_forward.6} parent=0 // loop_footer_branch
    %10 = sbr.rel target = $region3
  $region8: #{basic_critic_forward.6} parent=0 // loop_exit
    _

// kernel: basic_critic_forward.4
$region0: #{basic_critic_forward.4}
  #allocation0 [shape = 'u32[]', space=smem, size = 0x4, offset = 0x4, fixed_abs, tag = 'smem constant byte address 0x4 - core index']
  #allocation1 [shape = 'u32[144,128]{1,0:T(1,128)}', space=vmem, size = 0x12000, scoped, tag = 'internal scratch']
  %s0 = inlined_call_operand.vmem [shape: bf16[2,16,16,3], index: 0, kind: input, shape index: {}]
  %s1 = inlined_call_operand.vmem [shape: bf16[3,9,32], index: 1, kind: input, shape index: {}]
  %s2 = inlined_call_operand.vmem [shape: f32[1,32], index: 2, kind: input, shape index: {}]
  %s3 = inlined_call_operand.vmem [shape: bf16[2,14,14,32], index: 3, kind: output, shape index: {0}]
  %s4 = inlined_call_operand.vmem [shape: f32[2,2,32], index: 4, kind: output, shape index: {1}]
  %5 = xla_tuple %s3, %s4
  %s6 = sld [smem:[#allocation0]]
  $region53: #{basic_critic_forward.4} parent=0
    _
  %s8 = ssub.s32 1, %s6
  %s9 = scalar_select 0, %s8, %s6
  loop: start=0, step=1, limit=4
  $region2: #{basic_critic_forward.4} parent=0 // loop_pre_header
    _
  $region3: #{basic_critic_forward.4} parent=0 // loop_header
    %s11 = sphi 0, %s15
    %p12 = scmp.ge.s32.totalorder %s11, 4
    %s21 = sphi 0, %s23
    %s24 = sphi 0, %s21
    %s25 = sphi 0, %s24
    %s41 = sphi 0, %s25
    %s45 = sphi 0, %s45
    %s47 = sphi 0, %s45
    %s48 = sphi 0, %s47
    %s62 = sphi 0, %s48
    %s66 = sphi 0, %s66
    %s68 = sphi 0, %s66
    %s69 = sphi 0, %s68
    %s83 = sphi 0, %s69
    %s89 = sphi 0, %s91
    %s92 = sphi 0, %s89
    %s93 = sphi 0, %s92
    %s109 = sphi 0, %s93
    %s115 = sphi 0, %s117
    %s118 = sphi 0, %s115
    %s119 = sphi 0, %s118
    %s135 = sphi 0, %s119
  $region4: #{basic_critic_forward.4} parent=0 // loop_header_branch
    %14 = sbr.rel (%p12) target = $region8
  $region5: #{basic_critic_forward.4} parent=0 // loop_body
    %s16 = ssub.s32 %s11, 1
    %s17 = ssub.s32 %s11, 2
    %s18 = sadd.s32 %s11, 1
    %s19 = ssub.s32 %s11, %s18
    %p20 = scmp.eq.s32.totalorder %s19, 0
    %s22 = sadd.s32 %s21, 1
    %s23 = scalar_select %p20, %s21, %s22
    %p26 = pneg %p20
    %p27 = scmp.eq.s32.totalorder %s11, 1
    %p28 = por %p26, %p27
    %p29 = scmp.ne.s32.totalorder %s21, %s24
    %p30 = scmp.eq.s32.totalorder %s11, 0
    %p31 = por %p29, %p30
    %p32 = scmp.ne.s32.totalorder %s21, %s24
    %p33 = scmp.eq.s32.totalorder %s16, 1
    %p34 = por %p32, %p33
    %p35 = scmp.ne.s32.totalorder %s24, %s25
    %p36 = scmp.eq.s32.totalorder %s16, 0
    %p37 = por %p35, %p36
    %p38 = scmp.ne.s32.totalorder %s24, %s25
    %p39 = scmp.eq.s32.totalorder %s17, 1
    %p40 = por %p38, %p39
    %p42 = scmp.ne.s32.totalorder %s25, %s41
    %p43 = scmp.eq.s32.totalorder %s17, 0
    %p44 = por %p42, %p43
    %s46 = sadd.s32 %s45, 1
    %p49 = scmp.eq.s32.totalorder %s11, 1
    %p50 = scmp.ne.s32.totalorder %s45, %s47
    %p51 = scmp.eq.s32.totalorder %s11, 0
    %p52 = por %p50, %p51
    %p53 = scmp.ne.s32.totalorder %s45, %s47
    %p54 = scmp.eq.s32.totalorder %s16, 1
    %p55 = por %p53, %p54
    %p56 = scmp.ne.s32.totalorder %s47, %s48
    %p57 = scmp.eq.s32.totalorder %s16, 0
    %p58 = por %p56, %p57
    %p59 = scmp.ne.s32.totalorder %s47, %s48
    %p60 = scmp.eq.s32.totalorder %s17, 1
    %p61 = por %p59, %p60
    %p63 = scmp.ne.s32.totalorder %s48, %s62
    %p64 = scmp.eq.s32.totalorder %s17, 0
    %p65 = por %p63, %p64
    %s67 = sadd.s32 %s66, 1
    %p70 = scmp.eq.s32.totalorder %s11, 1
    %p71 = scmp.ne.s32.totalorder %s66, %s68
    %p72 = scmp.eq.s32.totalorder %s11, 0
    %p73 = por %p71, %p72
    %p74 = scmp.ne.s32.totalorder %s66, %s68
    %p75 = scmp.eq.s32.totalorder %s16, 1
    %p76 = por %p74, %p75
    %p77 = scmp.ne.s32.totalorder %s68, %s69
    %p78 = scmp.eq.s32.totalorder %s16, 0
    %p79 = por %p77, %p78
    %p80 = scmp.ne.s32.totalorder %s68, %s69
    %p81 = scmp.eq.s32.totalorder %s17, 1
    %p82 = por %p80, %p81
    %p84 = scmp.ne.s32.totalorder %s69, %s83
    %p85 = scmp.eq.s32.totalorder %s17, 0
    %p86 = por %p84, %p85
    %s87 = ssub.s32 %s11, %s18
    %p88 = scmp.eq.s32.totalorder %s87, 0
    %s90 = sadd.s32 %s89, 1
    %s91 = scalar_select %p88, %s89, %s90
    %p94 = pneg %p88
    %p95 = scmp.eq.s32.totalorder %s11, 1
    %p96 = por %p94, %p95
    %p97 = scmp.ne.s32.totalorder %s89, %s92
    %p98 = scmp.eq.s32.totalorder %s11, 0
    %p99 = por %p97, %p98
    %p100 = scmp.ne.s32.totalorder %s89, %s92
    %p101 = scmp.eq.s32.totalorder %s16, 1
    %p102 = por %p100, %p101
    %p103 = scmp.ne.s32.totalorder %s92, %s93
    %p104 = scmp.eq.s32.totalorder %s16, 0
    %p105 = por %p103, %p104
    %p106 = scmp.ne.s32.totalorder %s92, %s93
    %p107 = scmp.eq.s32.totalorder %s17, 1
    %p108 = por %p106, %p107
    %p110 = scmp.ne.s32.totalorder %s93, %s109
    %p111 = scmp.eq.s32.totalorder %s17, 0
    %p112 = por %p110, %p111
    %s113 = ssub.s32 %s11, %s18
    %p114 = scmp.eq.s32.totalorder %s113, 0
    %s116 = sadd.s32 %s115, 1
    %s117 = scalar_select %p114, %s115, %s116
    %p120 = pneg %p114
    %p121 = scmp.eq.s32.totalorder %s11, 1
    %p122 = por %p120, %p121
    %p123 = scmp.ne.s32.totalorder %s115, %s118
    %p124 = scmp.eq.s32.totalorder %s11, 0
    %p125 = por %p123, %p124
    %p126 = scmp.ne.s32.totalorder %s115, %s118
    %p127 = scmp.eq.s32.totalorder %s16, 1
    %p128 = por %p126, %p127
    %p129 = scmp.ne.s32.totalorder %s118, %s119
    %p130 = scmp.eq.s32.totalorder %s16, 0
    %p131 = por %p129, %p130
    %p132 = scmp.ne.s32.totalorder %s118, %s119
    %p133 = scmp.eq.s32.totalorder %s17, 1
    %p134 = por %p132, %p133
    %p136 = scmp.ne.s32.totalorder %s119, %s135
    %p137 = scmp.eq.s32.totalorder %s17, 0
    %p138 = por %p136, %p137
    %p139 = scmp.le.s32.totalorder 1, %s11
    %p140 = scmp.lt.s32.totalorder %s11, 3
    %p141 = pnand %p139, %p140
    %p142 = pneg %p141
    // Predicated region
    $region9: #{basic_critic_forward.4} parent=5 // pred_check
      _
    $region10: #{basic_critic_forward.4} parent=5 // pred_check_branch
      %144 = sbr.rel (%p141) target = $region12
    $region11: #{basic_critic_forward.4} parent=5 // pred_region
      %s145 = ssub.s32 %s11, 1
      // Predicated region
      $region13: #{basic_critic_forward.4} parent=11 // pred_check
        %p146 = pneg %p58
      $region14: #{basic_critic_forward.4} parent=11 // pred_check_branch
        %148 = sbr.rel (%p146) target = $region16
      $region15: #{basic_critic_forward.4} parent=11 // pred_region
        _
      $region16: #{basic_critic_forward.4} parent=11 // pred_fallthru
        _
      // Predicated region
      $region17: #{basic_critic_forward.4} parent=11 // pred_check
        %p149 = pneg %p79
      $region18: #{basic_critic_forward.4} parent=11 // pred_check_branch
        %151 = sbr.rel (%p149) target = $region20
      $region19: #{basic_critic_forward.4} parent=11 // pred_region
        _
      $region20: #{basic_critic_forward.4} parent=11 // pred_fallthru
        _
    $region12: #{basic_critic_forward.4} parent=5 // pred_fallthru
      _
    %p152 = scmp.lt.s32.totalorder %s11, 2
    // Predicated region
    $region21: #{basic_critic_forward.4} parent=5 // pred_check
      %p153 = pneg %p152
    $region22: #{basic_critic_forward.4} parent=5 // pred_check_branch
      %155 = sbr.rel (%p153) target = $region24
    $region23: #{basic_critic_forward.4} parent=5 // pred_region
      // Predicated region
      $region25: #{basic_critic_forward.4} parent=23 // pred_check
        %p156 = pneg %p31
      $region26: #{basic_critic_forward.4} parent=23 // pred_check_branch
        %158 = sbr.rel (%p156) target = $region28
      $region27: #{basic_critic_forward.4} parent=23 // pred_region
        %p159 = scmp.lt.s32.totalorder %s11, 1
        %s160 = scalar_select %p159, %s11, 1
        %s161 = smul.addr %s160, 32
        %s162 = smul.addr %s161, 4
        %s163 = scalar_lea.vmem %s0, %s162
      $region28: #{basic_critic_forward.4} parent=23 // pred_fallthru
        _
    $region24: #{basic_critic_forward.4} parent=5 // pred_fallthru
      _
    %p164 = scmp.le.s32.totalorder 1, %s11
    %p165 = scmp.lt.s32.totalorder %s11, 3
    %p166 = pnand %p164, %p165
    %p167 = pneg %p166
    // Predicated region
    $region29: #{basic_critic_forward.4} parent=5 // pred_check
      _
    $region30: #{basic_critic_forward.4} parent=5 // pred_check_branch
      %169 = sbr.rel (%p166) target = $region32
    $region31: #{basic_critic_forward.4} parent=5 // pred_region
      %s170 = ssub.s32 %s11, 1
      %p171 = scmp.lt.s32.totalorder %s16, 1
      %s172 = scalar_select %p171, %s16, 1
      %s173 = smul.addr %s172, 32
      %s174 = smul.addr %s173, 4
      %s175 = scalar_lea.vmem %s0, %s174
      %p176 = pneg %p37
      %p177 = pneg %p34
      %p178 = pneg %p58
      %p179 = pneg %p55
      %p180 = pneg %p79
      %p181 = pneg %p76
      %p182 = pneg %p105
      %p183 = pneg %p102
      %p184 = scmp.lt.s32.totalorder %s16, 1
      %s185 = scalar_select %p184, %s16, 1
      %s186 = smul.addr %s185, 28
      %s187 = smul.addr %s186, 4
      %s188 = scalar_lea.vmem %s3, %s187
      %p189 = pneg %p131
      %p190 = pneg %p128
      %p191 = scmp.lt.s32.totalorder %s16, 1
      %s192 = scalar_select %p191, %s16, 1
      %s193 = smul.addr %s192, 2
      %s194 = scalar_lea.vmem %s4, %s193
      %p195 = scmp.lt.s32.totalorder %s16, 1
      %s196 = scalar_select %p195, %s16, 1
      %s197 = smul.addr %s196, 32
      %s198 = smul.addr %s197, 4
      %s199 = scalar_lea.vmem %s0, %s198
      %p200 = scmp.lt.s32.totalorder %s16, 1
      %s201 = scalar_select %p200, %s16, 1
      %s202 = smul.addr %s201, 28
      %s203 = smul.addr %s202, 4
      %s204 = scalar_lea.vmem %s3, %s203
      %p205 = scmp.lt.s32.totalorder %s16, 1
      %s206 = scalar_select %p205, %s16, 1
      %s207 = smul.addr %s206, 2
      %s208 = scalar_lea.vmem %s4, %s207
      %v210 = vld [vmem:[%s199] sm:$0xf]
      %v211 = vld [vmem:[%s199 + $0x4] sm:$0xf]
      %v212 = vld [vmem:[%s199 + $0x8] sm:$0xf]
      %v213 = vld [vmem:[%s199 + $0xc] sm:$0xf]
      %v214 = vld [vmem:[%s199 + $0x10] sm:$0xf]
      %v215 = vld [vmem:[%s199 + $0x14] sm:$0xf]
      %v216 = vld [vmem:[%s199 + $0x18] sm:$0xf]
      %v217 = vld [vmem:[%s199 + $0x1c] sm:$0xf]
      %v218 = vld [vmem:[%s199 + $0x20] sm:$0xf]
      %v219 = vld [vmem:[%s199 + $0x24] sm:$0xf]
      %v220 = vld [vmem:[%s199 + $0x28] sm:$0xf]
      %v221 = vld [vmem:[%s199 + $0x2c] sm:$0xf]
      %v222 = vld [vmem:[%s199 + $0x30] sm:$0xf]
      %v223 = vld [vmem:[%s199 + $0x34] sm:$0xf]
      %v224 = vld [vmem:[%s199 + $0x38] sm:$0xf]
      %v225 = vld [vmem:[%s199 + $0x3c] sm:$0xf]
      %v226 = vld [vmem:[%s199 + $0x40] sm:$0xf]
      %v227 = vld [vmem:[%s199 + $0x44] sm:$0xf]
      %v228 = vld [vmem:[%s199 + $0x48] sm:$0xf]
      %v229 = vld [vmem:[%s199 + $0x4c] sm:$0xf]
      %v230 = vld [vmem:[%s199 + $0x50] sm:$0xf]
      %v231 = vld [vmem:[%s199 + $0x54] sm:$0xf]
      %v232 = vld [vmem:[%s199 + $0x58] sm:$0xf]
      %v233 = vld [vmem:[%s199 + $0x5c] sm:$0xf]
      %v234 = vld [vmem:[%s199 + $0x60] sm:$0xf]
      %v235 = vld [vmem:[%s199 + $0x64] sm:$0xf]
      %v236 = vld [vmem:[%s199 + $0x68] sm:$0xf]
      %v237 = vld [vmem:[%s199 + $0x6c] sm:$0xf]
      %v238 = vld [vmem:[%s199 + $0x70] sm:$0xf]
      %v239 = vld [vmem:[%s199 + $0x74] sm:$0xf]
      %v240 = vld [vmem:[%s199 + $0x78] sm:$0xf]
      %v241 = vld [vmem:[%s199 + $0x7c] sm:$0xf]
      %v242 = vunpack.c.l.bf16 %v210
      %v243 = vunpack.c.l.bf16 %v211
      %v244 = vunpack.c.l.bf16 %v212
      %v245 = vunpack.c.l.bf16 %v213
      %v246 = vunpack.c.l.bf16 %v214
      %v247 = vunpack.c.l.bf16 %v215
      %v248 = vunpack.c.l.bf16 %v216
      %v249 = vunpack.c.l.bf16 %v217
      %v250 = vunpack.c.l.bf16 %v218
      %v251 = vunpack.c.l.bf16 %v219
      %v252 = vunpack.c.l.bf16 %v220
      %v253 = vunpack.c.l.bf16 %v221
      %v254 = vunpack.c.l.bf16 %v222
      %v255 = vunpack.c.l.bf16 %v223
      %v256 = vunpack.c.l.bf16 %v224
      %v257 = vunpack.c.l.bf16 %v225
      %v258 = vunpack.c.l.bf16 %v226
      %v259 = vunpack.c.l.bf16 %v227
      %v260 = vunpack.c.l.bf16 %v228
      %v261 = vunpack.c.l.bf16 %v229
      %v262 = vunpack.c.l.bf16 %v230
      %v263 = vunpack.c.l.bf16 %v231
      %v264 = vunpack.c.l.bf16 %v232
      %v265 = vunpack.c.l.bf16 %v233
      %v266 = vunpack.c.l.bf16 %v234
      %v267 = vunpack.c.l.bf16 %v235
      %v268 = vunpack.c.l.bf16 %v236
      %v269 = vunpack.c.l.bf16 %v237
      %v270 = vunpack.c.l.bf16 %v238
      %v271 = vunpack.c.l.bf16 %v239
      %v272 = vunpack.c.l.bf16 %v240
      %v273 = vunpack.c.l.bf16 %v241
      %v274 = vpack.c.bf16 %v243, %v242
      %v275 = vpack.c.bf16 %v245, %v244
      %v276 = vpack.c.bf16 %v247, %v246
      %v277 = vpack.c.bf16 %v249, %v248
      %v278 = vpack.c.bf16 %v251, %v250
      %v279 = vpack.c.bf16 %v253, %v252
      %v280 = vpack.c.bf16 %v255, %v254
      %v281 = vpack.c.bf16 %v257, %v256
      %v282 = vpack.c.bf16 %v259, %v258
      %v283 = vpack.c.bf16 %v261, %v260
      %v284 = vpack.c.bf16 %v263, %v262
      %v285 = vpack.c.bf16 %v265, %v264
      %v286 = vpack.c.bf16 %v267, %v266
      %v287 = vpack.c.bf16 %v269, %v268
      %v289 = vshrl.u32 %v274, 16
      %v291 = vshll.u32 %v274, 16
      %v293 = vrot.slane %v291, 1
      %v294 = vor.u32 %v289, %v293
      %v296 = vshrl.u32 %v275, 16
      %v298 = vshll.u32 %v275, 16
      %v300 = vrot.slane %v298, 1
      %v301 = vor.u32 %v296, %v300
      %v303 = vshrl.u32 %v276, 16
      %v305 = vshll.u32 %v276, 16
      %v307 = vrot.slane %v305, 1
      %v308 = vor.u32 %v303, %v307
      %v310 = vshrl.u32 %v277, 16
      %v312 = vshll.u32 %v277, 16
      %v314 = vrot.slane %v312, 1
      %v315 = vor.u32 %v310, %v314
      %v317 = vshrl.u32 %v278, 16
      %v319 = vshll.u32 %v278, 16
      %v321 = vrot.slane %v319, 1
      %v322 = vor.u32 %v317, %v321
      %v324 = vshrl.u32 %v279, 16
      %v326 = vshll.u32 %v279, 16
      %v328 = vrot.slane %v326, 1
      %v329 = vor.u32 %v324, %v328
      %v331 = vshrl.u32 %v280, 16
      %v333 = vshll.u32 %v280, 16
      %v335 = vrot.slane %v333, 1
      %v336 = vor.u32 %v331, %v335
      %v338 = vshrl.u32 %v281, 16
      %v340 = vshll.u32 %v281, 16
      %v342 = vrot.slane %v340, 1
      %v343 = vor.u32 %v338, %v342
      %v345 = vshrl.u32 %v282, 16
      %v347 = vshll.u32 %v282, 16
      %v349 = vrot.slane %v347, 1
      %v350 = vor.u32 %v345, %v349
      %v352 = vshrl.u32 %v283, 16
      %v354 = vshll.u32 %v283, 16
      %v356 = vrot.slane %v354, 1
      %v357 = vor.u32 %v352, %v356
      %v359 = vshrl.u32 %v284, 16
      %v361 = vshll.u32 %v284, 16
      %v363 = vrot.slane %v361, 1
      %v364 = vor.u32 %v359, %v363
      %v366 = vshrl.u32 %v285, 16
      %v368 = vshll.u32 %v285, 16
      %v370 = vrot.slane %v368, 1
      %v371 = vor.u32 %v366, %v370
      %v373 = vshrl.u32 %v286, 16
      %v375 = vshll.u32 %v286, 16
      %v377 = vrot.slane %v375, 1
      %v378 = vor.u32 %v373, %v377
      %v380 = vshrl.u32 %v287, 16
      %v382 = vshll.u32 %v287, 16
      %v384 = vrot.slane %v382, 1
      %v385 = vor.u32 %v380, %v384
      %386 = vrot.lane.b32.xlu0 %v294, 3
      %v387 = vpop.permute.xlu0 %386
      %388 = vrot.lane.b32.xlu0 %v301, 3
      %v389 = vpop.permute.xlu0 %388
      %390 = vrot.lane.b32.xlu0 %v308, 3
      %v391 = vpop.permute.xlu0 %390
      %392 = vrot.lane.b32.xlu0 %v315, 3
      %v393 = vpop.permute.xlu0 %392
      %394 = vrot.lane.b32.xlu0 %v322, 3
      %v395 = vpop.permute.xlu0 %394
      %396 = vrot.lane.b32.xlu0 %v329, 3
      %v397 = vpop.permute.xlu0 %396
      %398 = vrot.lane.b32.xlu0 %v336, 3
      %v399 = vpop.permute.xlu0 %398
      %400 = vrot.lane.b32.xlu0 %v343, 3
      %v401 = vpop.permute.xlu0 %400
      %402 = vrot.lane.b32.xlu0 %v350, 3
      %v403 = vpop.permute.xlu0 %402
      %404 = vrot.lane.b32.xlu0 %v357, 3
      %v405 = vpop.permute.xlu0 %404
      %406 = vrot.lane.b32.xlu0 %v364, 3
      %v407 = vpop.permute.xlu0 %406
      %408 = vrot.lane.b32.xlu0 %v371, 3
      %v409 = vpop.permute.xlu0 %408
      %410 = vrot.lane.b32.xlu0 %v378, 3
      %v411 = vpop.permute.xlu0 %410
      %412 = vrot.lane.b32.xlu0 %v385, 3
      %v413 = vpop.permute.xlu0 %412
      %v428 = vrot.slane %v274, 1
      %v429 = vrot.slane %v275, 1
      %v430 = vrot.slane %v276, 1
      %v431 = vrot.slane %v277, 1
      %v432 = vrot.slane %v278, 1
      %v433 = vrot.slane %v279, 1
      %v434 = vrot.slane %v280, 1
      %v435 = vrot.slane %v281, 1
      %v436 = vrot.slane %v282, 1
      %v437 = vrot.slane %v283, 1
      %v438 = vrot.slane %v284, 1
      %v439 = vrot.slane %v285, 1
      %v440 = vrot.slane %v286, 1
      %v441 = vrot.slane %v287, 1
      %442 = vrot.lane.b32.xlu0 %v428, 6
      %v443 = vpop.permute.xlu0 %442
      %444 = vrot.lane.b32.xlu0 %v429, 6
      %v445 = vpop.permute.xlu0 %444
      %446 = vrot.lane.b32.xlu0 %v430, 6
      %v447 = vpop.permute.xlu0 %446
      %448 = vrot.lane.b32.xlu0 %v431, 6
      %v449 = vpop.permute.xlu0 %448
      %450 = vrot.lane.b32.xlu0 %v432, 6
      %v451 = vpop.permute.xlu0 %450
      %452 = vrot.lane.b32.xlu0 %v433, 6
      %v453 = vpop.permute.xlu0 %452
      %454 = vrot.lane.b32.xlu0 %v434, 6
      %v455 = vpop.permute.xlu0 %454
      %456 = vrot.lane.b32.xlu0 %v435, 6
      %v457 = vpop.permute.xlu0 %456
      %458 = vrot.lane.b32.xlu0 %v436, 6
      %v459 = vpop.permute.xlu0 %458
      %460 = vrot.lane.b32.xlu0 %v437, 6
      %v461 = vpop.permute.xlu0 %460
      %462 = vrot.lane.b32.xlu0 %v438, 6
      %v463 = vpop.permute.xlu0 %462
      %464 = vrot.lane.b32.xlu0 %v439, 6
      %v465 = vpop.permute.xlu0 %464
      %466 = vrot.lane.b32.xlu0 %v440, 6
      %v467 = vpop.permute.xlu0 %466
      %468 = vrot.lane.b32.xlu0 %v441, 6
      %v469 = vpop.permute.xlu0 %468
      %vm470 = vcmask 23552
      %v472 = vsel %vm470, %v274, %v387
      %v474 = vsel %vm470, %v275, %v389
      %v476 = vsel %vm470, %v276, %v391
      %v478 = vsel %vm470, %v277, %v393
      %v480 = vsel %vm470, %v278, %v395
      %v482 = vsel %vm470, %v279, %v397
      %v484 = vsel %vm470, %v280, %v399
      %v486 = vsel %vm470, %v281, %v401
      %v488 = vsel %vm470, %v282, %v403
      %v490 = vsel %vm470, %v283, %v405
      %v492 = vsel %vm470, %v284, %v407
      %v494 = vsel %vm470, %v285, %v409
      %v496 = vsel %vm470, %v286, %v411
      %v498 = vsel %vm470, %v287, %v413
      %vm499 = vcmask 48128
      %v501 = vsel %vm499, %v472, %v443
      %v503 = vsel %vm499, %v474, %v445
      %v505 = vsel %vm499, %v476, %v447
      %v507 = vsel %vm499, %v478, %v449
      %v509 = vsel %vm499, %v480, %v451
      %v511 = vsel %vm499, %v482, %v453
      %v513 = vsel %vm499, %v484, %v455
      %v515 = vsel %vm499, %v486, %v457
      %v517 = vsel %vm499, %v488, %v459
      %v519 = vsel %vm499, %v490, %v461
      %v521 = vsel %vm499, %v492, %v463
      %v523 = vsel %vm499, %v494, %v465
      %v525 = vsel %vm499, %v496, %v467
      %v527 = vsel %vm499, %v498, %v469
      %v542 = vcombine.high %v501, %v501
      %v544 = vunpack.c.l.s4 1966171168
      %v545 = vunpack.c.0.s8 %v544
      %v546 = vlaneseq
      %v547 = vshrl.u32 %v546, 7
      %v548 = vsub.s32 %v545, %v547
      %v549 = vrot.slane %v501, %v548
      %v551 = vunpack.c.l.s4 1966171168
      %v552 = vunpack.c.0.s8 %v551
      %v553 = vlaneseq
      %v554 = vshrl.u32 %v553, 7
      %v555 = vsub.s32 %v552, %v554
      %v556 = vrot.slane %v542, %v555
      %v557 = vcombine.high %v549, %v549
      %v558 = vcombine.high %v556, %v556
      %v560 = vunpack.c.l.s4 1966171168
      %v561 = vunpack.c.0.s8 %v560
      %v562 = vlaneseq
      %v563 = vshrl.u32 %v562, 7
      %v564 = vsub.s32 %v561, %v563
      %v565 = vrot.slane %v549, %v564
      %v567 = vunpack.c.l.s4 1966171168
      %v568 = vunpack.c.0.s8 %v567
      %v569 = vlaneseq
      %v570 = vshrl.u32 %v569, 7
      %v571 = vsub.s32 %v568, %v570
      %v572 = vrot.slane %v556, %v571
      %v574 = vunpack.c.l.s4 1966171168
      %v575 = vunpack.c.0.s8 %v574
      %v576 = vlaneseq
      %v577 = vshrl.u32 %v576, 7
      %v578 = vsub.s32 %v575, %v577
      %v579 = vrot.slane %v557, %v578
      %v581 = vunpack.c.l.s4 1966171168
      %v582 = vunpack.c.0.s8 %v581
      %v583 = vlaneseq
      %v584 = vshrl.u32 %v583, 7
      %v585 = vsub.s32 %v582, %v584
      %v586 = vrot.slane %v558, %v585
      %v587 = vcombine.high %v565, %v565
      %v588 = vcombine.high %v572, %v572
      %v589 = vcombine.high %v579, %v579
      %v590 = vcombine.high %v503, %v503
      %v592 = vunpack.c.l.s4 1966171168
      %v593 = vunpack.c.0.s8 %v592
      %v594 = vlaneseq
      %v595 = vshrl.u32 %v594, 7
      %v596 = vsub.s32 %v593, %v595
      %v597 = vrot.slane %v503, %v596
      %v599 = vunpack.c.l.s4 1966171168
      %v600 = vunpack.c.0.s8 %v599
      %v601 = vlaneseq
      %v602 = vshrl.u32 %v601, 7
      %v603 = vsub.s32 %v600, %v602
      %v604 = vrot.slane %v590, %v603
      %v605 = vcombine.high %v597, %v597
      %v606 = vcombine.high %v604, %v604
      %v608 = vunpack.c.l.s4 1966171168
      %v609 = vunpack.c.0.s8 %v608
      %v610 = vlaneseq
      %v611 = vshrl.u32 %v610, 7
      %v612 = vsub.s32 %v609, %v611
      %v613 = vrot.slane %v597, %v612
      %v615 = vunpack.c.l.s4 1966171168
      %v616 = vunpack.c.0.s8 %v615
      %v617 = vlaneseq
      %v618 = vshrl.u32 %v617, 7
      %v619 = vsub.s32 %v616, %v618
      %v620 = vrot.slane %v604, %v619
      %v622 = vunpack.c.l.s4 1966171168
      %v623 = vunpack.c.0.s8 %v622
      %v624 = vlaneseq
      %v625 = vshrl.u32 %v624, 7
      %v626 = vsub.s32 %v623, %v625
      %v627 = vrot.slane %v605, %v626
      %v629 = vunpack.c.l.s4 1966171168
      %v630 = vunpack.c.0.s8 %v629
      %v631 = vlaneseq
      %v632 = vshrl.u32 %v631, 7
      %v633 = vsub.s32 %v630, %v632
      %v634 = vrot.slane %v606, %v633
      %v635 = vcombine.high %v613, %v613
      %v636 = vcombine.high %v620, %v620
      %v637 = vcombine.high %v627, %v627
      %v638 = vcombine.high %v505, %v505
      %v640 = vunpack.c.l.s4 1966171168
      %v641 = vunpack.c.0.s8 %v640
      %v642 = vlaneseq
      %v643 = vshrl.u32 %v642, 7
      %v644 = vsub.s32 %v641, %v643
      %v645 = vrot.slane %v505, %v644
      %v647 = vunpack.c.l.s4 1966171168
      %v648 = vunpack.c.0.s8 %v647
      %v649 = vlaneseq
      %v650 = vshrl.u32 %v649, 7
      %v651 = vsub.s32 %v648, %v650
      %v652 = vrot.slane %v638, %v651
      %v653 = vcombine.high %v645, %v645
      %v654 = vcombine.high %v652, %v652
      %v656 = vunpack.c.l.s4 1966171168
      %v657 = vunpack.c.0.s8 %v656
      %v658 = vlaneseq
      %v659 = vshrl.u32 %v658, 7
      %v660 = vsub.s32 %v657, %v659
      %v661 = vrot.slane %v645, %v660
      %v663 = vunpack.c.l.s4 1966171168
      %v664 = vunpack.c.0.s8 %v663
      %v665 = vlaneseq
      %v666 = vshrl.u32 %v665, 7
      %v667 = vsub.s32 %v664, %v666
      %v668 = vrot.slane %v652, %v667
      %v670 = vunpack.c.l.s4 1966171168
      %v671 = vunpack.c.0.s8 %v670
      %v672 = vlaneseq
      %v673 = vshrl.u32 %v672, 7
      %v674 = vsub.s32 %v671, %v673
      %v675 = vrot.slane %v653, %v674
      %v677 = vunpack.c.l.s4 1966171168
      %v678 = vunpack.c.0.s8 %v677
      %v679 = vlaneseq
      %v680 = vshrl.u32 %v679, 7
      %v681 = vsub.s32 %v678, %v680
      %v682 = vrot.slane %v654, %v681
      %v683 = vcombine.high %v661, %v661
      %v684 = vcombine.high %v668, %v668
      %v685 = vcombine.high %v675, %v675
      %v686 = vcombine.high %v507, %v507
      %v688 = vunpack.c.l.s4 1966171168
      %v689 = vunpack.c.0.s8 %v688
      %v690 = vlaneseq
      %v691 = vshrl.u32 %v690, 7
      %v692 = vsub.s32 %v689, %v691
      %v693 = vrot.slane %v507, %v692
      %v695 = vunpack.c.l.s4 1966171168
      %v696 = vunpack.c.0.s8 %v695
      %v697 = vlaneseq
      %v698 = vshrl.u32 %v697, 7
      %v699 = vsub.s32 %v696, %v698
      %v700 = vrot.slane %v686, %v699
      %v701 = vcombine.high %v693, %v693
      %v702 = vcombine.high %v700, %v700
      %v704 = vunpack.c.l.s4 1966171168
      %v705 = vunpack.c.0.s8 %v704
      %v706 = vlaneseq
      %v707 = vshrl.u32 %v706, 7
      %v708 = vsub.s32 %v705, %v707
      %v709 = vrot.slane %v693, %v708
      %v711 = vunpack.c.l.s4 1966171168
      %v712 = vunpack.c.0.s8 %v711
      %v713 = vlaneseq
      %v714 = vshrl.u32 %v713, 7
      %v715 = vsub.s32 %v712, %v714
      %v716 = vrot.slane %v700, %v715
      %v718 = vunpack.c.l.s4 1966171168
      %v719 = vunpack.c.0.s8 %v718
      %v720 = vlaneseq
      %v721 = vshrl.u32 %v720, 7
      %v722 = vsub.s32 %v719, %v721
      %v723 = vrot.slane %v701, %v722
      %v725 = vunpack.c.l.s4 1966171168
      %v726 = vunpack.c.0.s8 %v725
      %v727 = vlaneseq
      %v728 = vshrl.u32 %v727, 7
      %v729 = vsub.s32 %v726, %v728
      %v730 = vrot.slane %v702, %v729
      %v731 = vcombine.high %v709, %v709
      %v732 = vcombine.high %v716, %v716
      %v733 = vcombine.high %v723, %v723
      %v734 = vcombine.high %v509, %v509
      %v736 = vunpack.c.l.s4 1966171168
      %v737 = vunpack.c.0.s8 %v736
      %v738 = vlaneseq
      %v739 = vshrl.u32 %v738, 7
      %v740 = vsub.s32 %v737, %v739
      %v741 = vrot.slane %v509, %v740
      %v743 = vunpack.c.l.s4 1966171168
      %v744 = vunpack.c.0.s8 %v743
      %v745 = vlaneseq
      %v746 = vshrl.u32 %v745, 7
      %v747 = vsub.s32 %v744, %v746
      %v748 = vrot.slane %v734, %v747
      %v749 = vcombine.high %v741, %v741
      %v750 = vcombine.high %v748, %v748
      %v752 = vunpack.c.l.s4 1966171168
      %v753 = vunpack.c.0.s8 %v752
      %v754 = vlaneseq
      %v755 = vshrl.u32 %v754, 7
      %v756 = vsub.s32 %v753, %v755
      %v757 = vrot.slane %v741, %v756
      %v759 = vunpack.c.l.s4 1966171168
      %v760 = vunpack.c.0.s8 %v759
      %v761 = vlaneseq
      %v762 = vshrl.u32 %v761, 7
      %v763 = vsub.s32 %v760, %v762
      %v764 = vrot.slane %v748, %v763
      %v766 = vunpack.c.l.s4 1966171168
      %v767 = vunpack.c.0.s8 %v766
      %v768 = vlaneseq
      %v769 = vshrl.u32 %v768, 7
      %v770 = vsub.s32 %v767, %v769
      %v771 = vrot.slane %v749, %v770
      %v773 = vunpack.c.l.s4 1966171168
      %v774 = vunpack.c.0.s8 %v773
      %v775 = vlaneseq
      %v776 = vshrl.u32 %v775, 7
      %v777 = vsub.s32 %v774, %v776
      %v778 = vrot.slane %v750, %v777
      %v779 = vcombine.high %v757, %v757
      %v780 = vcombine.high %v764, %v764
      %v781 = vcombine.high %v771, %v771
      %v782 = vcombine.high %v511, %v511
      %v784 = vunpack.c.l.s4 1966171168
      %v785 = vunpack.c.0.s8 %v784
      %v786 = vlaneseq
      %v787 = vshrl.u32 %v786, 7
      %v788 = vsub.s32 %v785, %v787
      %v789 = vrot.slane %v511, %v788
      %v791 = vunpack.c.l.s4 1966171168
      %v792 = vunpack.c.0.s8 %v791
      %v793 = vlaneseq
      %v794 = vshrl.u32 %v793, 7
      %v795 = vsub.s32 %v792, %v794
      %v796 = vrot.slane %v782, %v795
      %v797 = vcombine.high %v789, %v789
      %v798 = vcombine.high %v796, %v796
      %v800 = vunpack.c.l.s4 1966171168
      %v801 = vunpack.c.0.s8 %v800
      %v802 = vlaneseq
      %v803 = vshrl.u32 %v802, 7
      %v804 = vsub.s32 %v801, %v803
      %v805 = vrot.slane %v789, %v804
      %v807 = vunpack.c.l.s4 1966171168
      %v808 = vunpack.c.0.s8 %v807
      %v809 = vlaneseq
      %v810 = vshrl.u32 %v809, 7
      %v811 = vsub.s32 %v808, %v810
      %v812 = vrot.slane %v796, %v811
      %v814 = vunpack.c.l.s4 1966171168
      %v815 = vunpack.c.0.s8 %v814
      %v816 = vlaneseq
      %v817 = vshrl.u32 %v816, 7
      %v818 = vsub.s32 %v815, %v817
      %v819 = vrot.slane %v797, %v818
      %v821 = vunpack.c.l.s4 1966171168
      %v822 = vunpack.c.0.s8 %v821
      %v823 = vlaneseq
      %v824 = vshrl.u32 %v823, 7
      %v825 = vsub.s32 %v822, %v824
      %v826 = vrot.slane %v798, %v825
      %v827 = vcombine.high %v805, %v805
      %v828 = vcombine.high %v812, %v812
      %v829 = vcombine.high %v819, %v819
      %v830 = vcombine.high %v513, %v513
      %v832 = vunpack.c.l.s4 1966171168
      %v833 = vunpack.c.0.s8 %v832
      %v834 = vlaneseq
      %v835 = vshrl.u32 %v834, 7
      %v836 = vsub.s32 %v833, %v835
      %v837 = vrot.slane %v513, %v836
      %v839 = vunpack.c.l.s4 1966171168
      %v840 = vunpack.c.0.s8 %v839
      %v841 = vlaneseq
      %v842 = vshrl.u32 %v841, 7
      %v843 = vsub.s32 %v840, %v842
      %v844 = vrot.slane %v830, %v843
      %v845 = vcombine.high %v837, %v837
      %v846 = vcombine.high %v844, %v844
      %v848 = vunpack.c.l.s4 1966171168
      %v849 = vunpack.c.0.s8 %v848
      %v850 = vlaneseq
      %v851 = vshrl.u32 %v850, 7
      %v852 = vsub.s32 %v849, %v851
      %v853 = vrot.slane %v837, %v852
      %v855 = vunpack.c.l.s4 1966171168
      %v856 = vunpack.c.0.s8 %v855
      %v857 = vlaneseq
      %v858 = vshrl.u32 %v857, 7
      %v859 = vsub.s32 %v856, %v858
      %v860 = vrot.slane %v844, %v859
      %v862 = vunpack.c.l.s4 1966171168
      %v863 = vunpack.c.0.s8 %v862
      %v864 = vlaneseq
      %v865 = vshrl.u32 %v864, 7
      %v866 = vsub.s32 %v863, %v865
      %v867 = vrot.slane %v845, %v866
      %v869 = vunpack.c.l.s4 1966171168
      %v870 = vunpack.c.0.s8 %v869
      %v871 = vlaneseq
      %v872 = vshrl.u32 %v871, 7
      %v873 = vsub.s32 %v870, %v872
      %v874 = vrot.slane %v846, %v873
      %v875 = vcombine.high %v853, %v853
      %v876 = vcombine.high %v860, %v860
      %v877 = vcombine.high %v867, %v867
      %v878 = vcombine.high %v515, %v515
      %v880 = vunpack.c.l.s4 1966171168
      %v881 = vunpack.c.0.s8 %v880
      %v882 = vlaneseq
      %v883 = vshrl.u32 %v882, 7
      %v884 = vsub.s32 %v881, %v883
      %v885 = vrot.slane %v515, %v884
      %v887 = vunpack.c.l.s4 1966171168
      %v888 = vunpack.c.0.s8 %v887
      %v889 = vlaneseq
      %v890 = vshrl.u32 %v889, 7
      %v891 = vsub.s32 %v888, %v890
      %v892 = vrot.slane %v878, %v891
      %v893 = vcombine.high %v885, %v885
      %v894 = vcombine.high %v892, %v892
      %v896 = vunpack.c.l.s4 1966171168
      %v897 = vunpack.c.0.s8 %v896
      %v898 = vlaneseq
      %v899 = vshrl.u32 %v898, 7
      %v900 = vsub.s32 %v897, %v899
      %v901 = vrot.slane %v885, %v900
      %v903 = vunpack.c.l.s4 1966171168
      %v904 = vunpack.c.0.s8 %v903
      %v905 = vlaneseq
      %v906 = vshrl.u32 %v905, 7
      %v907 = vsub.s32 %v904, %v906
      %v908 = vrot.slane %v892, %v907
      %v910 = vunpack.c.l.s4 1966171168
      %v911 = vunpack.c.0.s8 %v910
      %v912 = vlaneseq
      %v913 = vshrl.u32 %v912, 7
      %v914 = vsub.s32 %v911, %v913
      %v915 = vrot.slane %v893, %v914
      %v917 = vunpack.c.l.s4 1966171168
      %v918 = vunpack.c.0.s8 %v917
      %v919 = vlaneseq
      %v920 = vshrl.u32 %v919, 7
      %v921 = vsub.s32 %v918, %v920
      %v922 = vrot.slane %v894, %v921
      %v923 = vcombine.high %v901, %v901
      %v924 = vcombine.high %v908, %v908
      %v925 = vcombine.high %v915, %v915
      %v926 = vcombine.high %v517, %v517
      %v928 = vunpack.c.l.s4 1966171168
      %v929 = vunpack.c.0.s8 %v928
      %v930 = vlaneseq
      %v931 = vshrl.u32 %v930, 7
      %v932 = vsub.s32 %v929, %v931
      %v933 = vrot.slane %v517, %v932
      %v935 = vunpack.c.l.s4 1966171168
      %v936 = vunpack.c.0.s8 %v935
      %v937 = vlaneseq
      %v938 = vshrl.u32 %v937, 7
      %v939 = vsub.s32 %v936, %v938
      %v940 = vrot.slane %v926, %v939
      %v941 = vcombine.high %v933, %v933
      %v942 = vcombine.high %v940, %v940
      %v944 = vunpack.c.l.s4 1966171168
      %v945 = vunpack.c.0.s8 %v944
      %v946 = vlaneseq
      %v947 = vshrl.u32 %v946, 7
      %v948 = vsub.s32 %v945, %v947
      %v949 = vrot.slane %v933, %v948
      %v951 = vunpack.c.l.s4 1966171168
      %v952 = vunpack.c.0.s8 %v951
      %v953 = vlaneseq
      %v954 = vshrl.u32 %v953, 7
      %v955 = vsub.s32 %v952, %v954
      %v956 = vrot.slane %v940, %v955
      %v958 = vunpack.c.l.s4 1966171168
      %v959 = vunpack.c.0.s8 %v958
      %v960 = vlaneseq
      %v961 = vshrl.u32 %v960, 7
      %v962 = vsub.s32 %v959, %v961
      %v963 = vrot.slane %v941, %v962
      %v965 = vunpack.c.l.s4 1966171168
      %v966 = vunpack.c.0.s8 %v965
      %v967 = vlaneseq
      %v968 = vshrl.u32 %v967, 7
      %v969 = vsub.s32 %v966, %v968
      %v970 = vrot.slane %v942, %v969
      %v971 = vcombine.high %v949, %v949
      %v972 = vcombine.high %v956, %v956
      %v973 = vcombine.high %v963, %v963
      %v974 = vcombine.high %v519, %v519
      %v976 = vunpack.c.l.s4 1966171168
      %v977 = vunpack.c.0.s8 %v976
      %v978 = vlaneseq
      %v979 = vshrl.u32 %v978, 7
      %v980 = vsub.s32 %v977, %v979
      %v981 = vrot.slane %v519, %v980
      %v983 = vunpack.c.l.s4 1966171168
      %v984 = vunpack.c.0.s8 %v983
      %v985 = vlaneseq
      %v986 = vshrl.u32 %v985, 7
      %v987 = vsub.s32 %v984, %v986
      %v988 = vrot.slane %v974, %v987
      %v989 = vcombine.high %v981, %v981
      %v990 = vcombine.high %v988, %v988
      %v992 = vunpack.c.l.s4 1966171168
      %v993 = vunpack.c.0.s8 %v992
      %v994 = vlaneseq
      %v995 = vshrl.u32 %v994, 7
      %v996 = vsub.s32 %v993, %v995
      %v997 = vrot.slane %v981, %v996
      %v999 = vunpack.c.l.s4 1966171168
      %v1000 = vunpack.c.0.s8 %v999
      %v1001 = vlaneseq
      %v1002 = vshrl.u32 %v1001, 7
      %v1003 = vsub.s32 %v1000, %v1002
      %v1004 = vrot.slane %v988, %v1003
      %v1006 = vunpack.c.l.s4 1966171168
      %v1007 = vunpack.c.0.s8 %v1006
      %v1008 = vlaneseq
      %v1009 = vshrl.u32 %v1008, 7
      %v1010 = vsub.s32 %v1007, %v1009
      %v1011 = vrot.slane %v989, %v1010
      %v1013 = vunpack.c.l.s4 1966171168
      %v1014 = vunpack.c.0.s8 %v1013
      %v1015 = vlaneseq
      %v1016 = vshrl.u32 %v1015, 7
      %v1017 = vsub.s32 %v1014, %v1016
      %v1018 = vrot.slane %v990, %v1017
      %v1019 = vcombine.high %v997, %v997
      %v1020 = vcombine.high %v1004, %v1004
      %v1021 = vcombine.high %v1011, %v1011
      %v1022 = vcombine.high %v521, %v521
      %v1024 = vunpack.c.l.s4 1966171168
      %v1025 = vunpack.c.0.s8 %v1024
      %v1026 = vlaneseq
      %v1027 = vshrl.u32 %v1026, 7
      %v1028 = vsub.s32 %v1025, %v1027
      %v1029 = vrot.slane %v521, %v1028
      %v1031 = vunpack.c.l.s4 1966171168
      %v1032 = vunpack.c.0.s8 %v1031
      %v1033 = vlaneseq
      %v1034 = vshrl.u32 %v1033, 7
      %v1035 = vsub.s32 %v1032, %v1034
      %v1036 = vrot.slane %v1022, %v1035
      %v1037 = vcombine.high %v1029, %v1029
      %v1038 = vcombine.high %v1036, %v1036
      %v1040 = vunpack.c.l.s4 1966171168
      %v1041 = vunpack.c.0.s8 %v1040
      %v1042 = vlaneseq
      %v1043 = vshrl.u32 %v1042, 7
      %v1044 = vsub.s32 %v1041, %v1043
      %v1045 = vrot.slane %v1029, %v1044
      %v1047 = vunpack.c.l.s4 1966171168
      %v1048 = vunpack.c.0.s8 %v1047
      %v1049 = vlaneseq
      %v1050 = vshrl.u32 %v1049, 7
      %v1051 = vsub.s32 %v1048, %v1050
      %v1052 = vrot.slane %v1036, %v1051
      %v1054 = vunpack.c.l.s4 1966171168
      %v1055 = vunpack.c.0.s8 %v1054
      %v1056 = vlaneseq
      %v1057 = vshrl.u32 %v1056, 7
      %v1058 = vsub.s32 %v1055, %v1057
      %v1059 = vrot.slane %v1037, %v1058
      %v1061 = vunpack.c.l.s4 1966171168
      %v1062 = vunpack.c.0.s8 %v1061
      %v1063 = vlaneseq
      %v1064 = vshrl.u32 %v1063, 7
      %v1065 = vsub.s32 %v1062, %v1064
      %v1066 = vrot.slane %v1038, %v1065
      %v1067 = vcombine.high %v1045, %v1045
      %v1068 = vcombine.high %v1052, %v1052
      %v1069 = vcombine.high %v1059, %v1059
      %v1070 = vcombine.high %v523, %v523
      %v1072 = vunpack.c.l.s4 1966171168
      %v1073 = vunpack.c.0.s8 %v1072
      %v1074 = vlaneseq
      %v1075 = vshrl.u32 %v1074, 7
      %v1076 = vsub.s32 %v1073, %v1075
      %v1077 = vrot.slane %v523, %v1076
      %v1079 = vunpack.c.l.s4 1966171168
      %v1080 = vunpack.c.0.s8 %v1079
      %v1081 = vlaneseq
      %v1082 = vshrl.u32 %v1081, 7
      %v1083 = vsub.s32 %v1080, %v1082
      %v1084 = vrot.slane %v1070, %v1083
      %v1085 = vcombine.high %v1077, %v1077
      %v1086 = vcombine.high %v1084, %v1084
      %v1088 = vunpack.c.l.s4 1966171168
      %v1089 = vunpack.c.0.s8 %v1088
      %v1090 = vlaneseq
      %v1091 = vshrl.u32 %v1090, 7
      %v1092 = vsub.s32 %v1089, %v1091
      %v1093 = vrot.slane %v1077, %v1092
      %v1095 = vunpack.c.l.s4 1966171168
      %v1096 = vunpack.c.0.s8 %v1095
      %v1097 = vlaneseq
      %v1098 = vshrl.u32 %v1097, 7
      %v1099 = vsub.s32 %v1096, %v1098
      %v1100 = vrot.slane %v1084, %v1099
      %v1102 = vunpack.c.l.s4 1966171168
      %v1103 = vunpack.c.0.s8 %v1102
      %v1104 = vlaneseq
      %v1105 = vshrl.u32 %v1104, 7
      %v1106 = vsub.s32 %v1103, %v1105
      %v1107 = vrot.slane %v1085, %v1106
      %v1109 = vunpack.c.l.s4 1966171168
      %v1110 = vunpack.c.0.s8 %v1109
      %v1111 = vlaneseq
      %v1112 = vshrl.u32 %v1111, 7
      %v1113 = vsub.s32 %v1110, %v1112
      %v1114 = vrot.slane %v1086, %v1113
      %v1115 = vcombine.high %v1093, %v1093
      %v1116 = vcombine.high %v1100, %v1100
      %v1117 = vcombine.high %v1107, %v1107
      %v1118 = vcombine.high %v525, %v525
      %v1120 = vunpack.c.l.s4 1966171168
      %v1121 = vunpack.c.0.s8 %v1120
      %v1122 = vlaneseq
      %v1123 = vshrl.u32 %v1122, 7
      %v1124 = vsub.s32 %v1121, %v1123
      %v1125 = vrot.slane %v525, %v1124
      %v1127 = vunpack.c.l.s4 1966171168
      %v1128 = vunpack.c.0.s8 %v1127
      %v1129 = vlaneseq
      %v1130 = vshrl.u32 %v1129, 7
      %v1131 = vsub.s32 %v1128, %v1130
      %v1132 = vrot.slane %v1118, %v1131
      %v1133 = vcombine.high %v1125, %v1125
      %v1134 = vcombine.high %v1132, %v1132
      %v1136 = vunpack.c.l.s4 1966171168
      %v1137 = vunpack.c.0.s8 %v1136
      %v1138 = vlaneseq
      %v1139 = vshrl.u32 %v1138, 7
      %v1140 = vsub.s32 %v1137, %v1139
      %v1141 = vrot.slane %v1125, %v1140
      %v1143 = vunpack.c.l.s4 1966171168
      %v1144 = vunpack.c.0.s8 %v1143
      %v1145 = vlaneseq
      %v1146 = vshrl.u32 %v1145, 7
      %v1147 = vsub.s32 %v1144, %v1146
      %v1148 = vrot.slane %v1132, %v1147
      %v1150 = vunpack.c.l.s4 1966171168
      %v1151 = vunpack.c.0.s8 %v1150
      %v1152 = vlaneseq
      %v1153 = vshrl.u32 %v1152, 7
      %v1154 = vsub.s32 %v1151, %v1153
      %v1155 = vrot.slane %v1133, %v1154
      %v1157 = vunpack.c.l.s4 1966171168
      %v1158 = vunpack.c.0.s8 %v1157
      %v1159 = vlaneseq
      %v1160 = vshrl.u32 %v1159, 7
      %v1161 = vsub.s32 %v1158, %v1160
      %v1162 = vrot.slane %v1134, %v1161
      %v1163 = vcombine.high %v1141, %v1141
      %v1164 = vcombine.high %v1148, %v1148
      %v1165 = vcombine.high %v1155, %v1155
      %v1166 = vcombine.high %v527, %v527
      %v1168 = vunpack.c.l.s4 1966171168
      %v1169 = vunpack.c.0.s8 %v1168
      %v1170 = vlaneseq
      %v1171 = vshrl.u32 %v1170, 7
      %v1172 = vsub.s32 %v1169, %v1171
      %v1173 = vrot.slane %v527, %v1172
      %v1175 = vunpack.c.l.s4 1966171168
      %v1176 = vunpack.c.0.s8 %v1175
      %v1177 = vlaneseq
      %v1178 = vshrl.u32 %v1177, 7
      %v1179 = vsub.s32 %v1176, %v1178
      %v1180 = vrot.slane %v1166, %v1179
      %v1181 = vcombine.high %v1173, %v1173
      %v1182 = vcombine.high %v1180, %v1180
      %v1184 = vunpack.c.l.s4 1966171168
      %v1185 = vunpack.c.0.s8 %v1184
      %v1186 = vlaneseq
      %v1187 = vshrl.u32 %v1186, 7
      %v1188 = vsub.s32 %v1185, %v1187
      %v1189 = vrot.slane %v1173, %v1188
      %v1191 = vunpack.c.l.s4 1966171168
      %v1192 = vunpack.c.0.s8 %v1191
      %v1193 = vlaneseq
      %v1194 = vshrl.u32 %v1193, 7
      %v1195 = vsub.s32 %v1192, %v1194
      %v1196 = vrot.slane %v1180, %v1195
      %v1198 = vunpack.c.l.s4 1966171168
      %v1199 = vunpack.c.0.s8 %v1198
      %v1200 = vlaneseq
      %v1201 = vshrl.u32 %v1200, 7
      %v1202 = vsub.s32 %v1199, %v1201
      %v1203 = vrot.slane %v1181, %v1202
      %v1205 = vunpack.c.l.s4 1966171168
      %v1206 = vunpack.c.0.s8 %v1205
      %v1207 = vlaneseq
      %v1208 = vshrl.u32 %v1207, 7
      %v1209 = vsub.s32 %v1206, %v1208
      %v1210 = vrot.slane %v1182, %v1209
      %v1211 = vcombine.high %v1189, %v1189
      %v1212 = vcombine.high %v1196, %v1196
      %v1213 = vcombine.high %v1203, %v1203
      %v1214 = vld [vmem:[%s1] sm:$0xf]
      %v1215 = vld [vmem:[%s1 + $0x4] sm:$0x1]
      %v1216 = vpack.c.bf16 %v271, %v270
      %v1218 = vshrl.u32 %v1216, 16
      %v1220 = vshll.u32 %v1216, 16
      %v1222 = vrot.slane %v1220, 1
      %v1223 = vor.u32 %v1218, %v1222
      %1224 = vrot.lane.b32.xlu0 %v1223, 3
      %v1225 = vpop.permute.xlu0 %1224
      %v1227 = vrot.slane %v1216, 1
      %1228 = vrot.lane.b32.xlu0 %v1227, 6
      %v1229 = vpop.permute.xlu0 %1228
      %v1231 = vsel %vm470, %v1216, %v1225
      %v1233 = vsel %vm499, %v1231, %v1229
      %v1235 = vcombine.high %v1233, %v1233
      %v1237 = vunpack.c.l.s4 1966171168
      %v1238 = vunpack.c.0.s8 %v1237
      %v1239 = vlaneseq
      %v1240 = vshrl.u32 %v1239, 7
      %v1241 = vsub.s32 %v1238, %v1240
      %v1242 = vrot.slane %v1233, %v1241
      %v1244 = vunpack.c.l.s4 1966171168
      %v1245 = vunpack.c.0.s8 %v1244
      %v1246 = vlaneseq
      %v1247 = vshrl.u32 %v1246, 7
      %v1248 = vsub.s32 %v1245, %v1247
      %v1249 = vrot.slane %v1235, %v1248
      %v1250 = vcombine.high %v1242, %v1242
      %v1251 = vcombine.high %v1249, %v1249
      %v1253 = vunpack.c.l.s4 1966171168
      %v1254 = vunpack.c.0.s8 %v1253
      %v1255 = vlaneseq
      %v1256 = vshrl.u32 %v1255, 7
      %v1257 = vsub.s32 %v1254, %v1256
      %v1258 = vrot.slane %v1242, %v1257
      %v1260 = vunpack.c.l.s4 1966171168
      %v1261 = vunpack.c.0.s8 %v1260
      %v1262 = vlaneseq
      %v1263 = vshrl.u32 %v1262, 7
      %v1264 = vsub.s32 %v1261, %v1263
      %v1265 = vrot.slane %v1249, %v1264
      %v1267 = vunpack.c.l.s4 1966171168
      %v1268 = vunpack.c.0.s8 %v1267
      %v1269 = vlaneseq
      %v1270 = vshrl.u32 %v1269, 7
      %v1271 = vsub.s32 %v1268, %v1270
      %v1272 = vrot.slane %v1250, %v1271
      %v1274 = vunpack.c.l.s4 1966171168
      %v1275 = vunpack.c.0.s8 %v1274
      %v1276 = vlaneseq
      %v1277 = vshrl.u32 %v1276, 7
      %v1278 = vsub.s32 %v1275, %v1277
      %v1279 = vrot.slane %v1251, %v1278
      %v1280 = vcombine.high %v1258, %v1258
      %v1281 = vcombine.high %v1265, %v1265
      %v1282 = vcombine.high %v1272, %v1272
      %s1283 = scalar_lea.vmem %s1, 8
      %v1284 = vld [vmem:[%s1283] sm:$0xf]
      %v1285 = vld [vmem:[%s1283 + $0x4] sm:$0x1]
      %v1286 = vcombine.low %v613, %v627
      %v1287 = vcombine.low %v635, %v637
      %v1288 = vcombine.low %v620, %v634
      %v1289 = vcombine.low %v636, %v661
      %v1291 = vunpack.c.l.s4 1966171168
      %v1292 = vunpack.c.0.s8 %v1291
      %v1293 = vlaneseq
      %v1294 = vshrl.u32 %v1293, 7
      %v1295 = vsub.s32 %v1292, %v1294
      %v1296 = vrot.slane %v1286, %v1295
      %v1298 = vunpack.c.l.s4 1966171168
      %v1299 = vunpack.c.0.s8 %v1298
      %v1300 = vlaneseq
      %v1301 = vshrl.u32 %v1300, 7
      %v1302 = vsub.s32 %v1299, %v1301
      %v1303 = vrot.slane %v1287, %v1302
      %v1305 = vunpack.c.l.s4 1966171168
      %v1306 = vunpack.c.0.s8 %v1305
      %v1307 = vlaneseq
      %v1308 = vshrl.u32 %v1307, 7
      %v1309 = vsub.s32 %v1306, %v1308
      %v1310 = vrot.slane %v1288, %v1309
      %v1312 = vunpack.c.l.s4 1966171168
      %v1313 = vunpack.c.0.s8 %v1312
      %v1314 = vlaneseq
      %v1315 = vshrl.u32 %v1314, 7
      %v1316 = vsub.s32 %v1313, %v1315
      %v1317 = vrot.slane %v1289, %v1316
      %v1318 = vcombine.low %v1296, %v1303
      %v1319 = vcombine.low %v1310, %v1317
      %v1321 = vunpack.c.l.s4 1966171168
      %v1322 = vunpack.c.0.s8 %v1321
      %v1323 = vlaneseq
      %v1324 = vshrl.u32 %v1323, 7
      %v1325 = vsub.s32 %v1322, %v1324
      %v1326 = vrot.slane %v1318, %v1325
      %v1328 = vunpack.c.l.s4 1966171168
      %v1329 = vunpack.c.0.s8 %v1328
      %v1330 = vlaneseq
      %v1331 = vshrl.u32 %v1330, 7
      %v1332 = vsub.s32 %v1329, %v1331
      %v1333 = vrot.slane %v1319, %v1332
      %v1334 = vcombine.low %v1326, %v1333
      %v1335 = vcombine.low %v675, %v683
      %v1336 = vcombine.low %v685, %v668
      %v1337 = vcombine.low %v682, %v684
      %v1338 = vcombine.low %v709, %v723
      %v1340 = vunpack.c.l.s4 1966171168
      %v1341 = vunpack.c.0.s8 %v1340
      %v1342 = vlaneseq
      %v1343 = vshrl.u32 %v1342, 7
      %v1344 = vsub.s32 %v1341, %v1343
      %v1345 = vrot.slane %v1335, %v1344
      %v1347 = vunpack.c.l.s4 1966171168
      %v1348 = vunpack.c.0.s8 %v1347
      %v1349 = vlaneseq
      %v1350 = vshrl.u32 %v1349, 7
      %v1351 = vsub.s32 %v1348, %v1350
      %v1352 = vrot.slane %v1336, %v1351
      %v1354 = vunpack.c.l.s4 1966171168
      %v1355 = vunpack.c.0.s8 %v1354
      %v1356 = vlaneseq
      %v1357 = vshrl.u32 %v1356, 7
      %v1358 = vsub.s32 %v1355, %v1357
      %v1359 = vrot.slane %v1337, %v1358
      %v1361 = vunpack.c.l.s4 1966171168
      %v1362 = vunpack.c.0.s8 %v1361
      %v1363 = vlaneseq
      %v1364 = vshrl.u32 %v1363, 7
      %v1365 = vsub.s32 %v1362, %v1364
      %v1366 = vrot.slane %v1338, %v1365
      %v1367 = vcombine.low %v1345, %v1352
      %v1368 = vcombine.low %v1359, %v1366
      %v1370 = vunpack.c.l.s4 1966171168
      %v1371 = vunpack.c.0.s8 %v1370
      %v1372 = vlaneseq
      %v1373 = vshrl.u32 %v1372, 7
      %v1374 = vsub.s32 %v1371, %v1373
      %v1375 = vrot.slane %v1367, %v1374
      %v1377 = vunpack.c.l.s4 1966171168
      %v1378 = vunpack.c.0.s8 %v1377
      %v1379 = vlaneseq
      %v1380 = vshrl.u32 %v1379, 7
      %v1381 = vsub.s32 %v1378, %v1380
      %v1382 = vrot.slane %v1368, %v1381
      %v1383 = vcombine.low %v1375, %v1382
      %v1384 = vcombine.low %v731, %v733
      %v1385 = vcombine.low %v716, %v730
      %v1386 = vcombine.low %v732, %v757
      %v1387 = vcombine.low %v771, %v779
      %v1389 = vunpack.c.l.s4 1966171168
      %v1390 = vunpack.c.0.s8 %v1389
      %v1391 = vlaneseq
      %v1392 = vshrl.u32 %v1391, 7
      %v1393 = vsub.s32 %v1390, %v1392
      %v1394 = vrot.slane %v1384, %v1393
      %v1396 = vunpack.c.l.s4 1966171168
      %v1397 = vunpack.c.0.s8 %v1396
      %v1398 = vlaneseq
      %v1399 = vshrl.u32 %v1398, 7
      %v1400 = vsub.s32 %v1397, %v1399
      %v1401 = vrot.slane %v1385, %v1400
      %v1403 = vunpack.c.l.s4 1966171168
      %v1404 = vunpack.c.0.s8 %v1403
      %v1405 = vlaneseq
      %v1406 = vshrl.u32 %v1405, 7
      %v1407 = vsub.s32 %v1404, %v1406
      %v1408 = vrot.slane %v1386, %v1407
      %v1410 = vunpack.c.l.s4 1966171168
      %v1411 = vunpack.c.0.s8 %v1410
      %v1412 = vlaneseq
      %v1413 = vshrl.u32 %v1412, 7
      %v1414 = vsub.s32 %v1411, %v1413
      %v1415 = vrot.slane %v1387, %v1414
      %v1416 = vcombine.low %v1394, %v1401
      %v1417 = vcombine.low %v1408, %v1415
      %v1419 = vunpack.c.l.s4 1966171168
      %v1420 = vunpack.c.0.s8 %v1419
      %v1421 = vlaneseq
      %v1422 = vshrl.u32 %v1421, 7
      %v1423 = vsub.s32 %v1420, %v1422
      %v1424 = vrot.slane %v1416, %v1423
      %v1426 = vunpack.c.l.s4 1966171168
      %v1427 = vunpack.c.0.s8 %v1426
      %v1428 = vlaneseq
      %v1429 = vshrl.u32 %v1428, 7
      %v1430 = vsub.s32 %v1427, %v1429
      %v1431 = vrot.slane %v1417, %v1430
      %v1432 = vcombine.low %v1424, %v1431
      %v1433 = vcombine.low %v781, %v764
      %v1434 = vcombine.low %v778, %v780
      %v1435 = vcombine.low %v805, %v819
      %v1436 = vcombine.low %v827, %v829
      %v1438 = vunpack.c.l.s4 1966171168
      %v1439 = vunpack.c.0.s8 %v1438
      %v1440 = vlaneseq
      %v1441 = vshrl.u32 %v1440, 7
      %v1442 = vsub.s32 %v1439, %v1441
      %v1443 = vrot.slane %v1433, %v1442
      %v1445 = vunpack.c.l.s4 1966171168
      %v1446 = vunpack.c.0.s8 %v1445
      %v1447 = vlaneseq
      %v1448 = vshrl.u32 %v1447, 7
      %v1449 = vsub.s32 %v1446, %v1448
      %v1450 = vrot.slane %v1434, %v1449
      %v1452 = vunpack.c.l.s4 1966171168
      %v1453 = vunpack.c.0.s8 %v1452
      %v1454 = vlaneseq
      %v1455 = vshrl.u32 %v1454, 7
      %v1456 = vsub.s32 %v1453, %v1455
      %v1457 = vrot.slane %v1435, %v1456
      %v1459 = vunpack.c.l.s4 1966171168
      %v1460 = vunpack.c.0.s8 %v1459
      %v1461 = vlaneseq
      %v1462 = vshrl.u32 %v1461, 7
      %v1463 = vsub.s32 %v1460, %v1462
      %v1464 = vrot.slane %v1436, %v1463
      %v1465 = vcombine.low %v1443, %v1450
      %v1466 = vcombine.low %v1457, %v1464
      %v1468 = vunpack.c.l.s4 1966171168
      %v1469 = vunpack.c.0.s8 %v1468
      %v1470 = vlaneseq
      %v1471 = vshrl.u32 %v1470, 7
      %v1472 = vsub.s32 %v1469, %v1471
      %v1473 = vrot.slane %v1465, %v1472
      %v1475 = vunpack.c.l.s4 1966171168
      %v1476 = vunpack.c.0.s8 %v1475
      %v1477 = vlaneseq
      %v1478 = vshrl.u32 %v1477, 7
      %v1479 = vsub.s32 %v1476, %v1478
      %v1480 = vrot.slane %v1466, %v1479
      %v1481 = vcombine.low %v1473, %v1480
      %v1482 = vcombine.low %v812, %v826
      %v1483 = vcombine.low %v828, %v853
      %v1484 = vcombine.low %v867, %v875
      %v1485 = vcombine.low %v877, %v860
      %v1487 = vunpack.c.l.s4 1966171168
      %v1488 = vunpack.c.0.s8 %v1487
      %v1489 = vlaneseq
      %v1490 = vshrl.u32 %v1489, 7
      %v1491 = vsub.s32 %v1488, %v1490
      %v1492 = vrot.slane %v1482, %v1491
      %v1494 = vunpack.c.l.s4 1966171168
      %v1495 = vunpack.c.0.s8 %v1494
      %v1496 = vlaneseq
      %v1497 = vshrl.u32 %v1496, 7
      %v1498 = vsub.s32 %v1495, %v1497
      %v1499 = vrot.slane %v1483, %v1498
      %v1501 = vunpack.c.l.s4 1966171168
      %v1502 = vunpack.c.0.s8 %v1501
      %v1503 = vlaneseq
      %v1504 = vshrl.u32 %v1503, 7
      %v1505 = vsub.s32 %v1502, %v1504
      %v1506 = vrot.slane %v1484, %v1505
      %v1508 = vunpack.c.l.s4 1966171168
      %v1509 = vunpack.c.0.s8 %v1508
      %v1510 = vlaneseq
      %v1511 = vshrl.u32 %v1510, 7
      %v1512 = vsub.s32 %v1509, %v1511
      %v1513 = vrot.slane %v1485, %v1512
      %v1514 = vcombine.low %v1492, %v1499
      %v1515 = vcombine.low %v1506, %v1513
      %v1517 = vunpack.c.l.s4 1966171168
      %v1518 = vunpack.c.0.s8 %v1517
      %v1519 = vlaneseq
      %v1520 = vshrl.u32 %v1519, 7
      %v1521 = vsub.s32 %v1518, %v1520
      %v1522 = vrot.slane %v1514, %v1521
      %v1524 = vunpack.c.l.s4 1966171168
      %v1525 = vunpack.c.0.s8 %v1524
      %v1526 = vlaneseq
      %v1527 = vshrl.u32 %v1526, 7
      %v1528 = vsub.s32 %v1525, %v1527
      %v1529 = vrot.slane %v1515, %v1528
      %v1530 = vcombine.low %v1522, %v1529
      %v1531 = vcombine.low %v874, %v876
      %v1532 = vcombine.low %v901, %v915
      %v1533 = vcombine.low %v923, %v925
      %v1534 = vcombine.low %v908, %v922
      %v1536 = vunpack.c.l.s4 1966171168
      %v1537 = vunpack.c.0.s8 %v1536
      %v1538 = vlaneseq
      %v1539 = vshrl.u32 %v1538, 7
      %v1540 = vsub.s32 %v1537, %v1539
      %v1541 = vrot.slane %v1531, %v1540
      %v1543 = vunpack.c.l.s4 1966171168
      %v1544 = vunpack.c.0.s8 %v1543
      %v1545 = vlaneseq
      %v1546 = vshrl.u32 %v1545, 7
      %v1547 = vsub.s32 %v1544, %v1546
      %v1548 = vrot.slane %v1532, %v1547
      %v1550 = vunpack.c.l.s4 1966171168
      %v1551 = vunpack.c.0.s8 %v1550
      %v1552 = vlaneseq
      %v1553 = vshrl.u32 %v1552, 7
      %v1554 = vsub.s32 %v1551, %v1553
      %v1555 = vrot.slane %v1533, %v1554
      %v1557 = vunpack.c.l.s4 1966171168
      %v1558 = vunpack.c.0.s8 %v1557
      %v1559 = vlaneseq
      %v1560 = vshrl.u32 %v1559, 7
      %v1561 = vsub.s32 %v1558, %v1560
      %v1562 = vrot.slane %v1534, %v1561
      %v1563 = vcombine.low %v1541, %v1548
      %v1564 = vcombine.low %v1555, %v1562
      %v1566 = vunpack.c.l.s4 1966171168
      %v1567 = vunpack.c.0.s8 %v1566
      %v1568 = vlaneseq
      %v1569 = vshrl.u32 %v1568, 7
      %v1570 = vsub.s32 %v1567, %v1569
      %v1571 = vrot.slane %v1563, %v1570
      %v1573 = vunpack.c.l.s4 1966171168
      %v1574 = vunpack.c.0.s8 %v1573
      %v1575 = vlaneseq
      %v1576 = vshrl.u32 %v1575, 7
      %v1577 = vsub.s32 %v1574, %v1576
      %v1578 = vrot.slane %v1564, %v1577
      %v1579 = vcombine.low %v1571, %v1578
      %v1580 = vcombine.low %v924, %v949
      %v1581 = vcombine.low %v963, %v971
      %v1582 = vcombine.low %v973, %v956
      %v1583 = vcombine.low %v970, %v972
      %v1585 = vunpack.c.l.s4 1966171168
      %v1586 = vunpack.c.0.s8 %v1585
      %v1587 = vlaneseq
      %v1588 = vshrl.u32 %v1587, 7
      %v1589 = vsub.s32 %v1586, %v1588
      %v1590 = vrot.slane %v1580, %v1589
      %v1592 = vunpack.c.l.s4 1966171168
      %v1593 = vunpack.c.0.s8 %v1592
      %v1594 = vlaneseq
      %v1595 = vshrl.u32 %v1594, 7
      %v1596 = vsub.s32 %v1593, %v1595
      %v1597 = vrot.slane %v1581, %v1596
      %v1599 = vunpack.c.l.s4 1966171168
      %v1600 = vunpack.c.0.s8 %v1599
      %v1601 = vlaneseq
      %v1602 = vshrl.u32 %v1601, 7
      %v1603 = vsub.s32 %v1600, %v1602
      %v1604 = vrot.slane %v1582, %v1603
      %v1606 = vunpack.c.l.s4 1966171168
      %v1607 = vunpack.c.0.s8 %v1606
      %v1608 = vlaneseq
      %v1609 = vshrl.u32 %v1608, 7
      %v1610 = vsub.s32 %v1607, %v1609
      %v1611 = vrot.slane %v1583, %v1610
      %v1612 = vcombine.low %v1590, %v1597
      %v1613 = vcombine.low %v1604, %v1611
      %v1615 = vunpack.c.l.s4 1966171168
      %v1616 = vunpack.c.0.s8 %v1615
      %v1617 = vlaneseq
      %v1618 = vshrl.u32 %v1617, 7
      %v1619 = vsub.s32 %v1616, %v1618
      %v1620 = vrot.slane %v1612, %v1619
      %v1622 = vunpack.c.l.s4 1966171168
      %v1623 = vunpack.c.0.s8 %v1622
      %v1624 = vlaneseq
      %v1625 = vshrl.u32 %v1624, 7
      %v1626 = vsub.s32 %v1623, %v1625
      %v1627 = vrot.slane %v1613, %v1626
      %v1628 = vcombine.low %v1620, %v1627
      %v1629 = vcombine.low %v997, %v1011
      %v1630 = vcombine.low %v1019, %v1021
      %v1631 = vcombine.low %v1004, %v1018
      %v1632 = vcombine.low %v1020, %v1045
      %v1634 = vunpack.c.l.s4 1966171168
      %v1635 = vunpack.c.0.s8 %v1634
      %v1636 = vlaneseq
      %v1637 = vshrl.u32 %v1636, 7
      %v1638 = vsub.s32 %v1635, %v1637
      %v1639 = vrot.slane %v1629, %v1638
      %v1641 = vunpack.c.l.s4 1966171168
      %v1642 = vunpack.c.0.s8 %v1641
      %v1643 = vlaneseq
      %v1644 = vshrl.u32 %v1643, 7
      %v1645 = vsub.s32 %v1642, %v1644
      %v1646 = vrot.slane %v1630, %v1645
      %v1648 = vunpack.c.l.s4 1966171168
      %v1649 = vunpack.c.0.s8 %v1648
      %v1650 = vlaneseq
      %v1651 = vshrl.u32 %v1650, 7
      %v1652 = vsub.s32 %v1649, %v1651
      %v1653 = vrot.slane %v1631, %v1652
      %v1655 = vunpack.c.l.s4 1966171168
      %v1656 = vunpack.c.0.s8 %v1655
      %v1657 = vlaneseq
      %v1658 = vshrl.u32 %v1657, 7
      %v1659 = vsub.s32 %v1656, %v1658
      %v1660 = vrot.slane %v1632, %v1659
      %v1661 = vcombine.low %v1639, %v1646
      %v1662 = vcombine.low %v1653, %v1660
      %v1664 = vunpack.c.l.s4 1966171168
      %v1665 = vunpack.c.0.s8 %v1664
      %v1666 = vlaneseq
      %v1667 = vshrl.u32 %v1666, 7
      %v1668 = vsub.s32 %v1665, %v1667
      %v1669 = vrot.slane %v1661, %v1668
      %v1671 = vunpack.c.l.s4 1966171168
      %v1672 = vunpack.c.0.s8 %v1671
      %v1673 = vlaneseq
      %v1674 = vshrl.u32 %v1673, 7
      %v1675 = vsub.s32 %v1672, %v1674
      %v1676 = vrot.slane %v1662, %v1675
      %v1677 = vcombine.low %v1669, %v1676
      %v1678 = vcombine.low %v1059, %v1067
      %v1679 = vcombine.low %v1069, %v1052
      %v1680 = vcombine.low %v1066, %v1068
      %v1681 = vcombine.low %v1093, %v1107
      %v1683 = vunpack.c.l.s4 1966171168
      %v1684 = vunpack.c.0.s8 %v1683
      %v1685 = vlaneseq
      %v1686 = vshrl.u32 %v1685, 7
      %v1687 = vsub.s32 %v1684, %v1686
      %v1688 = vrot.slane %v1678, %v1687
      %v1690 = vunpack.c.l.s4 1966171168
      %v1691 = vunpack.c.0.s8 %v1690
      %v1692 = vlaneseq
      %v1693 = vshrl.u32 %v1692, 7
      %v1694 = vsub.s32 %v1691, %v1693
      %v1695 = vrot.slane %v1679, %v1694
      %v1697 = vunpack.c.l.s4 1966171168
      %v1698 = vunpack.c.0.s8 %v1697
      %v1699 = vlaneseq
      %v1700 = vshrl.u32 %v1699, 7
      %v1701 = vsub.s32 %v1698, %v1700
      %v1702 = vrot.slane %v1680, %v1701
      %v1704 = vunpack.c.l.s4 1966171168
      %v1705 = vunpack.c.0.s8 %v1704
      %v1706 = vlaneseq
      %v1707 = vshrl.u32 %v1706, 7
      %v1708 = vsub.s32 %v1705, %v1707
      %v1709 = vrot.slane %v1681, %v1708
      %v1710 = vcombine.low %v1688, %v1695
      %v1711 = vcombine.low %v1702, %v1709
      %v1713 = vunpack.c.l.s4 1966171168
      %v1714 = vunpack.c.0.s8 %v1713
      %v1715 = vlaneseq
      %v1716 = vshrl.u32 %v1715, 7
      %v1717 = vsub.s32 %v1714, %v1716
      %v1718 = vrot.slane %v1710, %v1717
      %v1720 = vunpack.c.l.s4 1966171168
      %v1721 = vunpack.c.0.s8 %v1720
      %v1722 = vlaneseq
      %v1723 = vshrl.u32 %v1722, 7
      %v1724 = vsub.s32 %v1721, %v1723
      %v1725 = vrot.slane %v1711, %v1724
      %v1726 = vcombine.low %v1718, %v1725
      %v1727 = vcombine.low %v1115, %v1117
      %v1728 = vcombine.low %v1100, %v1114
      %v1729 = vcombine.low %v1116, %v1141
      %v1730 = vcombine.low %v1155, %v1163
      %v1732 = vunpack.c.l.s4 1966171168
      %v1733 = vunpack.c.0.s8 %v1732
      %v1734 = vlaneseq
      %v1735 = vshrl.u32 %v1734, 7
      %v1736 = vsub.s32 %v1733, %v1735
      %v1737 = vrot.slane %v1727, %v1736
      %v1739 = vunpack.c.l.s4 1966171168
      %v1740 = vunpack.c.0.s8 %v1739
      %v1741 = vlaneseq
      %v1742 = vshrl.u32 %v1741, 7
      %v1743 = vsub.s32 %v1740, %v1742
      %v1744 = vrot.slane %v1728, %v1743
      %v1746 = vunpack.c.l.s4 1966171168
      %v1747 = vunpack.c.0.s8 %v1746
      %v1748 = vlaneseq
      %v1749 = vshrl.u32 %v1748, 7
      %v1750 = vsub.s32 %v1747, %v1749
      %v1751 = vrot.slane %v1729, %v1750
      %v1753 = vunpack.c.l.s4 1966171168
      %v1754 = vunpack.c.0.s8 %v1753
      %v1755 = vlaneseq
      %v1756 = vshrl.u32 %v1755, 7
      %v1757 = vsub.s32 %v1754, %v1756
      %v1758 = vrot.slane %v1730, %v1757
      %v1759 = vcombine.low %v1737, %v1744
      %v1760 = vcombine.low %v1751, %v1758
      %v1762 = vunpack.c.l.s4 1966171168
      %v1763 = vunpack.c.0.s8 %v1762
      %v1764 = vlaneseq
      %v1765 = vshrl.u32 %v1764, 7
      %v1766 = vsub.s32 %v1763, %v1765
      %v1767 = vrot.slane %v1759, %v1766
      %v1769 = vunpack.c.l.s4 1966171168
      %v1770 = vunpack.c.0.s8 %v1769
      %v1771 = vlaneseq
      %v1772 = vshrl.u32 %v1771, 7
      %v1773 = vsub.s32 %v1770, %v1772
      %v1774 = vrot.slane %v1760, %v1773
      %v1775 = vcombine.low %v1767, %v1774
      %v1776 = vcombine.low %v1165, %v1148
      %v1777 = vcombine.low %v1162, %v1164
      %v1778 = vcombine.low %v1189, %v1203
      %v1779 = vcombine.low %v1211, %v1213
      %v1781 = vunpack.c.l.s4 1966171168
      %v1782 = vunpack.c.0.s8 %v1781
      %v1783 = vlaneseq
      %v1784 = vshrl.u32 %v1783, 7
      %v1785 = vsub.s32 %v1782, %v1784
      %v1786 = vrot.slane %v1776, %v1785
      %v1788 = vunpack.c.l.s4 1966171168
      %v1789 = vunpack.c.0.s8 %v1788
      %v1790 = vlaneseq
      %v1791 = vshrl.u32 %v1790, 7
      %v1792 = vsub.s32 %v1789, %v1791
      %v1793 = vrot.slane %v1777, %v1792
      %v1795 = vunpack.c.l.s4 1966171168
      %v1796 = vunpack.c.0.s8 %v1795
      %v1797 = vlaneseq
      %v1798 = vshrl.u32 %v1797, 7
      %v1799 = vsub.s32 %v1796, %v1798
      %v1800 = vrot.slane %v1778, %v1799
      %v1802 = vunpack.c.l.s4 1966171168
      %v1803 = vunpack.c.0.s8 %v1802
      %v1804 = vlaneseq
      %v1805 = vshrl.u32 %v1804, 7
      %v1806 = vsub.s32 %v1803, %v1805
      %v1807 = vrot.slane %v1779, %v1806
      %v1808 = vcombine.low %v1786, %v1793
      %v1809 = vcombine.low %v1800, %v1807
      %v1811 = vunpack.c.l.s4 1966171168
      %v1812 = vunpack.c.0.s8 %v1811
      %v1813 = vlaneseq
      %v1814 = vshrl.u32 %v1813, 7
      %v1815 = vsub.s32 %v1812, %v1814
      %v1816 = vrot.slane %v1808, %v1815
      %v1818 = vunpack.c.l.s4 1966171168
      %v1819 = vunpack.c.0.s8 %v1818
      %v1820 = vlaneseq
      %v1821 = vshrl.u32 %v1820, 7
      %v1822 = vsub.s32 %v1819, %v1821
      %v1823 = vrot.slane %v1809, %v1822
      %v1824 = vcombine.low %v1816, %v1823
      %v1825 = vcombine.low %v1196, %v1210
      %v1826 = vcombine.low %v1212, %v1258
      %v1827 = vcombine.low %v1272, %v1280
      %v1828 = vcombine.low %v1282, %v1265
      %v1830 = vunpack.c.l.s4 1966171168
      %v1831 = vunpack.c.0.s8 %v1830
      %v1832 = vlaneseq
      %v1833 = vshrl.u32 %v1832, 7
      %v1834 = vsub.s32 %v1831, %v1833
      %v1835 = vrot.slane %v1825, %v1834
      %v1837 = vunpack.c.l.s4 1966171168
      %v1838 = vunpack.c.0.s8 %v1837
      %v1839 = vlaneseq
      %v1840 = vshrl.u32 %v1839, 7
      %v1841 = vsub.s32 %v1838, %v1840
      %v1842 = vrot.slane %v1826, %v1841
      %v1844 = vunpack.c.l.s4 1966171168
      %v1845 = vunpack.c.0.s8 %v1844
      %v1846 = vlaneseq
      %v1847 = vshrl.u32 %v1846, 7
      %v1848 = vsub.s32 %v1845, %v1847
      %v1849 = vrot.slane %v1827, %v1848
      %v1851 = vunpack.c.l.s4 1966171168
      %v1852 = vunpack.c.0.s8 %v1851
      %v1853 = vlaneseq
      %v1854 = vshrl.u32 %v1853, 7
      %v1855 = vsub.s32 %v1852, %v1854
      %v1856 = vrot.slane %v1828, %v1855
      %v1857 = vcombine.low %v1835, %v1842
      %v1858 = vcombine.low %v1849, %v1856
      %v1860 = vunpack.c.l.s4 1966171168
      %v1861 = vunpack.c.0.s8 %v1860
      %v1862 = vlaneseq
      %v1863 = vshrl.u32 %v1862, 7
      %v1864 = vsub.s32 %v1861, %v1863
      %v1865 = vrot.slane %v1857, %v1864
      %v1867 = vunpack.c.l.s4 1966171168
      %v1868 = vunpack.c.0.s8 %v1867
      %v1869 = vlaneseq
      %v1870 = vshrl.u32 %v1869, 7
      %v1871 = vsub.s32 %v1868, %v1870
      %v1872 = vrot.slane %v1858, %v1871
      %v1873 = vcombine.low %v1865, %v1872
      %v1874 = vcombine.low %v1279, %v1281
      %v1876 = vunpack.c.l.s4 1966171168
      %v1877 = vunpack.c.0.s8 %v1876
      %v1878 = vlaneseq
      %v1879 = vshrl.u32 %v1878, 7
      %v1880 = vsub.s32 %v1877, %v1879
      %v1881 = vrot.slane %v1874, %v1880
      %v1883 = vunpack.c.l.s4 1966171168
      %v1884 = vunpack.c.0.s8 %v1883
      %v1885 = vlaneseq
      %v1886 = vshrl.u32 %v1885, 7
      %v1887 = vsub.s32 %v1884, %v1886
      %v1888 = vrot.slane %v1881, %v1887
      %v1891 = vunpack.c.l.b16 %v1284
      %v1892 = vunpack.c.l.b16 %v1285
      %v1893 = vpack.c.b16 %v1892, %v1891
      %vm1894 = vcmask 72704
      %v1896 = vsel %vm1894, %v1334, 0
      %v1899 = vsel %vm1894, %v1383, 0
      %v1902 = vsel %vm1894, %v1432, 0
      %v1905 = vsel %vm1894, %v1481, 0
      %v1908 = vsel %vm1894, %v1530, 0
      %v1911 = vsel %vm1894, %v1579, 0
      %v1914 = vsel %vm1894, %v1628, 0
      %v1917 = vsel %vm1894, %v1677, 0
      %v1920 = vsel %vm1894, %v1726, 0
      %v1923 = vsel %vm1894, %v1775, 0
      %v1926 = vsel %vm1894, %v1824, 0
      %v1929 = vsel %vm1894, %v1873, 0
      %v1932 = vsel %vm1894, %v1888, 0
      %vm1934 = vcmask 1043456
      %vm1935 = vcmask 1044480
      %v1936 = vsel %vm1934, 4294967295, 65535
      %v1937 = vsel %vm1935, %v1936, 0
      %v1939 = vand.u32 %v1893, %v1937
      %1941 = vmatprep.subr.bf16.mxu0 0
      %1942 = vmatpush1.bf16.msra.mxu0 0
      %1943 = vmatprep.subr.bf16.mxu0 0
      %1944 = vmatpush1.bf16.msra.mxu0 0
      %1945 = vmatprep.subr.bf16.mxu0 0
      %1946 = vmatpush1.bf16.msra.mxu0 0
      %1947 = vmatprep.subr.bf16.mxu0 0
      %1948 = vmatpush1.bf16.msra.mxu0 0
      %1949 = vmatprep.subr.bf16.mxu0 0
      %1950 = vmatpush1.bf16.msra.mxu0 0
      %1951 = vmatprep.subr.bf16.mxu0 0
      %1952 = vmatpush1.bf16.msra.mxu0 0
      %1953 = vmatprep.subr.bf16.mxu0 0
      %1954 = vmatpush1.bf16.msra.mxu0 0
      %1955 = vmatprep.subr.bf16.mxu0 0
      %1956 = vmatpush1.bf16.msra.mxu0 %v1939
      %1957 = vmatprep.subr.bf16.mxu0 0
      %1958 = vmatpush2.bf16.msra.mxu0 0
      %1959 = vmatprep.subr.bf16.mxu0 0
      %1960 = vmatpush2.bf16.msra.mxu0 0
      %1961 = vmatprep.subr.bf16.mxu0 0
      %1962 = vmatpush2.bf16.msra.mxu0 0
      %1963 = vmatprep.subr.bf16.mxu0 0
      %1964 = vmatpush2.bf16.msra.mxu0 0
      %1965 = vmatprep.subr.bf16.mxu0 0
      %1966 = vmatpush2.bf16.msra.mxu0 0
      %1967 = vmatprep.subr.bf16.mxu0 0
      %1968 = vmatpush2.bf16.msra.mxu0 0
      %1969 = vmatprep.subr.bf16.mxu0 0
      %1970 = vmatpush2.bf16.msra.mxu0 0
      %1971 = vmatprep.subr.bf16.mxu0 0
      %1972 = vmatpush2.bf16.msra.mxu0 0
      %1973 = vmatprep.mubr.bf16.mxu0 0
      %1974 = vmatmul.mubr.bf16.gmra.mxu0 %v1896
      %v1975 = vpop.f32.mrf.mxu0
      %v1976 = vadd.f32 0.0, %v1975
      %v1977 = vpop.f32.mrf.mxu0
      %v1978 = vpop.f32.mrf.mxu0
      %v1979 = vadd.f32 0.0, %v1978
      %v1980 = vpop.f32.mrf.mxu0
      %1981 = vmatprep.mubr.bf16.mxu0 0
      %1982 = vmatmul.mubr.bf16.gmra.mxu0 %v1899
      %v1983 = vpop.f32.mrf.mxu0
      %v1984 = vadd.f32 0.0, %v1983
      %v1985 = vpop.f32.mrf.mxu0
      %v1986 = vpop.f32.mrf.mxu0
      %v1987 = vadd.f32 0.0, %v1986
      %v1988 = vpop.f32.mrf.mxu0
      %1989 = vmatprep.mubr.bf16.mxu0 0
      %1990 = vmatmul.mubr.bf16.gmra.mxu0 %v1902
      %v1991 = vpop.f32.mrf.mxu0
      %v1992 = vadd.f32 0.0, %v1991
      %v1993 = vpop.f32.mrf.mxu0
      %v1994 = vpop.f32.mrf.mxu0
      %v1995 = vadd.f32 0.0, %v1994
      %v1996 = vpop.f32.mrf.mxu0
      %1997 = vmatprep.mubr.bf16.mxu0 0
      %1998 = vmatmul.mubr.bf16.gmra.mxu0 %v1905
      %v1999 = vpop.f32.mrf.mxu0
      %v2000 = vadd.f32 0.0, %v1999
      %v2001 = vpop.f32.mrf.mxu0
      %v2002 = vpop.f32.mrf.mxu0
      %v2003 = vadd.f32 0.0, %v2002
      %v2004 = vpop.f32.mrf.mxu0
      %2005 = vmatprep.mubr.bf16.mxu0 0
      %2006 = vmatmul.mubr.bf16.gmra.mxu0 %v1908
      %v2007 = vpop.f32.mrf.mxu0
      %v2008 = vadd.f32 0.0, %v2007
      %v2009 = vpop.f32.mrf.mxu0
      %v2010 = vpop.f32.mrf.mxu0
      %v2011 = vadd.f32 0.0, %v2010
      %v2012 = vpop.f32.mrf.mxu0
      %2013 = vmatprep.mubr.bf16.mxu0 0
      %2014 = vmatmul.mubr.bf16.gmra.mxu0 %v1911
      %v2015 = vpop.f32.mrf.mxu0
      %v2016 = vadd.f32 0.0, %v2015
      %v2017 = vpop.f32.mrf.mxu0
      %v2018 = vpop.f32.mrf.mxu0
      %v2019 = vadd.f32 0.0, %v2018
      %v2020 = vpop.f32.mrf.mxu0
      %2021 = vmatprep.mubr.bf16.mxu0 0
      %2022 = vmatmul.mubr.bf16.gmra.mxu0 %v1914
      %v2023 = vpop.f32.mrf.mxu0
      %v2024 = vadd.f32 0.0, %v2023
      %v2025 = vpop.f32.mrf.mxu0
      %v2026 = vpop.f32.mrf.mxu0
      %v2027 = vadd.f32 0.0, %v2026
      %v2028 = vpop.f32.mrf.mxu0
      %2029 = vmatprep.mubr.bf16.mxu0 0
      %2030 = vmatmul.mubr.bf16.gmra.mxu0 %v1917
      %v2031 = vpop.f32.mrf.mxu0
      %v2032 = vadd.f32 0.0, %v2031
      %v2033 = vpop.f32.mrf.mxu0
      %v2034 = vpop.f32.mrf.mxu0
      %v2035 = vadd.f32 0.0, %v2034
      %v2036 = vpop.f32.mrf.mxu0
      %2037 = vmatprep.mubr.bf16.mxu0 0
      %2038 = vmatmul.mubr.bf16.gmra.mxu0 %v1920
      %v2039 = vpop.f32.mrf.mxu0
      %v2040 = vadd.f32 0.0, %v2039
      %v2041 = vpop.f32.mrf.mxu0
      %v2042 = vpop.f32.mrf.mxu0
      %v2043 = vadd.f32 0.0, %v2042
      %v2044 = vpop.f32.mrf.mxu0
      %2045 = vmatprep.mubr.bf16.mxu0 0
      %2046 = vmatmul.mubr.bf16.gmra.mxu0 %v1923
      %v2047 = vpop.f32.mrf.mxu0
      %v2048 = vadd.f32 0.0, %v2047
      %v2049 = vpop.f32.mrf.mxu0
      %v2050 = vpop.f32.mrf.mxu0
      %v2051 = vadd.f32 0.0, %v2050
      %v2052 = vpop.f32.mrf.mxu0
      %2053 = vmatprep.mubr.bf16.mxu0 0
      %2054 = vmatmul.mubr.bf16.gmra.mxu0 %v1926
      %v2055 = vpop.f32.mrf.mxu0
      %v2056 = vadd.f32 0.0, %v2055
      %v2057 = vpop.f32.mrf.mxu0
      %v2058 = vpop.f32.mrf.mxu0
      %v2059 = vadd.f32 0.0, %v2058
      %v2060 = vpop.f32.mrf.mxu0
      %2061 = vmatprep.mubr.bf16.mxu0 0
      %2062 = vmatmul.mubr.bf16.gmra.mxu0 %v1929
      %v2063 = vpop.f32.mrf.mxu0
      %v2064 = vadd.f32 0.0, %v2063
      %v2065 = vpop.f32.mrf.mxu0
      %v2066 = vpop.f32.mrf.mxu0
      %v2067 = vadd.f32 0.0, %v2066
      %v2068 = vpop.f32.mrf.mxu0
      %2069 = vmatprep.mubr.bf16.mxu0 0
      %2070 = vmatmul.mubr.bf16.gmra.mxu0 %v1932
      %v2071 = vpop.f32.mrf.mxu0
      %v2072 = vadd.f32 0.0, %v2071
      %v2073 = vpop.f32.mrf.mxu0
      %v2074 = vpop.f32.mrf.mxu0
      %v2075 = vpop.f32.mrf.mxu0
      %2076 = vdwg.mxu0
      %v2077 = vcombine.low %v565, %v579
      %v2078 = vcombine.low %v587, %v589
      %v2079 = vcombine.low %v572, %v586
      %v2080 = vcombine.low %v588, %v613
      %v2082 = vunpack.c.l.s4 1966171168
      %v2083 = vunpack.c.0.s8 %v2082
      %v2084 = vlaneseq
      %v2085 = vshrl.u32 %v2084, 7
      %v2086 = vsub.s32 %v2083, %v2085
      %v2087 = vrot.slane %v2077, %v2086
      %v2089 = vunpack.c.l.s4 1966171168
      %v2090 = vunpack.c.0.s8 %v2089
      %v2091 = vlaneseq
      %v2092 = vshrl.u32 %v2091, 7
      %v2093 = vsub.s32 %v2090, %v2092
      %v2094 = vrot.slane %v2078, %v2093
      %v2096 = vunpack.c.l.s4 1966171168
      %v2097 = vunpack.c.0.s8 %v2096
      %v2098 = vlaneseq
      %v2099 = vshrl.u32 %v2098, 7
      %v2100 = vsub.s32 %v2097, %v2099
      %v2101 = vrot.slane %v2079, %v2100
      %v2103 = vunpack.c.l.s4 1966171168
      %v2104 = vunpack.c.0.s8 %v2103
      %v2105 = vlaneseq
      %v2106 = vshrl.u32 %v2105, 7
      %v2107 = vsub.s32 %v2104, %v2106
      %v2108 = vrot.slane %v2080, %v2107
      %v2109 = vcombine.low %v2087, %v2094
      %v2110 = vcombine.low %v2101, %v2108
      %v2112 = vunpack.c.l.s4 1966171168
      %v2113 = vunpack.c.0.s8 %v2112
      %v2114 = vlaneseq
      %v2115 = vshrl.u32 %v2114, 7
      %v2116 = vsub.s32 %v2113, %v2115
      %v2117 = vrot.slane %v2109, %v2116
      %v2119 = vunpack.c.l.s4 1966171168
      %v2120 = vunpack.c.0.s8 %v2119
      %v2121 = vlaneseq
      %v2122 = vshrl.u32 %v2121, 7
      %v2123 = vsub.s32 %v2120, %v2122
      %v2124 = vrot.slane %v2110, %v2123
      %v2125 = vcombine.low %v2117, %v2124
      %v2126 = vcombine.low %v627, %v635
      %v2127 = vcombine.low %v637, %v620
      %v2128 = vcombine.low %v634, %v636
      %v2129 = vcombine.low %v661, %v675
      %v2131 = vunpack.c.l.s4 1966171168
      %v2132 = vunpack.c.0.s8 %v2131
      %v2133 = vlaneseq
      %v2134 = vshrl.u32 %v2133, 7
      %v2135 = vsub.s32 %v2132, %v2134
      %v2136 = vrot.slane %v2126, %v2135
      %v2138 = vunpack.c.l.s4 1966171168
      %v2139 = vunpack.c.0.s8 %v2138
      %v2140 = vlaneseq
      %v2141 = vshrl.u32 %v2140, 7
      %v2142 = vsub.s32 %v2139, %v2141
      %v2143 = vrot.slane %v2127, %v2142
      %v2145 = vunpack.c.l.s4 1966171168
      %v2146 = vunpack.c.0.s8 %v2145
      %v2147 = vlaneseq
      %v2148 = vshrl.u32 %v2147, 7
      %v2149 = vsub.s32 %v2146, %v2148
      %v2150 = vrot.slane %v2128, %v2149
      %v2152 = vunpack.c.l.s4 1966171168
      %v2153 = vunpack.c.0.s8 %v2152
      %v2154 = vlaneseq
      %v2155 = vshrl.u32 %v2154, 7
      %v2156 = vsub.s32 %v2153, %v2155
      %v2157 = vrot.slane %v2129, %v2156
      %v2158 = vcombine.low %v2136, %v2143
      %v2159 = vcombine.low %v2150, %v2157
      %v2161 = vunpack.c.l.s4 1966171168
      %v2162 = vunpack.c.0.s8 %v2161
      %v2163 = vlaneseq
      %v2164 = vshrl.u32 %v2163, 7
      %v2165 = vsub.s32 %v2162, %v2164
      %v2166 = vrot.slane %v2158, %v2165
      %v2168 = vunpack.c.l.s4 1966171168
      %v2169 = vunpack.c.0.s8 %v2168
      %v2170 = vlaneseq
      %v2171 = vshrl.u32 %v2170, 7
      %v2172 = vsub.s32 %v2169, %v2171
      %v2173 = vrot.slane %v2159, %v2172
      %v2174 = vcombine.low %v2166, %v2173
      %v2175 = vcombine.low %v683, %v685
      %v2176 = vcombine.low %v668, %v682
      %v2177 = vcombine.low %v684, %v709
      %v2178 = vcombine.low %v723, %v731
      %v2180 = vunpack.c.l.s4 1966171168
      %v2181 = vunpack.c.0.s8 %v2180
      %v2182 = vlaneseq
      %v2183 = vshrl.u32 %v2182, 7
      %v2184 = vsub.s32 %v2181, %v2183
      %v2185 = vrot.slane %v2175, %v2184
      %v2187 = vunpack.c.l.s4 1966171168
      %v2188 = vunpack.c.0.s8 %v2187
      %v2189 = vlaneseq
      %v2190 = vshrl.u32 %v2189, 7
      %v2191 = vsub.s32 %v2188, %v2190
      %v2192 = vrot.slane %v2176, %v2191
      %v2194 = vunpack.c.l.s4 1966171168
      %v2195 = vunpack.c.0.s8 %v2194
      %v2196 = vlaneseq
      %v2197 = vshrl.u32 %v2196, 7
      %v2198 = vsub.s32 %v2195, %v2197
      %v2199 = vrot.slane %v2177, %v2198
      %v2201 = vunpack.c.l.s4 1966171168
      %v2202 = vunpack.c.0.s8 %v2201
      %v2203 = vlaneseq
      %v2204 = vshrl.u32 %v2203, 7
      %v2205 = vsub.s32 %v2202, %v2204
      %v2206 = vrot.slane %v2178, %v2205
      %v2207 = vcombine.low %v2185, %v2192
      %v2208 = vcombine.low %v2199, %v2206
      %v2210 = vunpack.c.l.s4 1966171168
      %v2211 = vunpack.c.0.s8 %v2210
      %v2212 = vlaneseq
      %v2213 = vshrl.u32 %v2212, 7
      %v2214 = vsub.s32 %v2211, %v2213
      %v2215 = vrot.slane %v2207, %v2214
      %v2217 = vunpack.c.l.s4 1966171168
      %v2218 = vunpack.c.0.s8 %v2217
      %v2219 = vlaneseq
      %v2220 = vshrl.u32 %v2219, 7
      %v2221 = vsub.s32 %v2218, %v2220
      %v2222 = vrot.slane %v2208, %v2221
      %v2223 = vcombine.low %v2215, %v2222
      %v2224 = vcombine.low %v733, %v716
      %v2225 = vcombine.low %v730, %v732
      %v2226 = vcombine.low %v757, %v771
      %v2227 = vcombine.low %v779, %v781
      %v2229 = vunpack.c.l.s4 1966171168
      %v2230 = vunpack.c.0.s8 %v2229
      %v2231 = vlaneseq
      %v2232 = vshrl.u32 %v2231, 7
      %v2233 = vsub.s32 %v2230, %v2232
      %v2234 = vrot.slane %v2224, %v2233
      %v2236 = vunpack.c.l.s4 1966171168
      %v2237 = vunpack.c.0.s8 %v2236
      %v2238 = vlaneseq
      %v2239 = vshrl.u32 %v2238, 7
      %v2240 = vsub.s32 %v2237, %v2239
      %v2241 = vrot.slane %v2225, %v2240
      %v2243 = vunpack.c.l.s4 1966171168
      %v2244 = vunpack.c.0.s8 %v2243
      %v2245 = vlaneseq
      %v2246 = vshrl.u32 %v2245, 7
      %v2247 = vsub.s32 %v2244, %v2246
      %v2248 = vrot.slane %v2226, %v2247
      %v2250 = vunpack.c.l.s4 1966171168
      %v2251 = vunpack.c.0.s8 %v2250
      %v2252 = vlaneseq
      %v2253 = vshrl.u32 %v2252, 7
      %v2254 = vsub.s32 %v2251, %v2253
      %v2255 = vrot.slane %v2227, %v2254
      %v2256 = vcombine.low %v2234, %v2241
      %v2257 = vcombine.low %v2248, %v2255
      %v2259 = vunpack.c.l.s4 1966171168
      %v2260 = vunpack.c.0.s8 %v2259
      %v2261 = vlaneseq
      %v2262 = vshrl.u32 %v2261, 7
      %v2263 = vsub.s32 %v2260, %v2262
      %v2264 = vrot.slane %v2256, %v2263
      %v2266 = vunpack.c.l.s4 1966171168
      %v2267 = vunpack.c.0.s8 %v2266
      %v2268 = vlaneseq
      %v2269 = vshrl.u32 %v2268, 7
      %v2270 = vsub.s32 %v2267, %v2269
      %v2271 = vrot.slane %v2257, %v2270
      %v2272 = vcombine.low %v2264, %v2271
      %v2273 = vcombine.low %v764, %v778
      %v2274 = vcombine.low %v780, %v805
      %v2275 = vcombine.low %v819, %v827
      %v2276 = vcombine.low %v829, %v812
      %v2278 = vunpack.c.l.s4 1966171168
      %v2279 = vunpack.c.0.s8 %v2278
      %v2280 = vlaneseq
      %v2281 = vshrl.u32 %v2280, 7
      %v2282 = vsub.s32 %v2279, %v2281
      %v2283 = vrot.slane %v2273, %v2282
      %v2285 = vunpack.c.l.s4 1966171168
      %v2286 = vunpack.c.0.s8 %v2285
      %v2287 = vlaneseq
      %v2288 = vshrl.u32 %v2287, 7
      %v2289 = vsub.s32 %v2286, %v2288
      %v2290 = vrot.slane %v2274, %v2289
      %v2292 = vunpack.c.l.s4 1966171168
      %v2293 = vunpack.c.0.s8 %v2292
      %v2294 = vlaneseq
      %v2295 = vshrl.u32 %v2294, 7
      %v2296 = vsub.s32 %v2293, %v2295
      %v2297 = vrot.slane %v2275, %v2296
      %v2299 = vunpack.c.l.s4 1966171168
      %v2300 = vunpack.c.0.s8 %v2299
      %v2301 = vlaneseq
      %v2302 = vshrl.u32 %v2301, 7
      %v2303 = vsub.s32 %v2300, %v2302
      %v2304 = vrot.slane %v2276, %v2303
      %v2305 = vcombine.low %v2283, %v2290
      %v2306 = vcombine.low %v2297, %v2304
      %v2308 = vunpack.c.l.s4 1966171168
      %v2309 = vunpack.c.0.s8 %v2308
      %v2310 = vlaneseq
      %v2311 = vshrl.u32 %v2310, 7
      %v2312 = vsub.s32 %v2309, %v2311
      %v2313 = vrot.slane %v2305, %v2312
      %v2315 = vunpack.c.l.s4 1966171168
      %v2316 = vunpack.c.0.s8 %v2315
      %v2317 = vlaneseq
      %v2318 = vshrl.u32 %v2317, 7
      %v2319 = vsub.s32 %v2316, %v2318
      %v2320 = vrot.slane %v2306, %v2319
      %v2321 = vcombine.low %v2313, %v2320
      %v2322 = vcombine.low %v826, %v828
      %v2323 = vcombine.low %v853, %v867
      %v2324 = vcombine.low %v875, %v877
      %v2325 = vcombine.low %v860, %v874
      %v2327 = vunpack.c.l.s4 1966171168
      %v2328 = vunpack.c.0.s8 %v2327
      %v2329 = vlaneseq
      %v2330 = vshrl.u32 %v2329, 7
      %v2331 = vsub.s32 %v2328, %v2330
      %v2332 = vrot.slane %v2322, %v2331
      %v2334 = vunpack.c.l.s4 1966171168
      %v2335 = vunpack.c.0.s8 %v2334
      %v2336 = vlaneseq
      %v2337 = vshrl.u32 %v2336, 7
      %v2338 = vsub.s32 %v2335, %v2337
      %v2339 = vrot.slane %v2323, %v2338
      %v2341 = vunpack.c.l.s4 1966171168
      %v2342 = vunpack.c.0.s8 %v2341
      %v2343 = vlaneseq
      %v2344 = vshrl.u32 %v2343, 7
      %v2345 = vsub.s32 %v2342, %v2344
      %v2346 = vrot.slane %v2324, %v2345
      %v2348 = vunpack.c.l.s4 1966171168
      %v2349 = vunpack.c.0.s8 %v2348
      %v2350 = vlaneseq
      %v2351 = vshrl.u32 %v2350, 7
      %v2352 = vsub.s32 %v2349, %v2351
      %v2353 = vrot.slane %v2325, %v2352
      %v2354 = vcombine.low %v2332, %v2339
      %v2355 = vcombine.low %v2346, %v2353
      %v2357 = vunpack.c.l.s4 1966171168
      %v2358 = vunpack.c.0.s8 %v2357
      %v2359 = vlaneseq
      %v2360 = vshrl.u32 %v2359, 7
      %v2361 = vsub.s32 %v2358, %v2360
      %v2362 = vrot.slane %v2354, %v2361
      %v2364 = vunpack.c.l.s4 1966171168
      %v2365 = vunpack.c.0.s8 %v2364
      %v2366 = vlaneseq
      %v2367 = vshrl.u32 %v2366, 7
      %v2368 = vsub.s32 %v2365, %v2367
      %v2369 = vrot.slane %v2355, %v2368
      %v2370 = vcombine.low %v2362, %v2369
      %v2371 = vcombine.low %v876, %v901
      %v2372 = vcombine.low %v915, %v923
      %v2373 = vcombine.low %v925, %v908
      %v2374 = vcombine.low %v922, %v924
      %v2376 = vunpack.c.l.s4 1966171168
      %v2377 = vunpack.c.0.s8 %v2376
      %v2378 = vlaneseq
      %v2379 = vshrl.u32 %v2378, 7
      %v2380 = vsub.s32 %v2377, %v2379
      %v2381 = vrot.slane %v2371, %v2380
      %v2383 = vunpack.c.l.s4 1966171168
      %v2384 = vunpack.c.0.s8 %v2383
      %v2385 = vlaneseq
      %v2386 = vshrl.u32 %v2385, 7
      %v2387 = vsub.s32 %v2384, %v2386
      %v2388 = vrot.slane %v2372, %v2387
      %v2390 = vunpack.c.l.s4 1966171168
      %v2391 = vunpack.c.0.s8 %v2390
      %v2392 = vlaneseq
      %v2393 = vshrl.u32 %v2392, 7
      %v2394 = vsub.s32 %v2391, %v2393
      %v2395 = vrot.slane %v2373, %v2394
      %v2397 = vunpack.c.l.s4 1966171168
      %v2398 = vunpack.c.0.s8 %v2397
      %v2399 = vlaneseq
      %v2400 = vshrl.u32 %v2399, 7
      %v2401 = vsub.s32 %v2398, %v2400
      %v2402 = vrot.slane %v2374, %v2401
      %v2403 = vcombine.low %v2381, %v2388
      %v2404 = vcombine.low %v2395, %v2402
      %v2406 = vunpack.c.l.s4 1966171168
      %v2407 = vunpack.c.0.s8 %v2406
      %v2408 = vlaneseq
      %v2409 = vshrl.u32 %v2408, 7
      %v2410 = vsub.s32 %v2407, %v2409
      %v2411 = vrot.slane %v2403, %v2410
      %v2413 = vunpack.c.l.s4 1966171168
      %v2414 = vunpack.c.0.s8 %v2413
      %v2415 = vlaneseq
      %v2416 = vshrl.u32 %v2415, 7
      %v2417 = vsub.s32 %v2414, %v2416
      %v2418 = vrot.slane %v2404, %v2417
      %v2419 = vcombine.low %v2411, %v2418
      %v2420 = vcombine.low %v949, %v963
      %v2421 = vcombine.low %v971, %v973
      %v2422 = vcombine.low %v956, %v970
      %v2423 = vcombine.low %v972, %v997
      %v2425 = vunpack.c.l.s4 1966171168
      %v2426 = vunpack.c.0.s8 %v2425
      %v2427 = vlaneseq
      %v2428 = vshrl.u32 %v2427, 7
      %v2429 = vsub.s32 %v2426, %v2428
      %v2430 = vrot.slane %v2420, %v2429
      %v2432 = vunpack.c.l.s4 1966171168
      %v2433 = vunpack.c.0.s8 %v2432
      %v2434 = vlaneseq
      %v2435 = vshrl.u32 %v2434, 7
      %v2436 = vsub.s32 %v2433, %v2435
      %v2437 = vrot.slane %v2421, %v2436
      %v2439 = vunpack.c.l.s4 1966171168
      %v2440 = vunpack.c.0.s8 %v2439
      %v2441 = vlaneseq
      %v2442 = vshrl.u32 %v2441, 7
      %v2443 = vsub.s32 %v2440, %v2442
      %v2444 = vrot.slane %v2422, %v2443
      %v2446 = vunpack.c.l.s4 1966171168
      %v2447 = vunpack.c.0.s8 %v2446
      %v2448 = vlaneseq
      %v2449 = vshrl.u32 %v2448, 7
      %v2450 = vsub.s32 %v2447, %v2449
      %v2451 = vrot.slane %v2423, %v2450
      %v2452 = vcombine.low %v2430, %v2437
      %v2453 = vcombine.low %v2444, %v2451
      %v2455 = vunpack.c.l.s4 1966171168
      %v2456 = vunpack.c.0.s8 %v2455
      %v2457 = vlaneseq
      %v2458 = vshrl.u32 %v2457, 7
      %v2459 = vsub.s32 %v2456, %v2458
      %v2460 = vrot.slane %v2452, %v2459
      %v2462 = vunpack.c.l.s4 1966171168
      %v2463 = vunpack.c.0.s8 %v2462
      %v2464 = vlaneseq
      %v2465 = vshrl.u32 %v2464, 7
      %v2466 = vsub.s32 %v2463, %v2465
      %v2467 = vrot.slane %v2453, %v2466
      %v2468 = vcombine.low %v2460, %v2467
      %v2469 = vcombine.low %v1011, %v1019
      %v2470 = vcombine.low %v1021, %v1004
      %v2471 = vcombine.low %v1018, %v1020
      %v2472 = vcombine.low %v1045, %v1059
      %v2474 = vunpack.c.l.s4 1966171168
      %v2475 = vunpack.c.0.s8 %v2474
      %v2476 = vlaneseq
      %v2477 = vshrl.u32 %v2476, 7
      %v2478 = vsub.s32 %v2475, %v2477
      %v2479 = vrot.slane %v2469, %v2478
      %v2481 = vunpack.c.l.s4 1966171168
      %v2482 = vunpack.c.0.s8 %v2481
      %v2483 = vlaneseq
      %v2484 = vshrl.u32 %v2483, 7
      %v2485 = vsub.s32 %v2482, %v2484
      %v2486 = vrot.slane %v2470, %v2485
      %v2488 = vunpack.c.l.s4 1966171168
      %v2489 = vunpack.c.0.s8 %v2488
      %v2490 = vlaneseq
      %v2491 = vshrl.u32 %v2490, 7
      %v2492 = vsub.s32 %v2489, %v2491
      %v2493 = vrot.slane %v2471, %v2492
      %v2495 = vunpack.c.l.s4 1966171168
      %v2496 = vunpack.c.0.s8 %v2495
      %v2497 = vlaneseq
      %v2498 = vshrl.u32 %v2497, 7
      %v2499 = vsub.s32 %v2496, %v2498
      %v2500 = vrot.slane %v2472, %v2499
      %v2501 = vcombine.low %v2479, %v2486
      %v2502 = vcombine.low %v2493, %v2500
      %v2504 = vunpack.c.l.s4 1966171168
      %v2505 = vunpack.c.0.s8 %v2504
      %v2506 = vlaneseq
      %v2507 = vshrl.u32 %v2506, 7
      %v2508 = vsub.s32 %v2505, %v2507
      %v2509 = vrot.slane %v2501, %v2508
      %v2511 = vunpack.c.l.s4 1966171168
      %v2512 = vunpack.c.0.s8 %v2511
      %v2513 = vlaneseq
      %v2514 = vshrl.u32 %v2513, 7
      %v2515 = vsub.s32 %v2512, %v2514
      %v2516 = vrot.slane %v2502, %v2515
      %v2517 = vcombine.low %v2509, %v2516
      %v2518 = vcombine.low %v1067, %v1069
      %v2519 = vcombine.low %v1052, %v1066
      %v2520 = vcombine.low %v1068, %v1093
      %v2521 = vcombine.low %v1107, %v1115
      %v2523 = vunpack.c.l.s4 1966171168
      %v2524 = vunpack.c.0.s8 %v2523
      %v2525 = vlaneseq
      %v2526 = vshrl.u32 %v2525, 7
      %v2527 = vsub.s32 %v2524, %v2526
      %v2528 = vrot.slane %v2518, %v2527
      %v2530 = vunpack.c.l.s4 1966171168
      %v2531 = vunpack.c.0.s8 %v2530
      %v2532 = vlaneseq
      %v2533 = vshrl.u32 %v2532, 7
      %v2534 = vsub.s32 %v2531, %v2533
      %v2535 = vrot.slane %v2519, %v2534
      %v2537 = vunpack.c.l.s4 1966171168
      %v2538 = vunpack.c.0.s8 %v2537
      %v2539 = vlaneseq
      %v2540 = vshrl.u32 %v2539, 7
      %v2541 = vsub.s32 %v2538, %v2540
      %v2542 = vrot.slane %v2520, %v2541
      %v2544 = vunpack.c.l.s4 1966171168
      %v2545 = vunpack.c.0.s8 %v2544
      %v2546 = vlaneseq
      %v2547 = vshrl.u32 %v2546, 7
      %v2548 = vsub.s32 %v2545, %v2547
      %v2549 = vrot.slane %v2521, %v2548
      %v2550 = vcombine.low %v2528, %v2535
      %v2551 = vcombine.low %v2542, %v2549
      %v2553 = vunpack.c.l.s4 1966171168
      %v2554 = vunpack.c.0.s8 %v2553
      %v2555 = vlaneseq
      %v2556 = vshrl.u32 %v2555, 7
      %v2557 = vsub.s32 %v2554, %v2556
      %v2558 = vrot.slane %v2550, %v2557
      %v2560 = vunpack.c.l.s4 1966171168
      %v2561 = vunpack.c.0.s8 %v2560
      %v2562 = vlaneseq
      %v2563 = vshrl.u32 %v2562, 7
      %v2564 = vsub.s32 %v2561, %v2563
      %v2565 = vrot.slane %v2551, %v2564
      %v2566 = vcombine.low %v2558, %v2565
      %v2567 = vcombine.low %v1117, %v1100
      %v2568 = vcombine.low %v1114, %v1116
      %v2569 = vcombine.low %v1141, %v1155
      %v2570 = vcombine.low %v1163, %v1165
      %v2572 = vunpack.c.l.s4 1966171168
      %v2573 = vunpack.c.0.s8 %v2572
      %v2574 = vlaneseq
      %v2575 = vshrl.u32 %v2574, 7
      %v2576 = vsub.s32 %v2573, %v2575
      %v2577 = vrot.slane %v2567, %v2576
      %v2579 = vunpack.c.l.s4 1966171168
      %v2580 = vunpack.c.0.s8 %v2579
      %v2581 = vlaneseq
      %v2582 = vshrl.u32 %v2581, 7
      %v2583 = vsub.s32 %v2580, %v2582
      %v2584 = vrot.slane %v2568, %v2583
      %v2586 = vunpack.c.l.s4 1966171168
      %v2587 = vunpack.c.0.s8 %v2586
      %v2588 = vlaneseq
      %v2589 = vshrl.u32 %v2588, 7
      %v2590 = vsub.s32 %v2587, %v2589
      %v2591 = vrot.slane %v2569, %v2590
      %v2593 = vunpack.c.l.s4 1966171168
      %v2594 = vunpack.c.0.s8 %v2593
      %v2595 = vlaneseq
      %v2596 = vshrl.u32 %v2595, 7
      %v2597 = vsub.s32 %v2594, %v2596
      %v2598 = vrot.slane %v2570, %v2597
      %v2599 = vcombine.low %v2577, %v2584
      %v2600 = vcombine.low %v2591, %v2598
      %v2602 = vunpack.c.l.s4 1966171168
      %v2603 = vunpack.c.0.s8 %v2602
      %v2604 = vlaneseq
      %v2605 = vshrl.u32 %v2604, 7
      %v2606 = vsub.s32 %v2603, %v2605
      %v2607 = vrot.slane %v2599, %v2606
      %v2609 = vunpack.c.l.s4 1966171168
      %v2610 = vunpack.c.0.s8 %v2609
      %v2611 = vlaneseq
      %v2612 = vshrl.u32 %v2611, 7
      %v2613 = vsub.s32 %v2610, %v2612
      %v2614 = vrot.slane %v2600, %v2613
      %v2615 = vcombine.low %v2607, %v2614
      %v2616 = vcombine.low %v1148, %v1162
      %v2617 = vcombine.low %v1164, %v1189
      %v2618 = vcombine.low %v1203, %v1211
      %v2619 = vcombine.low %v1213, %v1196
      %v2621 = vunpack.c.l.s4 1966171168
      %v2622 = vunpack.c.0.s8 %v2621
      %v2623 = vlaneseq
      %v2624 = vshrl.u32 %v2623, 7
      %v2625 = vsub.s32 %v2622, %v2624
      %v2626 = vrot.slane %v2616, %v2625
      %v2628 = vunpack.c.l.s4 1966171168
      %v2629 = vunpack.c.0.s8 %v2628
      %v2630 = vlaneseq
      %v2631 = vshrl.u32 %v2630, 7
      %v2632 = vsub.s32 %v2629, %v2631
      %v2633 = vrot.slane %v2617, %v2632
      %v2635 = vunpack.c.l.s4 1966171168
      %v2636 = vunpack.c.0.s8 %v2635
      %v2637 = vlaneseq
      %v2638 = vshrl.u32 %v2637, 7
      %v2639 = vsub.s32 %v2636, %v2638
      %v2640 = vrot.slane %v2618, %v2639
      %v2642 = vunpack.c.l.s4 1966171168
      %v2643 = vunpack.c.0.s8 %v2642
      %v2644 = vlaneseq
      %v2645 = vshrl.u32 %v2644, 7
      %v2646 = vsub.s32 %v2643, %v2645
      %v2647 = vrot.slane %v2619, %v2646
      %v2648 = vcombine.low %v2626, %v2633
      %v2649 = vcombine.low %v2640, %v2647
      %v2651 = vunpack.c.l.s4 1966171168
      %v2652 = vunpack.c.0.s8 %v2651
      %v2653 = vlaneseq
      %v2654 = vshrl.u32 %v2653, 7
      %v2655 = vsub.s32 %v2652, %v2654
      %v2656 = vrot.slane %v2648, %v2655
      %v2658 = vunpack.c.l.s4 1966171168
      %v2659 = vunpack.c.0.s8 %v2658
      %v2660 = vlaneseq
      %v2661 = vshrl.u32 %v2660, 7
      %v2662 = vsub.s32 %v2659, %v2661
      %v2663 = vrot.slane %v2649, %v2662
      %v2664 = vcombine.low %v2656, %v2663
      %v2665 = vcombine.low %v1210, %v1212
      %v2667 = vunpack.c.l.s4 1966171168
      %v2668 = vunpack.c.0.s8 %v2667
      %v2669 = vlaneseq
      %v2670 = vshrl.u32 %v2669, 7
      %v2671 = vsub.s32 %v2668, %v2670
      %v2672 = vrot.slane %v2665, %v2671
      %v2674 = vunpack.c.l.s4 1966171168
      %v2675 = vunpack.c.0.s8 %v2674
      %v2676 = vlaneseq
      %v2677 = vshrl.u32 %v2676, 7
      %v2678 = vsub.s32 %v2675, %v2677
      %v2679 = vrot.slane %v2672, %v2678
      %v2682 = vunpack.c.l.b16 %v1214
      %v2683 = vunpack.c.l.b16 %v1215
      %v2684 = vpack.c.b16 %v2683, %v2682
      %v2686 = vsel %vm1894, %v2125, 0
      %v2689 = vsel %vm1894, %v2174, 0
      %v2692 = vsel %vm1894, %v2223, 0
      %v2695 = vsel %vm1894, %v2272, 0
      %v2698 = vsel %vm1894, %v2321, 0
      %v2701 = vsel %vm1894, %v2370, 0
      %v2704 = vsel %vm1894, %v2419, 0
      %v2707 = vsel %vm1894, %v2468, 0
      %v2710 = vsel %vm1894, %v2517, 0
      %v2713 = vsel %vm1894, %v2566, 0
      %v2716 = vsel %vm1894, %v2615, 0
      %v2719 = vsel %vm1894, %v2664, 0
      %v2722 = vsel %vm1894, %v2679, 0
      %v2725 = vand.u32 %v2684, %v1937
      %2727 = vmatprep.subr.bf16.mxu0 0
      %2728 = vmatpush1.bf16.msra.mxu0 0
      %2729 = vmatprep.subr.bf16.mxu0 0
      %2730 = vmatpush1.bf16.msra.mxu0 0
      %2731 = vmatprep.subr.bf16.mxu0 0
      %2732 = vmatpush1.bf16.msra.mxu0 0
      %2733 = vmatprep.subr.bf16.mxu0 0
      %2734 = vmatpush1.bf16.msra.mxu0 0
      %2735 = vmatprep.subr.bf16.mxu0 0
      %2736 = vmatpush1.bf16.msra.mxu0 0
      %2737 = vmatprep.subr.bf16.mxu0 0
      %2738 = vmatpush1.bf16.msra.mxu0 0
      %2739 = vmatprep.subr.bf16.mxu0 0
      %2740 = vmatpush1.bf16.msra.mxu0 0
      %2741 = vmatprep.subr.bf16.mxu0 0
      %2742 = vmatpush1.bf16.msra.mxu0 %v2725
      %2743 = vmatprep.subr.bf16.mxu0 0
      %2744 = vmatpush2.bf16.msra.mxu0 0
      %2745 = vmatprep.subr.bf16.mxu0 0
      %2746 = vmatpush2.bf16.msra.mxu0 0
      %2747 = vmatprep.subr.bf16.mxu0 0
      %2748 = vmatpush2.bf16.msra.mxu0 0
      %2749 = vmatprep.subr.bf16.mxu0 0
      %2750 = vmatpush2.bf16.msra.mxu0 0
      %2751 = vmatprep.subr.bf16.mxu0 0
      %2752 = vmatpush2.bf16.msra.mxu0 0
      %2753 = vmatprep.subr.bf16.mxu0 0
      %2754 = vmatpush2.bf16.msra.mxu0 0
      %2755 = vmatprep.subr.bf16.mxu0 0
      %2756 = vmatpush2.bf16.msra.mxu0 0
      %2757 = vmatprep.subr.bf16.mxu0 0
      %2758 = vmatpush2.bf16.msra.mxu0 0
      %2759 = vmatprep.mubr.bf16.mxu0 0
      %2760 = vmatmul.mubr.bf16.gmra.mxu0 %v2686
      %v2761 = vpop.f32.mrf.mxu0
      %v2762 = vadd.f32 %v1976, %v2761
      %v2763 = vpop.f32.mrf.mxu0
      %v2764 = vpop.f32.mrf.mxu0
      %v2765 = vadd.f32 %v1979, %v2764
      %v2766 = vpop.f32.mrf.mxu0
      %2767 = vmatprep.mubr.bf16.mxu0 0
      %2768 = vmatmul.mubr.bf16.gmra.mxu0 %v2689
      %v2769 = vpop.f32.mrf.mxu0
      %v2770 = vadd.f32 %v1984, %v2769
      %v2771 = vpop.f32.mrf.mxu0
      %v2772 = vpop.f32.mrf.mxu0
      %v2773 = vadd.f32 %v1987, %v2772
      %v2774 = vpop.f32.mrf.mxu0
      %2775 = vmatprep.mubr.bf16.mxu0 0
      %2776 = vmatmul.mubr.bf16.gmra.mxu0 %v2692
      %v2777 = vpop.f32.mrf.mxu0
      %v2778 = vadd.f32 %v1992, %v2777
      %v2779 = vpop.f32.mrf.mxu0
      %v2780 = vpop.f32.mrf.mxu0
      %v2781 = vadd.f32 %v1995, %v2780
      %v2782 = vpop.f32.mrf.mxu0
      %2783 = vmatprep.mubr.bf16.mxu0 0
      %2784 = vmatmul.mubr.bf16.gmra.mxu0 %v2695
      %v2785 = vpop.f32.mrf.mxu0
      %v2786 = vadd.f32 %v2000, %v2785
      %v2787 = vpop.f32.mrf.mxu0
      %v2788 = vpop.f32.mrf.mxu0
      %v2789 = vadd.f32 %v2003, %v2788
      %v2790 = vpop.f32.mrf.mxu0
      %2791 = vmatprep.mubr.bf16.mxu0 0
      %2792 = vmatmul.mubr.bf16.gmra.mxu0 %v2698
      %v2793 = vpop.f32.mrf.mxu0
      %v2794 = vadd.f32 %v2008, %v2793
      %v2795 = vpop.f32.mrf.mxu0
      %v2796 = vpop.f32.mrf.mxu0
      %v2797 = vadd.f32 %v2011, %v2796
      %v2798 = vpop.f32.mrf.mxu0
      %2799 = vmatprep.mubr.bf16.mxu0 0
      %2800 = vmatmul.mubr.bf16.gmra.mxu0 %v2701
      %v2801 = vpop.f32.mrf.mxu0
      %v2802 = vadd.f32 %v2016, %v2801
      %v2803 = vpop.f32.mrf.mxu0
      %v2804 = vpop.f32.mrf.mxu0
      %v2805 = vadd.f32 %v2019, %v2804
      %v2806 = vpop.f32.mrf.mxu0
      %2807 = vmatprep.mubr.bf16.mxu0 0
      %2808 = vmatmul.mubr.bf16.gmra.mxu0 %v2704
      %v2809 = vpop.f32.mrf.mxu0
      %v2810 = vadd.f32 %v2024, %v2809
      %v2811 = vpop.f32.mrf.mxu0
      %v2812 = vpop.f32.mrf.mxu0
      %v2813 = vadd.f32 %v2027, %v2812
      %v2814 = vpop.f32.mrf.mxu0
      %2815 = vmatprep.mubr.bf16.mxu0 0
      %2816 = vmatmul.mubr.bf16.gmra.mxu0 %v2707
      %v2817 = vpop.f32.mrf.mxu0
      %v2818 = vadd.f32 %v2032, %v2817
      %v2819 = vpop.f32.mrf.mxu0
      %v2820 = vpop.f32.mrf.mxu0
      %v2821 = vadd.f32 %v2035, %v2820
      %v2822 = vpop.f32.mrf.mxu0
      %2823 = vmatprep.mubr.bf16.mxu0 0
      %2824 = vmatmul.mubr.bf16.gmra.mxu0 %v2710
      %v2825 = vpop.f32.mrf.mxu0
      %v2826 = vadd.f32 %v2040, %v2825
      %v2827 = vpop.f32.mrf.mxu0
      %v2828 = vpop.f32.mrf.mxu0
      %v2829 = vadd.f32 %v2043, %v2828
      %v2830 = vpop.f32.mrf.mxu0
      %2831 = vmatprep.mubr.bf16.mxu0 0
      %2832 = vmatmul.mubr.bf16.gmra.mxu0 %v2713
      %v2833 = vpop.f32.mrf.mxu0
      %v2834 = vadd.f32 %v2048, %v2833
      %v2835 = vpop.f32.mrf.mxu0
      %v2836 = vpop.f32.mrf.mxu0
      %v2837 = vadd.f32 %v2051, %v2836
      %v2838 = vpop.f32.mrf.mxu0
      %2839 = vmatprep.mubr.bf16.mxu0 0
      %2840 = vmatmul.mubr.bf16.gmra.mxu0 %v2716
      %v2841 = vpop.f32.mrf.mxu0
      %v2842 = vadd.f32 %v2056, %v2841
      %v2843 = vpop.f32.mrf.mxu0
      %v2844 = vpop.f32.mrf.mxu0
      %v2845 = vadd.f32 %v2059, %v2844
      %v2846 = vpop.f32.mrf.mxu0
      %2847 = vmatprep.mubr.bf16.mxu0 0
      %2848 = vmatmul.mubr.bf16.gmra.mxu0 %v2719
      %v2849 = vpop.f32.mrf.mxu0
      %v2850 = vadd.f32 %v2064, %v2849
      %v2851 = vpop.f32.mrf.mxu0
      %v2852 = vpop.f32.mrf.mxu0
      %v2853 = vadd.f32 %v2067, %v2852
      %v2854 = vpop.f32.mrf.mxu0
      %2855 = vmatprep.mubr.bf16.mxu0 0
      %2856 = vmatmul.mubr.bf16.gmra.mxu0 %v2722
      %v2857 = vpop.f32.mrf.mxu0
      %v2858 = vadd.f32 %v2072, %v2857
      %v2859 = vpop.f32.mrf.mxu0
      %v2860 = vpop.f32.mrf.mxu0
      %v2861 = vpop.f32.mrf.mxu0
      %2862 = vdwg.mxu0
      %v2863 = vpack.c.bf16 %v273, %v272
      %v2865 = vshrl.u32 %v2863, 16
      %v2867 = vshll.u32 %v2863, 16
      %v2869 = vrot.slane %v2867, 1
      %v2870 = vor.u32 %v2865, %v2869
      %2871 = vrot.lane.b32.xlu0 %v2870, 3
      %v2872 = vpop.permute.xlu0 %2871
      %v2874 = vrot.slane %v2863, 1
      %2875 = vrot.lane.b32.xlu0 %v2874, 6
      %v2876 = vpop.permute.xlu0 %2875
      %v2878 = vsel %vm470, %v2863, %v2872
      %v2880 = vsel %vm499, %v2878, %v2876
      %v2882 = vcombine.high %v2880, %v2880
      %v2884 = vunpack.c.l.s4 1966171168
      %v2885 = vunpack.c.0.s8 %v2884
      %v2886 = vlaneseq
      %v2887 = vshrl.u32 %v2886, 7
      %v2888 = vsub.s32 %v2885, %v2887
      %v2889 = vrot.slane %v2880, %v2888
      %v2891 = vunpack.c.l.s4 1966171168
      %v2892 = vunpack.c.0.s8 %v2891
      %v2893 = vlaneseq
      %v2894 = vshrl.u32 %v2893, 7
      %v2895 = vsub.s32 %v2892, %v2894
      %v2896 = vrot.slane %v2882, %v2895
      %v2897 = vcombine.high %v2889, %v2889
      %v2898 = vcombine.high %v2896, %v2896
      %v2900 = vunpack.c.l.s4 1966171168
      %v2901 = vunpack.c.0.s8 %v2900
      %v2902 = vlaneseq
      %v2903 = vshrl.u32 %v2902, 7
      %v2904 = vsub.s32 %v2901, %v2903
      %v2905 = vrot.slane %v2889, %v2904
      %v2907 = vunpack.c.l.s4 1966171168
      %v2908 = vunpack.c.0.s8 %v2907
      %v2909 = vlaneseq
      %v2910 = vshrl.u32 %v2909, 7
      %v2911 = vsub.s32 %v2908, %v2910
      %v2912 = vrot.slane %v2896, %v2911
      %v2914 = vunpack.c.l.s4 1966171168
      %v2915 = vunpack.c.0.s8 %v2914
      %v2916 = vlaneseq
      %v2917 = vshrl.u32 %v2916, 7
      %v2918 = vsub.s32 %v2915, %v2917
      %v2919 = vrot.slane %v2897, %v2918
      %v2921 = vunpack.c.l.s4 1966171168
      %v2922 = vunpack.c.0.s8 %v2921
      %v2923 = vlaneseq
      %v2924 = vshrl.u32 %v2923, 7
      %v2925 = vsub.s32 %v2922, %v2924
      %v2926 = vrot.slane %v2898, %v2925
      %v2927 = vcombine.high %v2905, %v2905
      %v2928 = vcombine.high %v2912, %v2912
      %v2929 = vcombine.high %v2919, %v2919
      %s2930 = scalar_lea.vmem %s1, 16
      %v2931 = vld [vmem:[%s2930] sm:$0xf]
      %v2932 = vld [vmem:[%s2930 + $0x4] sm:$0x1]
      %v2933 = vcombine.low %v2157, %v2185
      %v2934 = vcombine.low %v2192, %v2199
      %v2936 = vunpack.c.l.s4 1966171168
      %v2937 = vunpack.c.0.s8 %v2936
      %v2938 = vlaneseq
      %v2939 = vshrl.u32 %v2938, 7
      %v2940 = vsub.s32 %v2937, %v2939
      %v2941 = vrot.slane %v2933, %v2940
      %v2943 = vunpack.c.l.s4 1966171168
      %v2944 = vunpack.c.0.s8 %v2943
      %v2945 = vlaneseq
      %v2946 = vshrl.u32 %v2945, 7
      %v2947 = vsub.s32 %v2944, %v2946
      %v2948 = vrot.slane %v2934, %v2947
      %v2949 = vcombine.low %v2941, %v2948
      %v2950 = vcombine.low %v2206, %v2234
      %v2951 = vcombine.low %v2241, %v2248
      %v2953 = vunpack.c.l.s4 1966171168
      %v2954 = vunpack.c.0.s8 %v2953
      %v2955 = vlaneseq
      %v2956 = vshrl.u32 %v2955, 7
      %v2957 = vsub.s32 %v2954, %v2956
      %v2958 = vrot.slane %v2950, %v2957
      %v2960 = vunpack.c.l.s4 1966171168
      %v2961 = vunpack.c.0.s8 %v2960
      %v2962 = vlaneseq
      %v2963 = vshrl.u32 %v2962, 7
      %v2964 = vsub.s32 %v2961, %v2963
      %v2965 = vrot.slane %v2951, %v2964
      %v2966 = vcombine.low %v2958, %v2965
      %v2967 = vcombine.low %v2255, %v2283
      %v2968 = vcombine.low %v2290, %v2297
      %v2970 = vunpack.c.l.s4 1966171168
      %v2971 = vunpack.c.0.s8 %v2970
      %v2972 = vlaneseq
      %v2973 = vshrl.u32 %v2972, 7
      %v2974 = vsub.s32 %v2971, %v2973
      %v2975 = vrot.slane %v2967, %v2974
      %v2977 = vunpack.c.l.s4 1966171168
      %v2978 = vunpack.c.0.s8 %v2977
      %v2979 = vlaneseq
      %v2980 = vshrl.u32 %v2979, 7
      %v2981 = vsub.s32 %v2978, %v2980
      %v2982 = vrot.slane %v2968, %v2981
      %v2983 = vcombine.low %v2975, %v2982
      %v2984 = vcombine.low %v2304, %v2332
      %v2985 = vcombine.low %v2339, %v2346
      %v2987 = vunpack.c.l.s4 1966171168
      %v2988 = vunpack.c.0.s8 %v2987
      %v2989 = vlaneseq
      %v2990 = vshrl.u32 %v2989, 7
      %v2991 = vsub.s32 %v2988, %v2990
      %v2992 = vrot.slane %v2984, %v2991
      %v2994 = vunpack.c.l.s4 1966171168
      %v2995 = vunpack.c.0.s8 %v2994
      %v2996 = vlaneseq
      %v2997 = vshrl.u32 %v2996, 7
      %v2998 = vsub.s32 %v2995, %v2997
      %v2999 = vrot.slane %v2985, %v2998
      %v3000 = vcombine.low %v2992, %v2999
      %v3001 = vcombine.low %v2353, %v2381
      %v3002 = vcombine.low %v2388, %v2395
      %v3004 = vunpack.c.l.s4 1966171168
      %v3005 = vunpack.c.0.s8 %v3004
      %v3006 = vlaneseq
      %v3007 = vshrl.u32 %v3006, 7
      %v3008 = vsub.s32 %v3005, %v3007
      %v3009 = vrot.slane %v3001, %v3008
      %v3011 = vunpack.c.l.s4 1966171168
      %v3012 = vunpack.c.0.s8 %v3011
      %v3013 = vlaneseq
      %v3014 = vshrl.u32 %v3013, 7
      %v3015 = vsub.s32 %v3012, %v3014
      %v3016 = vrot.slane %v3002, %v3015
      %v3017 = vcombine.low %v3009, %v3016
      %v3018 = vcombine.low %v2402, %v2430
      %v3019 = vcombine.low %v2437, %v2444
      %v3021 = vunpack.c.l.s4 1966171168
      %v3022 = vunpack.c.0.s8 %v3021
      %v3023 = vlaneseq
      %v3024 = vshrl.u32 %v3023, 7
      %v3025 = vsub.s32 %v3022, %v3024
      %v3026 = vrot.slane %v3018, %v3025
      %v3028 = vunpack.c.l.s4 1966171168
      %v3029 = vunpack.c.0.s8 %v3028
      %v3030 = vlaneseq
      %v3031 = vshrl.u32 %v3030, 7
      %v3032 = vsub.s32 %v3029, %v3031
      %v3033 = vrot.slane %v3019, %v3032
      %v3034 = vcombine.low %v3026, %v3033
      %v3035 = vcombine.low %v2451, %v2479
      %v3036 = vcombine.low %v2486, %v2493
      %v3038 = vunpack.c.l.s4 1966171168
      %v3039 = vunpack.c.0.s8 %v3038
      %v3040 = vlaneseq
      %v3041 = vshrl.u32 %v3040, 7
      %v3042 = vsub.s32 %v3039, %v3041
      %v3043 = vrot.slane %v3035, %v3042
      %v3045 = vunpack.c.l.s4 1966171168
      %v3046 = vunpack.c.0.s8 %v3045
      %v3047 = vlaneseq
      %v3048 = vshrl.u32 %v3047, 7
      %v3049 = vsub.s32 %v3046, %v3048
      %v3050 = vrot.slane %v3036, %v3049
      %v3051 = vcombine.low %v3043, %v3050
      %v3052 = vcombine.low %v2500, %v2528
      %v3053 = vcombine.low %v2535, %v2542
      %v3055 = vunpack.c.l.s4 1966171168
      %v3056 = vunpack.c.0.s8 %v3055
      %v3057 = vlaneseq
      %v3058 = vshrl.u32 %v3057, 7
      %v3059 = vsub.s32 %v3056, %v3058
      %v3060 = vrot.slane %v3052, %v3059
      %v3062 = vunpack.c.l.s4 1966171168
      %v3063 = vunpack.c.0.s8 %v3062
      %v3064 = vlaneseq
      %v3065 = vshrl.u32 %v3064, 7
      %v3066 = vsub.s32 %v3063, %v3065
      %v3067 = vrot.slane %v3053, %v3066
      %v3068 = vcombine.low %v3060, %v3067
      %v3069 = vcombine.low %v2549, %v2577
      %v3070 = vcombine.low %v2584, %v2591
      %v3072 = vunpack.c.l.s4 1966171168
      %v3073 = vunpack.c.0.s8 %v3072
      %v3074 = vlaneseq
      %v3075 = vshrl.u32 %v3074, 7
      %v3076 = vsub.s32 %v3073, %v3075
      %v3077 = vrot.slane %v3069, %v3076
      %v3079 = vunpack.c.l.s4 1966171168
      %v3080 = vunpack.c.0.s8 %v3079
      %v3081 = vlaneseq
      %v3082 = vshrl.u32 %v3081, 7
      %v3083 = vsub.s32 %v3080, %v3082
      %v3084 = vrot.slane %v3070, %v3083
      %v3085 = vcombine.low %v3077, %v3084
      %v3086 = vcombine.low %v2598, %v2626
      %v3087 = vcombine.low %v2633, %v2640
      %v3089 = vunpack.c.l.s4 1966171168
      %v3090 = vunpack.c.0.s8 %v3089
      %v3091 = vlaneseq
      %v3092 = vshrl.u32 %v3091, 7
      %v3093 = vsub.s32 %v3090, %v3092
      %v3094 = vrot.slane %v3086, %v3093
      %v3096 = vunpack.c.l.s4 1966171168
      %v3097 = vunpack.c.0.s8 %v3096
      %v3098 = vlaneseq
      %v3099 = vshrl.u32 %v3098, 7
      %v3100 = vsub.s32 %v3097, %v3099
      %v3101 = vrot.slane %v3087, %v3100
      %v3102 = vcombine.low %v3094, %v3101
      %v3103 = vcombine.low %v1258, %v1272
      %v3104 = vcombine.low %v1280, %v1282
      %v3106 = vunpack.c.l.s4 1966171168
      %v3107 = vunpack.c.0.s8 %v3106
      %v3108 = vlaneseq
      %v3109 = vshrl.u32 %v3108, 7
      %v3110 = vsub.s32 %v3107, %v3109
      %v3111 = vrot.slane %v3103, %v3110
      %v3113 = vunpack.c.l.s4 1966171168
      %v3114 = vunpack.c.0.s8 %v3113
      %v3115 = vlaneseq
      %v3116 = vshrl.u32 %v3115, 7
      %v3117 = vsub.s32 %v3114, %v3116
      %v3118 = vrot.slane %v3104, %v3117
      %v3119 = vcombine.low %v2647, %v2672
      %v3120 = vcombine.low %v3111, %v3118
      %v3122 = vunpack.c.l.s4 1966171168
      %v3123 = vunpack.c.0.s8 %v3122
      %v3124 = vlaneseq
      %v3125 = vshrl.u32 %v3124, 7
      %v3126 = vsub.s32 %v3123, %v3125
      %v3127 = vrot.slane %v3119, %v3126
      %v3129 = vunpack.c.l.s4 1966171168
      %v3130 = vunpack.c.0.s8 %v3129
      %v3131 = vlaneseq
      %v3132 = vshrl.u32 %v3131, 7
      %v3133 = vsub.s32 %v3130, %v3132
      %v3134 = vrot.slane %v3120, %v3133
      %v3135 = vcombine.low %v3127, %v3134
      %v3136 = vcombine.low %v1265, %v1279
      %v3137 = vcombine.low %v1281, %v2905
      %v3138 = vcombine.low %v2919, %v2927
      %v3139 = vcombine.low %v2929, %v2912
      %v3141 = vunpack.c.l.s4 1966171168
      %v3142 = vunpack.c.0.s8 %v3141
      %v3143 = vlaneseq
      %v3144 = vshrl.u32 %v3143, 7
      %v3145 = vsub.s32 %v3142, %v3144
      %v3146 = vrot.slane %v3136, %v3145
      %v3148 = vunpack.c.l.s4 1966171168
      %v3149 = vunpack.c.0.s8 %v3148
      %v3150 = vlaneseq
      %v3151 = vshrl.u32 %v3150, 7
      %v3152 = vsub.s32 %v3149, %v3151
      %v3153 = vrot.slane %v3137, %v3152
      %v3155 = vunpack.c.l.s4 1966171168
      %v3156 = vunpack.c.0.s8 %v3155
      %v3157 = vlaneseq
      %v3158 = vshrl.u32 %v3157, 7
      %v3159 = vsub.s32 %v3156, %v3158
      %v3160 = vrot.slane %v3138, %v3159
      %v3162 = vunpack.c.l.s4 1966171168
      %v3163 = vunpack.c.0.s8 %v3162
      %v3164 = vlaneseq
      %v3165 = vshrl.u32 %v3164, 7
      %v3166 = vsub.s32 %v3163, %v3165
      %v3167 = vrot.slane %v3139, %v3166
      %v3168 = vcombine.low %v3146, %v3153
      %v3169 = vcombine.low %v3160, %v3167
      %v3171 = vunpack.c.l.s4 1966171168
      %v3172 = vunpack.c.0.s8 %v3171
      %v3173 = vlaneseq
      %v3174 = vshrl.u32 %v3173, 7
      %v3175 = vsub.s32 %v3172, %v3174
      %v3176 = vrot.slane %v3168, %v3175
      %v3178 = vunpack.c.l.s4 1966171168
      %v3179 = vunpack.c.0.s8 %v3178
      %v3180 = vlaneseq
      %v3181 = vshrl.u32 %v3180, 7
      %v3182 = vsub.s32 %v3179, %v3181
      %v3183 = vrot.slane %v3169, %v3182
      %v3184 = vcombine.low %v3176, %v3183
      %v3185 = vcombine.low %v2926, %v2928
      %v3187 = vunpack.c.l.s4 1966171168
      %v3188 = vunpack.c.0.s8 %v3187
      %v3189 = vlaneseq
      %v3190 = vshrl.u32 %v3189, 7
      %v3191 = vsub.s32 %v3188, %v3190
      %v3192 = vrot.slane %v3185, %v3191
      %v3194 = vunpack.c.l.s4 1966171168
      %v3195 = vunpack.c.0.s8 %v3194
      %v3196 = vlaneseq
      %v3197 = vshrl.u32 %v3196, 7
      %v3198 = vsub.s32 %v3195, %v3197
      %v3199 = vrot.slane %v3192, %v3198
      %v3202 = vunpack.c.l.b16 %v2931
      %v3203 = vunpack.c.l.b16 %v2932
      %v3204 = vpack.c.b16 %v3203, %v3202
      %v3206 = vsel %vm1894, %v2949, 0
      %v3209 = vsel %vm1894, %v2966, 0
      %v3212 = vsel %vm1894, %v2983, 0
      %v3215 = vsel %vm1894, %v3000, 0
      %v3218 = vsel %vm1894, %v3017, 0
      %v3221 = vsel %vm1894, %v3034, 0
      %v3224 = vsel %vm1894, %v3051, 0
      %v3227 = vsel %vm1894, %v3068, 0
      %v3230 = vsel %vm1894, %v3085, 0
      %v3233 = vsel %vm1894, %v3102, 0
      %v3236 = vsel %vm1894, %v3135, 0
      %v3239 = vsel %vm1894, %v3184, 0
      %v3242 = vsel %vm1894, %v3199, 0
      %v3245 = vand.u32 %v3204, %v1937
      %3247 = vmatprep.subr.bf16.mxu0 0
      %3248 = vmatpush1.bf16.msra.mxu0 0
      %3249 = vmatprep.subr.bf16.mxu0 0
      %3250 = vmatpush1.bf16.msra.mxu0 0
      %3251 = vmatprep.subr.bf16.mxu0 0
      %3252 = vmatpush1.bf16.msra.mxu0 0
      %3253 = vmatprep.subr.bf16.mxu0 0
      %3254 = vmatpush1.bf16.msra.mxu0 0
      %3255 = vmatprep.subr.bf16.mxu0 0
      %3256 = vmatpush1.bf16.msra.mxu0 0
      %3257 = vmatprep.subr.bf16.mxu0 0
      %3258 = vmatpush1.bf16.msra.mxu0 0
      %3259 = vmatprep.subr.bf16.mxu0 0
      %3260 = vmatpush1.bf16.msra.mxu0 0
      %3261 = vmatprep.subr.bf16.mxu0 0
      %3262 = vmatpush1.bf16.msra.mxu0 %v3245
      %3263 = vmatprep.subr.bf16.mxu0 0
      %3264 = vmatpush2.bf16.msra.mxu0 0
      %3265 = vmatprep.subr.bf16.mxu0 0
      %3266 = vmatpush2.bf16.msra.mxu0 0
      %3267 = vmatprep.subr.bf16.mxu0 0
      %3268 = vmatpush2.bf16.msra.mxu0 0
      %3269 = vmatprep.subr.bf16.mxu0 0
      %3270 = vmatpush2.bf16.msra.mxu0 0
      %3271 = vmatprep.subr.bf16.mxu0 0
      %3272 = vmatpush2.bf16.msra.mxu0 0
      %3273 = vmatprep.subr.bf16.mxu0 0
      %3274 = vmatpush2.bf16.msra.mxu0 0
      %3275 = vmatprep.subr.bf16.mxu0 0
      %3276 = vmatpush2.bf16.msra.mxu0 0
      %3277 = vmatprep.subr.bf16.mxu0 0
      %3278 = vmatpush2.bf16.msra.mxu0 0
      %3279 = vmatprep.mubr.bf16.mxu0 0
      %3280 = vmatmul.mubr.bf16.gmra.mxu0 %v3206
      %v3281 = vpop.f32.mrf.mxu0
      %v3282 = vadd.f32 0.0, %v3281
      %v3283 = vpop.f32.mrf.mxu0
      %v3284 = vpop.f32.mrf.mxu0
      %v3285 = vadd.f32 0.0, %v3284
      %v3286 = vpop.f32.mrf.mxu0
      %3287 = vmatprep.mubr.bf16.mxu0 0
      %3288 = vmatmul.mubr.bf16.gmra.mxu0 %v3209
      %v3289 = vpop.f32.mrf.mxu0
      %v3290 = vadd.f32 0.0, %v3289
      %v3291 = vpop.f32.mrf.mxu0
      %v3292 = vpop.f32.mrf.mxu0
      %v3293 = vadd.f32 0.0, %v3292
      %v3294 = vpop.f32.mrf.mxu0
      %3295 = vmatprep.mubr.bf16.mxu0 0
      %3296 = vmatmul.mubr.bf16.gmra.mxu0 %v3212
      %v3297 = vpop.f32.mrf.mxu0
      %v3298 = vadd.f32 0.0, %v3297
      %v3299 = vpop.f32.mrf.mxu0
      %v3300 = vpop.f32.mrf.mxu0
      %v3301 = vadd.f32 0.0, %v3300
      %v3302 = vpop.f32.mrf.mxu0
      %3303 = vmatprep.mubr.bf16.mxu0 0
      %3304 = vmatmul.mubr.bf16.gmra.mxu0 %v3215
      %v3305 = vpop.f32.mrf.mxu0
      %v3306 = vadd.f32 0.0, %v3305
      %v3307 = vpop.f32.mrf.mxu0
      %v3308 = vpop.f32.mrf.mxu0
      %v3309 = vadd.f32 0.0, %v3308
      %v3310 = vpop.f32.mrf.mxu0
      %3311 = vmatprep.mubr.bf16.mxu0 0
      %3312 = vmatmul.mubr.bf16.gmra.mxu0 %v3218
      %v3313 = vpop.f32.mrf.mxu0
      %v3314 = vadd.f32 0.0, %v3313
      %v3315 = vpop.f32.mrf.mxu0
      %v3316 = vpop.f32.mrf.mxu0
      %v3317 = vadd.f32 0.0, %v3316
      %v3318 = vpop.f32.mrf.mxu0
      %3319 = vmatprep.mubr.bf16.mxu0 0
      %3320 = vmatmul.mubr.bf16.gmra.mxu0 %v3221
      %v3321 = vpop.f32.mrf.mxu0
      %v3322 = vadd.f32 0.0, %v3321
      %v3323 = vpop.f32.mrf.mxu0
      %v3324 = vpop.f32.mrf.mxu0
      %v3325 = vadd.f32 0.0, %v3324
      %v3326 = vpop.f32.mrf.mxu0
      %3327 = vmatprep.mubr.bf16.mxu0 0
      %3328 = vmatmul.mubr.bf16.gmra.mxu0 %v3224
      %v3329 = vpop.f32.mrf.mxu0
      %v3330 = vadd.f32 0.0, %v3329
      %v3331 = vpop.f32.mrf.mxu0
      %v3332 = vpop.f32.mrf.mxu0
      %v3333 = vadd.f32 0.0, %v3332
      %v3334 = vpop.f32.mrf.mxu0
      %3335 = vmatprep.mubr.bf16.mxu0 0
      %3336 = vmatmul.mubr.bf16.gmra.mxu0 %v3227
      %v3337 = vpop.f32.mrf.mxu0
      %v3338 = vadd.f32 0.0, %v3337
      %v3339 = vpop.f32.mrf.mxu0
      %v3340 = vpop.f32.mrf.mxu0
      %v3341 = vadd.f32 0.0, %v3340
      %v3342 = vpop.f32.mrf.mxu0
      %3343 = vmatprep.mubr.bf16.mxu0 0
      %3344 = vmatmul.mubr.bf16.gmra.mxu0 %v3230
      %v3345 = vpop.f32.mrf.mxu0
      %v3346 = vadd.f32 0.0, %v3345
      %v3347 = vpop.f32.mrf.mxu0
      %v3348 = vpop.f32.mrf.mxu0
      %v3349 = vadd.f32 0.0, %v3348
      %v3350 = vpop.f32.mrf.mxu0
      %3351 = vmatprep.mubr.bf16.mxu0 0
      %3352 = vmatmul.mubr.bf16.gmra.mxu0 %v3233
      %v3353 = vpop.f32.mrf.mxu0
      %v3354 = vadd.f32 0.0, %v3353
      %v3355 = vpop.f32.mrf.mxu0
      %v3356 = vpop.f32.mrf.mxu0
      %v3357 = vadd.f32 0.0, %v3356
      %v3358 = vpop.f32.mrf.mxu0
      %3359 = vmatprep.mubr.bf16.mxu0 0
      %3360 = vmatmul.mubr.bf16.gmra.mxu0 %v3236
      %v3361 = vpop.f32.mrf.mxu0
      %v3362 = vadd.f32 0.0, %v3361
      %v3363 = vpop.f32.mrf.mxu0
      %v3364 = vpop.f32.mrf.mxu0
      %v3365 = vadd.f32 0.0, %v3364
      %v3366 = vpop.f32.mrf.mxu0
      %3367 = vmatprep.mubr.bf16.mxu0 0
      %3368 = vmatmul.mubr.bf16.gmra.mxu0 %v3239
      %v3369 = vpop.f32.mrf.mxu0
      %v3370 = vadd.f32 0.0, %v3369
      %v3371 = vpop.f32.mrf.mxu0
      %v3372 = vpop.f32.mrf.mxu0
      %v3373 = vadd.f32 0.0, %v3372
      %v3374 = vpop.f32.mrf.mxu0
      %3375 = vmatprep.mubr.bf16.mxu0 0
      %3376 = vmatmul.mubr.bf16.gmra.mxu0 %v3242
      %v3377 = vpop.f32.mrf.mxu0
      %v3378 = vadd.f32 0.0, %v3377
      %v3379 = vpop.f32.mrf.mxu0
      %v3380 = vpop.f32.mrf.mxu0
      %v3381 = vpop.f32.mrf.mxu0
      %3382 = vdwg.mxu0
      %v3383 = vadd.f32 %v2762, %v3282
      %v3384 = vadd.f32 %v2765, %v3285
      %v3385 = vadd.f32 %v2770, %v3290
      %v3386 = vadd.f32 %v2773, %v3293
      %v3387 = vadd.f32 %v2778, %v3298
      %v3388 = vadd.f32 %v2781, %v3301
      %v3389 = vadd.f32 %v2786, %v3306
      %v3390 = vadd.f32 %v2789, %v3309
      %v3391 = vadd.f32 %v2794, %v3314
      %v3392 = vadd.f32 %v2797, %v3317
      %v3393 = vadd.f32 %v2802, %v3322
      %v3394 = vadd.f32 %v2805, %v3325
      %v3395 = vadd.f32 %v2810, %v3330
      %v3396 = vadd.f32 %v2813, %v3333
      %v3397 = vadd.f32 %v2818, %v3338
      %v3398 = vadd.f32 %v2821, %v3341
      %v3399 = vadd.f32 %v2826, %v3346
      %v3400 = vadd.f32 %v2829, %v3349
      %v3401 = vadd.f32 %v2834, %v3354
      %v3402 = vadd.f32 %v2837, %v3357
      %v3403 = vadd.f32 %v2842, %v3362
      %v3404 = vadd.f32 %v2845, %v3365
      %v3405 = vadd.f32 %v2850, %v3370
      %v3406 = vadd.f32 %v2853, %v3373
      %v3407 = vadd.f32 %v2858, %v3378
      %v3408 = vld [vmem:[%s2] sm:$0x1]
      %v3410 = vlaneseq
      %v3411 = vshrl.u32 %v3410, 7
      %v3412 = vsub.s32 0, %v3411
      %v3413 = vrot.slane %v3408, %v3412
      %v3415 = vadd.f32 %v3383, %v3413
      %v3416 = vadd.f32 %v3384, %v3413
      %v3417 = vadd.f32 %v3385, %v3413
      %v3418 = vadd.f32 %v3386, %v3413
      %v3419 = vadd.f32 %v3387, %v3413
      %v3420 = vadd.f32 %v3388, %v3413
      %v3421 = vadd.f32 %v3389, %v3413
      %v3422 = vadd.f32 %v3390, %v3413
      %v3423 = vadd.f32 %v3391, %v3413
      %v3424 = vadd.f32 %v3392, %v3413
      %v3425 = vadd.f32 %v3393, %v3413
      %v3426 = vadd.f32 %v3394, %v3413
      %v3427 = vadd.f32 %v3395, %v3413
      %v3428 = vadd.f32 %v3396, %v3413
      %v3429 = vadd.f32 %v3397, %v3413
      %v3430 = vadd.f32 %v3398, %v3413
      %v3431 = vadd.f32 %v3399, %v3413
      %v3432 = vadd.f32 %v3400, %v3413
      %v3433 = vadd.f32 %v3401, %v3413
      %v3434 = vadd.f32 %v3402, %v3413
      %v3435 = vadd.f32 %v3403, %v3413
      %v3436 = vadd.f32 %v3404, %v3413
      %v3437 = vadd.f32 %v3405, %v3413
      %v3438 = vadd.f32 %v3406, %v3413
      %v3439 = vadd.f32 %v3407, %v3413
      %vm3440 = vcmp.gt.f32.partialorder %v3415, 0.0
      %vm3441 = vcmp.gt.f32.partialorder %v3416, 0.0
      %vm3442 = vcmp.gt.f32.partialorder %v3417, 0.0
      %vm3443 = vcmp.gt.f32.partialorder %v3418, 0.0
      %vm3444 = vcmp.gt.f32.partialorder %v3419, 0.0
      %vm3445 = vcmp.gt.f32.partialorder %v3420, 0.0
      %vm3446 = vcmp.gt.f32.partialorder %v3421, 0.0
      %vm3447 = vcmp.gt.f32.partialorder %v3422, 0.0
      %vm3448 = vcmp.gt.f32.partialorder %v3423, 0.0
      %vm3449 = vcmp.gt.f32.partialorder %v3424, 0.0
      %vm3450 = vcmp.gt.f32.partialorder %v3425, 0.0
      %vm3451 = vcmp.gt.f32.partialorder %v3426, 0.0
      %vm3452 = vcmp.gt.f32.partialorder %v3427, 0.0
      %vm3453 = vcmp.gt.f32.partialorder %v3428, 0.0
      %vm3454 = vcmp.gt.f32.partialorder %v3429, 0.0
      %vm3455 = vcmp.gt.f32.partialorder %v3430, 0.0
      %vm3456 = vcmp.gt.f32.partialorder %v3431, 0.0
      %vm3457 = vcmp.gt.f32.partialorder %v3432, 0.0
      %vm3458 = vcmp.gt.f32.partialorder %v3433, 0.0
      %vm3459 = vcmp.gt.f32.partialorder %v3434, 0.0
      %vm3460 = vcmp.gt.f32.partialorder %v3435, 0.0
      %vm3461 = vcmp.gt.f32.partialorder %v3436, 0.0
      %vm3462 = vcmp.gt.f32.partialorder %v3437, 0.0
      %vm3463 = vcmp.gt.f32.partialorder %v3438, 0.0
      %vm3464 = vcmp.gt.f32.partialorder %v3439, 0.0
      %v3465 = vmul.f32 %v3415, 0.01
      %v3466 = vmul.f32 %v3416, 0.01
      %v3467 = vmul.f32 %v3417, 0.01
      %v3468 = vmul.f32 %v3418, 0.01
      %v3469 = vmul.f32 %v3419, 0.01
      %v3470 = vmul.f32 %v3420, 0.01
      %v3471 = vmul.f32 %v3421, 0.01
      %v3472 = vmul.f32 %v3422, 0.01
      %v3473 = vmul.f32 %v3423, 0.01
      %v3474 = vmul.f32 %v3424, 0.01
      %v3475 = vmul.f32 %v3425, 0.01
      %v3476 = vmul.f32 %v3426, 0.01
      %v3477 = vmul.f32 %v3427, 0.01
      %v3478 = vmul.f32 %v3428, 0.01
      %v3479 = vmul.f32 %v3429, 0.01
      %v3480 = vmul.f32 %v3430, 0.01
      %v3481 = vmul.f32 %v3431, 0.01
      %v3482 = vmul.f32 %v3432, 0.01
      %v3483 = vmul.f32 %v3433, 0.01
      %v3484 = vmul.f32 %v3434, 0.01
      %v3485 = vmul.f32 %v3435, 0.01
      %v3486 = vmul.f32 %v3436, 0.01
      %v3487 = vmul.f32 %v3437, 0.01
      %v3488 = vmul.f32 %v3438, 0.01
      %v3489 = vmul.f32 %v3439, 0.01
      %v3490 = vsel %vm3440, %v3415, %v3465
      %v3491 = vsel %vm3441, %v3416, %v3466
      %v3492 = vsel %vm3442, %v3417, %v3467
      %v3493 = vsel %vm3443, %v3418, %v3468
      %v3494 = vsel %vm3444, %v3419, %v3469
      %v3495 = vsel %vm3445, %v3420, %v3470
      %v3496 = vsel %vm3446, %v3421, %v3471
      %v3497 = vsel %vm3447, %v3422, %v3472
      %v3498 = vsel %vm3448, %v3423, %v3473
      %v3499 = vsel %vm3449, %v3424, %v3474
      %v3500 = vsel %vm3450, %v3425, %v3475
      %v3501 = vsel %vm3451, %v3426, %v3476
      %v3502 = vsel %vm3452, %v3427, %v3477
      %v3503 = vsel %vm3453, %v3428, %v3478
      %v3504 = vsel %vm3454, %v3429, %v3479
      %v3505 = vsel %vm3455, %v3430, %v3480
      %v3506 = vsel %vm3456, %v3431, %v3481
      %v3507 = vsel %vm3457, %v3432, %v3482
      %v3508 = vsel %vm3458, %v3433, %v3483
      %v3509 = vsel %vm3459, %v3434, %v3484
      %v3510 = vsel %vm3460, %v3435, %v3485
      %v3511 = vsel %vm3461, %v3436, %v3486
      %v3512 = vsel %vm3462, %v3437, %v3487
      %v3513 = vsel %vm3463, %v3438, %v3488
      %v3514 = vsel %vm3464, %v3439, %v3489
      %vm3515 = vcmask 261120
      %v3516 = vsel %vm3515, %v3490, 0.0
      %v3517 = vsel %vm3515, %v3491, 0.0
      %v3518 = vadd.f32 %v3516, %v3517
      %v3519 = vsel %vm3515, %v3492, 0.0
      %v3520 = vadd.f32 %v3518, %v3519
      %v3521 = vsel %vm3515, %v3493, 0.0
      %v3522 = vadd.f32 %v3520, %v3521
      %v3523 = vsel %vm3515, %v3494, 0.0
      %v3524 = vadd.f32 %v3522, %v3523
      %v3525 = vsel %vm3515, %v3495, 0.0
      %v3526 = vadd.f32 %v3524, %v3525
      %v3527 = vsel %vm3515, %v3496, 0.0
      %v3528 = vadd.f32 %v3526, %v3527
      %v3529 = vsel %vm3515, %v3497, 0.0
      %v3530 = vadd.f32 %v3528, %v3529
      %v3531 = vsel %vm3515, %v3498, 0.0
      %v3532 = vadd.f32 %v3530, %v3531
      %v3533 = vsel %vm3515, %v3499, 0.0
      %v3534 = vadd.f32 %v3532, %v3533
      %v3535 = vsel %vm3515, %v3500, 0.0
      %v3536 = vadd.f32 %v3534, %v3535
      %v3537 = vsel %vm3515, %v3501, 0.0
      %v3538 = vadd.f32 %v3536, %v3537
      %v3539 = vsel %vm3515, %v3502, 0.0
      %v3540 = vadd.f32 %v3538, %v3539
      %v3541 = vsel %vm3515, %v3503, 0.0
      %v3542 = vadd.f32 %v3540, %v3541
      %v3543 = vsel %vm3515, %v3504, 0.0
      %v3544 = vadd.f32 %v3542, %v3543
      %v3545 = vsel %vm3515, %v3505, 0.0
      %v3546 = vadd.f32 %v3544, %v3545
      %v3547 = vsel %vm3515, %v3506, 0.0
      %v3548 = vadd.f32 %v3546, %v3547
      %v3549 = vsel %vm3515, %v3507, 0.0
      %v3550 = vadd.f32 %v3548, %v3549
      %v3551 = vsel %vm3515, %v3508, 0.0
      %v3552 = vadd.f32 %v3550, %v3551
      %v3553 = vsel %vm3515, %v3509, 0.0
      %v3554 = vadd.f32 %v3552, %v3553
      %v3555 = vsel %vm3515, %v3510, 0.0
      %v3556 = vadd.f32 %v3554, %v3555
      %v3557 = vsel %vm3515, %v3511, 0.0
      %v3558 = vadd.f32 %v3556, %v3557
      %v3559 = vsel %vm3515, %v3512, 0.0
      %v3560 = vadd.f32 %v3558, %v3559
      %v3561 = vsel %vm3515, %v3513, 0.0
      %v3562 = vadd.f32 %v3560, %v3561
      %vm3563 = vcmask 257024
      %v3564 = vsel %vm3563, %v3514, 0.0
      %v3565 = vadd.f32 %v3562, %v3564
      %v3566 = vrot.slane %v3565, 4
      %v3567 = vadd.f32 %v3565, %v3566
      %v3568 = vrot.slane %v3567, 2
      %v3569 = vadd.f32 %v3567, %v3568
      %v3570 = vrot.slane %v3569, 1
      %v3571 = vadd.f32 %v3569, %v3570
      %v3572 = vmul.f32 %v3490, %v3490
      %v3573 = vmul.f32 %v3491, %v3491
      %v3574 = vmul.f32 %v3492, %v3492
      %v3575 = vmul.f32 %v3493, %v3493
      %v3576 = vmul.f32 %v3494, %v3494
      %v3577 = vmul.f32 %v3495, %v3495
      %v3578 = vmul.f32 %v3496, %v3496
      %v3579 = vmul.f32 %v3497, %v3497
      %v3580 = vmul.f32 %v3498, %v3498
      %v3581 = vmul.f32 %v3499, %v3499
      %v3582 = vmul.f32 %v3500, %v3500
      %v3583 = vmul.f32 %v3501, %v3501
      %v3584 = vmul.f32 %v3502, %v3502
      %v3585 = vmul.f32 %v3503, %v3503
      %v3586 = vmul.f32 %v3504, %v3504
      %v3587 = vmul.f32 %v3505, %v3505
      %v3588 = vmul.f32 %v3506, %v3506
      %v3589 = vmul.f32 %v3507, %v3507
      %v3590 = vmul.f32 %v3508, %v3508
      %v3591 = vmul.f32 %v3509, %v3509
      %v3592 = vmul.f32 %v3510, %v3510
      %v3593 = vmul.f32 %v3511, %v3511
      %v3594 = vmul.f32 %v3512, %v3512
      %v3595 = vmul.f32 %v3513, %v3513
      %v3596 = vmul.f32 %v3514, %v3514
      %v3597 = vsel %vm3515, %v3572, 0.0
      %v3598 = vsel %vm3515, %v3573, 0.0
      %v3599 = vadd.f32 %v3597, %v3598
      %v3600 = vsel %vm3515, %v3574, 0.0
      %v3601 = vadd.f32 %v3599, %v3600
      %v3602 = vsel %vm3515, %v3575, 0.0
      %v3603 = vadd.f32 %v3601, %v3602
      %v3604 = vsel %vm3515, %v3576, 0.0
      %v3605 = vadd.f32 %v3603, %v3604
      %v3606 = vsel %vm3515, %v3577, 0.0
      %v3607 = vadd.f32 %v3605, %v3606
      %v3608 = vsel %vm3515, %v3578, 0.0
      %v3609 = vadd.f32 %v3607, %v3608
      %v3610 = vsel %vm3515, %v3579, 0.0
      %v3611 = vadd.f32 %v3609, %v3610
      %v3612 = vsel %vm3515, %v3580, 0.0
      %v3613 = vadd.f32 %v3611, %v3612
      %v3614 = vsel %vm3515, %v3581, 0.0
      %v3615 = vadd.f32 %v3613, %v3614
      %v3616 = vsel %vm3515, %v3582, 0.0
      %v3617 = vadd.f32 %v3615, %v3616
      %v3618 = vsel %vm3515, %v3583, 0.0
      %v3619 = vadd.f32 %v3617, %v3618
      %v3620 = vsel %vm3515, %v3584, 0.0
      %v3621 = vadd.f32 %v3619, %v3620
      %v3622 = vsel %vm3515, %v3585, 0.0
      %v3623 = vadd.f32 %v3621, %v3622
      %v3624 = vsel %vm3515, %v3586, 0.0
      %v3625 = vadd.f32 %v3623, %v3624
      %v3626 = vsel %vm3515, %v3587, 0.0
      %v3627 = vadd.f32 %v3625, %v3626
      %v3628 = vsel %vm3515, %v3588, 0.0
      %v3629 = vadd.f32 %v3627, %v3628
      %v3630 = vsel %vm3515, %v3589, 0.0
      %v3631 = vadd.f32 %v3629, %v3630
      %v3632 = vsel %vm3515, %v3590, 0.0
      %v3633 = vadd.f32 %v3631, %v3632
      %v3634 = vsel %vm3515, %v3591, 0.0
      %v3635 = vadd.f32 %v3633, %v3634
      %v3636 = vsel %vm3515, %v3592, 0.0
      %v3637 = vadd.f32 %v3635, %v3636
      %v3638 = vsel %vm3515, %v3593, 0.0
      %v3639 = vadd.f32 %v3637, %v3638
      %v3640 = vsel %vm3515, %v3594, 0.0
      %v3641 = vadd.f32 %v3639, %v3640
      %v3642 = vsel %vm3515, %v3595, 0.0
      %v3643 = vadd.f32 %v3641, %v3642
      %v3644 = vsel %vm3563, %v3596, 0.0
      %v3645 = vadd.f32 %v3643, %v3644
      %v3646 = vrot.slane %v3645, 4
      %v3647 = vadd.f32 %v3645, %v3646
      %v3648 = vrot.slane %v3647, 2
      %v3649 = vadd.f32 %v3647, %v3648
      %v3650 = vrot.slane %v3649, 1
      %v3651 = vadd.f32 %v3649, %v3650
      %vm3652 = vcmask 1040384
      %v3653 = vsel %vm3652, %v3571, %v3651
      %vm3654 = vcmask 254976
      %3655 = vst.msk [vmem:[%s208] sm:$0x3] %vm3654, %v3653
      %v3681 = vcombine.high %v3490, %v3490
      %v3683 = vunpack.c.l.s4 1983009808
      %v3684 = vunpack.c.0.s8 %v3683
      %v3685 = vlaneseq
      %v3686 = vshrl.u32 %v3685, 7
      %v3687 = vsub.s32 %v3684, %v3686
      %v3688 = vrot.slane %v3490, %v3687
      %v3690 = vunpack.c.l.s4 1983009808
      %v3691 = vunpack.c.0.s8 %v3690
      %v3692 = vlaneseq
      %v3693 = vshrl.u32 %v3692, 7
      %v3694 = vsub.s32 %v3691, %v3693
      %v3695 = vrot.slane %v3681, %v3694
      %v3696 = vcombine.high %v3688, %v3688
      %v3697 = vcombine.high %v3695, %v3695
      %v3698 = vcombine.high %v3491, %v3491
      %v3700 = vunpack.c.l.s4 1983009808
      %v3701 = vunpack.c.0.s8 %v3700
      %v3702 = vlaneseq
      %v3703 = vshrl.u32 %v3702, 7
      %v3704 = vsub.s32 %v3701, %v3703
      %v3705 = vrot.slane %v3491, %v3704
      %v3707 = vunpack.c.l.s4 1983009808
      %v3708 = vunpack.c.0.s8 %v3707
      %v3709 = vlaneseq
      %v3710 = vshrl.u32 %v3709, 7
      %v3711 = vsub.s32 %v3708, %v3710
      %v3712 = vrot.slane %v3698, %v3711
      %v3713 = vcombine.high %v3705, %v3705
      %v3714 = vcombine.high %v3712, %v3712
      %v3715 = vcombine.high %v3492, %v3492
      %v3717 = vunpack.c.l.s4 1983009808
      %v3718 = vunpack.c.0.s8 %v3717
      %v3719 = vlaneseq
      %v3720 = vshrl.u32 %v3719, 7
      %v3721 = vsub.s32 %v3718, %v3720
      %v3722 = vrot.slane %v3492, %v3721
      %v3724 = vunpack.c.l.s4 1983009808
      %v3725 = vunpack.c.0.s8 %v3724
      %v3726 = vlaneseq
      %v3727 = vshrl.u32 %v3726, 7
      %v3728 = vsub.s32 %v3725, %v3727
      %v3729 = vrot.slane %v3715, %v3728
      %v3730 = vcombine.high %v3722, %v3722
      %v3731 = vcombine.high %v3729, %v3729
      %v3732 = vcombine.high %v3493, %v3493
      %v3734 = vunpack.c.l.s4 1983009808
      %v3735 = vunpack.c.0.s8 %v3734
      %v3736 = vlaneseq
      %v3737 = vshrl.u32 %v3736, 7
      %v3738 = vsub.s32 %v3735, %v3737
      %v3739 = vrot.slane %v3493, %v3738
      %v3741 = vunpack.c.l.s4 1983009808
      %v3742 = vunpack.c.0.s8 %v3741
      %v3743 = vlaneseq
      %v3744 = vshrl.u32 %v3743, 7
      %v3745 = vsub.s32 %v3742, %v3744
      %v3746 = vrot.slane %v3732, %v3745
      %v3747 = vcombine.high %v3739, %v3739
      %v3748 = vcombine.high %v3746, %v3746
      %v3749 = vcombine.high %v3494, %v3494
      %v3751 = vunpack.c.l.s4 1983009808
      %v3752 = vunpack.c.0.s8 %v3751
      %v3753 = vlaneseq
      %v3754 = vshrl.u32 %v3753, 7
      %v3755 = vsub.s32 %v3752, %v3754
      %v3756 = vrot.slane %v3494, %v3755
      %v3758 = vunpack.c.l.s4 1983009808
      %v3759 = vunpack.c.0.s8 %v3758
      %v3760 = vlaneseq
      %v3761 = vshrl.u32 %v3760, 7
      %v3762 = vsub.s32 %v3759, %v3761
      %v3763 = vrot.slane %v3749, %v3762
      %v3764 = vcombine.high %v3756, %v3756
      %v3765 = vcombine.high %v3763, %v3763
      %v3766 = vcombine.high %v3495, %v3495
      %v3768 = vunpack.c.l.s4 1983009808
      %v3769 = vunpack.c.0.s8 %v3768
      %v3770 = vlaneseq
      %v3771 = vshrl.u32 %v3770, 7
      %v3772 = vsub.s32 %v3769, %v3771
      %v3773 = vrot.slane %v3495, %v3772
      %v3775 = vunpack.c.l.s4 1983009808
      %v3776 = vunpack.c.0.s8 %v3775
      %v3777 = vlaneseq
      %v3778 = vshrl.u32 %v3777, 7
      %v3779 = vsub.s32 %v3776, %v3778
      %v3780 = vrot.slane %v3766, %v3779
      %v3781 = vcombine.high %v3773, %v3773
      %v3782 = vcombine.high %v3780, %v3780
      %v3783 = vcombine.high %v3496, %v3496
      %v3785 = vunpack.c.l.s4 1983009808
      %v3786 = vunpack.c.0.s8 %v3785
      %v3787 = vlaneseq
      %v3788 = vshrl.u32 %v3787, 7
      %v3789 = vsub.s32 %v3786, %v3788
      %v3790 = vrot.slane %v3496, %v3789
      %v3792 = vunpack.c.l.s4 1983009808
      %v3793 = vunpack.c.0.s8 %v3792
      %v3794 = vlaneseq
      %v3795 = vshrl.u32 %v3794, 7
      %v3796 = vsub.s32 %v3793, %v3795
      %v3797 = vrot.slane %v3783, %v3796
      %v3798 = vcombine.high %v3790, %v3790
      %v3799 = vcombine.high %v3797, %v3797
      %v3800 = vcombine.high %v3497, %v3497
      %v3802 = vunpack.c.l.s4 1983009808
      %v3803 = vunpack.c.0.s8 %v3802
      %v3804 = vlaneseq
      %v3805 = vshrl.u32 %v3804, 7
      %v3806 = vsub.s32 %v3803, %v3805
      %v3807 = vrot.slane %v3497, %v3806
      %v3809 = vunpack.c.l.s4 1983009808
      %v3810 = vunpack.c.0.s8 %v3809
      %v3811 = vlaneseq
      %v3812 = vshrl.u32 %v3811, 7
      %v3813 = vsub.s32 %v3810, %v3812
      %v3814 = vrot.slane %v3800, %v3813
      %v3815 = vcombine.high %v3807, %v3807
      %v3816 = vcombine.high %v3814, %v3814
      %v3817 = vcombine.high %v3498, %v3498
      %v3819 = vunpack.c.l.s4 1983009808
      %v3820 = vunpack.c.0.s8 %v3819
      %v3821 = vlaneseq
      %v3822 = vshrl.u32 %v3821, 7
      %v3823 = vsub.s32 %v3820, %v3822
      %v3824 = vrot.slane %v3498, %v3823
      %v3826 = vunpack.c.l.s4 1983009808
      %v3827 = vunpack.c.0.s8 %v3826
      %v3828 = vlaneseq
      %v3829 = vshrl.u32 %v3828, 7
      %v3830 = vsub.s32 %v3827, %v3829
      %v3831 = vrot.slane %v3817, %v3830
      %v3832 = vcombine.high %v3824, %v3824
      %v3833 = vcombine.high %v3831, %v3831
      %v3834 = vcombine.high %v3499, %v3499
      %v3836 = vunpack.c.l.s4 1983009808
      %v3837 = vunpack.c.0.s8 %v3836
      %v3838 = vlaneseq
      %v3839 = vshrl.u32 %v3838, 7
      %v3840 = vsub.s32 %v3837, %v3839
      %v3841 = vrot.slane %v3499, %v3840
      %v3843 = vunpack.c.l.s4 1983009808
      %v3844 = vunpack.c.0.s8 %v3843
      %v3845 = vlaneseq
      %v3846 = vshrl.u32 %v3845, 7
      %v3847 = vsub.s32 %v3844, %v3846
      %v3848 = vrot.slane %v3834, %v3847
      %v3849 = vcombine.high %v3841, %v3841
      %v3850 = vcombine.high %v3848, %v3848
      %v3851 = vcombine.high %v3500, %v3500
      %v3853 = vunpack.c.l.s4 1983009808
      %v3854 = vunpack.c.0.s8 %v3853
      %v3855 = vlaneseq
      %v3856 = vshrl.u32 %v3855, 7
      %v3857 = vsub.s32 %v3854, %v3856
      %v3858 = vrot.slane %v3500, %v3857
      %v3860 = vunpack.c.l.s4 1983009808
      %v3861 = vunpack.c.0.s8 %v3860
      %v3862 = vlaneseq
      %v3863 = vshrl.u32 %v3862, 7
      %v3864 = vsub.s32 %v3861, %v3863
      %v3865 = vrot.slane %v3851, %v3864
      %v3866 = vcombine.high %v3858, %v3858
      %v3867 = vcombine.high %v3865, %v3865
      %v3868 = vcombine.high %v3501, %v3501
      %v3870 = vunpack.c.l.s4 1983009808
      %v3871 = vunpack.c.0.s8 %v3870
      %v3872 = vlaneseq
      %v3873 = vshrl.u32 %v3872, 7
      %v3874 = vsub.s32 %v3871, %v3873
      %v3875 = vrot.slane %v3501, %v3874
      %v3877 = vunpack.c.l.s4 1983009808
      %v3878 = vunpack.c.0.s8 %v3877
      %v3879 = vlaneseq
      %v3880 = vshrl.u32 %v3879, 7
      %v3881 = vsub.s32 %v3878, %v3880
      %v3882 = vrot.slane %v3868, %v3881
      %v3883 = vcombine.high %v3875, %v3875
      %v3884 = vcombine.high %v3882, %v3882
      %v3885 = vcombine.high %v3502, %v3502
      %v3887 = vunpack.c.l.s4 1983009808
      %v3888 = vunpack.c.0.s8 %v3887
      %v3889 = vlaneseq
      %v3890 = vshrl.u32 %v3889, 7
      %v3891 = vsub.s32 %v3888, %v3890
      %v3892 = vrot.slane %v3502, %v3891
      %v3894 = vunpack.c.l.s4 1983009808
      %v3895 = vunpack.c.0.s8 %v3894
      %v3896 = vlaneseq
      %v3897 = vshrl.u32 %v3896, 7
      %v3898 = vsub.s32 %v3895, %v3897
      %v3899 = vrot.slane %v3885, %v3898
      %v3900 = vcombine.high %v3892, %v3892
      %v3901 = vcombine.high %v3899, %v3899
      %v3902 = vcombine.high %v3503, %v3503
      %v3904 = vunpack.c.l.s4 1983009808
      %v3905 = vunpack.c.0.s8 %v3904
      %v3906 = vlaneseq
      %v3907 = vshrl.u32 %v3906, 7
      %v3908 = vsub.s32 %v3905, %v3907
      %v3909 = vrot.slane %v3503, %v3908
      %v3911 = vunpack.c.l.s4 1983009808
      %v3912 = vunpack.c.0.s8 %v3911
      %v3913 = vlaneseq
      %v3914 = vshrl.u32 %v3913, 7
      %v3915 = vsub.s32 %v3912, %v3914
      %v3916 = vrot.slane %v3902, %v3915
      %v3917 = vcombine.high %v3909, %v3909
      %v3918 = vcombine.high %v3916, %v3916
      %v3919 = vcombine.high %v3504, %v3504
      %v3921 = vunpack.c.l.s4 1983009808
      %v3922 = vunpack.c.0.s8 %v3921
      %v3923 = vlaneseq
      %v3924 = vshrl.u32 %v3923, 7
      %v3925 = vsub.s32 %v3922, %v3924
      %v3926 = vrot.slane %v3504, %v3925
      %v3928 = vunpack.c.l.s4 1983009808
      %v3929 = vunpack.c.0.s8 %v3928
      %v3930 = vlaneseq
      %v3931 = vshrl.u32 %v3930, 7
      %v3932 = vsub.s32 %v3929, %v3931
      %v3933 = vrot.slane %v3919, %v3932
      %v3934 = vcombine.high %v3926, %v3926
      %v3935 = vcombine.high %v3933, %v3933
      %v3936 = vcombine.high %v3505, %v3505
      %v3938 = vunpack.c.l.s4 1983009808
      %v3939 = vunpack.c.0.s8 %v3938
      %v3940 = vlaneseq
      %v3941 = vshrl.u32 %v3940, 7
      %v3942 = vsub.s32 %v3939, %v3941
      %v3943 = vrot.slane %v3505, %v3942
      %v3945 = vunpack.c.l.s4 1983009808
      %v3946 = vunpack.c.0.s8 %v3945
      %v3947 = vlaneseq
      %v3948 = vshrl.u32 %v3947, 7
      %v3949 = vsub.s32 %v3946, %v3948
      %v3950 = vrot.slane %v3936, %v3949
      %v3951 = vcombine.high %v3943, %v3943
      %v3952 = vcombine.high %v3950, %v3950
      %v3953 = vcombine.high %v3506, %v3506
      %v3955 = vunpack.c.l.s4 1983009808
      %v3956 = vunpack.c.0.s8 %v3955
      %v3957 = vlaneseq
      %v3958 = vshrl.u32 %v3957, 7
      %v3959 = vsub.s32 %v3956, %v3958
      %v3960 = vrot.slane %v3506, %v3959
      %v3962 = vunpack.c.l.s4 1983009808
      %v3963 = vunpack.c.0.s8 %v3962
      %v3964 = vlaneseq
      %v3965 = vshrl.u32 %v3964, 7
      %v3966 = vsub.s32 %v3963, %v3965
      %v3967 = vrot.slane %v3953, %v3966
      %v3968 = vcombine.high %v3960, %v3960
      %v3969 = vcombine.high %v3967, %v3967
      %v3970 = vcombine.high %v3507, %v3507
      %v3972 = vunpack.c.l.s4 1983009808
      %v3973 = vunpack.c.0.s8 %v3972
      %v3974 = vlaneseq
      %v3975 = vshrl.u32 %v3974, 7
      %v3976 = vsub.s32 %v3973, %v3975
      %v3977 = vrot.slane %v3507, %v3976
      %v3979 = vunpack.c.l.s4 1983009808
      %v3980 = vunpack.c.0.s8 %v3979
      %v3981 = vlaneseq
      %v3982 = vshrl.u32 %v3981, 7
      %v3983 = vsub.s32 %v3980, %v3982
      %v3984 = vrot.slane %v3970, %v3983
      %v3985 = vcombine.high %v3977, %v3977
      %v3986 = vcombine.high %v3984, %v3984
      %v3987 = vcombine.high %v3508, %v3508
      %v3989 = vunpack.c.l.s4 1983009808
      %v3990 = vunpack.c.0.s8 %v3989
      %v3991 = vlaneseq
      %v3992 = vshrl.u32 %v3991, 7
      %v3993 = vsub.s32 %v3990, %v3992
      %v3994 = vrot.slane %v3508, %v3993
      %v3996 = vunpack.c.l.s4 1983009808
      %v3997 = vunpack.c.0.s8 %v3996
      %v3998 = vlaneseq
      %v3999 = vshrl.u32 %v3998, 7
      %v4000 = vsub.s32 %v3997, %v3999
      %v4001 = vrot.slane %v3987, %v4000
      %v4002 = vcombine.high %v3994, %v3994
      %v4003 = vcombine.high %v4001, %v4001
      %v4004 = vcombine.high %v3509, %v3509
      %v4006 = vunpack.c.l.s4 1983009808
      %v4007 = vunpack.c.0.s8 %v4006
      %v4008 = vlaneseq
      %v4009 = vshrl.u32 %v4008, 7
      %v4010 = vsub.s32 %v4007, %v4009
      %v4011 = vrot.slane %v3509, %v4010
      %v4013 = vunpack.c.l.s4 1983009808
      %v4014 = vunpack.c.0.s8 %v4013
      %v4015 = vlaneseq
      %v4016 = vshrl.u32 %v4015, 7
      %v4017 = vsub.s32 %v4014, %v4016
      %v4018 = vrot.slane %v4004, %v4017
      %v4019 = vcombine.high %v4011, %v4011
      %v4020 = vcombine.high %v4018, %v4018
      %v4021 = vcombine.high %v3510, %v3510
      %v4023 = vunpack.c.l.s4 1983009808
      %v4024 = vunpack.c.0.s8 %v4023
      %v4025 = vlaneseq
      %v4026 = vshrl.u32 %v4025, 7
      %v4027 = vsub.s32 %v4024, %v4026
      %v4028 = vrot.slane %v3510, %v4027
      %v4030 = vunpack.c.l.s4 1983009808
      %v4031 = vunpack.c.0.s8 %v4030
      %v4032 = vlaneseq
      %v4033 = vshrl.u32 %v4032, 7
      %v4034 = vsub.s32 %v4031, %v4033
      %v4035 = vrot.slane %v4021, %v4034
      %v4036 = vcombine.high %v4028, %v4028
      %v4037 = vcombine.high %v4035, %v4035
      %v4038 = vcombine.high %v3511, %v3511
      %v4040 = vunpack.c.l.s4 1983009808
      %v4041 = vunpack.c.0.s8 %v4040
      %v4042 = vlaneseq
      %v4043 = vshrl.u32 %v4042, 7
      %v4044 = vsub.s32 %v4041, %v4043
      %v4045 = vrot.slane %v3511, %v4044
      %v4047 = vunpack.c.l.s4 1983009808
      %v4048 = vunpack.c.0.s8 %v4047
      %v4049 = vlaneseq
      %v4050 = vshrl.u32 %v4049, 7
      %v4051 = vsub.s32 %v4048, %v4050
      %v4052 = vrot.slane %v4038, %v4051
      %v4053 = vcombine.high %v4045, %v4045
      %v4054 = vcombine.high %v4052, %v4052
      %v4055 = vcombine.high %v3512, %v3512
      %v4057 = vunpack.c.l.s4 1983009808
      %v4058 = vunpack.c.0.s8 %v4057
      %v4059 = vlaneseq
      %v4060 = vshrl.u32 %v4059, 7
      %v4061 = vsub.s32 %v4058, %v4060
      %v4062 = vrot.slane %v3512, %v4061
      %v4064 = vunpack.c.l.s4 1983009808
      %v4065 = vunpack.c.0.s8 %v4064
      %v4066 = vlaneseq
      %v4067 = vshrl.u32 %v4066, 7
      %v4068 = vsub.s32 %v4065, %v4067
      %v4069 = vrot.slane %v4055, %v4068
      %v4070 = vcombine.high %v4062, %v4062
      %v4071 = vcombine.high %v4069, %v4069
      %v4072 = vcombine.high %v3513, %v3513
      %v4074 = vunpack.c.l.s4 1983009808
      %v4075 = vunpack.c.0.s8 %v4074
      %v4076 = vlaneseq
      %v4077 = vshrl.u32 %v4076, 7
      %v4078 = vsub.s32 %v4075, %v4077
      %v4079 = vrot.slane %v3513, %v4078
      %v4081 = vunpack.c.l.s4 1983009808
      %v4082 = vunpack.c.0.s8 %v4081
      %v4083 = vlaneseq
      %v4084 = vshrl.u32 %v4083, 7
      %v4085 = vsub.s32 %v4082, %v4084
      %v4086 = vrot.slane %v4072, %v4085
      %v4087 = vcombine.high %v4079, %v4079
      %v4088 = vcombine.high %v4086, %v4086
      %v4090 = vunpack.c.l.s4 1983009808
      %v4091 = vunpack.c.0.s8 %v4090
      %v4092 = vlaneseq
      %v4093 = vshrl.u32 %v4092, 7
      %v4094 = vsub.s32 %v4091, %v4093
      %v4095 = vrot.slane %v3514, %v4094
      %v4096 = vcombine.high %v4095, %v4095
      %v4097 = vcombine.low %v3688, %v3696
      %v4098 = vcombine.low %v3695, %v3697
      %v4100 = vunpack.c.l.s4 1983009808
      %v4101 = vunpack.c.0.s8 %v4100
      %v4102 = vlaneseq
      %v4103 = vshrl.u32 %v4102, 7
      %v4104 = vsub.s32 %v4101, %v4103
      %v4105 = vrot.slane %v4097, %v4104
      %v4107 = vunpack.c.l.s4 1983009808
      %v4108 = vunpack.c.0.s8 %v4107
      %v4109 = vlaneseq
      %v4110 = vshrl.u32 %v4109, 7
      %v4111 = vsub.s32 %v4108, %v4110
      %v4112 = vrot.slane %v4098, %v4111
      %v4113 = vcombine.low %v4105, %v4112
      %v4114 = vcombine.low %v3705, %v3713
      %v4116 = vunpack.c.l.s4 1983009808
      %v4117 = vunpack.c.0.s8 %v4116
      %v4118 = vlaneseq
      %v4119 = vshrl.u32 %v4118, 7
      %v4120 = vsub.s32 %v4117, %v4119
      %v4121 = vrot.slane %v4114, %v4120
      %v4123 = vunpack.c.l.s4 1983009808
      %v4124 = vunpack.c.0.s8 %v4123
      %v4125 = vlaneseq
      %v4126 = vshrl.u32 %v4125, 7
      %v4127 = vsub.s32 %v4124, %v4126
      %v4128 = vrot.slane %v3712, %v4127
      %v4129 = vcombine.low %v4121, %v4128
      %v4130 = vcombine.low %v3714, %v3722
      %v4131 = vcombine.low %v3730, %v3729
      %v4133 = vunpack.c.l.s4 1983009808
      %v4134 = vunpack.c.0.s8 %v4133
      %v4135 = vlaneseq
      %v4136 = vshrl.u32 %v4135, 7
      %v4137 = vsub.s32 %v4134, %v4136
      %v4138 = vrot.slane %v4130, %v4137
      %v4140 = vunpack.c.l.s4 1983009808
      %v4141 = vunpack.c.0.s8 %v4140
      %v4142 = vlaneseq
      %v4143 = vshrl.u32 %v4142, 7
      %v4144 = vsub.s32 %v4141, %v4143
      %v4145 = vrot.slane %v4131, %v4144
      %v4146 = vcombine.low %v4138, %v4145
      %v4147 = vcombine.low %v3731, %v3739
      %v4149 = vunpack.c.l.s4 1983009808
      %v4150 = vunpack.c.0.s8 %v4149
      %v4151 = vlaneseq
      %v4152 = vshrl.u32 %v4151, 7
      %v4153 = vsub.s32 %v4150, %v4152
      %v4154 = vrot.slane %v4147, %v4153
      %v4156 = vunpack.c.l.s4 1983009808
      %v4157 = vunpack.c.0.s8 %v4156
      %v4158 = vlaneseq
      %v4159 = vshrl.u32 %v4158, 7
      %v4160 = vsub.s32 %v4157, %v4159
      %v4161 = vrot.slane %v3747, %v4160
      %v4162 = vcombine.low %v4154, %v4161
      %v4163 = vcombine.low %v3746, %v3748
      %v4164 = vcombine.low %v3756, %v3764
      %v4166 = vunpack.c.l.s4 1983009808
      %v4167 = vunpack.c.0.s8 %v4166
      %v4168 = vlaneseq
      %v4169 = vshrl.u32 %v4168, 7
      %v4170 = vsub.s32 %v4167, %v4169
      %v4171 = vrot.slane %v4163, %v4170
      %v4173 = vunpack.c.l.s4 1983009808
      %v4174 = vunpack.c.0.s8 %v4173
      %v4175 = vlaneseq
      %v4176 = vshrl.u32 %v4175, 7
      %v4177 = vsub.s32 %v4174, %v4176
      %v4178 = vrot.slane %v4164, %v4177
      %v4179 = vcombine.low %v4171, %v4178
      %v4180 = vcombine.low %v3763, %v3765
      %v4182 = vunpack.c.l.s4 1983009808
      %v4183 = vunpack.c.0.s8 %v4182
      %v4184 = vlaneseq
      %v4185 = vshrl.u32 %v4184, 7
      %v4186 = vsub.s32 %v4183, %v4185
      %v4187 = vrot.slane %v4180, %v4186
      %v4189 = vunpack.c.l.s4 1983009808
      %v4190 = vunpack.c.0.s8 %v4189
      %v4191 = vlaneseq
      %v4192 = vshrl.u32 %v4191, 7
      %v4193 = vsub.s32 %v4190, %v4192
      %v4194 = vrot.slane %v3773, %v4193
      %v4195 = vcombine.low %v4187, %v4194
      %v4196 = vcombine.low %v3781, %v3780
      %v4197 = vcombine.low %v3782, %v3790
      %v4199 = vunpack.c.l.s4 1983009808
      %v4200 = vunpack.c.0.s8 %v4199
      %v4201 = vlaneseq
      %v4202 = vshrl.u32 %v4201, 7
      %v4203 = vsub.s32 %v4200, %v4202
      %v4204 = vrot.slane %v4196, %v4203
      %v4206 = vunpack.c.l.s4 1983009808
      %v4207 = vunpack.c.0.s8 %v4206
      %v4208 = vlaneseq
      %v4209 = vshrl.u32 %v4208, 7
      %v4210 = vsub.s32 %v4207, %v4209
      %v4211 = vrot.slane %v4197, %v4210
      %v4212 = vcombine.low %v4204, %v4211
      %v4213 = vcombine.low %v3798, %v3797
      %v4215 = vunpack.c.l.s4 1983009808
      %v4216 = vunpack.c.0.s8 %v4215
      %v4217 = vlaneseq
      %v4218 = vshrl.u32 %v4217, 7
      %v4219 = vsub.s32 %v4216, %v4218
      %v4220 = vrot.slane %v4213, %v4219
      %v4222 = vunpack.c.l.s4 1983009808
      %v4223 = vunpack.c.0.s8 %v4222
      %v4224 = vlaneseq
      %v4225 = vshrl.u32 %v4224, 7
      %v4226 = vsub.s32 %v4223, %v4225
      %v4227 = vrot.slane %v3799, %v4226
      %v4228 = vcombine.low %v4220, %v4227
      %v4229 = vcombine.low %v3807, %v3815
      %v4230 = vcombine.low %v3814, %v3816
      %v4232 = vunpack.c.l.s4 1983009808
      %v4233 = vunpack.c.0.s8 %v4232
      %v4234 = vlaneseq
      %v4235 = vshrl.u32 %v4234, 7
      %v4236 = vsub.s32 %v4233, %v4235
      %v4237 = vrot.slane %v4229, %v4236
      %v4239 = vunpack.c.l.s4 1983009808
      %v4240 = vunpack.c.0.s8 %v4239
      %v4241 = vlaneseq
      %v4242 = vshrl.u32 %v4241, 7
      %v4243 = vsub.s32 %v4240, %v4242
      %v4244 = vrot.slane %v4230, %v4243
      %v4245 = vcombine.low %v4237, %v4244
      %v4246 = vcombine.low %v3824, %v3832
      %v4248 = vunpack.c.l.s4 1983009808
      %v4249 = vunpack.c.0.s8 %v4248
      %v4250 = vlaneseq
      %v4251 = vshrl.u32 %v4250, 7
      %v4252 = vsub.s32 %v4249, %v4251
      %v4253 = vrot.slane %v4246, %v4252
      %v4255 = vunpack.c.l.s4 1983009808
      %v4256 = vunpack.c.0.s8 %v4255
      %v4257 = vlaneseq
      %v4258 = vshrl.u32 %v4257, 7
      %v4259 = vsub.s32 %v4256, %v4258
      %v4260 = vrot.slane %v3831, %v4259
      %v4261 = vcombine.low %v4253, %v4260
      %v4262 = vcombine.low %v3833, %v3841
      %v4263 = vcombine.low %v3849, %v3848
      %v4265 = vunpack.c.l.s4 1983009808
      %v4266 = vunpack.c.0.s8 %v4265
      %v4267 = vlaneseq
      %v4268 = vshrl.u32 %v4267, 7
      %v4269 = vsub.s32 %v4266, %v4268
      %v4270 = vrot.slane %v4262, %v4269
      %v4272 = vunpack.c.l.s4 1983009808
      %v4273 = vunpack.c.0.s8 %v4272
      %v4274 = vlaneseq
      %v4275 = vshrl.u32 %v4274, 7
      %v4276 = vsub.s32 %v4273, %v4275
      %v4277 = vrot.slane %v4263, %v4276
      %v4278 = vcombine.low %v4270, %v4277
      %v4279 = vcombine.low %v3850, %v3858
      %v4281 = vunpack.c.l.s4 1983009808
      %v4282 = vunpack.c.0.s8 %v4281
      %v4283 = vlaneseq
      %v4284 = vshrl.u32 %v4283, 7
      %v4285 = vsub.s32 %v4282, %v4284
      %v4286 = vrot.slane %v4279, %v4285
      %v4288 = vunpack.c.l.s4 1983009808
      %v4289 = vunpack.c.0.s8 %v4288
      %v4290 = vlaneseq
      %v4291 = vshrl.u32 %v4290, 7
      %v4292 = vsub.s32 %v4289, %v4291
      %v4293 = vrot.slane %v3866, %v4292
      %v4294 = vcombine.low %v4286, %v4293
      %v4295 = vcombine.low %v3865, %v3867
      %v4296 = vcombine.low %v3875, %v3883
      %v4298 = vunpack.c.l.s4 1983009808
      %v4299 = vunpack.c.0.s8 %v4298
      %v4300 = vlaneseq
      %v4301 = vshrl.u32 %v4300, 7
      %v4302 = vsub.s32 %v4299, %v4301
      %v4303 = vrot.slane %v4295, %v4302
      %v4305 = vunpack.c.l.s4 1983009808
      %v4306 = vunpack.c.0.s8 %v4305
      %v4307 = vlaneseq
      %v4308 = vshrl.u32 %v4307, 7
      %v4309 = vsub.s32 %v4306, %v4308
      %v4310 = vrot.slane %v4296, %v4309
      %v4311 = vcombine.low %v4303, %v4310
      %v4312 = vcombine.low %v3882, %v3884
      %v4314 = vunpack.c.l.s4 1983009808
      %v4315 = vunpack.c.0.s8 %v4314
      %v4316 = vlaneseq
      %v4317 = vshrl.u32 %v4316, 7
      %v4318 = vsub.s32 %v4315, %v4317
      %v4319 = vrot.slane %v4312, %v4318
      %v4321 = vunpack.c.l.s4 1983009808
      %v4322 = vunpack.c.0.s8 %v4321
      %v4323 = vlaneseq
      %v4324 = vshrl.u32 %v4323, 7
      %v4325 = vsub.s32 %v4322, %v4324
      %v4326 = vrot.slane %v3892, %v4325
      %v4327 = vcombine.low %v4319, %v4326
      %v4328 = vcombine.low %v3900, %v3899
      %v4329 = vcombine.low %v3901, %v3909
      %v4331 = vunpack.c.l.s4 1983009808
      %v4332 = vunpack.c.0.s8 %v4331
      %v4333 = vlaneseq
      %v4334 = vshrl.u32 %v4333, 7
      %v4335 = vsub.s32 %v4332, %v4334
      %v4336 = vrot.slane %v4328, %v4335
      %v4338 = vunpack.c.l.s4 1983009808
      %v4339 = vunpack.c.0.s8 %v4338
      %v4340 = vlaneseq
      %v4341 = vshrl.u32 %v4340, 7
      %v4342 = vsub.s32 %v4339, %v4341
      %v4343 = vrot.slane %v4329, %v4342
      %v4344 = vcombine.low %v4336, %v4343
      %v4345 = vcombine.low %v3917, %v3916
      %v4347 = vunpack.c.l.s4 1983009808
      %v4348 = vunpack.c.0.s8 %v4347
      %v4349 = vlaneseq
      %v4350 = vshrl.u32 %v4349, 7
      %v4351 = vsub.s32 %v4348, %v4350
      %v4352 = vrot.slane %v4345, %v4351
      %v4354 = vunpack.c.l.s4 1983009808
      %v4355 = vunpack.c.0.s8 %v4354
      %v4356 = vlaneseq
      %v4357 = vshrl.u32 %v4356, 7
      %v4358 = vsub.s32 %v4355, %v4357
      %v4359 = vrot.slane %v3918, %v4358
      %v4360 = vcombine.low %v4352, %v4359
      %v4361 = vcombine.low %v3926, %v3934
      %v4362 = vcombine.low %v3933, %v3935
      %v4364 = vunpack.c.l.s4 1983009808
      %v4365 = vunpack.c.0.s8 %v4364
      %v4366 = vlaneseq
      %v4367 = vshrl.u32 %v4366, 7
      %v4368 = vsub.s32 %v4365, %v4367
      %v4369 = vrot.slane %v4361, %v4368
      %v4371 = vunpack.c.l.s4 1983009808
      %v4372 = vunpack.c.0.s8 %v4371
      %v4373 = vlaneseq
      %v4374 = vshrl.u32 %v4373, 7
      %v4375 = vsub.s32 %v4372, %v4374
      %v4376 = vrot.slane %v4362, %v4375
      %v4377 = vcombine.low %v4369, %v4376
      %v4378 = vcombine.low %v3943, %v3951
      %v4380 = vunpack.c.l.s4 1983009808
      %v4381 = vunpack.c.0.s8 %v4380
      %v4382 = vlaneseq
      %v4383 = vshrl.u32 %v4382, 7
      %v4384 = vsub.s32 %v4381, %v4383
      %v4385 = vrot.slane %v4378, %v4384
      %v4387 = vunpack.c.l.s4 1983009808
      %v4388 = vunpack.c.0.s8 %v4387
      %v4389 = vlaneseq
      %v4390 = vshrl.u32 %v4389, 7
      %v4391 = vsub.s32 %v4388, %v4390
      %v4392 = vrot.slane %v3950, %v4391
      %v4393 = vcombine.low %v4385, %v4392
      %v4394 = vcombine.low %v3952, %v3960
      %v4395 = vcombine.low %v3968, %v3967
      %v4397 = vunpack.c.l.s4 1983009808
      %v4398 = vunpack.c.0.s8 %v4397
      %v4399 = vlaneseq
      %v4400 = vshrl.u32 %v4399, 7
      %v4401 = vsub.s32 %v4398, %v4400
      %v4402 = vrot.slane %v4394, %v4401
      %v4404 = vunpack.c.l.s4 1983009808
      %v4405 = vunpack.c.0.s8 %v4404
      %v4406 = vlaneseq
      %v4407 = vshrl.u32 %v4406, 7
      %v4408 = vsub.s32 %v4405, %v4407
      %v4409 = vrot.slane %v4395, %v4408
      %v4410 = vcombine.low %v4402, %v4409
      %v4411 = vcombine.low %v3969, %v3977
      %v4413 = vunpack.c.l.s4 1983009808
      %v4414 = vunpack.c.0.s8 %v4413
      %v4415 = vlaneseq
      %v4416 = vshrl.u32 %v4415, 7
      %v4417 = vsub.s32 %v4414, %v4416
      %v4418 = vrot.slane %v4411, %v4417
      %v4420 = vunpack.c.l.s4 1983009808
      %v4421 = vunpack.c.0.s8 %v4420
      %v4422 = vlaneseq
      %v4423 = vshrl.u32 %v4422, 7
      %v4424 = vsub.s32 %v4421, %v4423
      %v4425 = vrot.slane %v3985, %v4424
      %v4426 = vcombine.low %v4418, %v4425
      %v4427 = vcombine.low %v3984, %v3986
      %v4428 = vcombine.low %v3994, %v4002
      %v4430 = vunpack.c.l.s4 1983009808
      %v4431 = vunpack.c.0.s8 %v4430
      %v4432 = vlaneseq
      %v4433 = vshrl.u32 %v4432, 7
      %v4434 = vsub.s32 %v4431, %v4433
      %v4435 = vrot.slane %v4427, %v4434
      %v4437 = vunpack.c.l.s4 1983009808
      %v4438 = vunpack.c.0.s8 %v4437
      %v4439 = vlaneseq
      %v4440 = vshrl.u32 %v4439, 7
      %v4441 = vsub.s32 %v4438, %v4440
      %v4442 = vrot.slane %v4428, %v4441
      %v4443 = vcombine.low %v4435, %v4442
      %v4444 = vcombine.low %v4001, %v4003
      %v4446 = vunpack.c.l.s4 1983009808
      %v4447 = vunpack.c.0.s8 %v4446
      %v4448 = vlaneseq
      %v4449 = vshrl.u32 %v4448, 7
      %v4450 = vsub.s32 %v4447, %v4449
      %v4451 = vrot.slane %v4444, %v4450
      %v4453 = vunpack.c.l.s4 1983009808
      %v4454 = vunpack.c.0.s8 %v4453
      %v4455 = vlaneseq
      %v4456 = vshrl.u32 %v4455, 7
      %v4457 = vsub.s32 %v4454, %v4456
      %v4458 = vrot.slane %v4011, %v4457
      %v4459 = vcombine.low %v4451, %v4458
      %v4460 = vcombine.low %v4019, %v4018
      %v4461 = vcombine.low %v4020, %v4028
      %v4463 = vunpack.c.l.s4 1983009808
      %v4464 = vunpack.c.0.s8 %v4463
      %v4465 = vlaneseq
      %v4466 = vshrl.u32 %v4465, 7
      %v4467 = vsub.s32 %v4464, %v4466
      %v4468 = vrot.slane %v4460, %v4467
      %v4470 = vunpack.c.l.s4 1983009808
      %v4471 = vunpack.c.0.s8 %v4470
      %v4472 = vlaneseq
      %v4473 = vshrl.u32 %v4472, 7
      %v4474 = vsub.s32 %v4471, %v4473
      %v4475 = vrot.slane %v4461, %v4474
      %v4476 = vcombine.low %v4468, %v4475
      %v4477 = vcombine.low %v4036, %v4035
      %v4479 = vunpack.c.l.s4 1983009808
      %v4480 = vunpack.c.0.s8 %v4479
      %v4481 = vlaneseq
      %v4482 = vshrl.u32 %v4481, 7
      %v4483 = vsub.s32 %v4480, %v4482
      %v4484 = vrot.slane %v4477, %v4483
      %v4486 = vunpack.c.l.s4 1983009808
      %v4487 = vunpack.c.0.s8 %v4486
      %v4488 = vlaneseq
      %v4489 = vshrl.u32 %v4488, 7
      %v4490 = vsub.s32 %v4487, %v4489
      %v4491 = vrot.slane %v4037, %v4490
      %v4492 = vcombine.low %v4484, %v4491
      %v4493 = vcombine.low %v4045, %v4053
      %v4494 = vcombine.low %v4052, %v4054
      %v4496 = vunpack.c.l.s4 1983009808
      %v4497 = vunpack.c.0.s8 %v4496
      %v4498 = vlaneseq
      %v4499 = vshrl.u32 %v4498, 7
      %v4500 = vsub.s32 %v4497, %v4499
      %v4501 = vrot.slane %v4493, %v4500
      %v4503 = vunpack.c.l.s4 1983009808
      %v4504 = vunpack.c.0.s8 %v4503
      %v4505 = vlaneseq
      %v4506 = vshrl.u32 %v4505, 7
      %v4507 = vsub.s32 %v4504, %v4506
      %v4508 = vrot.slane %v4494, %v4507
      %v4509 = vcombine.low %v4501, %v4508
      %v4510 = vcombine.low %v4062, %v4070
      %v4512 = vunpack.c.l.s4 1983009808
      %v4513 = vunpack.c.0.s8 %v4512
      %v4514 = vlaneseq
      %v4515 = vshrl.u32 %v4514, 7
      %v4516 = vsub.s32 %v4513, %v4515
      %v4517 = vrot.slane %v4510, %v4516
      %v4519 = vunpack.c.l.s4 1983009808
      %v4520 = vunpack.c.0.s8 %v4519
      %v4521 = vlaneseq
      %v4522 = vshrl.u32 %v4521, 7
      %v4523 = vsub.s32 %v4520, %v4522
      %v4524 = vrot.slane %v4069, %v4523
      %v4525 = vcombine.low %v4517, %v4524
      %v4526 = vcombine.low %v4071, %v4079
      %v4527 = vcombine.low %v4087, %v4086
      %v4529 = vunpack.c.l.s4 1983009808
      %v4530 = vunpack.c.0.s8 %v4529
      %v4531 = vlaneseq
      %v4532 = vshrl.u32 %v4531, 7
      %v4533 = vsub.s32 %v4530, %v4532
      %v4534 = vrot.slane %v4526, %v4533
      %v4536 = vunpack.c.l.s4 1983009808
      %v4537 = vunpack.c.0.s8 %v4536
      %v4538 = vlaneseq
      %v4539 = vshrl.u32 %v4538, 7
      %v4540 = vsub.s32 %v4537, %v4539
      %v4541 = vrot.slane %v4527, %v4540
      %v4542 = vcombine.low %v4534, %v4541
      %v4543 = vcombine.low %v4088, %v4095
      %v4545 = vunpack.c.l.s4 1983009808
      %v4546 = vunpack.c.0.s8 %v4545
      %v4547 = vlaneseq
      %v4548 = vshrl.u32 %v4547, 7
      %v4549 = vsub.s32 %v4546, %v4548
      %v4550 = vrot.slane %v4543, %v4549
      %v4552 = vunpack.c.l.s4 1983009808
      %v4553 = vunpack.c.0.s8 %v4552
      %v4554 = vlaneseq
      %v4555 = vshrl.u32 %v4554, 7
      %v4556 = vsub.s32 %v4553, %v4555
      %v4557 = vrot.slane %v4096, %v4556
      %v4558 = vcombine.low %v4550, %v4557
      %v4587 = vpack.c.bf16 %v4129, %v4113
      %v4588 = vpack.c.bf16 %v4162, %v4146
      %v4589 = vpack.c.bf16 %v4195, %v4179
      %v4590 = vpack.c.bf16 %v4228, %v4212
      %v4591 = vpack.c.bf16 %v4261, %v4245
      %v4592 = vpack.c.bf16 %v4294, %v4278
      %v4593 = vpack.c.bf16 %v4327, %v4311
      %v4594 = vpack.c.bf16 %v4360, %v4344
      %v4595 = vpack.c.bf16 %v4393, %v4377
      %v4596 = vpack.c.bf16 %v4426, %v4410
      %v4597 = vpack.c.bf16 %v4459, %v4443
      %v4598 = vpack.c.bf16 %v4492, %v4476
      %v4599 = vpack.c.bf16 %v4525, %v4509
      %v4600 = vpack.c.bf16 %v4558, %v4542
      %v4615 = vunpack.c.l.b16 %v4587
      %v4616 = vunpack.c.h.b16 %v4587
      %v4617 = vunpack.c.l.b16 %v4588
      %v4618 = vunpack.c.h.b16 %v4588
      %v4619 = vunpack.c.l.b16 %v4589
      %v4620 = vunpack.c.h.b16 %v4589
      %v4621 = vunpack.c.l.b16 %v4590
      %v4622 = vunpack.c.h.b16 %v4590
      %v4623 = vunpack.c.l.b16 %v4591
      %v4624 = vunpack.c.h.b16 %v4591
      %v4625 = vunpack.c.l.b16 %v4592
      %v4626 = vunpack.c.h.b16 %v4592
      %v4627 = vunpack.c.l.b16 %v4593
      %v4628 = vunpack.c.h.b16 %v4593
      %v4629 = vunpack.c.l.b16 %v4594
      %v4630 = vunpack.c.h.b16 %v4594
      %v4631 = vunpack.c.l.b16 %v4595
      %v4632 = vunpack.c.h.b16 %v4595
      %v4633 = vunpack.c.l.b16 %v4596
      %v4634 = vunpack.c.h.b16 %v4596
      %v4635 = vunpack.c.l.b16 %v4597
      %v4636 = vunpack.c.h.b16 %v4597
      %v4637 = vunpack.c.l.b16 %v4598
      %v4638 = vunpack.c.h.b16 %v4598
      %v4639 = vunpack.c.l.b16 %v4599
      %v4640 = vunpack.c.h.b16 %v4599
      %v4641 = vunpack.c.l.b16 %v4600
      %v4642 = vunpack.c.h.b16 %v4600
      %v4643 = vpack.c.b16 %v4615, %v4615
      %v4644 = vpack.c.b16 %v4616, %v4616
      %v4645 = vpack.c.b16 %v4617, %v4617
      %v4646 = vpack.c.b16 %v4618, %v4618
      %v4647 = vpack.c.b16 %v4619, %v4619
      %v4648 = vpack.c.b16 %v4620, %v4620
      %v4649 = vpack.c.b16 %v4621, %v4621
      %v4650 = vpack.c.b16 %v4622, %v4622
      %v4651 = vpack.c.b16 %v4623, %v4623
      %v4652 = vpack.c.b16 %v4624, %v4624
      %v4653 = vpack.c.b16 %v4625, %v4625
      %v4654 = vpack.c.b16 %v4626, %v4626
      %v4655 = vpack.c.b16 %v4627, %v4627
      %v4656 = vpack.c.b16 %v4628, %v4628
      %v4657 = vpack.c.b16 %v4629, %v4629
      %v4658 = vpack.c.b16 %v4630, %v4630
      %v4659 = vpack.c.b16 %v4631, %v4631
      %v4660 = vpack.c.b16 %v4632, %v4632
      %v4661 = vpack.c.b16 %v4633, %v4633
      %v4662 = vpack.c.b16 %v4634, %v4634
      %v4663 = vpack.c.b16 %v4635, %v4635
      %v4664 = vpack.c.b16 %v4636, %v4636
      %v4665 = vpack.c.b16 %v4637, %v4637
      %v4666 = vpack.c.b16 %v4638, %v4638
      %v4667 = vpack.c.b16 %v4639, %v4639
      %v4668 = vpack.c.b16 %v4640, %v4640
      %v4669 = vpack.c.b16 %v4641, %v4641
      %v4670 = vpack.c.b16 %v4642, %v4642
      %4699 = vst.msk [vmem:[%s204] sm:$0xf] %vm3563, %v4643
      %vm4700 = vcmask 256000
      %4701 = vst.msk [vmem:[%s204 + $0x4] sm:$0x7] %vm4700, %v4644
      %4702 = vst.msk [vmem:[%s204 + $0x8] sm:$0xf] %vm3563, %v4645
      %4703 = vst.msk [vmem:[%s204 + $0xc] sm:$0x7] %vm4700, %v4646
      %4704 = vst.msk [vmem:[%s204 + $0x10] sm:$0xf] %vm3563, %v4647
      %4705 = vst.msk [vmem:[%s204 + $0x14] sm:$0x7] %vm4700, %v4648
      %4706 = vst.msk [vmem:[%s204 + $0x18] sm:$0xf] %vm3563, %v4649
      %4707 = vst.msk [vmem:[%s204 + $0x1c] sm:$0x7] %vm4700, %v4650
      %4708 = vst.msk [vmem:[%s204 + $0x20] sm:$0xf] %vm3563, %v4651
      %4709 = vst.msk [vmem:[%s204 + $0x24] sm:$0x7] %vm4700, %v4652
      %4710 = vst.msk [vmem:[%s204 + $0x28] sm:$0xf] %vm3563, %v4653
      %4711 = vst.msk [vmem:[%s204 + $0x2c] sm:$0x7] %vm4700, %v4654
      %4712 = vst.msk [vmem:[%s204 + $0x30] sm:$0xf] %vm3563, %v4655
      %4713 = vst.msk [vmem:[%s204 + $0x34] sm:$0x7] %vm4700, %v4656
      %4714 = vst.msk [vmem:[%s204 + $0x38] sm:$0xf] %vm3563, %v4657
      %4715 = vst.msk [vmem:[%s204 + $0x3c] sm:$0x7] %vm4700, %v4658
      %4716 = vst.msk [vmem:[%s204 + $0x40] sm:$0xf] %vm3563, %v4659
      %4717 = vst.msk [vmem:[%s204 + $0x44] sm:$0x7] %vm4700, %v4660
      %4718 = vst.msk [vmem:[%s204 + $0x48] sm:$0xf] %vm3563, %v4661
      %4719 = vst.msk [vmem:[%s204 + $0x4c] sm:$0x7] %vm4700, %v4662
      %4720 = vst.msk [vmem:[%s204 + $0x50] sm:$0xf] %vm3563, %v4663
      %4721 = vst.msk [vmem:[%s204 + $0x54] sm:$0x7] %vm4700, %v4664
      %4722 = vst.msk [vmem:[%s204 + $0x58] sm:$0xf] %vm3563, %v4665
      %4723 = vst.msk [vmem:[%s204 + $0x5c] sm:$0x7] %vm4700, %v4666
      %4724 = vst.msk [vmem:[%s204 + $0x60] sm:$0xf] %vm3563, %v4667
      %4725 = vst.msk [vmem:[%s204 + $0x64] sm:$0x7] %vm4700, %v4668
      %4726 = vst.msk [vmem:[%s204 + $0x68] sm:$0xf] %vm3563, %v4669
      %4727 = vst.msk [vmem:[%s204 + $0x6c] sm:$0x7] %vm4700, %v4670
      %p4728 = scmp.lt.s32.totalorder %s16, 1
      %s4729 = scalar_select %p4728, %s16, 1
      %s4730 = smul.addr %s4729, 28
      %s4731 = smul.addr %s4730, 4
      %s4732 = scalar_lea.vmem %s3, %s4731
      %p4733 = scmp.lt.s32.totalorder %s16, 1
      %s4734 = scalar_select %p4733, %s16, 1
      %s4735 = smul.addr %s4734, 2
      %s4736 = scalar_lea.vmem %s4, %s4735
      // Predicated region
      $region33: #{basic_critic_forward.4} parent=31 // pred_check
        %p4737 = pneg %p102
      $region34: #{basic_critic_forward.4} parent=31 // pred_check_branch
        %4739 = sbr.rel (%p4737) target = $region36
      $region35: #{basic_critic_forward.4} parent=31 // pred_region
        _
      $region36: #{basic_critic_forward.4} parent=31 // pred_fallthru
        _
      // Predicated region
      $region37: #{basic_critic_forward.4} parent=31 // pred_check
        %p4740 = pneg %p128
      $region38: #{basic_critic_forward.4} parent=31 // pred_check_branch
        %4742 = sbr.rel (%p4740) target = $region40
      $region39: #{basic_critic_forward.4} parent=31 // pred_region
        _
      $region40: #{basic_critic_forward.4} parent=31 // pred_fallthru
        _
    $region32: #{basic_critic_forward.4} parent=5 // pred_fallthru
      _
    %p4743 = scmp.le.s32.totalorder 2, %s11
    // Predicated region
    $region41: #{basic_critic_forward.4} parent=5 // pred_check
      %p4744 = pneg %p4743
    $region42: #{basic_critic_forward.4} parent=5 // pred_check_branch
      %4746 = sbr.rel (%p4744) target = $region44
    $region43: #{basic_critic_forward.4} parent=5 // pred_region
      %s4747 = ssub.s32 %s11, 2
      // Predicated region
      $region45: #{basic_critic_forward.4} parent=43 // pred_check
        %p4748 = pneg %p108
      $region46: #{basic_critic_forward.4} parent=43 // pred_check_branch
        %4750 = sbr.rel (%p4748) target = $region48
      $region47: #{basic_critic_forward.4} parent=43 // pred_region
        %p4751 = scmp.lt.s32.totalorder %s17, 1
        %s4752 = scalar_select %p4751, %s17, 1
        %s4753 = smul.addr %s4752, 28
        %s4754 = smul.addr %s4753, 4
        %s4755 = scalar_lea.vmem %s3, %s4754
      $region48: #{basic_critic_forward.4} parent=43 // pred_fallthru
        _
      // Predicated region
      $region49: #{basic_critic_forward.4} parent=43 // pred_check
        %p4756 = pneg %p134
      $region50: #{basic_critic_forward.4} parent=43 // pred_check_branch
        %4758 = sbr.rel (%p4756) target = $region52
      $region51: #{basic_critic_forward.4} parent=43 // pred_region
        %p4759 = scmp.lt.s32.totalorder %s17, 1
        %s4760 = scalar_select %p4759, %s17, 1
        %s4761 = smul.addr %s4760, 2
        %s4762 = scalar_lea.vmem %s4, %s4761
      $region52: #{basic_critic_forward.4} parent=43 // pred_fallthru
        _
    $region44: #{basic_critic_forward.4} parent=5 // pred_fallthru
      _
  $region6: #{basic_critic_forward.4} parent=0 // loop_footer
    %s15 = sadd.s32 1, %s11
  $region7: #{basic_critic_forward.4} parent=0 // loop_footer_branch
    %10 = sbr.rel target = $region3
  $region8: #{basic_critic_forward.4} parent=0 // loop_exit
    _

</llo_original>
